<compile_context>
chip_gen: v5e
topology: v5e:2x2
jax: 0.10.0
libtpu: 0.0.40
codegen_flags: <defaults>
</compile_context>

<pallas_src>
import jax
import jax.numpy as jnp
from jax.experimental import pallas as pl
from jax.experimental.pallas import tpu as pltpu


# ---------------------------------------------------------------------------
# Pallas kernels
# ---------------------------------------------------------------------------
def _conv_matmul_kernel(x_ref, w_ref, b_ref, o_ref):
    """Fused (im2col-matrix) matmul + folded-BN bias + ReLU, bf16 output."""
    y = jnp.dot(x_ref[...], w_ref[...], preferred_element_type=jnp.float32)
    y = jnp.maximum(y + b_ref[...], 0.0)          # f32 epilogue (v5e-friendly)
    o_ref[...] = y.astype(o_ref.dtype)            # single cast at the store


def _conv3_pool_fc_kernel(x_ref, w_ref, b_ref, pool_ref, wc_ref, bc_ref, o_ref):
    """conv3+BN+ReLU, then global-mean AvgPool (via a tiny selection matmul)
    and the final Linear(256->128), all in one kernel."""
    y = jnp.dot(x_ref[...], w_ref[...], preferred_element_type=jnp.float32)
    y = jnp.maximum(y + b_ref[...], 0.0)                        # (B*27, 256) f32
    pooled = jnp.dot(pool_ref[...], y,
                     preferred_element_type=jnp.float32)        # (B, 256) f32
    out = jnp.dot(pooled.astype(wc_ref.dtype), wc_ref[...],
                  preferred_element_type=jnp.float32) + bc_ref[...]
    o_ref[...] = out.astype(o_ref.dtype)


# ---------------------------------------------------------------------------
# pallas_call wrappers
# ---------------------------------------------------------------------------
def _pick_tm(M, K, elem_bytes=2, tile_budget=4 << 20):
    """Largest exact divisor of M giving an EVEN block count (v7x megacore
    balance) with bf16-tile-aligned rows (mult. of 16) and a VMEM-sized tile.
    Falls back to a single full-M block (fewest steps: best for v5e/v6e)."""
    for nblk in (2, 4, 8, 16, 32):
        if M % nblk:
            continue
        tm = M // nblk
        if tm % 16 == 0 and tm * K * elem_bytes <= tile_budget:
            return tm
    return M


def conv_matmul(x, w, bias):
    """out = relu(x @ w + bias) in bf16.  x:(M,K) bf16, w:(K,N) bf16,
    bias:(1,N) f32.  K and N are never tiled; M split only by exact divisors."""
    M, K = x.shape
    K2, N = w.shape
    assert K == K2
    tm = _pick_tm(M, K)
    return pl.pallas_call(
        _conv_matmul_kernel,
        out_shape=jax.ShapeDtypeStruct((M, N), jnp.bfloat16),
        grid=(M // tm,),
        in_specs=[
            pl.BlockSpec((tm, K), lambda i: (i, 0)),   # full-K LHS tile
            pl.BlockSpec((K, N), lambda i: (0, 0)),    # whole RHS, resident
            pl.BlockSpec((1, N), lambda i: (0, 0)),    # folded BN bias
        ],
        out_specs=pl.BlockSpec((tm, N), lambda i: (i, 0)),
        compiler_params=pltpu.CompilerParams(
            dimension_semantics=("parallel",)),
    )(x, w, bias)


def conv3_pool_fc(x, w, bias, pool, wc, bc):
    """Single-step fused conv3 matmul + BN + ReLU + AvgPool + Linear."""
    M, K = x.shape
    K2, N = w.shape
    assert K == K2
    B = pool.shape[0]
    Nc = wc.shape[1]
    return pl.pallas_call(
        _conv3_pool_fc_kernel,
        out_shape=jax.ShapeDtypeStruct((B, Nc), jnp.float32),
        grid=(1,),
        in_specs=[
            pl.BlockSpec((M, K), lambda i: (0, 0)),
            pl.BlockSpec((K, N), lambda i: (0, 0)),
            pl.BlockSpec((1, N), lambda i: (0, 0)),
            pl.BlockSpec((B, M), lambda i: (0, 0)),     # averaging matrix
            pl.BlockSpec((N, Nc), lambda i: (0, 0)),    # classifier weight
            pl.BlockSpec((1, Nc), lambda i: (0, 0)),    # classifier bias
        ],
        out_specs=pl.BlockSpec((B, Nc), lambda i: (0, 0)),
        compiler_params=pltpu.CompilerParams(
            dimension_semantics=("arbitrary",)),
    )(x, w, bias, pool, wc, bc)


# ---------------------------------------------------------------------------
# Channels-last im2col glue (XLA): patch-major, C-minor -> plain flatten.
# ---------------------------------------------------------------------------
def _im2col(x, k=3, stride=2, pad=1, k_pad_to=None):
    """x: (B, D, H, W, C) -> ((B*Do*Ho*Wo, k^3*C [padded]), (Do, Ho, Wo))."""
    B, D, H, W, C = x.shape
    xp = jnp.pad(x, ((0, 0), (pad, pad), (pad, pad), (pad, pad), (0, 0)))
    Do = (D + 2 * pad - k) // stride + 1
    Ho = (H + 2 * pad - k) // stride + 1
    Wo = (W + 2 * pad - k) // stride + 1
    patches = []
    for kd in range(k):
        for kh in range(k):
            for kw in range(k):
                patches.append(
                    xp[:,
                       kd:kd + stride * (Do - 1) + 1:stride,
                       kh:kh + stride * (Ho - 1) + 1:stride,
                       kw:kw + stride * (Wo - 1) + 1:stride, :])
    K = k * k * k * C
    if k_pad_to is not None and k_pad_to > K:
        # Free K padding: one extra zero chunk inside the concat that already
        # happens (gives lane-aligned K=128 for conv1's K=108).
        patches.append(jnp.zeros((B, Do, Ho, Wo, k_pad_to - K), x.dtype))
        K = k_pad_to
    col = jnp.concatenate(patches, axis=-1)           # (B, Do, Ho, Wo, K)
    return col.reshape(B * Do * Ho * Wo, K), (Do, Ho, Wo)


# ---------------------------------------------------------------------------
# ShapeEncoder forward (input in PyTorch NCDHW layout)
# ---------------------------------------------------------------------------
def shape_encoder_forward(x_ncdhw, pp):
    B = x_ncdhw.shape[0]
    # One cheap relayout: NCDHW -> NDHWC + bf16 cast (fused by XLA).
    x = jnp.transpose(x_ncdhw, (0, 2, 3, 4, 1)).astype(jnp.bfloat16)

    # conv1 + BN + ReLU   (M=B*1728, K=128, N=64)
    col, (d, hh, ww) = _im2col(x, k_pad_to=pp["w1"].shape[0])
    y = conv_matmul(col, pp["w1"], pp["b1"])
    y = y.reshape(B, d, hh, ww, pp["w1"].shape[1])

    # conv2 + BN + ReLU   (M=B*216, K=1728, N=128)
    col, (d, hh, ww) = _im2col(y)
    y = conv_matmul(col, pp["w2"], pp["b2"])
    y = y.reshape(B, d, hh, ww, pp["w2"].shape[1])

    # conv3 + BN + ReLU + AvgPool3d(3,2) + Linear(256,128): one fused kernel.
    col, (d, hh, ww) = _im2col(y)
    assert (d, hh, ww) == (3, 3, 3), (
        "global-mean AvgPool shortcut only valid for a 3x3x3 conv3 map "
        "(24^3 input)")
    n_sp = d * hh * ww
    pool = jnp.repeat(jnp.eye(B, dtype=jnp.float32), n_sp, axis=1) / float(n_sp)
    return conv3_pool_fc(col, pp["w3"], pp["b3"], pool, pp["wc"], pp["bc"])


# ---------------------------------------------------------------------------
# Parameters: PyTorch-shaped raw params + one-time (outside jit) preparation
# ---------------------------------------------------------------------------
def init_params(key):
    ks = jax.random.split(key, 20)

    def conv_init(kw, kb, cout, cin):
        fan_in = cin * 27
        std = (2.0 / fan_in) ** 0.5
        return (jax.random.normal(kw, (cout, cin, 3, 3, 3), jnp.float32) * std,
                jax.random.normal(kb, (cout,), jnp.float32) * 0.01)

    def bn_init(kg, kb, km, kv, c):
        gamma = 0.5 + jax.random.uniform(kg, (c,), jnp.float32)
        beta = jax.random.normal(kb, (c,), jnp.float32) * 0.01
        mean = jax.random.normal(km, (c,), jnp.float32) * 0.01
        var = 0.5 + jax.random.uniform(kv, (c,), jnp.float32)
        return (gamma, beta, mean, var)

    w1, b1 = conv_init(ks[0], ks[1], 64, 4)
    w2, b2 = conv_init(ks[2], ks[3], 128, 64)
    w3, b3 = conv_init(ks[4], ks[5], 256, 128)
    bn1 = bn_init(ks[6], ks[7], ks[8], ks[9], 64)
    bn2 = bn_init(ks[10], ks[11], ks[12], ks[13], 128)
    bn3 = bn_init(ks[14], ks[15], ks[16], ks[17], 256)
    wc = jax.random.normal(ks[18], (128, 256), jnp.float32) * (1.0 / 256.0) ** 0.5
    bc = jax.random.normal(ks[19], (128,), jnp.float32) * 0.01
    return dict(w1=w1, b1=b1, bn1=bn1, w2=w2, b2=b2, bn2=bn2,
                w3=w3, b3=b3, bn3=bn3, wc=wc, bc=bc)


def prepare_params(p, eps=1e-5):
    """Fold eval-mode BN into bf16 weight matrices / f32 biases ONCE."""
    def fold(w, b, bn, k_pad_to=None):
        gamma, beta, mean, var = bn
        scale = gamma / jnp.sqrt(var + eps)
        cout, cin = w.shape[0], w.shape[1]
        # Rows ordered (kd, kh, kw) major, Cin minor -- matches _im2col.
        wmat = w.transpose(2, 3, 4, 1, 0).reshape(27 * cin, cout) * scale[None, :]
        bias = scale * (b - mean) + beta
        if k_pad_to is not None and k_pad_to > wmat.shape[0]:
            wmat = jnp.pad(wmat, ((0, k_pad_to - wmat.shape[0]), (0, 0)))
        return wmat.astype(jnp.bfloat16), bias.reshape(1, -1).astype(jnp.float32)

    w1, b1 = fold(p["w1"], p["b1"], p["bn1"], k_pad_to=128)   # K 108 -> 128
    w2, b2 = fold(p["w2"], p["b2"], p["bn2"])
    w3, b3 = fold(p["w3"], p["b3"], p["bn3"])
    wc = p["wc"].T.astype(jnp.bfloat16)                       # (256, 128)
    bc = p["bc"].reshape(1, -1).astype(jnp.float32)
    return dict(w1=w1, b1=b1, w2=w2, b2=b2, w3=w3, b3=b3, wc=wc, bc=bc)


if __name__ == "__main__":
    key = jax.random.PRNGKey(0)
    params = init_params(key)
    pp = prepare_params(params)              # once, outside the jitted forward
    # Input NCDHW; spatial 24 -> 12 -> 6 -> 3 -> avgpool -> 1, so the flattened
    # feature dim is exactly 256, matching Linear(256, 128).
    x = jax.random.normal(jax.random.fold_in(key, 1), (2, 4, 24, 24, 24),
                          jnp.float32)
    fwd = jax.jit(shape_encoder_forward)
    out = jax.block_until_ready(fwd(x, pp))
    assert out.shape == (2, 128), out.shape
    assert bool(jnp.all(jnp.isfinite(out)))
    print("KERNEL_OK")
</pallas_src>

<mosaic_0001>
module attributes {stable_mosaic.version = 11 : i64} {
  func.func @_conv_matmul_kernel(%arg0: i32, %arg1: memref<1728x128xbf16, #tpu.memory_space<vmem>>, %arg2: memref<128x64xbf16, #tpu.memory_space<vmem>>, %arg3: memref<1x64xf32, #tpu.memory_space<vmem>>, %arg4: memref<1728x64xbf16, #tpu.memory_space<vmem>>) attributes {dimension_semantics = [#tpu.dimension_semantics<parallel>], iteration_bounds = array<i64: 2>, scalar_prefetch = 0 : i64, scratch_operands = 0 : i64, tpu.core_type = #tpu.core_type<tc>, window_params = [{transform_indices = @transform_0, window_bounds = array<i64: 1728, 128>}, {pipeline_mode = #tpu.pipeline_mode<synchronous>, transform_indices = @transform_1, window_bounds = array<i64: 128, 64>}, {pipeline_mode = #tpu.pipeline_mode<synchronous>, transform_indices = @transform_2, window_bounds = array<i64: 1, 64>}, {transform_indices = @transform_3, window_bounds = array<i64: 1728, 64>}]} {
    %c0 = arith.constant 0 : index
    %c0_0 = arith.constant 0 : index
    %0 = vector.load %arg1[%c0, %c0_0] : memref<1728x128xbf16, #tpu.memory_space<vmem>>, vector<1728x128xbf16>
    %c0_1 = arith.constant 0 : index
    %c0_2 = arith.constant 0 : index
    %1 = vector.load %arg2[%c0_1, %c0_2] : memref<128x64xbf16, #tpu.memory_space<vmem>>, vector<128x64xbf16>
    %cst = arith.constant dense<0.000000e+00> : vector<1728x64xf32>
    %2 = tpu.matmul %0, %1, %cst {dimension_numbers = #tpu.dot_dimension_numbers<[1], [0], [0], [1], [0, 0, 1, 1], [], []>} : vector<1728x128xbf16>, vector<128x64xbf16>, vector<1728x64xf32> -> vector<1728x64xf32>
    %c0_3 = arith.constant 0 : index
    %c0_4 = arith.constant 0 : index
    %3 = vector.load %arg3[%c0_3, %c0_4] : memref<1x64xf32, #tpu.memory_space<vmem>>, vector<1x64xf32>
    %4 = vector.broadcast %3 : vector<1x64xf32> to vector<1728x64xf32>
    %5 = arith.addf %2, %4 : vector<1728x64xf32>
    %cst_5 = arith.constant 0.000000e+00 : f32
    %6 = vector.broadcast %cst_5 : f32 to vector<1728x64xf32>
    %7 = arith.maximumf %5, %6 : vector<1728x64xf32>
    %8 = arith.truncf %7 : vector<1728x64xf32> to vector<1728x64xbf16>
    %c0_6 = arith.constant 0 : index
    %c0_7 = arith.constant 0 : index
    %9 = vector.load %arg4[%c0_6, %c0_7] : memref<1728x64xbf16, #tpu.memory_space<vmem>>, vector<1728x64xbf16>
    tpu.vector_store %arg4[%c0_6, %c0_7], %8 {strides = array<i32>} : memref<1728x64xbf16, #tpu.memory_space<vmem>>, vector<1728x64xbf16>,
    return
  }
  func.func @transform_0(%arg0: i32) -> (i32, i32) {
    %c0_i32 = arith.constant 0 : i32
    %c0_i32_0 = arith.constant 0 : i32
    return %arg0, %c0_i32 : i32, i32
  }
  func.func @transform_1(%arg0: i32) -> (i32, i32) {
    %c0_i32 = arith.constant 0 : i32
    %c0_i32_0 = arith.constant 0 : i32
    %c0_i32_1 = arith.constant 0 : i32
    return %c0_i32, %c0_i32_0 : i32, i32
  }
  func.func @transform_2(%arg0: i32) -> (i32, i32) {
    %c0_i32 = arith.constant 0 : i32
    %c0_i32_0 = arith.constant 0 : i32
    %c0_i32_1 = arith.constant 0 : i32
    return %c0_i32, %c0_i32_0 : i32, i32
  }
  func.func @transform_3(%arg0: i32) -> (i32, i32) {
    %c0_i32 = arith.constant 0 : i32
    %c0_i32_0 = arith.constant 0 : i32
    return %arg0, %c0_i32 : i32, i32
  }
}

module attributes {stable_mosaic.version = 11 : i64} {
  func.func @_conv_matmul_kernel(%arg0: i32, %arg1: memref<432x1728xbf16, #tpu.memory_space<vmem>>, %arg2: memref<1728x128xbf16, #tpu.memory_space<vmem>>, %arg3: memref<1x128xf32, #tpu.memory_space<vmem>>, %arg4: memref<432x128xbf16, #tpu.memory_space<vmem>>) attributes {dimension_semantics = [#tpu.dimension_semantics<parallel>], iteration_bounds = array<i64: 1>, scalar_prefetch = 0 : i64, scratch_operands = 0 : i64, tpu.core_type = #tpu.core_type<tc>, window_params = [{transform_indices = @transform_0, window_bounds = array<i64: 432, 1728>}, {pipeline_mode = #tpu.pipeline_mode<synchronous>, transform_indices = @transform_1, window_bounds = array<i64: 1728, 128>}, {pipeline_mode = #tpu.pipeline_mode<synchronous>, transform_indices = @transform_2, window_bounds = array<i64: 1, 128>}, {transform_indices = @transform_3, window_bounds = array<i64: 432, 128>}]} {
    %c0 = arith.constant 0 : index
    %c0_0 = arith.constant 0 : index
    %0 = vector.load %arg1[%c0, %c0_0] : memref<432x1728xbf16, #tpu.memory_space<vmem>>, vector<432x1728xbf16>
    %c0_1 = arith.constant 0 : index
    %c0_2 = arith.constant 0 : index
    %1 = vector.load %arg2[%c0_1, %c0_2] : memref<1728x128xbf16, #tpu.memory_space<vmem>>, vector<1728x128xbf16>
    %cst = arith.constant dense<0.000000e+00> : vector<432x128xf32>
    %2 = tpu.matmul %0, %1, %cst {dimension_numbers = #tpu.dot_dimension_numbers<[1], [0], [0], [1], [0, 0, 1, 1], [], []>} : vector<432x1728xbf16>, vector<1728x128xbf16>, vector<432x128xf32> -> vector<432x128xf32>
    %c0_3 = arith.constant 0 : index
    %c0_4 = arith.constant 0 : index
    %3 = vector.load %arg3[%c0_3, %c0_4] : memref<1x128xf32, #tpu.memory_space<vmem>>, vector<1x128xf32>
    %4 = vector.broadcast %3 : vector<1x128xf32> to vector<432x128xf32>
    %5 = arith.addf %2, %4 : vector<432x128xf32>
    %cst_5 = arith.constant 0.000000e+00 : f32
    %6 = vector.broadcast %cst_5 : f32 to vector<432x128xf32>
    %7 = arith.maximumf %5, %6 : vector<432x128xf32>
    %8 = arith.truncf %7 : vector<432x128xf32> to vector<432x128xbf16>
    %c0_6 = arith.constant 0 : index
    %c0_7 = arith.constant 0 : index
    %9 = vector.load %arg4[%c0_6, %c0_7] : memref<432x128xbf16, #tpu.memory_space<vmem>>, vector<432x128xbf16>
    tpu.vector_store %arg4[%c0_6, %c0_7], %8 {strides = array<i32>} : memref<432x128xbf16, #tpu.memory_space<vmem>>, vector<432x128xbf16>,
    return
  }
  func.func @transform_0(%arg0: i32) -> (i32, i32) {
    %c0_i32 = arith.constant 0 : i32
    %c0_i32_0 = arith.constant 0 : i32
    return %arg0, %c0_i32 : i32, i32
  }
  func.func @transform_1(%arg0: i32) -> (i32, i32) {
    %c0_i32 = arith.constant 0 : i32
    %c0_i32_0 = arith.constant 0 : i32
    %c0_i32_1 = arith.constant 0 : i32
    return %c0_i32, %c0_i32_0 : i32, i32
  }
  func.func @transform_2(%arg0: i32) -> (i32, i32) {
    %c0_i32 = arith.constant 0 : i32
    %c0_i32_0 = arith.constant 0 : i32
    %c0_i32_1 = arith.constant 0 : i32
    return %c0_i32, %c0_i32_0 : i32, i32
  }
  func.func @transform_3(%arg0: i32) -> (i32, i32) {
    %c0_i32 = arith.constant 0 : i32
    %c0_i32_0 = arith.constant 0 : i32
    return %arg0, %c0_i32 : i32, i32
  }
}

module attributes {stable_mosaic.version = 11 : i64} {
  func.func @_conv3_pool_fc_kernel(%arg0: i32, %arg1: memref<54x3456xbf16, #tpu.memory_space<vmem>>, %arg2: memref<3456x256xbf16, #tpu.memory_space<vmem>>, %arg3: memref<1x256xf32, #tpu.memory_space<vmem>>, %arg4: memref<2x54xf32, #tpu.memory_space<vmem>>, %arg5: memref<256x128xbf16, #tpu.memory_space<vmem>>, %arg6: memref<1x128xf32, #tpu.memory_space<vmem>>, %arg7: memref<2x128xf32, #tpu.memory_space<vmem>>) attributes {dimension_semantics = [#tpu.dimension_semantics<arbitrary>], iteration_bounds = array<i64: 1>, scalar_prefetch = 0 : i64, scratch_operands = 0 : i64, tpu.core_type = #tpu.core_type<tc>, window_params = [{pipeline_mode = #tpu.pipeline_mode<synchronous>, transform_indices = @transform_0, window_bounds = array<i64: 54, 3456>}, {pipeline_mode = #tpu.pipeline_mode<synchronous>, transform_indices = @transform_1, window_bounds = array<i64: 3456, 256>}, {pipeline_mode = #tpu.pipeline_mode<synchronous>, transform_indices = @transform_2, window_bounds = array<i64: 1, 256>}, {pipeline_mode = #tpu.pipeline_mode<synchronous>, transform_indices = @transform_3, window_bounds = array<i64: 2, 54>}, {pipeline_mode = #tpu.pipeline_mode<synchronous>, transform_indices = @transform_4, window_bounds = array<i64: 256, 128>}, {pipeline_mode = #tpu.pipeline_mode<synchronous>, transform_indices = @transform_5, window_bounds = array<i64: 1, 128>}, {pipeline_mode = #tpu.pipeline_mode<synchronous>, transform_indices = @transform_6, window_bounds = array<i64: 2, 128>}]} {
    %c0 = arith.constant 0 : index
    %c0_0 = arith.constant 0 : index
    %0 = vector.load %arg1[%c0, %c0_0] : memref<54x3456xbf16, #tpu.memory_space<vmem>>, vector<54x3456xbf16>
    %c0_1 = arith.constant 0 : index
    %c0_2 = arith.constant 0 : index
    %1 = vector.load %arg2[%c0_1, %c0_2] : memref<3456x256xbf16, #tpu.memory_space<vmem>>, vector<3456x256xbf16>
    %cst = arith.constant dense<0.000000e+00> : vector<54x256xf32>
    %2 = tpu.matmul %0, %1, %cst {dimension_numbers = #tpu.dot_dimension_numbers<[1], [0], [0], [1], [0, 0, 1, 1], [], []>} : vector<54x3456xbf16>, vector<3456x256xbf16>, vector<54x256xf32> -> vector<54x256xf32>
    %c0_3 = arith.constant 0 : index
    %c0_4 = arith.constant 0 : index
    %3 = vector.load %arg3[%c0_3, %c0_4] : memref<1x256xf32, #tpu.memory_space<vmem>>, vector<1x256xf32>
    %4 = vector.broadcast %3 : vector<1x256xf32> to vector<54x256xf32>
    %5 = arith.addf %2, %4 : vector<54x256xf32>
    %cst_5 = arith.constant 0.000000e+00 : f32
    %6 = vector.broadcast %cst_5 : f32 to vector<54x256xf32>
    %7 = arith.maximumf %5, %6 : vector<54x256xf32>
    %c0_6 = arith.constant 0 : index
    %c0_7 = arith.constant 0 : index
    %8 = vector.load %arg4[%c0_6, %c0_7] : memref<2x54xf32, #tpu.memory_space<vmem>>, vector<2x54xf32>
    %cst_8 = arith.constant dense<0.000000e+00> : vector<2x256xf32>
    %9 = tpu.matmul %8, %7, %cst_8 {dimension_numbers = #tpu.dot_dimension_numbers<[1], [0], [0], [1], [0, 0, 1, 1], [], []>} : vector<2x54xf32>, vector<54x256xf32>, vector<2x256xf32> -> vector<2x256xf32>
    %10 = arith.truncf %9 : vector<2x256xf32> to vector<2x256xbf16>
    %c0_9 = arith.constant 0 : index
    %c0_10 = arith.constant 0 : index
    %11 = vector.load %arg5[%c0_9, %c0_10] : memref<256x128xbf16, #tpu.memory_space<vmem>>, vector<256x128xbf16>
    %cst_11 = arith.constant dense<0.000000e+00> : vector<2x128xf32>
    %12 = tpu.matmul %10, %11, %cst_11 {dimension_numbers = #tpu.dot_dimension_numbers<[1], [0], [0], [1], [0, 0, 1, 1], [], []>} : vector<2x256xbf16>, vector<256x128xbf16>, vector<2x128xf32> -> vector<2x128xf32>
    %c0_12 = arith.constant 0 : index
    %c0_13 = arith.constant 0 : index
    %13 = vector.load %arg6[%c0_12, %c0_13] : memref<1x128xf32, #tpu.memory_space<vmem>>, vector<1x128xf32>
    %14 = vector.broadcast %13 : vector<1x128xf32> to vector<2x128xf32>
    %15 = arith.addf %12, %14 : vector<2x128xf32>
    %c0_14 = arith.constant 0 : index
    %c0_15 = arith.constant 0 : index
    %16 = vector.load %arg7[%c0_14, %c0_15] : memref<2x128xf32, #tpu.memory_space<vmem>>, vector<2x128xf32>
    tpu.vector_store %arg7[%c0_14, %c0_15], %15 {strides = array<i32>} : memref<2x128xf32, #tpu.memory_space<vmem>>, vector<2x128xf32>,
    return
  }
  func.func @transform_0(%arg0: i32) -> (i32, i32) {
    %c0_i32 = arith.constant 0 : i32
    %c0_i32_0 = arith.constant 0 : i32
    %c0_i32_1 = arith.constant 0 : i32
    return %c0_i32, %c0_i32_0 : i32, i32
  }
  func.func @transform_1(%arg0: i32) -> (i32, i32) {
    %c0_i32 = arith.constant 0 : i32
    %c0_i32_0 = arith.constant 0 : i32
    %c0_i32_1 = arith.constant 0 : i32
    return %c0_i32, %c0_i32_0 : i32, i32
  }
  func.func @transform_2(%arg0: i32) -> (i32, i32) {
    %c0_i32 = arith.constant 0 : i32
    %c0_i32_0 = arith.constant 0 : i32
    %c0_i32_1 = arith.constant 0 : i32
    return %c0_i32, %c0_i32_0 : i32, i32
  }
  func.func @transform_3(%arg0: i32) -> (i32, i32) {
    %c0_i32 = arith.constant 0 : i32
    %c0_i32_0 = arith.constant 0 : i32
    %c0_i32_1 = arith.constant 0 : i32
    return %c0_i32, %c0_i32_0 : i32, i32
  }
  func.func @transform_4(%arg0: i32) -> (i32, i32) {
    %c0_i32 = arith.constant 0 : i32
    %c0_i32_0 = arith.constant 0 : i32
    %c0_i32_1 = arith.constant 0 : i32
    return %c0_i32, %c0_i32_0 : i32, i32
  }
  func.func @transform_5(%arg0: i32) -> (i32, i32) {
    %c0_i32 = arith.constant 0 : i32
    %c0_i32_0 = arith.constant 0 : i32
    %c0_i32_1 = arith.constant 0 : i32
    return %c0_i32, %c0_i32_0 : i32, i32
  }
  func.func @transform_6(%arg0: i32) -> (i32, i32) {
    %c0_i32 = arith.constant 0 : i32
    %c0_i32_0 = arith.constant 0 : i32
    %c0_i32_1 = arith.constant 0 : i32
    return %c0_i32, %c0_i32_0 : i32, i32
  }
}

</mosaic_0001>

<llo_original>
// kernel: shape_encoder_forward.3
$region0: #{shape_encoder_forward.3}
  #allocation0 [shape = 'u32[]', space=smem, size = 0x4, offset = 0x4, fixed_abs, tag = 'smem constant byte address 0x4 - core index']
  #allocation1 [shape = 'u32[72,128]{1,0:T(1,128)}', space=vmem, size = 0x9000, scoped, tag = 'internal scratch']
  %s0 = inlined_call_operand.vmem [shape: bf16[3456,128], index: 0, kind: input, shape index: {}]
  %s1 = inlined_call_operand.vmem [shape: bf16[128,64], index: 1, kind: input, shape index: {}]
  %s2 = inlined_call_operand.vmem [shape: f32[1,64], index: 2, kind: input, shape index: {}]
  %s3 = inlined_call_operand.vmem [shape: bf16[3456,64], index: 3, kind: output, shape index: {}]
  %s4 = sld [smem:[#allocation0]]
  $region45: #{shape_encoder_forward.3} parent=0
    _
  %s6 = ssub.s32 1, %s4
  %s7 = scalar_select 0, %s6, %s4
  loop: start=0, step=1, limit=4
  $region2: #{shape_encoder_forward.3} parent=0 // loop_pre_header
    _
  $region3: #{shape_encoder_forward.3} parent=0 // loop_header
    %s9 = sphi 0, %s13
    %p10 = scmp.ge.s32.totalorder %s9, 4
    %s19 = sphi 0, %s21
    %s22 = sphi 0, %s19
    %s23 = sphi 0, %s22
    %s39 = sphi 0, %s23
    %s43 = sphi 0, %s43
    %s45 = sphi 0, %s43
    %s46 = sphi 0, %s45
    %s60 = sphi 0, %s46
    %s64 = sphi 0, %s64
    %s66 = sphi 0, %s64
    %s67 = sphi 0, %s66
    %s81 = sphi 0, %s67
    %s87 = sphi 0, %s89
    %s90 = sphi 0, %s87
    %s91 = sphi 0, %s90
    %s107 = sphi 0, %s91
  $region4: #{shape_encoder_forward.3} parent=0 // loop_header_branch
    %12 = sbr.rel (%p10) target = $region8
  $region5: #{shape_encoder_forward.3} parent=0 // loop_body
    %s14 = ssub.s32 %s9, 1
    %s15 = ssub.s32 %s9, 2
    %s16 = sadd.s32 %s9, 1
    %s17 = ssub.s32 %s9, %s16
    %p18 = scmp.eq.s32.totalorder %s17, 0
    %s20 = sadd.s32 %s19, 1
    %s21 = scalar_select %p18, %s19, %s20
    %p24 = pneg %p18
    %p25 = scmp.eq.s32.totalorder %s9, 1
    %p26 = por %p24, %p25
    %p27 = scmp.ne.s32.totalorder %s19, %s22
    %p28 = scmp.eq.s32.totalorder %s9, 0
    %p29 = por %p27, %p28
    %p30 = scmp.ne.s32.totalorder %s19, %s22
    %p31 = scmp.eq.s32.totalorder %s14, 1
    %p32 = por %p30, %p31
    %p33 = scmp.ne.s32.totalorder %s22, %s23
    %p34 = scmp.eq.s32.totalorder %s14, 0
    %p35 = por %p33, %p34
    %p36 = scmp.ne.s32.totalorder %s22, %s23
    %p37 = scmp.eq.s32.totalorder %s15, 1
    %p38 = por %p36, %p37
    %p40 = scmp.ne.s32.totalorder %s23, %s39
    %p41 = scmp.eq.s32.totalorder %s15, 0
    %p42 = por %p40, %p41
    %s44 = sadd.s32 %s43, 1
    %p47 = scmp.eq.s32.totalorder %s9, 1
    %p48 = scmp.ne.s32.totalorder %s43, %s45
    %p49 = scmp.eq.s32.totalorder %s9, 0
    %p50 = por %p48, %p49
    %p51 = scmp.ne.s32.totalorder %s43, %s45
    %p52 = scmp.eq.s32.totalorder %s14, 1
    %p53 = por %p51, %p52
    %p54 = scmp.ne.s32.totalorder %s45, %s46
    %p55 = scmp.eq.s32.totalorder %s14, 0
    %p56 = por %p54, %p55
    %p57 = scmp.ne.s32.totalorder %s45, %s46
    %p58 = scmp.eq.s32.totalorder %s15, 1
    %p59 = por %p57, %p58
    %p61 = scmp.ne.s32.totalorder %s46, %s60
    %p62 = scmp.eq.s32.totalorder %s15, 0
    %p63 = por %p61, %p62
    %s65 = sadd.s32 %s64, 1
    %p68 = scmp.eq.s32.totalorder %s9, 1
    %p69 = scmp.ne.s32.totalorder %s64, %s66
    %p70 = scmp.eq.s32.totalorder %s9, 0
    %p71 = por %p69, %p70
    %p72 = scmp.ne.s32.totalorder %s64, %s66
    %p73 = scmp.eq.s32.totalorder %s14, 1
    %p74 = por %p72, %p73
    %p75 = scmp.ne.s32.totalorder %s66, %s67
    %p76 = scmp.eq.s32.totalorder %s14, 0
    %p77 = por %p75, %p76
    %p78 = scmp.ne.s32.totalorder %s66, %s67
    %p79 = scmp.eq.s32.totalorder %s15, 1
    %p80 = por %p78, %p79
    %p82 = scmp.ne.s32.totalorder %s67, %s81
    %p83 = scmp.eq.s32.totalorder %s15, 0
    %p84 = por %p82, %p83
    %s85 = ssub.s32 %s9, %s16
    %p86 = scmp.eq.s32.totalorder %s85, 0
    %s88 = sadd.s32 %s87, 1
    %s89 = scalar_select %p86, %s87, %s88
    %p92 = pneg %p86
    %p93 = scmp.eq.s32.totalorder %s9, 1
    %p94 = por %p92, %p93
    %p95 = scmp.ne.s32.totalorder %s87, %s90
    %p96 = scmp.eq.s32.totalorder %s9, 0
    %p97 = por %p95, %p96
    %p98 = scmp.ne.s32.totalorder %s87, %s90
    %p99 = scmp.eq.s32.totalorder %s14, 1
    %p100 = por %p98, %p99
    %p101 = scmp.ne.s32.totalorder %s90, %s91
    %p102 = scmp.eq.s32.totalorder %s14, 0
    %p103 = por %p101, %p102
    %p104 = scmp.ne.s32.totalorder %s90, %s91
    %p105 = scmp.eq.s32.totalorder %s15, 1
    %p106 = por %p104, %p105
    %p108 = scmp.ne.s32.totalorder %s91, %s107
    %p109 = scmp.eq.s32.totalorder %s15, 0
    %p110 = por %p108, %p109
    %p111 = scmp.le.s32.totalorder 1, %s9
    %p112 = scmp.lt.s32.totalorder %s9, 3
    %p113 = pnand %p111, %p112
    %p114 = pneg %p113
    // Predicated region
    $region9: #{shape_encoder_forward.3} parent=5 // pred_check
      _
    $region10: #{shape_encoder_forward.3} parent=5 // pred_check_branch
      %116 = sbr.rel (%p113) target = $region12
    $region11: #{shape_encoder_forward.3} parent=5 // pred_region
      %s117 = ssub.s32 %s9, 1
      // Predicated region
      $region13: #{shape_encoder_forward.3} parent=11 // pred_check
        %p118 = pneg %p56
      $region14: #{shape_encoder_forward.3} parent=11 // pred_check_branch
        %120 = sbr.rel (%p118) target = $region16
      $region15: #{shape_encoder_forward.3} parent=11 // pred_region
        _
      $region16: #{shape_encoder_forward.3} parent=11 // pred_fallthru
        _
      // Predicated region
      $region17: #{shape_encoder_forward.3} parent=11 // pred_check
        %p121 = pneg %p77
      $region18: #{shape_encoder_forward.3} parent=11 // pred_check_branch
        %123 = sbr.rel (%p121) target = $region20
      $region19: #{shape_encoder_forward.3} parent=11 // pred_region
        _
      $region20: #{shape_encoder_forward.3} parent=11 // pred_fallthru
        _
    $region12: #{shape_encoder_forward.3} parent=5 // pred_fallthru
      _
    %p124 = scmp.lt.s32.totalorder %s9, 2
    // Predicated region
    $region21: #{shape_encoder_forward.3} parent=5 // pred_check
      %p125 = pneg %p124
    $region22: #{shape_encoder_forward.3} parent=5 // pred_check_branch
      %127 = sbr.rel (%p125) target = $region24
    $region23: #{shape_encoder_forward.3} parent=5 // pred_region
      // Predicated region
      $region25: #{shape_encoder_forward.3} parent=23 // pred_check
        %p128 = pneg %p29
      $region26: #{shape_encoder_forward.3} parent=23 // pred_check_branch
        %130 = sbr.rel (%p128) target = $region28
      $region27: #{shape_encoder_forward.3} parent=23 // pred_region
        %s131 = smul.u32 216, %s9
        %p132 = scmp.lt.s32.totalorder %s131, 431
        %s133 = scalar_select %p132, %s131, 431
        %s134 = smul.addr %s133, 4
        %s135 = scalar_lea.vmem %s0, %s134
        %s136 = smul.u32 216, %s9
      $region28: #{shape_encoder_forward.3} parent=23 // pred_fallthru
        _
    $region24: #{shape_encoder_forward.3} parent=5 // pred_fallthru
      _
    %p137 = scmp.le.s32.totalorder 1, %s9
    %p138 = scmp.lt.s32.totalorder %s9, 3
    %p139 = pnand %p137, %p138
    %p140 = pneg %p139
    // Predicated region
    $region29: #{shape_encoder_forward.3} parent=5 // pred_check
      _
    $region30: #{shape_encoder_forward.3} parent=5 // pred_check_branch
      %142 = sbr.rel (%p139) target = $region32
    $region31: #{shape_encoder_forward.3} parent=5 // pred_region
      %s143 = ssub.s32 %s9, 1
      %s144 = smul.u32 216, %s14
      %p145 = scmp.lt.s32.totalorder %s144, 431
      %s146 = scalar_select %p145, %s144, 431
      %s147 = smul.addr %s146, 4
      %s148 = scalar_lea.vmem %s0, %s147
      %p149 = pneg %p35
      %p150 = pneg %p32
      %p151 = pneg %p56
      %p152 = pneg %p53
      %p153 = pneg %p77
      %p154 = pneg %p74
      %p155 = pneg %p103
      %p156 = pneg %p100
      %s157 = smul.u32 216, %s14
      %p158 = scmp.lt.s32.totalorder %s157, 431
      %s159 = scalar_select %p158, %s157, 431
      %s160 = smul.addr %s159, 4
      %s161 = scalar_lea.vmem %s3, %s160
      %s162 = smul.u32 216, %s14
      %p163 = scmp.lt.s32.totalorder %s162, 431
      %s164 = scalar_select %p163, %s162, 431
      %s165 = smul.addr %s164, 4
      %s166 = scalar_lea.vmem %s0, %s165
      %s167 = smul.u32 216, %s14
      %s168 = smul.u32 216, %s14
      %p169 = scmp.lt.s32.totalorder %s168, 431
      %s170 = scalar_select %p169, %s168, 431
      %s171 = smul.addr %s170, 4
      %s172 = scalar_lea.vmem %s3, %s171
      %s173 = smul.u32 216, %s14
      %v174 = vld [vmem:[%s166] sm:$0xf]
      %v175 = vld [vmem:[%s166 + $0x4] sm:$0xf]
      %v176 = vld [vmem:[%s166 + $0x8] sm:$0xf]
      %v177 = vld [vmem:[%s166 + $0xc] sm:$0xf]
      %v178 = vld [vmem:[%s166 + $0x10] sm:$0xf]
      %v179 = vld [vmem:[%s166 + $0x14] sm:$0xf]
      %v180 = vld [vmem:[%s166 + $0x18] sm:$0xf]
      %v181 = vld [vmem:[%s166 + $0x1c] sm:$0xf]
      %v182 = vld [vmem:[%s166 + $0x20] sm:$0xf]
      %v183 = vld [vmem:[%s166 + $0x24] sm:$0xf]
      %v184 = vld [vmem:[%s166 + $0x28] sm:$0xf]
      %v185 = vld [vmem:[%s166 + $0x2c] sm:$0xf]
      %v186 = vld [vmem:[%s166 + $0x30] sm:$0xf]
      %v187 = vld [vmem:[%s166 + $0x34] sm:$0xf]
      %v188 = vld [vmem:[%s166 + $0x38] sm:$0xf]
      %v189 = vld [vmem:[%s166 + $0x3c] sm:$0xf]
      %v190 = vld [vmem:[%s166 + $0x40] sm:$0xf]
      %v191 = vld [vmem:[%s166 + $0x44] sm:$0xf]
      %v192 = vld [vmem:[%s166 + $0x48] sm:$0xf]
      %v193 = vld [vmem:[%s166 + $0x4c] sm:$0xf]
      %v194 = vld [vmem:[%s166 + $0x50] sm:$0xf]
      %v195 = vld [vmem:[%s166 + $0x54] sm:$0xf]
      %v196 = vld [vmem:[%s166 + $0x58] sm:$0xf]
      %v197 = vld [vmem:[%s166 + $0x5c] sm:$0xf]
      %v198 = vld [vmem:[%s166 + $0x60] sm:$0xf]
      %v199 = vld [vmem:[%s166 + $0x64] sm:$0xf]
      %v200 = vld [vmem:[%s166 + $0x68] sm:$0xf]
      %v201 = vld [vmem:[%s166 + $0x6c] sm:$0xf]
      %v202 = vld [vmem:[%s166 + $0x70] sm:$0xf]
      %v203 = vld [vmem:[%s166 + $0x74] sm:$0xf]
      %v204 = vld [vmem:[%s166 + $0x78] sm:$0xf]
      %v205 = vld [vmem:[%s166 + $0x7c] sm:$0xf]
      %v206 = vld [vmem:[%s166 + $0x80] sm:$0xf]
      %v207 = vld [vmem:[%s166 + $0x84] sm:$0xf]
      %v208 = vld [vmem:[%s166 + $0x88] sm:$0xf]
      %v209 = vld [vmem:[%s166 + $0x8c] sm:$0xf]
      %v210 = vld [vmem:[%s166 + $0x90] sm:$0xf]
      %v211 = vld [vmem:[%s166 + $0x94] sm:$0xf]
      %v212 = vld [vmem:[%s166 + $0x98] sm:$0xf]
      %v213 = vld [vmem:[%s166 + $0x9c] sm:$0xf]
      %v214 = vld [vmem:[%s166 + $0xa0] sm:$0xf]
      %v215 = vld [vmem:[%s166 + $0xa4] sm:$0xf]
      %v216 = vld [vmem:[%s166 + $0xa8] sm:$0xf]
      %v217 = vld [vmem:[%s166 + $0xac] sm:$0xf]
      %v218 = vld [vmem:[%s166 + $0xb0] sm:$0xf]
      %v219 = vld [vmem:[%s166 + $0xb4] sm:$0xf]
      %v220 = vld [vmem:[%s166 + $0xb8] sm:$0xf]
      %v221 = vld [vmem:[%s166 + $0xbc] sm:$0xf]
      %v222 = vld [vmem:[%s166 + $0xc0] sm:$0xf]
      %v223 = vld [vmem:[%s166 + $0xc4] sm:$0xf]
      %v224 = vld [vmem:[%s166 + $0xc8] sm:$0xf]
      %v225 = vld [vmem:[%s166 + $0xcc] sm:$0xf]
      %v226 = vld [vmem:[%s166 + $0xd0] sm:$0xf]
      %v227 = vld [vmem:[%s166 + $0xd4] sm:$0xf]
      %v228 = vld [vmem:[%s166 + $0xd8] sm:$0xf]
      %v229 = vld [vmem:[%s166 + $0xdc] sm:$0xf]
      %v230 = vld [vmem:[%s166 + $0xe0] sm:$0xf]
      %v231 = vld [vmem:[%s166 + $0xe4] sm:$0xf]
      %v232 = vld [vmem:[%s166 + $0xe8] sm:$0xf]
      %v233 = vld [vmem:[%s166 + $0xec] sm:$0xf]
      %v234 = vld [vmem:[%s166 + $0xf0] sm:$0xf]
      %v235 = vld [vmem:[%s166 + $0xf4] sm:$0xf]
      %v236 = vld [vmem:[%s166 + $0xf8] sm:$0xf]
      %v237 = vld [vmem:[%s166 + $0xfc] sm:$0xf]
      %v238 = vld [vmem:[%s166 + $0x100] sm:$0xf]
      %v239 = vld [vmem:[%s166 + $0x104] sm:$0xf]
      %v240 = vld [vmem:[%s166 + $0x108] sm:$0xf]
      %v241 = vld [vmem:[%s166 + $0x10c] sm:$0xf]
      %v242 = vld [vmem:[%s166 + $0x110] sm:$0xf]
      %v243 = vld [vmem:[%s166 + $0x114] sm:$0xf]
      %v244 = vld [vmem:[%s166 + $0x118] sm:$0xf]
      %v245 = vld [vmem:[%s166 + $0x11c] sm:$0xf]
      %v246 = vld [vmem:[%s166 + $0x120] sm:$0xf]
      %v247 = vld [vmem:[%s166 + $0x124] sm:$0xf]
      %v248 = vld [vmem:[%s166 + $0x128] sm:$0xf]
      %v249 = vld [vmem:[%s166 + $0x12c] sm:$0xf]
      %v250 = vld [vmem:[%s166 + $0x130] sm:$0xf]
      %v251 = vld [vmem:[%s166 + $0x134] sm:$0xf]
      %v252 = vld [vmem:[%s166 + $0x138] sm:$0xf]
      %v253 = vld [vmem:[%s166 + $0x13c] sm:$0xf]
      %v254 = vld [vmem:[%s166 + $0x140] sm:$0xf]
      %v255 = vld [vmem:[%s166 + $0x144] sm:$0xf]
      %v256 = vld [vmem:[%s166 + $0x148] sm:$0xf]
      %v257 = vld [vmem:[%s166 + $0x14c] sm:$0xf]
      %v258 = vld [vmem:[%s166 + $0x150] sm:$0xf]
      %v259 = vld [vmem:[%s166 + $0x154] sm:$0xf]
      %v260 = vld [vmem:[%s166 + $0x158] sm:$0xf]
      %v261 = vld [vmem:[%s166 + $0x15c] sm:$0xf]
      %v262 = vld [vmem:[%s166 + $0x160] sm:$0xf]
      %v263 = vld [vmem:[%s166 + $0x164] sm:$0xf]
      %v264 = vld [vmem:[%s166 + $0x168] sm:$0xf]
      %v265 = vld [vmem:[%s166 + $0x16c] sm:$0xf]
      %v266 = vld [vmem:[%s166 + $0x170] sm:$0xf]
      %v267 = vld [vmem:[%s166 + $0x174] sm:$0xf]
      %v268 = vld [vmem:[%s166 + $0x178] sm:$0xf]
      %v269 = vld [vmem:[%s166 + $0x17c] sm:$0xf]
      %v270 = vld [vmem:[%s166 + $0x180] sm:$0xf]
      %v271 = vld [vmem:[%s166 + $0x184] sm:$0xf]
      %v272 = vld [vmem:[%s166 + $0x188] sm:$0xf]
      %v273 = vld [vmem:[%s166 + $0x18c] sm:$0xf]
      %v274 = vld [vmem:[%s166 + $0x190] sm:$0xf]
      %v275 = vld [vmem:[%s166 + $0x194] sm:$0xf]
      %v276 = vld [vmem:[%s166 + $0x198] sm:$0xf]
      %v277 = vld [vmem:[%s166 + $0x19c] sm:$0xf]
      %v278 = vld [vmem:[%s166 + $0x1a0] sm:$0xf]
      %v279 = vld [vmem:[%s166 + $0x1a4] sm:$0xf]
      %v280 = vld [vmem:[%s166 + $0x1a8] sm:$0xf]
      %v281 = vld [vmem:[%s166 + $0x1ac] sm:$0xf]
      %v282 = vld [vmem:[%s166 + $0x1b0] sm:$0xf]
      %v283 = vld [vmem:[%s166 + $0x1b4] sm:$0xf]
      %v284 = vld [vmem:[%s166 + $0x1b8] sm:$0xf]
      %v285 = vld [vmem:[%s166 + $0x1bc] sm:$0xf]
      %v286 = vld [vmem:[%s166 + $0x1c0] sm:$0xf]
      %v287 = vld [vmem:[%s166 + $0x1c4] sm:$0xf]
      %v288 = vld [vmem:[%s166 + $0x1c8] sm:$0xf]
      %v289 = vld [vmem:[%s166 + $0x1cc] sm:$0xf]
      %v290 = vld [vmem:[%s166 + $0x1d0] sm:$0xf]
      %v291 = vld [vmem:[%s166 + $0x1d4] sm:$0xf]
      %v292 = vld [vmem:[%s166 + $0x1d8] sm:$0xf]
      %v293 = vld [vmem:[%s166 + $0x1dc] sm:$0xf]
      %v294 = vld [vmem:[%s166 + $0x1e0] sm:$0xf]
      %v295 = vld [vmem:[%s166 + $0x1e4] sm:$0xf]
      %v296 = vld [vmem:[%s166 + $0x1e8] sm:$0xf]
      %v297 = vld [vmem:[%s166 + $0x1ec] sm:$0xf]
      %v298 = vld [vmem:[%s166 + $0x1f0] sm:$0xf]
      %v299 = vld [vmem:[%s166 + $0x1f4] sm:$0xf]
      %v300 = vld [vmem:[%s166 + $0x1f8] sm:$0xf]
      %v301 = vld [vmem:[%s166 + $0x1fc] sm:$0xf]
      %v302 = vld [vmem:[%s166 + $0x200] sm:$0xf]
      %v303 = vld [vmem:[%s166 + $0x204] sm:$0xf]
      %v304 = vld [vmem:[%s166 + $0x208] sm:$0xf]
      %v305 = vld [vmem:[%s166 + $0x20c] sm:$0xf]
      %v306 = vld [vmem:[%s166 + $0x210] sm:$0xf]
      %v307 = vld [vmem:[%s166 + $0x214] sm:$0xf]
      %v308 = vld [vmem:[%s166 + $0x218] sm:$0xf]
      %v309 = vld [vmem:[%s166 + $0x21c] sm:$0xf]
      %v310 = vld [vmem:[%s166 + $0x220] sm:$0xf]
      %v311 = vld [vmem:[%s166 + $0x224] sm:$0xf]
      %v312 = vld [vmem:[%s166 + $0x228] sm:$0xf]
      %v313 = vld [vmem:[%s166 + $0x22c] sm:$0xf]
      %v314 = vld [vmem:[%s166 + $0x230] sm:$0xf]
      %v315 = vld [vmem:[%s166 + $0x234] sm:$0xf]
      %v316 = vld [vmem:[%s166 + $0x238] sm:$0xf]
      %v317 = vld [vmem:[%s166 + $0x23c] sm:$0xf]
      %v318 = vld [vmem:[%s166 + $0x240] sm:$0xf]
      %v319 = vld [vmem:[%s166 + $0x244] sm:$0xf]
      %v320 = vld [vmem:[%s166 + $0x248] sm:$0xf]
      %v321 = vld [vmem:[%s166 + $0x24c] sm:$0xf]
      %v322 = vld [vmem:[%s166 + $0x250] sm:$0xf]
      %v323 = vld [vmem:[%s166 + $0x254] sm:$0xf]
      %v324 = vld [vmem:[%s166 + $0x258] sm:$0xf]
      %v325 = vld [vmem:[%s166 + $0x25c] sm:$0xf]
      %v326 = vld [vmem:[%s166 + $0x260] sm:$0xf]
      %v327 = vld [vmem:[%s166 + $0x264] sm:$0xf]
      %v328 = vld [vmem:[%s166 + $0x268] sm:$0xf]
      %v329 = vld [vmem:[%s166 + $0x26c] sm:$0xf]
      %v330 = vld [vmem:[%s166 + $0x270] sm:$0xf]
      %v331 = vld [vmem:[%s166 + $0x274] sm:$0xf]
      %v332 = vld [vmem:[%s166 + $0x278] sm:$0xf]
      %v333 = vld [vmem:[%s166 + $0x27c] sm:$0xf]
      %v334 = vld [vmem:[%s166 + $0x280] sm:$0xf]
      %v335 = vld [vmem:[%s166 + $0x284] sm:$0xf]
      %v336 = vld [vmem:[%s166 + $0x288] sm:$0xf]
      %v337 = vld [vmem:[%s166 + $0x28c] sm:$0xf]
      %v338 = vld [vmem:[%s166 + $0x290] sm:$0xf]
      %v339 = vld [vmem:[%s166 + $0x294] sm:$0xf]
      %v340 = vld [vmem:[%s166 + $0x298] sm:$0xf]
      %v341 = vld [vmem:[%s166 + $0x29c] sm:$0xf]
      %v342 = vld [vmem:[%s166 + $0x2a0] sm:$0xf]
      %v343 = vld [vmem:[%s166 + $0x2a4] sm:$0xf]
      %v344 = vld [vmem:[%s166 + $0x2a8] sm:$0xf]
      %v345 = vld [vmem:[%s166 + $0x2ac] sm:$0xf]
      %v346 = vld [vmem:[%s166 + $0x2b0] sm:$0xf]
      %v347 = vld [vmem:[%s166 + $0x2b4] sm:$0xf]
      %v348 = vld [vmem:[%s166 + $0x2b8] sm:$0xf]
      %v349 = vld [vmem:[%s166 + $0x2bc] sm:$0xf]
      %v350 = vld [vmem:[%s166 + $0x2c0] sm:$0xf]
      %v351 = vld [vmem:[%s166 + $0x2c4] sm:$0xf]
      %v352 = vld [vmem:[%s166 + $0x2c8] sm:$0xf]
      %v353 = vld [vmem:[%s166 + $0x2cc] sm:$0xf]
      %v354 = vld [vmem:[%s166 + $0x2d0] sm:$0xf]
      %v355 = vld [vmem:[%s166 + $0x2d4] sm:$0xf]
      %v356 = vld [vmem:[%s166 + $0x2d8] sm:$0xf]
      %v357 = vld [vmem:[%s166 + $0x2dc] sm:$0xf]
      %v358 = vld [vmem:[%s166 + $0x2e0] sm:$0xf]
      %v359 = vld [vmem:[%s166 + $0x2e4] sm:$0xf]
      %v360 = vld [vmem:[%s166 + $0x2e8] sm:$0xf]
      %v361 = vld [vmem:[%s166 + $0x2ec] sm:$0xf]
      %v362 = vld [vmem:[%s166 + $0x2f0] sm:$0xf]
      %v363 = vld [vmem:[%s166 + $0x2f4] sm:$0xf]
      %v364 = vld [vmem:[%s166 + $0x2f8] sm:$0xf]
      %v365 = vld [vmem:[%s166 + $0x2fc] sm:$0xf]
      %v366 = vld [vmem:[%s166 + $0x300] sm:$0xf]
      %v367 = vld [vmem:[%s166 + $0x304] sm:$0xf]
      %v368 = vld [vmem:[%s166 + $0x308] sm:$0xf]
      %v369 = vld [vmem:[%s166 + $0x30c] sm:$0xf]
      %v370 = vld [vmem:[%s166 + $0x310] sm:$0xf]
      %v371 = vld [vmem:[%s166 + $0x314] sm:$0xf]
      %v372 = vld [vmem:[%s166 + $0x318] sm:$0xf]
      %v373 = vld [vmem:[%s166 + $0x31c] sm:$0xf]
      %v374 = vld [vmem:[%s166 + $0x320] sm:$0xf]
      %v375 = vld [vmem:[%s166 + $0x324] sm:$0xf]
      %v376 = vld [vmem:[%s166 + $0x328] sm:$0xf]
      %v377 = vld [vmem:[%s166 + $0x32c] sm:$0xf]
      %v378 = vld [vmem:[%s166 + $0x330] sm:$0xf]
      %v379 = vld [vmem:[%s166 + $0x334] sm:$0xf]
      %v380 = vld [vmem:[%s166 + $0x338] sm:$0xf]
      %v381 = vld [vmem:[%s166 + $0x33c] sm:$0xf]
      %v382 = vld [vmem:[%s166 + $0x340] sm:$0xf]
      %v383 = vld [vmem:[%s166 + $0x344] sm:$0xf]
      %v384 = vld [vmem:[%s166 + $0x348] sm:$0xf]
      %v385 = vld [vmem:[%s166 + $0x34c] sm:$0xf]
      %v386 = vld [vmem:[%s166 + $0x350] sm:$0xf]
      %v387 = vld [vmem:[%s166 + $0x354] sm:$0xf]
      %v388 = vld [vmem:[%s166 + $0x358] sm:$0xf]
      %v389 = vld [vmem:[%s166 + $0x35c] sm:$0xf]
      %v390 = vld [vmem:[%s1] sm:$0xf]
      %v391 = vld [vmem:[%s1 + $0x4] sm:$0xf]
      %v392 = vld [vmem:[%s1 + $0x8] sm:$0xf]
      %v393 = vld [vmem:[%s1 + $0xc] sm:$0xf]
      %v394 = vld [vmem:[%s1 + $0x10] sm:$0xf]
      %v395 = vld [vmem:[%s1 + $0x14] sm:$0xf]
      %v396 = vld [vmem:[%s1 + $0x18] sm:$0xf]
      %v397 = vld [vmem:[%s1 + $0x1c] sm:$0xf]
      %v398 = vld [vmem:[%s1 + $0x20] sm:$0xf]
      %v399 = vld [vmem:[%s1 + $0x24] sm:$0xf]
      %v400 = vld [vmem:[%s1 + $0x28] sm:$0xf]
      %v401 = vld [vmem:[%s1 + $0x2c] sm:$0xf]
      %v402 = vld [vmem:[%s1 + $0x30] sm:$0xf]
      %v403 = vld [vmem:[%s1 + $0x34] sm:$0xf]
      %v404 = vld [vmem:[%s1 + $0x38] sm:$0xf]
      %v405 = vld [vmem:[%s1 + $0x3c] sm:$0xf]
      %v406 = vld [vmem:[%s2] sm:$0x1]
      %v408 = vperm.slane %v406, 0
      %v626 = vunpack.c.l.b16 %v174
      %v627 = vunpack.c.l.b16 %v175
      %v628 = vunpack.c.l.b16 %v176
      %v629 = vunpack.c.l.b16 %v177
      %v630 = vunpack.c.l.b16 %v178
      %v631 = vunpack.c.l.b16 %v179
      %v632 = vunpack.c.l.b16 %v180
      %v633 = vunpack.c.l.b16 %v181
      %v634 = vunpack.c.l.b16 %v182
      %v635 = vunpack.c.l.b16 %v183
      %v636 = vunpack.c.l.b16 %v184
      %v637 = vunpack.c.l.b16 %v185
      %v638 = vunpack.c.l.b16 %v186
      %v639 = vunpack.c.l.b16 %v187
      %v640 = vunpack.c.l.b16 %v188
      %v641 = vunpack.c.l.b16 %v189
      %v642 = vunpack.c.l.b16 %v190
      %v643 = vunpack.c.l.b16 %v191
      %v644 = vunpack.c.l.b16 %v192
      %v645 = vunpack.c.l.b16 %v193
      %v646 = vunpack.c.l.b16 %v194
      %v647 = vunpack.c.l.b16 %v195
      %v648 = vunpack.c.l.b16 %v196
      %v649 = vunpack.c.l.b16 %v197
      %v650 = vunpack.c.l.b16 %v198
      %v651 = vunpack.c.l.b16 %v199
      %v652 = vunpack.c.l.b16 %v200
      %v653 = vunpack.c.l.b16 %v201
      %v654 = vunpack.c.l.b16 %v202
      %v655 = vunpack.c.l.b16 %v203
      %v656 = vunpack.c.l.b16 %v204
      %v657 = vunpack.c.l.b16 %v205
      %v658 = vunpack.c.l.b16 %v206
      %v659 = vunpack.c.l.b16 %v207
      %v660 = vunpack.c.l.b16 %v208
      %v661 = vunpack.c.l.b16 %v209
      %v662 = vunpack.c.l.b16 %v210
      %v663 = vunpack.c.l.b16 %v211
      %v664 = vunpack.c.l.b16 %v212
      %v665 = vunpack.c.l.b16 %v213
      %v666 = vunpack.c.l.b16 %v214
      %v667 = vunpack.c.l.b16 %v215
      %v668 = vunpack.c.l.b16 %v216
      %v669 = vunpack.c.l.b16 %v217
      %v670 = vunpack.c.l.b16 %v218
      %v671 = vunpack.c.l.b16 %v219
      %v672 = vunpack.c.l.b16 %v220
      %v673 = vunpack.c.l.b16 %v221
      %v674 = vunpack.c.l.b16 %v222
      %v675 = vunpack.c.l.b16 %v223
      %v676 = vunpack.c.l.b16 %v224
      %v677 = vunpack.c.l.b16 %v225
      %v678 = vunpack.c.l.b16 %v226
      %v679 = vunpack.c.l.b16 %v227
      %v680 = vunpack.c.l.b16 %v228
      %v681 = vunpack.c.l.b16 %v229
      %v682 = vunpack.c.l.b16 %v230
      %v683 = vunpack.c.l.b16 %v231
      %v684 = vunpack.c.l.b16 %v232
      %v685 = vunpack.c.l.b16 %v233
      %v686 = vunpack.c.l.b16 %v234
      %v687 = vunpack.c.l.b16 %v235
      %v688 = vunpack.c.l.b16 %v236
      %v689 = vunpack.c.l.b16 %v237
      %v690 = vunpack.c.l.b16 %v238
      %v691 = vunpack.c.l.b16 %v239
      %v692 = vunpack.c.l.b16 %v240
      %v693 = vunpack.c.l.b16 %v241
      %v694 = vunpack.c.l.b16 %v242
      %v695 = vunpack.c.l.b16 %v243
      %v696 = vunpack.c.l.b16 %v244
      %v697 = vunpack.c.l.b16 %v245
      %v698 = vunpack.c.l.b16 %v246
      %v699 = vunpack.c.l.b16 %v247
      %v700 = vunpack.c.l.b16 %v248
      %v701 = vunpack.c.l.b16 %v249
      %v702 = vunpack.c.l.b16 %v250
      %v703 = vunpack.c.l.b16 %v251
      %v704 = vunpack.c.l.b16 %v252
      %v705 = vunpack.c.l.b16 %v253
      %v706 = vunpack.c.l.b16 %v254
      %v707 = vunpack.c.l.b16 %v255
      %v708 = vunpack.c.l.b16 %v256
      %v709 = vunpack.c.l.b16 %v257
      %v710 = vunpack.c.l.b16 %v258
      %v711 = vunpack.c.l.b16 %v259
      %v712 = vunpack.c.l.b16 %v260
      %v713 = vunpack.c.l.b16 %v261
      %v714 = vunpack.c.l.b16 %v262
      %v715 = vunpack.c.l.b16 %v263
      %v716 = vunpack.c.l.b16 %v264
      %v717 = vunpack.c.l.b16 %v265
      %v718 = vunpack.c.l.b16 %v266
      %v719 = vunpack.c.l.b16 %v267
      %v720 = vunpack.c.l.b16 %v268
      %v721 = vunpack.c.l.b16 %v269
      %v722 = vunpack.c.l.b16 %v270
      %v723 = vunpack.c.l.b16 %v271
      %v724 = vunpack.c.l.b16 %v272
      %v725 = vunpack.c.l.b16 %v273
      %v726 = vunpack.c.l.b16 %v274
      %v727 = vunpack.c.l.b16 %v275
      %v728 = vunpack.c.l.b16 %v276
      %v729 = vunpack.c.l.b16 %v277
      %v730 = vunpack.c.l.b16 %v278
      %v731 = vunpack.c.l.b16 %v279
      %v732 = vunpack.c.l.b16 %v280
      %v733 = vunpack.c.l.b16 %v281
      %v734 = vunpack.c.l.b16 %v282
      %v735 = vunpack.c.l.b16 %v283
      %v736 = vunpack.c.l.b16 %v284
      %v737 = vunpack.c.l.b16 %v285
      %v738 = vunpack.c.l.b16 %v286
      %v739 = vunpack.c.l.b16 %v287
      %v740 = vunpack.c.l.b16 %v288
      %v741 = vunpack.c.l.b16 %v289
      %v742 = vunpack.c.l.b16 %v290
      %v743 = vunpack.c.l.b16 %v291
      %v744 = vunpack.c.l.b16 %v292
      %v745 = vunpack.c.l.b16 %v293
      %v746 = vunpack.c.l.b16 %v294
      %v747 = vunpack.c.l.b16 %v295
      %v748 = vunpack.c.l.b16 %v296
      %v749 = vunpack.c.l.b16 %v297
      %v750 = vunpack.c.l.b16 %v298
      %v751 = vunpack.c.l.b16 %v299
      %v752 = vunpack.c.l.b16 %v300
      %v753 = vunpack.c.l.b16 %v301
      %v754 = vunpack.c.l.b16 %v302
      %v755 = vunpack.c.l.b16 %v303
      %v756 = vunpack.c.l.b16 %v304
      %v757 = vunpack.c.l.b16 %v305
      %v758 = vunpack.c.l.b16 %v306
      %v759 = vunpack.c.l.b16 %v307
      %v760 = vunpack.c.l.b16 %v308
      %v761 = vunpack.c.l.b16 %v309
      %v762 = vunpack.c.l.b16 %v310
      %v763 = vunpack.c.l.b16 %v311
      %v764 = vunpack.c.l.b16 %v312
      %v765 = vunpack.c.l.b16 %v313
      %v766 = vunpack.c.l.b16 %v314
      %v767 = vunpack.c.l.b16 %v315
      %v768 = vunpack.c.l.b16 %v316
      %v769 = vunpack.c.l.b16 %v317
      %v770 = vunpack.c.l.b16 %v318
      %v771 = vunpack.c.l.b16 %v319
      %v772 = vunpack.c.l.b16 %v320
      %v773 = vunpack.c.l.b16 %v321
      %v774 = vunpack.c.l.b16 %v322
      %v775 = vunpack.c.l.b16 %v323
      %v776 = vunpack.c.l.b16 %v324
      %v777 = vunpack.c.l.b16 %v325
      %v778 = vunpack.c.l.b16 %v326
      %v779 = vunpack.c.l.b16 %v327
      %v780 = vunpack.c.l.b16 %v328
      %v781 = vunpack.c.l.b16 %v329
      %v782 = vunpack.c.l.b16 %v330
      %v783 = vunpack.c.l.b16 %v331
      %v784 = vunpack.c.l.b16 %v332
      %v785 = vunpack.c.l.b16 %v333
      %v786 = vunpack.c.l.b16 %v334
      %v787 = vunpack.c.l.b16 %v335
      %v788 = vunpack.c.l.b16 %v336
      %v789 = vunpack.c.l.b16 %v337
      %v790 = vunpack.c.l.b16 %v338
      %v791 = vunpack.c.l.b16 %v339
      %v792 = vunpack.c.l.b16 %v340
      %v793 = vunpack.c.l.b16 %v341
      %v794 = vunpack.c.l.b16 %v342
      %v795 = vunpack.c.l.b16 %v343
      %v796 = vunpack.c.l.b16 %v344
      %v797 = vunpack.c.l.b16 %v345
      %v798 = vunpack.c.l.b16 %v346
      %v799 = vunpack.c.l.b16 %v347
      %v800 = vunpack.c.l.b16 %v348
      %v801 = vunpack.c.l.b16 %v349
      %v802 = vunpack.c.l.b16 %v350
      %v803 = vunpack.c.l.b16 %v351
      %v804 = vunpack.c.l.b16 %v352
      %v805 = vunpack.c.l.b16 %v353
      %v806 = vunpack.c.l.b16 %v354
      %v807 = vunpack.c.l.b16 %v355
      %v808 = vunpack.c.l.b16 %v356
      %v809 = vunpack.c.l.b16 %v357
      %v810 = vunpack.c.l.b16 %v358
      %v811 = vunpack.c.l.b16 %v359
      %v812 = vunpack.c.l.b16 %v360
      %v813 = vunpack.c.l.b16 %v361
      %v814 = vunpack.c.l.b16 %v362
      %v815 = vunpack.c.l.b16 %v363
      %v816 = vunpack.c.l.b16 %v364
      %v817 = vunpack.c.l.b16 %v365
      %v818 = vunpack.c.l.b16 %v366
      %v819 = vunpack.c.l.b16 %v367
      %v820 = vunpack.c.l.b16 %v368
      %v821 = vunpack.c.l.b16 %v369
      %v822 = vunpack.c.l.b16 %v370
      %v823 = vunpack.c.l.b16 %v371
      %v824 = vunpack.c.l.b16 %v372
      %v825 = vunpack.c.l.b16 %v373
      %v826 = vunpack.c.l.b16 %v374
      %v827 = vunpack.c.l.b16 %v375
      %v828 = vunpack.c.l.b16 %v376
      %v829 = vunpack.c.l.b16 %v377
      %v830 = vunpack.c.l.b16 %v378
      %v831 = vunpack.c.l.b16 %v379
      %v832 = vunpack.c.l.b16 %v380
      %v833 = vunpack.c.l.b16 %v381
      %v834 = vunpack.c.l.b16 %v382
      %v835 = vunpack.c.l.b16 %v383
      %v836 = vunpack.c.l.b16 %v384
      %v837 = vunpack.c.l.b16 %v385
      %v838 = vunpack.c.l.b16 %v386
      %v839 = vunpack.c.l.b16 %v387
      %v840 = vunpack.c.l.b16 %v388
      %v841 = vunpack.c.l.b16 %v389
      %v842 = vpack.c.b16 %v627, %v626
      %v843 = vpack.c.b16 %v629, %v628
      %v844 = vpack.c.b16 %v631, %v630
      %v845 = vpack.c.b16 %v633, %v632
      %v846 = vpack.c.b16 %v635, %v634
      %v847 = vpack.c.b16 %v637, %v636
      %v848 = vpack.c.b16 %v639, %v638
      %v849 = vpack.c.b16 %v641, %v640
      %v850 = vpack.c.b16 %v643, %v642
      %v851 = vpack.c.b16 %v645, %v644
      %v852 = vpack.c.b16 %v647, %v646
      %v853 = vpack.c.b16 %v649, %v648
      %v854 = vpack.c.b16 %v651, %v650
      %v855 = vpack.c.b16 %v653, %v652
      %v856 = vpack.c.b16 %v655, %v654
      %v857 = vpack.c.b16 %v657, %v656
      %v858 = vpack.c.b16 %v659, %v658
      %v859 = vpack.c.b16 %v661, %v660
      %v860 = vpack.c.b16 %v663, %v662
      %v861 = vpack.c.b16 %v665, %v664
      %v862 = vpack.c.b16 %v667, %v666
      %v863 = vpack.c.b16 %v669, %v668
      %v864 = vpack.c.b16 %v671, %v670
      %v865 = vpack.c.b16 %v673, %v672
      %v866 = vpack.c.b16 %v675, %v674
      %v867 = vpack.c.b16 %v677, %v676
      %v868 = vpack.c.b16 %v679, %v678
      %v869 = vpack.c.b16 %v681, %v680
      %v870 = vpack.c.b16 %v683, %v682
      %v871 = vpack.c.b16 %v685, %v684
      %v872 = vpack.c.b16 %v687, %v686
      %v873 = vpack.c.b16 %v689, %v688
      %v874 = vpack.c.b16 %v691, %v690
      %v875 = vpack.c.b16 %v693, %v692
      %v876 = vpack.c.b16 %v695, %v694
      %v877 = vpack.c.b16 %v697, %v696
      %v878 = vpack.c.b16 %v699, %v698
      %v879 = vpack.c.b16 %v701, %v700
      %v880 = vpack.c.b16 %v703, %v702
      %v881 = vpack.c.b16 %v705, %v704
      %v882 = vpack.c.b16 %v707, %v706
      %v883 = vpack.c.b16 %v709, %v708
      %v884 = vpack.c.b16 %v711, %v710
      %v885 = vpack.c.b16 %v713, %v712
      %v886 = vpack.c.b16 %v715, %v714
      %v887 = vpack.c.b16 %v717, %v716
      %v888 = vpack.c.b16 %v719, %v718
      %v889 = vpack.c.b16 %v721, %v720
      %v890 = vpack.c.b16 %v723, %v722
      %v891 = vpack.c.b16 %v725, %v724
      %v892 = vpack.c.b16 %v727, %v726
      %v893 = vpack.c.b16 %v729, %v728
      %v894 = vpack.c.b16 %v731, %v730
      %v895 = vpack.c.b16 %v733, %v732
      %v896 = vpack.c.b16 %v735, %v734
      %v897 = vpack.c.b16 %v737, %v736
      %v898 = vpack.c.b16 %v739, %v738
      %v899 = vpack.c.b16 %v741, %v740
      %v900 = vpack.c.b16 %v743, %v742
      %v901 = vpack.c.b16 %v745, %v744
      %v902 = vpack.c.b16 %v747, %v746
      %v903 = vpack.c.b16 %v749, %v748
      %v904 = vpack.c.b16 %v751, %v750
      %v905 = vpack.c.b16 %v753, %v752
      %v906 = vpack.c.b16 %v755, %v754
      %v907 = vpack.c.b16 %v757, %v756
      %v908 = vpack.c.b16 %v759, %v758
      %v909 = vpack.c.b16 %v761, %v760
      %v910 = vpack.c.b16 %v763, %v762
      %v911 = vpack.c.b16 %v765, %v764
      %v912 = vpack.c.b16 %v767, %v766
      %v913 = vpack.c.b16 %v769, %v768
      %v914 = vpack.c.b16 %v771, %v770
      %v915 = vpack.c.b16 %v773, %v772
      %v916 = vpack.c.b16 %v775, %v774
      %v917 = vpack.c.b16 %v777, %v776
      %v918 = vpack.c.b16 %v779, %v778
      %v919 = vpack.c.b16 %v781, %v780
      %v920 = vpack.c.b16 %v783, %v782
      %v921 = vpack.c.b16 %v785, %v784
      %v922 = vpack.c.b16 %v787, %v786
      %v923 = vpack.c.b16 %v789, %v788
      %v924 = vpack.c.b16 %v791, %v790
      %v925 = vpack.c.b16 %v793, %v792
      %v926 = vpack.c.b16 %v795, %v794
      %v927 = vpack.c.b16 %v797, %v796
      %v928 = vpack.c.b16 %v799, %v798
      %v929 = vpack.c.b16 %v801, %v800
      %v930 = vpack.c.b16 %v803, %v802
      %v931 = vpack.c.b16 %v805, %v804
      %v932 = vpack.c.b16 %v807, %v806
      %v933 = vpack.c.b16 %v809, %v808
      %v934 = vpack.c.b16 %v811, %v810
      %v935 = vpack.c.b16 %v813, %v812
      %v936 = vpack.c.b16 %v815, %v814
      %v937 = vpack.c.b16 %v817, %v816
      %v938 = vpack.c.b16 %v819, %v818
      %v939 = vpack.c.b16 %v821, %v820
      %v940 = vpack.c.b16 %v823, %v822
      %v941 = vpack.c.b16 %v825, %v824
      %v942 = vpack.c.b16 %v827, %v826
      %v943 = vpack.c.b16 %v829, %v828
      %v944 = vpack.c.b16 %v831, %v830
      %v945 = vpack.c.b16 %v833, %v832
      %v946 = vpack.c.b16 %v835, %v834
      %v947 = vpack.c.b16 %v837, %v836
      %v948 = vpack.c.b16 %v839, %v838
      %v949 = vpack.c.b16 %v841, %v840
      %v1074 = vunpack.c.l.b16 %v390
      %v1075 = vunpack.c.l.b16 %v391
      %v1076 = vunpack.c.l.b16 %v392
      %v1077 = vunpack.c.l.b16 %v393
      %v1078 = vunpack.c.l.b16 %v394
      %v1079 = vunpack.c.l.b16 %v395
      %v1080 = vunpack.c.l.b16 %v396
      %v1081 = vunpack.c.l.b16 %v397
      %v1082 = vunpack.c.l.b16 %v398
      %v1083 = vunpack.c.l.b16 %v399
      %v1084 = vunpack.c.l.b16 %v400
      %v1085 = vunpack.c.l.b16 %v401
      %v1086 = vunpack.c.l.b16 %v402
      %v1087 = vunpack.c.l.b16 %v403
      %v1088 = vunpack.c.l.b16 %v404
      %v1089 = vunpack.c.l.b16 %v405
      %v1090 = vpack.c.b16 %v1075, %v1074
      %v1091 = vpack.c.b16 %v1077, %v1076
      %v1092 = vpack.c.b16 %v1079, %v1078
      %v1093 = vpack.c.b16 %v1081, %v1080
      %v1094 = vpack.c.b16 %v1083, %v1082
      %v1095 = vpack.c.b16 %v1085, %v1084
      %v1096 = vpack.c.b16 %v1087, %v1086
      %v1097 = vpack.c.b16 %v1089, %v1088
      %1106 = vmatpush.bf16.msra.mxu0 %v1097
      %1107 = vmatpush.bf16.msra.mxu0 %v1096
      %1108 = vmatpush.bf16.msra.mxu0 %v1095
      %1109 = vmatpush.bf16.msra.mxu0 %v1094
      %1110 = vmatpush.bf16.msra.mxu0 %v1093
      %1111 = vmatpush.bf16.msra.mxu0 %v1092
      %1112 = vmatpush.bf16.msra.mxu0 %v1091
      %1113 = vmatpush.bf16.msra.mxu0 %v1090
      %1114 = vmatmul.bf16.gmra.mxu0 %v842
      %v1115 = vpop.f32.mrf.mxu0
      %v1116 = vadd.f32 %v408, %v1115
      %v1117 = vpop.f32.mrf.mxu0
      %v1118 = vadd.f32 %v408, %v1117
      %1119 = vmatmul.bf16.gmra.mxu0 %v843
      %v1120 = vpop.f32.mrf.mxu0
      %v1121 = vadd.f32 %v408, %v1120
      %v1122 = vpop.f32.mrf.mxu0
      %v1123 = vadd.f32 %v408, %v1122
      %1124 = vmatmul.bf16.gmra.mxu0 %v844
      %v1125 = vpop.f32.mrf.mxu0
      %v1126 = vadd.f32 %v408, %v1125
      %v1127 = vpop.f32.mrf.mxu0
      %v1128 = vadd.f32 %v408, %v1127
      %1129 = vmatmul.bf16.gmra.mxu0 %v845
      %v1130 = vpop.f32.mrf.mxu0
      %v1131 = vadd.f32 %v408, %v1130
      %v1132 = vpop.f32.mrf.mxu0
      %v1133 = vadd.f32 %v408, %v1132
      %1134 = vmatmul.bf16.gmra.mxu0 %v846
      %v1135 = vpop.f32.mrf.mxu0
      %v1136 = vadd.f32 %v408, %v1135
      %v1137 = vpop.f32.mrf.mxu0
      %v1138 = vadd.f32 %v408, %v1137
      %1139 = vmatmul.bf16.gmra.mxu0 %v847
      %v1140 = vpop.f32.mrf.mxu0
      %v1141 = vadd.f32 %v408, %v1140
      %v1142 = vpop.f32.mrf.mxu0
      %v1143 = vadd.f32 %v408, %v1142
      %1144 = vmatmul.bf16.gmra.mxu0 %v848
      %v1145 = vpop.f32.mrf.mxu0
      %v1146 = vadd.f32 %v408, %v1145
      %v1147 = vpop.f32.mrf.mxu0
      %v1148 = vadd.f32 %v408, %v1147
      %1149 = vmatmul.bf16.gmra.mxu0 %v849
      %v1150 = vpop.f32.mrf.mxu0
      %v1151 = vadd.f32 %v408, %v1150
      %v1152 = vpop.f32.mrf.mxu0
      %v1153 = vadd.f32 %v408, %v1152
      %1154 = vmatmul.bf16.gmra.mxu0 %v850
      %v1155 = vpop.f32.mrf.mxu0
      %v1156 = vadd.f32 %v408, %v1155
      %v1157 = vpop.f32.mrf.mxu0
      %v1158 = vadd.f32 %v408, %v1157
      %1159 = vmatmul.bf16.gmra.mxu0 %v851
      %v1160 = vpop.f32.mrf.mxu0
      %v1161 = vadd.f32 %v408, %v1160
      %v1162 = vpop.f32.mrf.mxu0
      %v1163 = vadd.f32 %v408, %v1162
      %1164 = vmatmul.bf16.gmra.mxu0 %v852
      %v1165 = vpop.f32.mrf.mxu0
      %v1166 = vadd.f32 %v408, %v1165
      %v1167 = vpop.f32.mrf.mxu0
      %v1168 = vadd.f32 %v408, %v1167
      %1169 = vmatmul.bf16.gmra.mxu0 %v853
      %v1170 = vpop.f32.mrf.mxu0
      %v1171 = vadd.f32 %v408, %v1170
      %v1172 = vpop.f32.mrf.mxu0
      %v1173 = vadd.f32 %v408, %v1172
      %1174 = vmatmul.bf16.gmra.mxu0 %v854
      %v1175 = vpop.f32.mrf.mxu0
      %v1176 = vadd.f32 %v408, %v1175
      %v1177 = vpop.f32.mrf.mxu0
      %v1178 = vadd.f32 %v408, %v1177
      %1179 = vmatmul.bf16.gmra.mxu0 %v855
      %v1180 = vpop.f32.mrf.mxu0
      %v1181 = vadd.f32 %v408, %v1180
      %v1182 = vpop.f32.mrf.mxu0
      %v1183 = vadd.f32 %v408, %v1182
      %1184 = vmatmul.bf16.gmra.mxu0 %v856
      %v1185 = vpop.f32.mrf.mxu0
      %v1186 = vadd.f32 %v408, %v1185
      %v1187 = vpop.f32.mrf.mxu0
      %v1188 = vadd.f32 %v408, %v1187
      %1189 = vmatmul.bf16.gmra.mxu0 %v857
      %v1190 = vpop.f32.mrf.mxu0
      %v1191 = vadd.f32 %v408, %v1190
      %v1192 = vpop.f32.mrf.mxu0
      %v1193 = vadd.f32 %v408, %v1192
      %1194 = vmatmul.bf16.gmra.mxu0 %v858
      %v1195 = vpop.f32.mrf.mxu0
      %v1196 = vadd.f32 %v408, %v1195
      %v1197 = vpop.f32.mrf.mxu0
      %v1198 = vadd.f32 %v408, %v1197
      %1199 = vmatmul.bf16.gmra.mxu0 %v859
      %v1200 = vpop.f32.mrf.mxu0
      %v1201 = vadd.f32 %v408, %v1200
      %v1202 = vpop.f32.mrf.mxu0
      %v1203 = vadd.f32 %v408, %v1202
      %1204 = vmatmul.bf16.gmra.mxu0 %v860
      %v1205 = vpop.f32.mrf.mxu0
      %v1206 = vadd.f32 %v408, %v1205
      %v1207 = vpop.f32.mrf.mxu0
      %v1208 = vadd.f32 %v408, %v1207
      %1209 = vmatmul.bf16.gmra.mxu0 %v861
      %v1210 = vpop.f32.mrf.mxu0
      %v1211 = vadd.f32 %v408, %v1210
      %v1212 = vpop.f32.mrf.mxu0
      %v1213 = vadd.f32 %v408, %v1212
      %1214 = vmatmul.bf16.gmra.mxu0 %v862
      %v1215 = vpop.f32.mrf.mxu0
      %v1216 = vadd.f32 %v408, %v1215
      %v1217 = vpop.f32.mrf.mxu0
      %v1218 = vadd.f32 %v408, %v1217
      %1219 = vmatmul.bf16.gmra.mxu0 %v863
      %v1220 = vpop.f32.mrf.mxu0
      %v1221 = vadd.f32 %v408, %v1220
      %v1222 = vpop.f32.mrf.mxu0
      %v1223 = vadd.f32 %v408, %v1222
      %1224 = vmatmul.bf16.gmra.mxu0 %v864
      %v1225 = vpop.f32.mrf.mxu0
      %v1226 = vadd.f32 %v408, %v1225
      %v1227 = vpop.f32.mrf.mxu0
      %v1228 = vadd.f32 %v408, %v1227
      %1229 = vmatmul.bf16.gmra.mxu0 %v865
      %v1230 = vpop.f32.mrf.mxu0
      %v1231 = vadd.f32 %v408, %v1230
      %v1232 = vpop.f32.mrf.mxu0
      %v1233 = vadd.f32 %v408, %v1232
      %1234 = vmatmul.bf16.gmra.mxu0 %v866
      %v1235 = vpop.f32.mrf.mxu0
      %v1236 = vadd.f32 %v408, %v1235
      %v1237 = vpop.f32.mrf.mxu0
      %v1238 = vadd.f32 %v408, %v1237
      %1239 = vmatmul.bf16.gmra.mxu0 %v867
      %v1240 = vpop.f32.mrf.mxu0
      %v1241 = vadd.f32 %v408, %v1240
      %v1242 = vpop.f32.mrf.mxu0
      %v1243 = vadd.f32 %v408, %v1242
      %1244 = vmatmul.bf16.gmra.mxu0 %v868
      %v1245 = vpop.f32.mrf.mxu0
      %v1246 = vadd.f32 %v408, %v1245
      %v1247 = vpop.f32.mrf.mxu0
      %v1248 = vadd.f32 %v408, %v1247
      %1249 = vmatmul.bf16.gmra.mxu0 %v869
      %v1250 = vpop.f32.mrf.mxu0
      %v1251 = vadd.f32 %v408, %v1250
      %v1252 = vpop.f32.mrf.mxu0
      %v1253 = vadd.f32 %v408, %v1252
      %1254 = vmatmul.bf16.gmra.mxu0 %v870
      %v1255 = vpop.f32.mrf.mxu0
      %v1256 = vadd.f32 %v408, %v1255
      %v1257 = vpop.f32.mrf.mxu0
      %v1258 = vadd.f32 %v408, %v1257
      %1259 = vmatmul.bf16.gmra.mxu0 %v871
      %v1260 = vpop.f32.mrf.mxu0
      %v1261 = vadd.f32 %v408, %v1260
      %v1262 = vpop.f32.mrf.mxu0
      %v1263 = vadd.f32 %v408, %v1262
      %1264 = vmatmul.bf16.gmra.mxu0 %v872
      %v1265 = vpop.f32.mrf.mxu0
      %v1266 = vadd.f32 %v408, %v1265
      %v1267 = vpop.f32.mrf.mxu0
      %v1268 = vadd.f32 %v408, %v1267
      %1269 = vmatmul.bf16.gmra.mxu0 %v873
      %v1270 = vpop.f32.mrf.mxu0
      %v1271 = vadd.f32 %v408, %v1270
      %v1272 = vpop.f32.mrf.mxu0
      %v1273 = vadd.f32 %v408, %v1272
      %1274 = vmatmul.bf16.gmra.mxu0 %v874
      %v1275 = vpop.f32.mrf.mxu0
      %v1276 = vadd.f32 %v408, %v1275
      %v1277 = vpop.f32.mrf.mxu0
      %v1278 = vadd.f32 %v408, %v1277
      %1279 = vmatmul.bf16.gmra.mxu0 %v875
      %v1280 = vpop.f32.mrf.mxu0
      %v1281 = vadd.f32 %v408, %v1280
      %v1282 = vpop.f32.mrf.mxu0
      %v1283 = vadd.f32 %v408, %v1282
      %1284 = vmatmul.bf16.gmra.mxu0 %v876
      %v1285 = vpop.f32.mrf.mxu0
      %v1286 = vadd.f32 %v408, %v1285
      %v1287 = vpop.f32.mrf.mxu0
      %v1288 = vadd.f32 %v408, %v1287
      %1289 = vmatmul.bf16.gmra.mxu0 %v877
      %v1290 = vpop.f32.mrf.mxu0
      %v1291 = vadd.f32 %v408, %v1290
      %v1292 = vpop.f32.mrf.mxu0
      %v1293 = vadd.f32 %v408, %v1292
      %1294 = vmatmul.bf16.gmra.mxu0 %v878
      %v1295 = vpop.f32.mrf.mxu0
      %v1296 = vadd.f32 %v408, %v1295
      %v1297 = vpop.f32.mrf.mxu0
      %v1298 = vadd.f32 %v408, %v1297
      %1299 = vmatmul.bf16.gmra.mxu0 %v879
      %v1300 = vpop.f32.mrf.mxu0
      %v1301 = vadd.f32 %v408, %v1300
      %v1302 = vpop.f32.mrf.mxu0
      %v1303 = vadd.f32 %v408, %v1302
      %1304 = vmatmul.bf16.gmra.mxu0 %v880
      %v1305 = vpop.f32.mrf.mxu0
      %v1306 = vadd.f32 %v408, %v1305
      %v1307 = vpop.f32.mrf.mxu0
      %v1308 = vadd.f32 %v408, %v1307
      %1309 = vmatmul.bf16.gmra.mxu0 %v881
      %v1310 = vpop.f32.mrf.mxu0
      %v1311 = vadd.f32 %v408, %v1310
      %v1312 = vpop.f32.mrf.mxu0
      %v1313 = vadd.f32 %v408, %v1312
      %1314 = vmatmul.bf16.gmra.mxu0 %v882
      %v1315 = vpop.f32.mrf.mxu0
      %v1316 = vadd.f32 %v408, %v1315
      %v1317 = vpop.f32.mrf.mxu0
      %v1318 = vadd.f32 %v408, %v1317
      %1319 = vmatmul.bf16.gmra.mxu0 %v883
      %v1320 = vpop.f32.mrf.mxu0
      %v1321 = vadd.f32 %v408, %v1320
      %v1322 = vpop.f32.mrf.mxu0
      %v1323 = vadd.f32 %v408, %v1322
      %1324 = vmatmul.bf16.gmra.mxu0 %v884
      %v1325 = vpop.f32.mrf.mxu0
      %v1326 = vadd.f32 %v408, %v1325
      %v1327 = vpop.f32.mrf.mxu0
      %v1328 = vadd.f32 %v408, %v1327
      %1329 = vmatmul.bf16.gmra.mxu0 %v885
      %v1330 = vpop.f32.mrf.mxu0
      %v1331 = vadd.f32 %v408, %v1330
      %v1332 = vpop.f32.mrf.mxu0
      %v1333 = vadd.f32 %v408, %v1332
      %1334 = vmatmul.bf16.gmra.mxu0 %v886
      %v1335 = vpop.f32.mrf.mxu0
      %v1336 = vadd.f32 %v408, %v1335
      %v1337 = vpop.f32.mrf.mxu0
      %v1338 = vadd.f32 %v408, %v1337
      %1339 = vmatmul.bf16.gmra.mxu0 %v887
      %v1340 = vpop.f32.mrf.mxu0
      %v1341 = vadd.f32 %v408, %v1340
      %v1342 = vpop.f32.mrf.mxu0
      %v1343 = vadd.f32 %v408, %v1342
      %1344 = vmatmul.bf16.gmra.mxu0 %v888
      %v1345 = vpop.f32.mrf.mxu0
      %v1346 = vadd.f32 %v408, %v1345
      %v1347 = vpop.f32.mrf.mxu0
      %v1348 = vadd.f32 %v408, %v1347
      %1349 = vmatmul.bf16.gmra.mxu0 %v889
      %v1350 = vpop.f32.mrf.mxu0
      %v1351 = vadd.f32 %v408, %v1350
      %v1352 = vpop.f32.mrf.mxu0
      %v1353 = vadd.f32 %v408, %v1352
      %1354 = vmatmul.bf16.gmra.mxu0 %v890
      %v1355 = vpop.f32.mrf.mxu0
      %v1356 = vadd.f32 %v408, %v1355
      %v1357 = vpop.f32.mrf.mxu0
      %v1358 = vadd.f32 %v408, %v1357
      %1359 = vmatmul.bf16.gmra.mxu0 %v891
      %v1360 = vpop.f32.mrf.mxu0
      %v1361 = vadd.f32 %v408, %v1360
      %v1362 = vpop.f32.mrf.mxu0
      %v1363 = vadd.f32 %v408, %v1362
      %1364 = vmatmul.bf16.gmra.mxu0 %v892
      %v1365 = vpop.f32.mrf.mxu0
      %v1366 = vadd.f32 %v408, %v1365
      %v1367 = vpop.f32.mrf.mxu0
      %v1368 = vadd.f32 %v408, %v1367
      %1369 = vmatmul.bf16.gmra.mxu0 %v893
      %v1370 = vpop.f32.mrf.mxu0
      %v1371 = vadd.f32 %v408, %v1370
      %v1372 = vpop.f32.mrf.mxu0
      %v1373 = vadd.f32 %v408, %v1372
      %1374 = vmatmul.bf16.gmra.mxu0 %v894
      %v1375 = vpop.f32.mrf.mxu0
      %v1376 = vadd.f32 %v408, %v1375
      %v1377 = vpop.f32.mrf.mxu0
      %v1378 = vadd.f32 %v408, %v1377
      %1379 = vmatmul.bf16.gmra.mxu0 %v895
      %v1380 = vpop.f32.mrf.mxu0
      %v1381 = vadd.f32 %v408, %v1380
      %v1382 = vpop.f32.mrf.mxu0
      %v1383 = vadd.f32 %v408, %v1382
      %1384 = vmatmul.bf16.gmra.mxu0 %v896
      %v1385 = vpop.f32.mrf.mxu0
      %v1386 = vadd.f32 %v408, %v1385
      %v1387 = vpop.f32.mrf.mxu0
      %v1388 = vadd.f32 %v408, %v1387
      %1389 = vmatmul.bf16.gmra.mxu0 %v897
      %v1390 = vpop.f32.mrf.mxu0
      %v1391 = vadd.f32 %v408, %v1390
      %v1392 = vpop.f32.mrf.mxu0
      %v1393 = vadd.f32 %v408, %v1392
      %1394 = vmatmul.bf16.gmra.mxu0 %v898
      %v1395 = vpop.f32.mrf.mxu0
      %v1396 = vadd.f32 %v408, %v1395
      %v1397 = vpop.f32.mrf.mxu0
      %v1398 = vadd.f32 %v408, %v1397
      %1399 = vmatmul.bf16.gmra.mxu0 %v899
      %v1400 = vpop.f32.mrf.mxu0
      %v1401 = vadd.f32 %v408, %v1400
      %v1402 = vpop.f32.mrf.mxu0
      %v1403 = vadd.f32 %v408, %v1402
      %1404 = vmatmul.bf16.gmra.mxu0 %v900
      %v1405 = vpop.f32.mrf.mxu0
      %v1406 = vadd.f32 %v408, %v1405
      %v1407 = vpop.f32.mrf.mxu0
      %v1408 = vadd.f32 %v408, %v1407
      %1409 = vmatmul.bf16.gmra.mxu0 %v901
      %v1410 = vpop.f32.mrf.mxu0
      %v1411 = vadd.f32 %v408, %v1410
      %v1412 = vpop.f32.mrf.mxu0
      %v1413 = vadd.f32 %v408, %v1412
      %1414 = vmatmul.bf16.gmra.mxu0 %v902
      %v1415 = vpop.f32.mrf.mxu0
      %v1416 = vadd.f32 %v408, %v1415
      %v1417 = vpop.f32.mrf.mxu0
      %v1418 = vadd.f32 %v408, %v1417
      %1419 = vmatmul.bf16.gmra.mxu0 %v903
      %v1420 = vpop.f32.mrf.mxu0
      %v1421 = vadd.f32 %v408, %v1420
      %v1422 = vpop.f32.mrf.mxu0
      %v1423 = vadd.f32 %v408, %v1422
      %1424 = vmatmul.bf16.gmra.mxu0 %v904
      %v1425 = vpop.f32.mrf.mxu0
      %v1426 = vadd.f32 %v408, %v1425
      %v1427 = vpop.f32.mrf.mxu0
      %v1428 = vadd.f32 %v408, %v1427
      %1429 = vmatmul.bf16.gmra.mxu0 %v905
      %v1430 = vpop.f32.mrf.mxu0
      %v1431 = vadd.f32 %v408, %v1430
      %v1432 = vpop.f32.mrf.mxu0
      %v1433 = vadd.f32 %v408, %v1432
      %1434 = vmatmul.bf16.gmra.mxu0 %v906
      %v1435 = vpop.f32.mrf.mxu0
      %v1436 = vadd.f32 %v408, %v1435
      %v1437 = vpop.f32.mrf.mxu0
      %v1438 = vadd.f32 %v408, %v1437
      %1439 = vmatmul.bf16.gmra.mxu0 %v907
      %v1440 = vpop.f32.mrf.mxu0
      %v1441 = vadd.f32 %v408, %v1440
      %v1442 = vpop.f32.mrf.mxu0
      %v1443 = vadd.f32 %v408, %v1442
      %1444 = vmatmul.bf16.gmra.mxu0 %v908
      %v1445 = vpop.f32.mrf.mxu0
      %v1446 = vadd.f32 %v408, %v1445
      %v1447 = vpop.f32.mrf.mxu0
      %v1448 = vadd.f32 %v408, %v1447
      %1449 = vmatmul.bf16.gmra.mxu0 %v909
      %v1450 = vpop.f32.mrf.mxu0
      %v1451 = vadd.f32 %v408, %v1450
      %v1452 = vpop.f32.mrf.mxu0
      %v1453 = vadd.f32 %v408, %v1452
      %1454 = vmatmul.bf16.gmra.mxu0 %v910
      %v1455 = vpop.f32.mrf.mxu0
      %v1456 = vadd.f32 %v408, %v1455
      %v1457 = vpop.f32.mrf.mxu0
      %v1458 = vadd.f32 %v408, %v1457
      %1459 = vmatmul.bf16.gmra.mxu0 %v911
      %v1460 = vpop.f32.mrf.mxu0
      %v1461 = vadd.f32 %v408, %v1460
      %v1462 = vpop.f32.mrf.mxu0
      %v1463 = vadd.f32 %v408, %v1462
      %1464 = vmatmul.bf16.gmra.mxu0 %v912
      %v1465 = vpop.f32.mrf.mxu0
      %v1466 = vadd.f32 %v408, %v1465
      %v1467 = vpop.f32.mrf.mxu0
      %v1468 = vadd.f32 %v408, %v1467
      %1469 = vmatmul.bf16.gmra.mxu0 %v913
      %v1470 = vpop.f32.mrf.mxu0
      %v1471 = vadd.f32 %v408, %v1470
      %v1472 = vpop.f32.mrf.mxu0
      %v1473 = vadd.f32 %v408, %v1472
      %1474 = vmatmul.bf16.gmra.mxu0 %v914
      %v1475 = vpop.f32.mrf.mxu0
      %v1476 = vadd.f32 %v408, %v1475
      %v1477 = vpop.f32.mrf.mxu0
      %v1478 = vadd.f32 %v408, %v1477
      %1479 = vmatmul.bf16.gmra.mxu0 %v915
      %v1480 = vpop.f32.mrf.mxu0
      %v1481 = vadd.f32 %v408, %v1480
      %v1482 = vpop.f32.mrf.mxu0
      %v1483 = vadd.f32 %v408, %v1482
      %1484 = vmatmul.bf16.gmra.mxu0 %v916
      %v1485 = vpop.f32.mrf.mxu0
      %v1486 = vadd.f32 %v408, %v1485
      %v1487 = vpop.f32.mrf.mxu0
      %v1488 = vadd.f32 %v408, %v1487
      %1489 = vmatmul.bf16.gmra.mxu0 %v917
      %v1490 = vpop.f32.mrf.mxu0
      %v1491 = vadd.f32 %v408, %v1490
      %v1492 = vpop.f32.mrf.mxu0
      %v1493 = vadd.f32 %v408, %v1492
      %1494 = vmatmul.bf16.gmra.mxu0 %v918
      %v1495 = vpop.f32.mrf.mxu0
      %v1496 = vadd.f32 %v408, %v1495
      %v1497 = vpop.f32.mrf.mxu0
      %v1498 = vadd.f32 %v408, %v1497
      %1499 = vmatmul.bf16.gmra.mxu0 %v919
      %v1500 = vpop.f32.mrf.mxu0
      %v1501 = vadd.f32 %v408, %v1500
      %v1502 = vpop.f32.mrf.mxu0
      %v1503 = vadd.f32 %v408, %v1502
      %1504 = vmatmul.bf16.gmra.mxu0 %v920
      %v1505 = vpop.f32.mrf.mxu0
      %v1506 = vadd.f32 %v408, %v1505
      %v1507 = vpop.f32.mrf.mxu0
      %v1508 = vadd.f32 %v408, %v1507
      %1509 = vmatmul.bf16.gmra.mxu0 %v921
      %v1510 = vpop.f32.mrf.mxu0
      %v1511 = vadd.f32 %v408, %v1510
      %v1512 = vpop.f32.mrf.mxu0
      %v1513 = vadd.f32 %v408, %v1512
      %1514 = vmatmul.bf16.gmra.mxu0 %v922
      %v1515 = vpop.f32.mrf.mxu0
      %v1516 = vadd.f32 %v408, %v1515
      %v1517 = vpop.f32.mrf.mxu0
      %v1518 = vadd.f32 %v408, %v1517
      %1519 = vmatmul.bf16.gmra.mxu0 %v923
      %v1520 = vpop.f32.mrf.mxu0
      %v1521 = vadd.f32 %v408, %v1520
      %v1522 = vpop.f32.mrf.mxu0
      %v1523 = vadd.f32 %v408, %v1522
      %1524 = vmatmul.bf16.gmra.mxu0 %v924
      %v1525 = vpop.f32.mrf.mxu0
      %v1526 = vadd.f32 %v408, %v1525
      %v1527 = vpop.f32.mrf.mxu0
      %v1528 = vadd.f32 %v408, %v1527
      %1529 = vmatmul.bf16.gmra.mxu0 %v925
      %v1530 = vpop.f32.mrf.mxu0
      %v1531 = vadd.f32 %v408, %v1530
      %v1532 = vpop.f32.mrf.mxu0
      %v1533 = vadd.f32 %v408, %v1532
      %1534 = vmatmul.bf16.gmra.mxu0 %v926
      %v1535 = vpop.f32.mrf.mxu0
      %v1536 = vadd.f32 %v408, %v1535
      %v1537 = vpop.f32.mrf.mxu0
      %v1538 = vadd.f32 %v408, %v1537
      %1539 = vmatmul.bf16.gmra.mxu0 %v927
      %v1540 = vpop.f32.mrf.mxu0
      %v1541 = vadd.f32 %v408, %v1540
      %v1542 = vpop.f32.mrf.mxu0
      %v1543 = vadd.f32 %v408, %v1542
      %1544 = vmatmul.bf16.gmra.mxu0 %v928
      %v1545 = vpop.f32.mrf.mxu0
      %v1546 = vadd.f32 %v408, %v1545
      %v1547 = vpop.f32.mrf.mxu0
      %v1548 = vadd.f32 %v408, %v1547
      %1549 = vmatmul.bf16.gmra.mxu0 %v929
      %v1550 = vpop.f32.mrf.mxu0
      %v1551 = vadd.f32 %v408, %v1550
      %v1552 = vpop.f32.mrf.mxu0
      %v1553 = vadd.f32 %v408, %v1552
      %1554 = vmatmul.bf16.gmra.mxu0 %v930
      %v1555 = vpop.f32.mrf.mxu0
      %v1556 = vadd.f32 %v408, %v1555
      %v1557 = vpop.f32.mrf.mxu0
      %v1558 = vadd.f32 %v408, %v1557
      %1559 = vmatmul.bf16.gmra.mxu0 %v931
      %v1560 = vpop.f32.mrf.mxu0
      %v1561 = vadd.f32 %v408, %v1560
      %v1562 = vpop.f32.mrf.mxu0
      %v1563 = vadd.f32 %v408, %v1562
      %1564 = vmatmul.bf16.gmra.mxu0 %v932
      %v1565 = vpop.f32.mrf.mxu0
      %v1566 = vadd.f32 %v408, %v1565
      %v1567 = vpop.f32.mrf.mxu0
      %v1568 = vadd.f32 %v408, %v1567
      %1569 = vmatmul.bf16.gmra.mxu0 %v933
      %v1570 = vpop.f32.mrf.mxu0
      %v1571 = vadd.f32 %v408, %v1570
      %v1572 = vpop.f32.mrf.mxu0
      %v1573 = vadd.f32 %v408, %v1572
      %1574 = vmatmul.bf16.gmra.mxu0 %v934
      %v1575 = vpop.f32.mrf.mxu0
      %v1576 = vadd.f32 %v408, %v1575
      %v1577 = vpop.f32.mrf.mxu0
      %v1578 = vadd.f32 %v408, %v1577
      %1579 = vmatmul.bf16.gmra.mxu0 %v935
      %v1580 = vpop.f32.mrf.mxu0
      %v1581 = vadd.f32 %v408, %v1580
      %v1582 = vpop.f32.mrf.mxu0
      %v1583 = vadd.f32 %v408, %v1582
      %1584 = vmatmul.bf16.gmra.mxu0 %v936
      %v1585 = vpop.f32.mrf.mxu0
      %v1586 = vadd.f32 %v408, %v1585
      %v1587 = vpop.f32.mrf.mxu0
      %v1588 = vadd.f32 %v408, %v1587
      %1589 = vmatmul.bf16.gmra.mxu0 %v937
      %v1590 = vpop.f32.mrf.mxu0
      %v1591 = vadd.f32 %v408, %v1590
      %v1592 = vpop.f32.mrf.mxu0
      %v1593 = vadd.f32 %v408, %v1592
      %1594 = vmatmul.bf16.gmra.mxu0 %v938
      %v1595 = vpop.f32.mrf.mxu0
      %v1596 = vadd.f32 %v408, %v1595
      %v1597 = vpop.f32.mrf.mxu0
      %v1598 = vadd.f32 %v408, %v1597
      %1599 = vmatmul.bf16.gmra.mxu0 %v939
      %v1600 = vpop.f32.mrf.mxu0
      %v1601 = vadd.f32 %v408, %v1600
      %v1602 = vpop.f32.mrf.mxu0
      %v1603 = vadd.f32 %v408, %v1602
      %1604 = vmatmul.bf16.gmra.mxu0 %v940
      %v1605 = vpop.f32.mrf.mxu0
      %v1606 = vadd.f32 %v408, %v1605
      %v1607 = vpop.f32.mrf.mxu0
      %v1608 = vadd.f32 %v408, %v1607
      %1609 = vmatmul.bf16.gmra.mxu0 %v941
      %v1610 = vpop.f32.mrf.mxu0
      %v1611 = vadd.f32 %v408, %v1610
      %v1612 = vpop.f32.mrf.mxu0
      %v1613 = vadd.f32 %v408, %v1612
      %1614 = vmatmul.bf16.gmra.mxu0 %v942
      %v1615 = vpop.f32.mrf.mxu0
      %v1616 = vadd.f32 %v408, %v1615
      %v1617 = vpop.f32.mrf.mxu0
      %v1618 = vadd.f32 %v408, %v1617
      %1619 = vmatmul.bf16.gmra.mxu0 %v943
      %v1620 = vpop.f32.mrf.mxu0
      %v1621 = vadd.f32 %v408, %v1620
      %v1622 = vpop.f32.mrf.mxu0
      %v1623 = vadd.f32 %v408, %v1622
      %1624 = vmatmul.bf16.gmra.mxu0 %v944
      %v1625 = vpop.f32.mrf.mxu0
      %v1626 = vadd.f32 %v408, %v1625
      %v1627 = vpop.f32.mrf.mxu0
      %v1628 = vadd.f32 %v408, %v1627
      %1629 = vmatmul.bf16.gmra.mxu0 %v945
      %v1630 = vpop.f32.mrf.mxu0
      %v1631 = vadd.f32 %v408, %v1630
      %v1632 = vpop.f32.mrf.mxu0
      %v1633 = vadd.f32 %v408, %v1632
      %1634 = vmatmul.bf16.gmra.mxu0 %v946
      %v1635 = vpop.f32.mrf.mxu0
      %v1636 = vadd.f32 %v408, %v1635
      %v1637 = vpop.f32.mrf.mxu0
      %v1638 = vadd.f32 %v408, %v1637
      %1639 = vmatmul.bf16.gmra.mxu0 %v947
      %v1640 = vpop.f32.mrf.mxu0
      %v1641 = vadd.f32 %v408, %v1640
      %v1642 = vpop.f32.mrf.mxu0
      %v1643 = vadd.f32 %v408, %v1642
      %1644 = vmatmul.bf16.gmra.mxu0 %v948
      %v1645 = vpop.f32.mrf.mxu0
      %v1646 = vadd.f32 %v408, %v1645
      %v1647 = vpop.f32.mrf.mxu0
      %v1648 = vadd.f32 %v408, %v1647
      %1649 = vmatmul.bf16.gmra.mxu0 %v949
      %v1650 = vpop.f32.mrf.mxu0
      %v1651 = vadd.f32 %v408, %v1650
      %v1652 = vpop.f32.mrf.mxu0
      %v1653 = vadd.f32 %v408, %v1652
      %1654 = vdwg.mxu0
      %v1655 = vmax.f32 %v1116, 0.0
      %v1656 = vmax.f32 %v1118, 0.0
      %v1657 = vmax.f32 %v1121, 0.0
      %v1658 = vmax.f32 %v1123, 0.0
      %v1659 = vmax.f32 %v1126, 0.0
      %v1660 = vmax.f32 %v1128, 0.0
      %v1661 = vmax.f32 %v1131, 0.0
      %v1662 = vmax.f32 %v1133, 0.0
      %v1663 = vmax.f32 %v1136, 0.0
      %v1664 = vmax.f32 %v1138, 0.0
      %v1665 = vmax.f32 %v1141, 0.0
      %v1666 = vmax.f32 %v1143, 0.0
      %v1667 = vmax.f32 %v1146, 0.0
      %v1668 = vmax.f32 %v1148, 0.0
      %v1669 = vmax.f32 %v1151, 0.0
      %v1670 = vmax.f32 %v1153, 0.0
      %v1671 = vmax.f32 %v1156, 0.0
      %v1672 = vmax.f32 %v1158, 0.0
      %v1673 = vmax.f32 %v1161, 0.0
      %v1674 = vmax.f32 %v1163, 0.0
      %v1675 = vmax.f32 %v1166, 0.0
      %v1676 = vmax.f32 %v1168, 0.0
      %v1677 = vmax.f32 %v1171, 0.0
      %v1678 = vmax.f32 %v1173, 0.0
      %v1679 = vmax.f32 %v1176, 0.0
      %v1680 = vmax.f32 %v1178, 0.0
      %v1681 = vmax.f32 %v1181, 0.0
      %v1682 = vmax.f32 %v1183, 0.0
      %v1683 = vmax.f32 %v1186, 0.0
      %v1684 = vmax.f32 %v1188, 0.0
      %v1685 = vmax.f32 %v1191, 0.0
      %v1686 = vmax.f32 %v1193, 0.0
      %v1687 = vmax.f32 %v1196, 0.0
      %v1688 = vmax.f32 %v1198, 0.0
      %v1689 = vmax.f32 %v1201, 0.0
      %v1690 = vmax.f32 %v1203, 0.0
      %v1691 = vmax.f32 %v1206, 0.0
      %v1692 = vmax.f32 %v1208, 0.0
      %v1693 = vmax.f32 %v1211, 0.0
      %v1694 = vmax.f32 %v1213, 0.0
      %v1695 = vmax.f32 %v1216, 0.0
      %v1696 = vmax.f32 %v1218, 0.0
      %v1697 = vmax.f32 %v1221, 0.0
      %v1698 = vmax.f32 %v1223, 0.0
      %v1699 = vmax.f32 %v1226, 0.0
      %v1700 = vmax.f32 %v1228, 0.0
      %v1701 = vmax.f32 %v1231, 0.0
      %v1702 = vmax.f32 %v1233, 0.0
      %v1703 = vmax.f32 %v1236, 0.0
      %v1704 = vmax.f32 %v1238, 0.0
      %v1705 = vmax.f32 %v1241, 0.0
      %v1706 = vmax.f32 %v1243, 0.0
      %v1707 = vmax.f32 %v1246, 0.0
      %v1708 = vmax.f32 %v1248, 0.0
      %v1709 = vmax.f32 %v1251, 0.0
      %v1710 = vmax.f32 %v1253, 0.0
      %v1711 = vmax.f32 %v1256, 0.0
      %v1712 = vmax.f32 %v1258, 0.0
      %v1713 = vmax.f32 %v1261, 0.0
      %v1714 = vmax.f32 %v1263, 0.0
      %v1715 = vmax.f32 %v1266, 0.0
      %v1716 = vmax.f32 %v1268, 0.0
      %v1717 = vmax.f32 %v1271, 0.0
      %v1718 = vmax.f32 %v1273, 0.0
      %v1719 = vmax.f32 %v1276, 0.0
      %v1720 = vmax.f32 %v1278, 0.0
      %v1721 = vmax.f32 %v1281, 0.0
      %v1722 = vmax.f32 %v1283, 0.0
      %v1723 = vmax.f32 %v1286, 0.0
      %v1724 = vmax.f32 %v1288, 0.0
      %v1725 = vmax.f32 %v1291, 0.0
      %v1726 = vmax.f32 %v1293, 0.0
      %v1727 = vmax.f32 %v1296, 0.0
      %v1728 = vmax.f32 %v1298, 0.0
      %v1729 = vmax.f32 %v1301, 0.0
      %v1730 = vmax.f32 %v1303, 0.0
      %v1731 = vmax.f32 %v1306, 0.0
      %v1732 = vmax.f32 %v1308, 0.0
      %v1733 = vmax.f32 %v1311, 0.0
      %v1734 = vmax.f32 %v1313, 0.0
      %v1735 = vmax.f32 %v1316, 0.0
      %v1736 = vmax.f32 %v1318, 0.0
      %v1737 = vmax.f32 %v1321, 0.0
      %v1738 = vmax.f32 %v1323, 0.0
      %v1739 = vmax.f32 %v1326, 0.0
      %v1740 = vmax.f32 %v1328, 0.0
      %v1741 = vmax.f32 %v1331, 0.0
      %v1742 = vmax.f32 %v1333, 0.0
      %v1743 = vmax.f32 %v1336, 0.0
      %v1744 = vmax.f32 %v1338, 0.0
      %v1745 = vmax.f32 %v1341, 0.0
      %v1746 = vmax.f32 %v1343, 0.0
      %v1747 = vmax.f32 %v1346, 0.0
      %v1748 = vmax.f32 %v1348, 0.0
      %v1749 = vmax.f32 %v1351, 0.0
      %v1750 = vmax.f32 %v1353, 0.0
      %v1751 = vmax.f32 %v1356, 0.0
      %v1752 = vmax.f32 %v1358, 0.0
      %v1753 = vmax.f32 %v1361, 0.0
      %v1754 = vmax.f32 %v1363, 0.0
      %v1755 = vmax.f32 %v1366, 0.0
      %v1756 = vmax.f32 %v1368, 0.0
      %v1757 = vmax.f32 %v1371, 0.0
      %v1758 = vmax.f32 %v1373, 0.0
      %v1759 = vmax.f32 %v1376, 0.0
      %v1760 = vmax.f32 %v1378, 0.0
      %v1761 = vmax.f32 %v1381, 0.0
      %v1762 = vmax.f32 %v1383, 0.0
      %v1763 = vmax.f32 %v1386, 0.0
      %v1764 = vmax.f32 %v1388, 0.0
      %v1765 = vmax.f32 %v1391, 0.0
      %v1766 = vmax.f32 %v1393, 0.0
      %v1767 = vmax.f32 %v1396, 0.0
      %v1768 = vmax.f32 %v1398, 0.0
      %v1769 = vmax.f32 %v1401, 0.0
      %v1770 = vmax.f32 %v1403, 0.0
      %v1771 = vmax.f32 %v1406, 0.0
      %v1772 = vmax.f32 %v1408, 0.0
      %v1773 = vmax.f32 %v1411, 0.0
      %v1774 = vmax.f32 %v1413, 0.0
      %v1775 = vmax.f32 %v1416, 0.0
      %v1776 = vmax.f32 %v1418, 0.0
      %v1777 = vmax.f32 %v1421, 0.0
      %v1778 = vmax.f32 %v1423, 0.0
      %v1779 = vmax.f32 %v1426, 0.0
      %v1780 = vmax.f32 %v1428, 0.0
      %v1781 = vmax.f32 %v1431, 0.0
      %v1782 = vmax.f32 %v1433, 0.0
      %v1783 = vmax.f32 %v1436, 0.0
      %v1784 = vmax.f32 %v1438, 0.0
      %v1785 = vmax.f32 %v1441, 0.0
      %v1786 = vmax.f32 %v1443, 0.0
      %v1787 = vmax.f32 %v1446, 0.0
      %v1788 = vmax.f32 %v1448, 0.0
      %v1789 = vmax.f32 %v1451, 0.0
      %v1790 = vmax.f32 %v1453, 0.0
      %v1791 = vmax.f32 %v1456, 0.0
      %v1792 = vmax.f32 %v1458, 0.0
      %v1793 = vmax.f32 %v1461, 0.0
      %v1794 = vmax.f32 %v1463, 0.0
      %v1795 = vmax.f32 %v1466, 0.0
      %v1796 = vmax.f32 %v1468, 0.0
      %v1797 = vmax.f32 %v1471, 0.0
      %v1798 = vmax.f32 %v1473, 0.0
      %v1799 = vmax.f32 %v1476, 0.0
      %v1800 = vmax.f32 %v1478, 0.0
      %v1801 = vmax.f32 %v1481, 0.0
      %v1802 = vmax.f32 %v1483, 0.0
      %v1803 = vmax.f32 %v1486, 0.0
      %v1804 = vmax.f32 %v1488, 0.0
      %v1805 = vmax.f32 %v1491, 0.0
      %v1806 = vmax.f32 %v1493, 0.0
      %v1807 = vmax.f32 %v1496, 0.0
      %v1808 = vmax.f32 %v1498, 0.0
      %v1809 = vmax.f32 %v1501, 0.0
      %v1810 = vmax.f32 %v1503, 0.0
      %v1811 = vmax.f32 %v1506, 0.0
      %v1812 = vmax.f32 %v1508, 0.0
      %v1813 = vmax.f32 %v1511, 0.0
      %v1814 = vmax.f32 %v1513, 0.0
      %v1815 = vmax.f32 %v1516, 0.0
      %v1816 = vmax.f32 %v1518, 0.0
      %v1817 = vmax.f32 %v1521, 0.0
      %v1818 = vmax.f32 %v1523, 0.0
      %v1819 = vmax.f32 %v1526, 0.0
      %v1820 = vmax.f32 %v1528, 0.0
      %v1821 = vmax.f32 %v1531, 0.0
      %v1822 = vmax.f32 %v1533, 0.0
      %v1823 = vmax.f32 %v1536, 0.0
      %v1824 = vmax.f32 %v1538, 0.0
      %v1825 = vmax.f32 %v1541, 0.0
      %v1826 = vmax.f32 %v1543, 0.0
      %v1827 = vmax.f32 %v1546, 0.0
      %v1828 = vmax.f32 %v1548, 0.0
      %v1829 = vmax.f32 %v1551, 0.0
      %v1830 = vmax.f32 %v1553, 0.0
      %v1831 = vmax.f32 %v1556, 0.0
      %v1832 = vmax.f32 %v1558, 0.0
      %v1833 = vmax.f32 %v1561, 0.0
      %v1834 = vmax.f32 %v1563, 0.0
      %v1835 = vmax.f32 %v1566, 0.0
      %v1836 = vmax.f32 %v1568, 0.0
      %v1837 = vmax.f32 %v1571, 0.0
      %v1838 = vmax.f32 %v1573, 0.0
      %v1839 = vmax.f32 %v1576, 0.0
      %v1840 = vmax.f32 %v1578, 0.0
      %v1841 = vmax.f32 %v1581, 0.0
      %v1842 = vmax.f32 %v1583, 0.0
      %v1843 = vmax.f32 %v1586, 0.0
      %v1844 = vmax.f32 %v1588, 0.0
      %v1845 = vmax.f32 %v1591, 0.0
      %v1846 = vmax.f32 %v1593, 0.0
      %v1847 = vmax.f32 %v1596, 0.0
      %v1848 = vmax.f32 %v1598, 0.0
      %v1849 = vmax.f32 %v1601, 0.0
      %v1850 = vmax.f32 %v1603, 0.0
      %v1851 = vmax.f32 %v1606, 0.0
      %v1852 = vmax.f32 %v1608, 0.0
      %v1853 = vmax.f32 %v1611, 0.0
      %v1854 = vmax.f32 %v1613, 0.0
      %v1855 = vmax.f32 %v1616, 0.0
      %v1856 = vmax.f32 %v1618, 0.0
      %v1857 = vmax.f32 %v1621, 0.0
      %v1858 = vmax.f32 %v1623, 0.0
      %v1859 = vmax.f32 %v1626, 0.0
      %v1860 = vmax.f32 %v1628, 0.0
      %v1861 = vmax.f32 %v1631, 0.0
      %v1862 = vmax.f32 %v1633, 0.0
      %v1863 = vmax.f32 %v1636, 0.0
      %v1864 = vmax.f32 %v1638, 0.0
      %v1865 = vmax.f32 %v1641, 0.0
      %v1866 = vmax.f32 %v1643, 0.0
      %v1867 = vmax.f32 %v1646, 0.0
      %v1868 = vmax.f32 %v1648, 0.0
      %v1869 = vmax.f32 %v1651, 0.0
      %v1870 = vmax.f32 %v1653, 0.0
      %v1871 = vpack.c.bf16 %v1655, %v1655
      %v1872 = vpack.c.bf16 %v1656, %v1656
      %v1873 = vpack.c.bf16 %v1657, %v1657
      %v1874 = vpack.c.bf16 %v1658, %v1658
      %v1875 = vpack.c.bf16 %v1659, %v1659
      %v1876 = vpack.c.bf16 %v1660, %v1660
      %v1877 = vpack.c.bf16 %v1661, %v1661
      %v1878 = vpack.c.bf16 %v1662, %v1662
      %v1879 = vpack.c.bf16 %v1663, %v1663
      %v1880 = vpack.c.bf16 %v1664, %v1664
      %v1881 = vpack.c.bf16 %v1665, %v1665
      %v1882 = vpack.c.bf16 %v1666, %v1666
      %v1883 = vpack.c.bf16 %v1667, %v1667
      %v1884 = vpack.c.bf16 %v1668, %v1668
      %v1885 = vpack.c.bf16 %v1669, %v1669
      %v1886 = vpack.c.bf16 %v1670, %v1670
      %v1887 = vpack.c.bf16 %v1671, %v1671
      %v1888 = vpack.c.bf16 %v1672, %v1672
      %v1889 = vpack.c.bf16 %v1673, %v1673
      %v1890 = vpack.c.bf16 %v1674, %v1674
      %v1891 = vpack.c.bf16 %v1675, %v1675
      %v1892 = vpack.c.bf16 %v1676, %v1676
      %v1893 = vpack.c.bf16 %v1677, %v1677
      %v1894 = vpack.c.bf16 %v1678, %v1678
      %v1895 = vpack.c.bf16 %v1679, %v1679
      %v1896 = vpack.c.bf16 %v1680, %v1680
      %v1897 = vpack.c.bf16 %v1681, %v1681
      %v1898 = vpack.c.bf16 %v1682, %v1682
      %v1899 = vpack.c.bf16 %v1683, %v1683
      %v1900 = vpack.c.bf16 %v1684, %v1684
      %v1901 = vpack.c.bf16 %v1685, %v1685
      %v1902 = vpack.c.bf16 %v1686, %v1686
      %v1903 = vpack.c.bf16 %v1687, %v1687
      %v1904 = vpack.c.bf16 %v1688, %v1688
      %v1905 = vpack.c.bf16 %v1689, %v1689
      %v1906 = vpack.c.bf16 %v1690, %v1690
      %v1907 = vpack.c.bf16 %v1691, %v1691
      %v1908 = vpack.c.bf16 %v1692, %v1692
      %v1909 = vpack.c.bf16 %v1693, %v1693
      %v1910 = vpack.c.bf16 %v1694, %v1694
      %v1911 = vpack.c.bf16 %v1695, %v1695
      %v1912 = vpack.c.bf16 %v1696, %v1696
      %v1913 = vpack.c.bf16 %v1697, %v1697
      %v1914 = vpack.c.bf16 %v1698, %v1698
      %v1915 = vpack.c.bf16 %v1699, %v1699
      %v1916 = vpack.c.bf16 %v1700, %v1700
      %v1917 = vpack.c.bf16 %v1701, %v1701
      %v1918 = vpack.c.bf16 %v1702, %v1702
      %v1919 = vpack.c.bf16 %v1703, %v1703
      %v1920 = vpack.c.bf16 %v1704, %v1704
      %v1921 = vpack.c.bf16 %v1705, %v1705
      %v1922 = vpack.c.bf16 %v1706, %v1706
      %v1923 = vpack.c.bf16 %v1707, %v1707
      %v1924 = vpack.c.bf16 %v1708, %v1708
      %v1925 = vpack.c.bf16 %v1709, %v1709
      %v1926 = vpack.c.bf16 %v1710, %v1710
      %v1927 = vpack.c.bf16 %v1711, %v1711
      %v1928 = vpack.c.bf16 %v1712, %v1712
      %v1929 = vpack.c.bf16 %v1713, %v1713
      %v1930 = vpack.c.bf16 %v1714, %v1714
      %v1931 = vpack.c.bf16 %v1715, %v1715
      %v1932 = vpack.c.bf16 %v1716, %v1716
      %v1933 = vpack.c.bf16 %v1717, %v1717
      %v1934 = vpack.c.bf16 %v1718, %v1718
      %v1935 = vpack.c.bf16 %v1719, %v1719
      %v1936 = vpack.c.bf16 %v1720, %v1720
      %v1937 = vpack.c.bf16 %v1721, %v1721
      %v1938 = vpack.c.bf16 %v1722, %v1722
      %v1939 = vpack.c.bf16 %v1723, %v1723
      %v1940 = vpack.c.bf16 %v1724, %v1724
      %v1941 = vpack.c.bf16 %v1725, %v1725
      %v1942 = vpack.c.bf16 %v1726, %v1726
      %v1943 = vpack.c.bf16 %v1727, %v1727
      %v1944 = vpack.c.bf16 %v1728, %v1728
      %v1945 = vpack.c.bf16 %v1729, %v1729
      %v1946 = vpack.c.bf16 %v1730, %v1730
      %v1947 = vpack.c.bf16 %v1731, %v1731
      %v1948 = vpack.c.bf16 %v1732, %v1732
      %v1949 = vpack.c.bf16 %v1733, %v1733
      %v1950 = vpack.c.bf16 %v1734, %v1734
      %v1951 = vpack.c.bf16 %v1735, %v1735
      %v1952 = vpack.c.bf16 %v1736, %v1736
      %v1953 = vpack.c.bf16 %v1737, %v1737
      %v1954 = vpack.c.bf16 %v1738, %v1738
      %v1955 = vpack.c.bf16 %v1739, %v1739
      %v1956 = vpack.c.bf16 %v1740, %v1740
      %v1957 = vpack.c.bf16 %v1741, %v1741
      %v1958 = vpack.c.bf16 %v1742, %v1742
      %v1959 = vpack.c.bf16 %v1743, %v1743
      %v1960 = vpack.c.bf16 %v1744, %v1744
      %v1961 = vpack.c.bf16 %v1745, %v1745
      %v1962 = vpack.c.bf16 %v1746, %v1746
      %v1963 = vpack.c.bf16 %v1747, %v1747
      %v1964 = vpack.c.bf16 %v1748, %v1748
      %v1965 = vpack.c.bf16 %v1749, %v1749
      %v1966 = vpack.c.bf16 %v1750, %v1750
      %v1967 = vpack.c.bf16 %v1751, %v1751
      %v1968 = vpack.c.bf16 %v1752, %v1752
      %v1969 = vpack.c.bf16 %v1753, %v1753
      %v1970 = vpack.c.bf16 %v1754, %v1754
      %v1971 = vpack.c.bf16 %v1755, %v1755
      %v1972 = vpack.c.bf16 %v1756, %v1756
      %v1973 = vpack.c.bf16 %v1757, %v1757
      %v1974 = vpack.c.bf16 %v1758, %v1758
      %v1975 = vpack.c.bf16 %v1759, %v1759
      %v1976 = vpack.c.bf16 %v1760, %v1760
      %v1977 = vpack.c.bf16 %v1761, %v1761
      %v1978 = vpack.c.bf16 %v1762, %v1762
      %v1979 = vpack.c.bf16 %v1763, %v1763
      %v1980 = vpack.c.bf16 %v1764, %v1764
      %v1981 = vpack.c.bf16 %v1765, %v1765
      %v1982 = vpack.c.bf16 %v1766, %v1766
      %v1983 = vpack.c.bf16 %v1767, %v1767
      %v1984 = vpack.c.bf16 %v1768, %v1768
      %v1985 = vpack.c.bf16 %v1769, %v1769
      %v1986 = vpack.c.bf16 %v1770, %v1770
      %v1987 = vpack.c.bf16 %v1771, %v1771
      %v1988 = vpack.c.bf16 %v1772, %v1772
      %v1989 = vpack.c.bf16 %v1773, %v1773
      %v1990 = vpack.c.bf16 %v1774, %v1774
      %v1991 = vpack.c.bf16 %v1775, %v1775
      %v1992 = vpack.c.bf16 %v1776, %v1776
      %v1993 = vpack.c.bf16 %v1777, %v1777
      %v1994 = vpack.c.bf16 %v1778, %v1778
      %v1995 = vpack.c.bf16 %v1779, %v1779
      %v1996 = vpack.c.bf16 %v1780, %v1780
      %v1997 = vpack.c.bf16 %v1781, %v1781
      %v1998 = vpack.c.bf16 %v1782, %v1782
      %v1999 = vpack.c.bf16 %v1783, %v1783
      %v2000 = vpack.c.bf16 %v1784, %v1784
      %v2001 = vpack.c.bf16 %v1785, %v1785
      %v2002 = vpack.c.bf16 %v1786, %v1786
      %v2003 = vpack.c.bf16 %v1787, %v1787
      %v2004 = vpack.c.bf16 %v1788, %v1788
      %v2005 = vpack.c.bf16 %v1789, %v1789
      %v2006 = vpack.c.bf16 %v1790, %v1790
      %v2007 = vpack.c.bf16 %v1791, %v1791
      %v2008 = vpack.c.bf16 %v1792, %v1792
      %v2009 = vpack.c.bf16 %v1793, %v1793
      %v2010 = vpack.c.bf16 %v1794, %v1794
      %v2011 = vpack.c.bf16 %v1795, %v1795
      %v2012 = vpack.c.bf16 %v1796, %v1796
      %v2013 = vpack.c.bf16 %v1797, %v1797
      %v2014 = vpack.c.bf16 %v1798, %v1798
      %v2015 = vpack.c.bf16 %v1799, %v1799
      %v2016 = vpack.c.bf16 %v1800, %v1800
      %v2017 = vpack.c.bf16 %v1801, %v1801
      %v2018 = vpack.c.bf16 %v1802, %v1802
      %v2019 = vpack.c.bf16 %v1803, %v1803
      %v2020 = vpack.c.bf16 %v1804, %v1804
      %v2021 = vpack.c.bf16 %v1805, %v1805
      %v2022 = vpack.c.bf16 %v1806, %v1806
      %v2023 = vpack.c.bf16 %v1807, %v1807
      %v2024 = vpack.c.bf16 %v1808, %v1808
      %v2025 = vpack.c.bf16 %v1809, %v1809
      %v2026 = vpack.c.bf16 %v1810, %v1810
      %v2027 = vpack.c.bf16 %v1811, %v1811
      %v2028 = vpack.c.bf16 %v1812, %v1812
      %v2029 = vpack.c.bf16 %v1813, %v1813
      %v2030 = vpack.c.bf16 %v1814, %v1814
      %v2031 = vpack.c.bf16 %v1815, %v1815
      %v2032 = vpack.c.bf16 %v1816, %v1816
      %v2033 = vpack.c.bf16 %v1817, %v1817
      %v2034 = vpack.c.bf16 %v1818, %v1818
      %v2035 = vpack.c.bf16 %v1819, %v1819
      %v2036 = vpack.c.bf16 %v1820, %v1820
      %v2037 = vpack.c.bf16 %v1821, %v1821
      %v2038 = vpack.c.bf16 %v1822, %v1822
      %v2039 = vpack.c.bf16 %v1823, %v1823
      %v2040 = vpack.c.bf16 %v1824, %v1824
      %v2041 = vpack.c.bf16 %v1825, %v1825
      %v2042 = vpack.c.bf16 %v1826, %v1826
      %v2043 = vpack.c.bf16 %v1827, %v1827
      %v2044 = vpack.c.bf16 %v1828, %v1828
      %v2045 = vpack.c.bf16 %v1829, %v1829
      %v2046 = vpack.c.bf16 %v1830, %v1830
      %v2047 = vpack.c.bf16 %v1831, %v1831
      %v2048 = vpack.c.bf16 %v1832, %v1832
      %v2049 = vpack.c.bf16 %v1833, %v1833
      %v2050 = vpack.c.bf16 %v1834, %v1834
      %v2051 = vpack.c.bf16 %v1835, %v1835
      %v2052 = vpack.c.bf16 %v1836, %v1836
      %v2053 = vpack.c.bf16 %v1837, %v1837
      %v2054 = vpack.c.bf16 %v1838, %v1838
      %v2055 = vpack.c.bf16 %v1839, %v1839
      %v2056 = vpack.c.bf16 %v1840, %v1840
      %v2057 = vpack.c.bf16 %v1841, %v1841
      %v2058 = vpack.c.bf16 %v1842, %v1842
      %v2059 = vpack.c.bf16 %v1843, %v1843
      %v2060 = vpack.c.bf16 %v1844, %v1844
      %v2061 = vpack.c.bf16 %v1845, %v1845
      %v2062 = vpack.c.bf16 %v1846, %v1846
      %v2063 = vpack.c.bf16 %v1847, %v1847
      %v2064 = vpack.c.bf16 %v1848, %v1848
      %v2065 = vpack.c.bf16 %v1849, %v1849
      %v2066 = vpack.c.bf16 %v1850, %v1850
      %v2067 = vpack.c.bf16 %v1851, %v1851
      %v2068 = vpack.c.bf16 %v1852, %v1852
      %v2069 = vpack.c.bf16 %v1853, %v1853
      %v2070 = vpack.c.bf16 %v1854, %v1854
      %v2071 = vpack.c.bf16 %v1855, %v1855
      %v2072 = vpack.c.bf16 %v1856, %v1856
      %v2073 = vpack.c.bf16 %v1857, %v1857
      %v2074 = vpack.c.bf16 %v1858, %v1858
      %v2075 = vpack.c.bf16 %v1859, %v1859
      %v2076 = vpack.c.bf16 %v1860, %v1860
      %v2077 = vpack.c.bf16 %v1861, %v1861
      %v2078 = vpack.c.bf16 %v1862, %v1862
      %v2079 = vpack.c.bf16 %v1863, %v1863
      %v2080 = vpack.c.bf16 %v1864, %v1864
      %v2081 = vpack.c.bf16 %v1865, %v1865
      %v2082 = vpack.c.bf16 %v1866, %v1866
      %v2083 = vpack.c.bf16 %v1867, %v1867
      %v2084 = vpack.c.bf16 %v1868, %v1868
      %v2085 = vpack.c.bf16 %v1869, %v1869
      %v2086 = vpack.c.bf16 %v1870, %v1870
      %vm2087 = vcmask 519168
      %2088 = vst.msk [vmem:[%s172] sm:$0xf] %vm2087, %v1871
      %2089 = vst.msk [vmem:[%s172 + $0x4] sm:$0xf] %vm2087, %v1872
      %2090 = vst.msk [vmem:[%s172 + $0x8] sm:$0xf] %vm2087, %v1873
      %2091 = vst.msk [vmem:[%s172 + $0xc] sm:$0xf] %vm2087, %v1874
      %2092 = vst.msk [vmem:[%s172 + $0x10] sm:$0xf] %vm2087, %v1875
      %2093 = vst.msk [vmem:[%s172 + $0x14] sm:$0xf] %vm2087, %v1876
      %2094 = vst.msk [vmem:[%s172 + $0x18] sm:$0xf] %vm2087, %v1877
      %2095 = vst.msk [vmem:[%s172 + $0x1c] sm:$0xf] %vm2087, %v1878
      %2096 = vst.msk [vmem:[%s172 + $0x20] sm:$0xf] %vm2087, %v1879
      %2097 = vst.msk [vmem:[%s172 + $0x24] sm:$0xf] %vm2087, %v1880
      %2098 = vst.msk [vmem:[%s172 + $0x28] sm:$0xf] %vm2087, %v1881
      %2099 = vst.msk [vmem:[%s172 + $0x2c] sm:$0xf] %vm2087, %v1882
      %2100 = vst.msk [vmem:[%s172 + $0x30] sm:$0xf] %vm2087, %v1883
      %2101 = vst.msk [vmem:[%s172 + $0x34] sm:$0xf] %vm2087, %v1884
      %2102 = vst.msk [vmem:[%s172 + $0x38] sm:$0xf] %vm2087, %v1885
      %2103 = vst.msk [vmem:[%s172 + $0x3c] sm:$0xf] %vm2087, %v1886
      %2104 = vst.msk [vmem:[%s172 + $0x40] sm:$0xf] %vm2087, %v1887
      %2105 = vst.msk [vmem:[%s172 + $0x44] sm:$0xf] %vm2087, %v1888
      %2106 = vst.msk [vmem:[%s172 + $0x48] sm:$0xf] %vm2087, %v1889
      %2107 = vst.msk [vmem:[%s172 + $0x4c] sm:$0xf] %vm2087, %v1890
      %2108 = vst.msk [vmem:[%s172 + $0x50] sm:$0xf] %vm2087, %v1891
      %2109 = vst.msk [vmem:[%s172 + $0x54] sm:$0xf] %vm2087, %v1892
      %2110 = vst.msk [vmem:[%s172 + $0x58] sm:$0xf] %vm2087, %v1893
      %2111 = vst.msk [vmem:[%s172 + $0x5c] sm:$0xf] %vm2087, %v1894
      %2112 = vst.msk [vmem:[%s172 + $0x60] sm:$0xf] %vm2087, %v1895
      %2113 = vst.msk [vmem:[%s172 + $0x64] sm:$0xf] %vm2087, %v1896
      %2114 = vst.msk [vmem:[%s172 + $0x68] sm:$0xf] %vm2087, %v1897
      %2115 = vst.msk [vmem:[%s172 + $0x6c] sm:$0xf] %vm2087, %v1898
      %2116 = vst.msk [vmem:[%s172 + $0x70] sm:$0xf] %vm2087, %v1899
      %2117 = vst.msk [vmem:[%s172 + $0x74] sm:$0xf] %vm2087, %v1900
      %2118 = vst.msk [vmem:[%s172 + $0x78] sm:$0xf] %vm2087, %v1901
      %2119 = vst.msk [vmem:[%s172 + $0x7c] sm:$0xf] %vm2087, %v1902
      %2120 = vst.msk [vmem:[%s172 + $0x80] sm:$0xf] %vm2087, %v1903
      %2121 = vst.msk [vmem:[%s172 + $0x84] sm:$0xf] %vm2087, %v1904
      %2122 = vst.msk [vmem:[%s172 + $0x88] sm:$0xf] %vm2087, %v1905
      %2123 = vst.msk [vmem:[%s172 + $0x8c] sm:$0xf] %vm2087, %v1906
      %2124 = vst.msk [vmem:[%s172 + $0x90] sm:$0xf] %vm2087, %v1907
      %2125 = vst.msk [vmem:[%s172 + $0x94] sm:$0xf] %vm2087, %v1908
      %2126 = vst.msk [vmem:[%s172 + $0x98] sm:$0xf] %vm2087, %v1909
      %2127 = vst.msk [vmem:[%s172 + $0x9c] sm:$0xf] %vm2087, %v1910
      %2128 = vst.msk [vmem:[%s172 + $0xa0] sm:$0xf] %vm2087, %v1911
      %2129 = vst.msk [vmem:[%s172 + $0xa4] sm:$0xf] %vm2087, %v1912
      %2130 = vst.msk [vmem:[%s172 + $0xa8] sm:$0xf] %vm2087, %v1913
      %2131 = vst.msk [vmem:[%s172 + $0xac] sm:$0xf] %vm2087, %v1914
      %2132 = vst.msk [vmem:[%s172 + $0xb0] sm:$0xf] %vm2087, %v1915
      %2133 = vst.msk [vmem:[%s172 + $0xb4] sm:$0xf] %vm2087, %v1916
      %2134 = vst.msk [vmem:[%s172 + $0xb8] sm:$0xf] %vm2087, %v1917
      %2135 = vst.msk [vmem:[%s172 + $0xbc] sm:$0xf] %vm2087, %v1918
      %2136 = vst.msk [vmem:[%s172 + $0xc0] sm:$0xf] %vm2087, %v1919
      %2137 = vst.msk [vmem:[%s172 + $0xc4] sm:$0xf] %vm2087, %v1920
      %2138 = vst.msk [vmem:[%s172 + $0xc8] sm:$0xf] %vm2087, %v1921
      %2139 = vst.msk [vmem:[%s172 + $0xcc] sm:$0xf] %vm2087, %v1922
      %2140 = vst.msk [vmem:[%s172 + $0xd0] sm:$0xf] %vm2087, %v1923
      %2141 = vst.msk [vmem:[%s172 + $0xd4] sm:$0xf] %vm2087, %v1924
      %2142 = vst.msk [vmem:[%s172 + $0xd8] sm:$0xf] %vm2087, %v1925
      %2143 = vst.msk [vmem:[%s172 + $0xdc] sm:$0xf] %vm2087, %v1926
      %2144 = vst.msk [vmem:[%s172 + $0xe0] sm:$0xf] %vm2087, %v1927
      %2145 = vst.msk [vmem:[%s172 + $0xe4] sm:$0xf] %vm2087, %v1928
      %2146 = vst.msk [vmem:[%s172 + $0xe8] sm:$0xf] %vm2087, %v1929
      %2147 = vst.msk [vmem:[%s172 + $0xec] sm:$0xf] %vm2087, %v1930
      %2148 = vst.msk [vmem:[%s172 + $0xf0] sm:$0xf] %vm2087, %v1931
      %2149 = vst.msk [vmem:[%s172 + $0xf4] sm:$0xf] %vm2087, %v1932
      %2150 = vst.msk [vmem:[%s172 + $0xf8] sm:$0xf] %vm2087, %v1933
      %2151 = vst.msk [vmem:[%s172 + $0xfc] sm:$0xf] %vm2087, %v1934
      %2152 = vst.msk [vmem:[%s172 + $0x100] sm:$0xf] %vm2087, %v1935
      %2153 = vst.msk [vmem:[%s172 + $0x104] sm:$0xf] %vm2087, %v1936
      %2154 = vst.msk [vmem:[%s172 + $0x108] sm:$0xf] %vm2087, %v1937
      %2155 = vst.msk [vmem:[%s172 + $0x10c] sm:$0xf] %vm2087, %v1938
      %2156 = vst.msk [vmem:[%s172 + $0x110] sm:$0xf] %vm2087, %v1939
      %2157 = vst.msk [vmem:[%s172 + $0x114] sm:$0xf] %vm2087, %v1940
      %2158 = vst.msk [vmem:[%s172 + $0x118] sm:$0xf] %vm2087, %v1941
      %2159 = vst.msk [vmem:[%s172 + $0x11c] sm:$0xf] %vm2087, %v1942
      %2160 = vst.msk [vmem:[%s172 + $0x120] sm:$0xf] %vm2087, %v1943
      %2161 = vst.msk [vmem:[%s172 + $0x124] sm:$0xf] %vm2087, %v1944
      %2162 = vst.msk [vmem:[%s172 + $0x128] sm:$0xf] %vm2087, %v1945
      %2163 = vst.msk [vmem:[%s172 + $0x12c] sm:$0xf] %vm2087, %v1946
      %2164 = vst.msk [vmem:[%s172 + $0x130] sm:$0xf] %vm2087, %v1947
      %2165 = vst.msk [vmem:[%s172 + $0x134] sm:$0xf] %vm2087, %v1948
      %2166 = vst.msk [vmem:[%s172 + $0x138] sm:$0xf] %vm2087, %v1949
      %2167 = vst.msk [vmem:[%s172 + $0x13c] sm:$0xf] %vm2087, %v1950
      %2168 = vst.msk [vmem:[%s172 + $0x140] sm:$0xf] %vm2087, %v1951
      %2169 = vst.msk [vmem:[%s172 + $0x144] sm:$0xf] %vm2087, %v1952
      %2170 = vst.msk [vmem:[%s172 + $0x148] sm:$0xf] %vm2087, %v1953
      %2171 = vst.msk [vmem:[%s172 + $0x14c] sm:$0xf] %vm2087, %v1954
      %2172 = vst.msk [vmem:[%s172 + $0x150] sm:$0xf] %vm2087, %v1955
      %2173 = vst.msk [vmem:[%s172 + $0x154] sm:$0xf] %vm2087, %v1956
      %2174 = vst.msk [vmem:[%s172 + $0x158] sm:$0xf] %vm2087, %v1957
      %2175 = vst.msk [vmem:[%s172 + $0x15c] sm:$0xf] %vm2087, %v1958
      %2176 = vst.msk [vmem:[%s172 + $0x160] sm:$0xf] %vm2087, %v1959
      %2177 = vst.msk [vmem:[%s172 + $0x164] sm:$0xf] %vm2087, %v1960
      %2178 = vst.msk [vmem:[%s172 + $0x168] sm:$0xf] %vm2087, %v1961
      %2179 = vst.msk [vmem:[%s172 + $0x16c] sm:$0xf] %vm2087, %v1962
      %2180 = vst.msk [vmem:[%s172 + $0x170] sm:$0xf] %vm2087, %v1963
      %2181 = vst.msk [vmem:[%s172 + $0x174] sm:$0xf] %vm2087, %v1964
      %2182 = vst.msk [vmem:[%s172 + $0x178] sm:$0xf] %vm2087, %v1965
      %2183 = vst.msk [vmem:[%s172 + $0x17c] sm:$0xf] %vm2087, %v1966
      %2184 = vst.msk [vmem:[%s172 + $0x180] sm:$0xf] %vm2087, %v1967
      %2185 = vst.msk [vmem:[%s172 + $0x184] sm:$0xf] %vm2087, %v1968
      %2186 = vst.msk [vmem:[%s172 + $0x188] sm:$0xf] %vm2087, %v1969
      %2187 = vst.msk [vmem:[%s172 + $0x18c] sm:$0xf] %vm2087, %v1970
      %2188 = vst.msk [vmem:[%s172 + $0x190] sm:$0xf] %vm2087, %v1971
      %2189 = vst.msk [vmem:[%s172 + $0x194] sm:$0xf] %vm2087, %v1972
      %2190 = vst.msk [vmem:[%s172 + $0x198] sm:$0xf] %vm2087, %v1973
      %2191 = vst.msk [vmem:[%s172 + $0x19c] sm:$0xf] %vm2087, %v1974
      %2192 = vst.msk [vmem:[%s172 + $0x1a0] sm:$0xf] %vm2087, %v1975
      %2193 = vst.msk [vmem:[%s172 + $0x1a4] sm:$0xf] %vm2087, %v1976
      %2194 = vst.msk [vmem:[%s172 + $0x1a8] sm:$0xf] %vm2087, %v1977
      %2195 = vst.msk [vmem:[%s172 + $0x1ac] sm:$0xf] %vm2087, %v1978
      %2196 = vst.msk [vmem:[%s172 + $0x1b0] sm:$0xf] %vm2087, %v1979
      %2197 = vst.msk [vmem:[%s172 + $0x1b4] sm:$0xf] %vm2087, %v1980
      %2198 = vst.msk [vmem:[%s172 + $0x1b8] sm:$0xf] %vm2087, %v1981
      %2199 = vst.msk [vmem:[%s172 + $0x1bc] sm:$0xf] %vm2087, %v1982
      %2200 = vst.msk [vmem:[%s172 + $0x1c0] sm:$0xf] %vm2087, %v1983
      %2201 = vst.msk [vmem:[%s172 + $0x1c4] sm:$0xf] %vm2087, %v1984
      %2202 = vst.msk [vmem:[%s172 + $0x1c8] sm:$0xf] %vm2087, %v1985
      %2203 = vst.msk [vmem:[%s172 + $0x1cc] sm:$0xf] %vm2087, %v1986
      %2204 = vst.msk [vmem:[%s172 + $0x1d0] sm:$0xf] %vm2087, %v1987
      %2205 = vst.msk [vmem:[%s172 + $0x1d4] sm:$0xf] %vm2087, %v1988
      %2206 = vst.msk [vmem:[%s172 + $0x1d8] sm:$0xf] %vm2087, %v1989
      %2207 = vst.msk [vmem:[%s172 + $0x1dc] sm:$0xf] %vm2087, %v1990
      %2208 = vst.msk [vmem:[%s172 + $0x1e0] sm:$0xf] %vm2087, %v1991
      %2209 = vst.msk [vmem:[%s172 + $0x1e4] sm:$0xf] %vm2087, %v1992
      %2210 = vst.msk [vmem:[%s172 + $0x1e8] sm:$0xf] %vm2087, %v1993
      %2211 = vst.msk [vmem:[%s172 + $0x1ec] sm:$0xf] %vm2087, %v1994
      %2212 = vst.msk [vmem:[%s172 + $0x1f0] sm:$0xf] %vm2087, %v1995
      %2213 = vst.msk [vmem:[%s172 + $0x1f4] sm:$0xf] %vm2087, %v1996
      %2214 = vst.msk [vmem:[%s172 + $0x1f8] sm:$0xf] %vm2087, %v1997
      %2215 = vst.msk [vmem:[%s172 + $0x1fc] sm:$0xf] %vm2087, %v1998
      %2216 = vst.msk [vmem:[%s172 + $0x200] sm:$0xf] %vm2087, %v1999
      %2217 = vst.msk [vmem:[%s172 + $0x204] sm:$0xf] %vm2087, %v2000
      %2218 = vst.msk [vmem:[%s172 + $0x208] sm:$0xf] %vm2087, %v2001
      %2219 = vst.msk [vmem:[%s172 + $0x20c] sm:$0xf] %vm2087, %v2002
      %2220 = vst.msk [vmem:[%s172 + $0x210] sm:$0xf] %vm2087, %v2003
      %2221 = vst.msk [vmem:[%s172 + $0x214] sm:$0xf] %vm2087, %v2004
      %2222 = vst.msk [vmem:[%s172 + $0x218] sm:$0xf] %vm2087, %v2005
      %2223 = vst.msk [vmem:[%s172 + $0x21c] sm:$0xf] %vm2087, %v2006
      %2224 = vst.msk [vmem:[%s172 + $0x220] sm:$0xf] %vm2087, %v2007
      %2225 = vst.msk [vmem:[%s172 + $0x224] sm:$0xf] %vm2087, %v2008
      %2226 = vst.msk [vmem:[%s172 + $0x228] sm:$0xf] %vm2087, %v2009
      %2227 = vst.msk [vmem:[%s172 + $0x22c] sm:$0xf] %vm2087, %v2010
      %2228 = vst.msk [vmem:[%s172 + $0x230] sm:$0xf] %vm2087, %v2011
      %2229 = vst.msk [vmem:[%s172 + $0x234] sm:$0xf] %vm2087, %v2012
      %2230 = vst.msk [vmem:[%s172 + $0x238] sm:$0xf] %vm2087, %v2013
      %2231 = vst.msk [vmem:[%s172 + $0x23c] sm:$0xf] %vm2087, %v2014
      %2232 = vst.msk [vmem:[%s172 + $0x240] sm:$0xf] %vm2087, %v2015
      %2233 = vst.msk [vmem:[%s172 + $0x244] sm:$0xf] %vm2087, %v2016
      %2234 = vst.msk [vmem:[%s172 + $0x248] sm:$0xf] %vm2087, %v2017
      %2235 = vst.msk [vmem:[%s172 + $0x24c] sm:$0xf] %vm2087, %v2018
      %2236 = vst.msk [vmem:[%s172 + $0x250] sm:$0xf] %vm2087, %v2019
      %2237 = vst.msk [vmem:[%s172 + $0x254] sm:$0xf] %vm2087, %v2020
      %2238 = vst.msk [vmem:[%s172 + $0x258] sm:$0xf] %vm2087, %v2021
      %2239 = vst.msk [vmem:[%s172 + $0x25c] sm:$0xf] %vm2087, %v2022
      %2240 = vst.msk [vmem:[%s172 + $0x260] sm:$0xf] %vm2087, %v2023
      %2241 = vst.msk [vmem:[%s172 + $0x264] sm:$0xf] %vm2087, %v2024
      %2242 = vst.msk [vmem:[%s172 + $0x268] sm:$0xf] %vm2087, %v2025
      %2243 = vst.msk [vmem:[%s172 + $0x26c] sm:$0xf] %vm2087, %v2026
      %2244 = vst.msk [vmem:[%s172 + $0x270] sm:$0xf] %vm2087, %v2027
      %2245 = vst.msk [vmem:[%s172 + $0x274] sm:$0xf] %vm2087, %v2028
      %2246 = vst.msk [vmem:[%s172 + $0x278] sm:$0xf] %vm2087, %v2029
      %2247 = vst.msk [vmem:[%s172 + $0x27c] sm:$0xf] %vm2087, %v2030
      %2248 = vst.msk [vmem:[%s172 + $0x280] sm:$0xf] %vm2087, %v2031
      %2249 = vst.msk [vmem:[%s172 + $0x284] sm:$0xf] %vm2087, %v2032
      %2250 = vst.msk [vmem:[%s172 + $0x288] sm:$0xf] %vm2087, %v2033
      %2251 = vst.msk [vmem:[%s172 + $0x28c] sm:$0xf] %vm2087, %v2034
      %2252 = vst.msk [vmem:[%s172 + $0x290] sm:$0xf] %vm2087, %v2035
      %2253 = vst.msk [vmem:[%s172 + $0x294] sm:$0xf] %vm2087, %v2036
      %2254 = vst.msk [vmem:[%s172 + $0x298] sm:$0xf] %vm2087, %v2037
      %2255 = vst.msk [vmem:[%s172 + $0x29c] sm:$0xf] %vm2087, %v2038
      %2256 = vst.msk [vmem:[%s172 + $0x2a0] sm:$0xf] %vm2087, %v2039
      %2257 = vst.msk [vmem:[%s172 + $0x2a4] sm:$0xf] %vm2087, %v2040
      %2258 = vst.msk [vmem:[%s172 + $0x2a8] sm:$0xf] %vm2087, %v2041
      %2259 = vst.msk [vmem:[%s172 + $0x2ac] sm:$0xf] %vm2087, %v2042
      %2260 = vst.msk [vmem:[%s172 + $0x2b0] sm:$0xf] %vm2087, %v2043
      %2261 = vst.msk [vmem:[%s172 + $0x2b4] sm:$0xf] %vm2087, %v2044
      %2262 = vst.msk [vmem:[%s172 + $0x2b8] sm:$0xf] %vm2087, %v2045
      %2263 = vst.msk [vmem:[%s172 + $0x2bc] sm:$0xf] %vm2087, %v2046
      %2264 = vst.msk [vmem:[%s172 + $0x2c0] sm:$0xf] %vm2087, %v2047
      %2265 = vst.msk [vmem:[%s172 + $0x2c4] sm:$0xf] %vm2087, %v2048
      %2266 = vst.msk [vmem:[%s172 + $0x2c8] sm:$0xf] %vm2087, %v2049
      %2267 = vst.msk [vmem:[%s172 + $0x2cc] sm:$0xf] %vm2087, %v2050
      %2268 = vst.msk [vmem:[%s172 + $0x2d0] sm:$0xf] %vm2087, %v2051
      %2269 = vst.msk [vmem:[%s172 + $0x2d4] sm:$0xf] %vm2087, %v2052
      %2270 = vst.msk [vmem:[%s172 + $0x2d8] sm:$0xf] %vm2087, %v2053
      %2271 = vst.msk [vmem:[%s172 + $0x2dc] sm:$0xf] %vm2087, %v2054
      %2272 = vst.msk [vmem:[%s172 + $0x2e0] sm:$0xf] %vm2087, %v2055
      %2273 = vst.msk [vmem:[%s172 + $0x2e4] sm:$0xf] %vm2087, %v2056
      %2274 = vst.msk [vmem:[%s172 + $0x2e8] sm:$0xf] %vm2087, %v2057
      %2275 = vst.msk [vmem:[%s172 + $0x2ec] sm:$0xf] %vm2087, %v2058
      %2276 = vst.msk [vmem:[%s172 + $0x2f0] sm:$0xf] %vm2087, %v2059
      %2277 = vst.msk [vmem:[%s172 + $0x2f4] sm:$0xf] %vm2087, %v2060
      %2278 = vst.msk [vmem:[%s172 + $0x2f8] sm:$0xf] %vm2087, %v2061
      %2279 = vst.msk [vmem:[%s172 + $0x2fc] sm:$0xf] %vm2087, %v2062
      %2280 = vst.msk [vmem:[%s172 + $0x300] sm:$0xf] %vm2087, %v2063
      %2281 = vst.msk [vmem:[%s172 + $0x304] sm:$0xf] %vm2087, %v2064
      %2282 = vst.msk [vmem:[%s172 + $0x308] sm:$0xf] %vm2087, %v2065
      %2283 = vst.msk [vmem:[%s172 + $0x30c] sm:$0xf] %vm2087, %v2066
      %2284 = vst.msk [vmem:[%s172 + $0x310] sm:$0xf] %vm2087, %v2067
      %2285 = vst.msk [vmem:[%s172 + $0x314] sm:$0xf] %vm2087, %v2068
      %2286 = vst.msk [vmem:[%s172 + $0x318] sm:$0xf] %vm2087, %v2069
      %2287 = vst.msk [vmem:[%s172 + $0x31c] sm:$0xf] %vm2087, %v2070
      %2288 = vst.msk [vmem:[%s172 + $0x320] sm:$0xf] %vm2087, %v2071
      %2289 = vst.msk [vmem:[%s172 + $0x324] sm:$0xf] %vm2087, %v2072
      %2290 = vst.msk [vmem:[%s172 + $0x328] sm:$0xf] %vm2087, %v2073
      %2291 = vst.msk [vmem:[%s172 + $0x32c] sm:$0xf] %vm2087, %v2074
      %2292 = vst.msk [vmem:[%s172 + $0x330] sm:$0xf] %vm2087, %v2075
      %2293 = vst.msk [vmem:[%s172 + $0x334] sm:$0xf] %vm2087, %v2076
      %2294 = vst.msk [vmem:[%s172 + $0x338] sm:$0xf] %vm2087, %v2077
      %2295 = vst.msk [vmem:[%s172 + $0x33c] sm:$0xf] %vm2087, %v2078
      %2296 = vst.msk [vmem:[%s172 + $0x340] sm:$0xf] %vm2087, %v2079
      %2297 = vst.msk [vmem:[%s172 + $0x344] sm:$0xf] %vm2087, %v2080
      %2298 = vst.msk [vmem:[%s172 + $0x348] sm:$0xf] %vm2087, %v2081
      %2299 = vst.msk [vmem:[%s172 + $0x34c] sm:$0xf] %vm2087, %v2082
      %2300 = vst.msk [vmem:[%s172 + $0x350] sm:$0xf] %vm2087, %v2083
      %2301 = vst.msk [vmem:[%s172 + $0x354] sm:$0xf] %vm2087, %v2084
      %2302 = vst.msk [vmem:[%s172 + $0x358] sm:$0xf] %vm2087, %v2085
      %2303 = vst.msk [vmem:[%s172 + $0x35c] sm:$0xf] %vm2087, %v2086
      %s2304 = smul.u32 216, %s14
      %p2305 = scmp.lt.s32.totalorder %s2304, 431
      %s2306 = scalar_select %p2305, %s2304, 431
      %s2307 = smul.addr %s2306, 4
      %s2308 = scalar_lea.vmem %s3, %s2307
      // Predicated region
      $region33: #{shape_encoder_forward.3} parent=31 // pred_check
        %p2309 = pneg %p100
      $region34: #{shape_encoder_forward.3} parent=31 // pred_check_branch
        %2311 = sbr.rel (%p2309) target = $region36
      $region35: #{shape_encoder_forward.3} parent=31 // pred_region
        %s2312 = smul.u32 216, %s14
      $region36: #{shape_encoder_forward.3} parent=31 // pred_fallthru
        _
    $region32: #{shape_encoder_forward.3} parent=5 // pred_fallthru
      _
    %p2313 = scmp.le.s32.totalorder 2, %s9
    // Predicated region
    $region37: #{shape_encoder_forward.3} parent=5 // pred_check
      %p2314 = pneg %p2313
    $region38: #{shape_encoder_forward.3} parent=5 // pred_check_branch
      %2316 = sbr.rel (%p2314) target = $region40
    $region39: #{shape_encoder_forward.3} parent=5 // pred_region
      %s2317 = ssub.s32 %s9, 2
      // Predicated region
      $region41: #{shape_encoder_forward.3} parent=39 // pred_check
        %p2318 = pneg %p106
      $region42: #{shape_encoder_forward.3} parent=39 // pred_check_branch
        %2320 = sbr.rel (%p2318) target = $region44
      $region43: #{shape_encoder_forward.3} parent=39 // pred_region
        %s2321 = smul.u32 216, %s15
        %p2322 = scmp.lt.s32.totalorder %s2321, 431
        %s2323 = scalar_select %p2322, %s2321, 431
        %s2324 = smul.addr %s2323, 4
        %s2325 = scalar_lea.vmem %s3, %s2324
      $region44: #{shape_encoder_forward.3} parent=39 // pred_fallthru
        _
    $region40: #{shape_encoder_forward.3} parent=5 // pred_fallthru
      _
  $region6: #{shape_encoder_forward.3} parent=0 // loop_footer
    %s13 = sadd.s32 1, %s9
  $region7: #{shape_encoder_forward.3} parent=0 // loop_footer_branch
    %8 = sbr.rel target = $region3
  $region8: #{shape_encoder_forward.3} parent=0 // loop_exit
    _

// kernel: shape_encoder_forward.4
$region0: #{shape_encoder_forward.4}
  #allocation0 [shape = 'u32[]', space=smem, size = 0x4, offset = 0x4, fixed_abs, tag = 'smem constant byte address 0x4 - core index']
  #allocation1 [shape = 'u32[72,128]{1,0:T(1,128)}', space=vmem, size = 0x9000, scoped, tag = 'internal scratch']
  %s0 = inlined_call_operand.vmem [shape: bf16[432,1728], index: 0, kind: input, shape index: {}]
  %s1 = inlined_call_operand.vmem [shape: bf16[1728,128], index: 1, kind: input, shape index: {}]
  %s2 = inlined_call_operand.vmem [shape: f32[1,128], index: 2, kind: input, shape index: {}]
  %s3 = inlined_call_operand.vmem [shape: bf16[432,128], index: 3, kind: output, shape index: {}]
  %s4 = sld [smem:[#allocation0]]
  $region22: #{shape_encoder_forward.4} parent=0
    _
  %s6 = ssub.s32 1, %s4
  %s7 = scalar_select 0, %s6, %s4
  // Predicated region
  $region2: #{shape_encoder_forward.4} parent=0 // pred_check
    _
  $region3: #{shape_encoder_forward.4} parent=0 // pred_check_branch
    %9 = sbr.rel (0) target = $region5
  $region4: #{shape_encoder_forward.4} parent=0 // pred_region
    _
  $region5: #{shape_encoder_forward.4} parent=0 // pred_fallthru
    _
  // Predicated region
  $region6: #{shape_encoder_forward.4} parent=0 // pred_check
    _
  $region7: #{shape_encoder_forward.4} parent=0 // pred_check_branch
    %11 = sbr.rel (0) target = $region9
  $region8: #{shape_encoder_forward.4} parent=0 // pred_region
    _
  $region9: #{shape_encoder_forward.4} parent=0 // pred_fallthru
    _
  // Predicated region
  $region10: #{shape_encoder_forward.4} parent=0 // pred_check
    _
  $region11: #{shape_encoder_forward.4} parent=0 // pred_check_branch
    %13 = sbr.rel (0) target = $region13
  $region12: #{shape_encoder_forward.4} parent=0 // pred_region
    _
  $region13: #{shape_encoder_forward.4} parent=0 // pred_fallthru
    _
  %v15 = vld [vmem:[%s0] sm:$0xff]
  %v16 = vld [vmem:[%s0 + $0x8] sm:$0xff]
  %v17 = vld [vmem:[%s0 + $0x10] sm:$0xff]
  %v18 = vld [vmem:[%s0 + $0x18] sm:$0xff]
  %v19 = vld [vmem:[%s0 + $0x20] sm:$0xff]
  %v20 = vld [vmem:[%s0 + $0x28] sm:$0xff]
  %v21 = vld [vmem:[%s0 + $0x30] sm:$0xff]
  %v22 = vld [vmem:[%s0 + $0x38] sm:$0xff]
  %v23 = vld [vmem:[%s0 + $0x40] sm:$0xff]
  %v24 = vld [vmem:[%s0 + $0x48] sm:$0xff]
  %v25 = vld [vmem:[%s0 + $0x50] sm:$0xff]
  %v26 = vld [vmem:[%s0 + $0x58] sm:$0xff]
  %v27 = vld [vmem:[%s0 + $0x60] sm:$0xff]
  %v28 = vld [vmem:[%s0 + $0x68] sm:$0xff]
  %v29 = vld [vmem:[%s0 + $0x70] sm:$0xff]
  %v30 = vld [vmem:[%s0 + $0x78] sm:$0xff]
  %v31 = vld [vmem:[%s0 + $0x80] sm:$0xff]
  %v32 = vld [vmem:[%s0 + $0x88] sm:$0xff]
  %v33 = vld [vmem:[%s0 + $0x90] sm:$0xff]
  %v34 = vld [vmem:[%s0 + $0x98] sm:$0xff]
  %v35 = vld [vmem:[%s0 + $0xa0] sm:$0xff]
  %v36 = vld [vmem:[%s0 + $0xa8] sm:$0xff]
  %v37 = vld [vmem:[%s0 + $0xb0] sm:$0xff]
  %v38 = vld [vmem:[%s0 + $0xb8] sm:$0xff]
  %v39 = vld [vmem:[%s0 + $0xc0] sm:$0xff]
  %v40 = vld [vmem:[%s0 + $0xc8] sm:$0xff]
  %v41 = vld [vmem:[%s0 + $0xd0] sm:$0xff]
  %v42 = vld [vmem:[%s0 + $0xd8] sm:$0xff]
  %v43 = vld [vmem:[%s0 + $0xe0] sm:$0xff]
  %v44 = vld [vmem:[%s0 + $0xe8] sm:$0xff]
  %v45 = vld [vmem:[%s0 + $0xf0] sm:$0xff]
  %v46 = vld [vmem:[%s0 + $0xf8] sm:$0xff]
  %v47 = vld [vmem:[%s0 + $0x100] sm:$0xff]
  %v48 = vld [vmem:[%s0 + $0x108] sm:$0xff]
  %v49 = vld [vmem:[%s0 + $0x110] sm:$0xff]
  %v50 = vld [vmem:[%s0 + $0x118] sm:$0xff]
  %v51 = vld [vmem:[%s0 + $0x120] sm:$0xff]
  %v52 = vld [vmem:[%s0 + $0x128] sm:$0xff]
  %v53 = vld [vmem:[%s0 + $0x130] sm:$0xff]
  %v54 = vld [vmem:[%s0 + $0x138] sm:$0xff]
  %v55 = vld [vmem:[%s0 + $0x140] sm:$0xff]
  %v56 = vld [vmem:[%s0 + $0x148] sm:$0xff]
  %v57 = vld [vmem:[%s0 + $0x150] sm:$0xff]
  %v58 = vld [vmem:[%s0 + $0x158] sm:$0xff]
  %v59 = vld [vmem:[%s0 + $0x160] sm:$0xff]
  %v60 = vld [vmem:[%s0 + $0x168] sm:$0xff]
  %v61 = vld [vmem:[%s0 + $0x170] sm:$0xff]
  %v62 = vld [vmem:[%s0 + $0x178] sm:$0xff]
  %v63 = vld [vmem:[%s0 + $0x180] sm:$0xff]
  %v64 = vld [vmem:[%s0 + $0x188] sm:$0xff]
  %v65 = vld [vmem:[%s0 + $0x190] sm:$0xff]
  %v66 = vld [vmem:[%s0 + $0x198] sm:$0xff]
  %v67 = vld [vmem:[%s0 + $0x1a0] sm:$0xff]
  %v68 = vld [vmem:[%s0 + $0x1a8] sm:$0xff]
  %v69 = vld [vmem:[%s0 + $0x1b0] sm:$0xff]
  %v70 = vld [vmem:[%s0 + $0x1b8] sm:$0xff]
  %v71 = vld [vmem:[%s0 + $0x1c0] sm:$0xff]
  %v72 = vld [vmem:[%s0 + $0x1c8] sm:$0xff]
  %v73 = vld [vmem:[%s0 + $0x1d0] sm:$0xff]
  %v74 = vld [vmem:[%s0 + $0x1d8] sm:$0xff]
  %v75 = vld [vmem:[%s0 + $0x1e0] sm:$0xff]
  %v76 = vld [vmem:[%s0 + $0x1e8] sm:$0xff]
  %v77 = vld [vmem:[%s0 + $0x1f0] sm:$0xff]
  %v78 = vld [vmem:[%s0 + $0x1f8] sm:$0xff]
  %v79 = vld [vmem:[%s0 + $0x200] sm:$0xff]
  %v80 = vld [vmem:[%s0 + $0x208] sm:$0xff]
  %v81 = vld [vmem:[%s0 + $0x210] sm:$0xff]
  %v82 = vld [vmem:[%s0 + $0x218] sm:$0xff]
  %v83 = vld [vmem:[%s0 + $0x220] sm:$0xff]
  %v84 = vld [vmem:[%s0 + $0x228] sm:$0xff]
  %v85 = vld [vmem:[%s0 + $0x230] sm:$0xff]
  %v86 = vld [vmem:[%s0 + $0x238] sm:$0xff]
  %v87 = vld [vmem:[%s0 + $0x240] sm:$0xff]
  %v88 = vld [vmem:[%s0 + $0x248] sm:$0xff]
  %v89 = vld [vmem:[%s0 + $0x250] sm:$0xff]
  %v90 = vld [vmem:[%s0 + $0x258] sm:$0xff]
  %v91 = vld [vmem:[%s0 + $0x260] sm:$0xff]
  %v92 = vld [vmem:[%s0 + $0x268] sm:$0xff]
  %v93 = vld [vmem:[%s0 + $0x270] sm:$0xff]
  %v94 = vld [vmem:[%s0 + $0x278] sm:$0xff]
  %v95 = vld [vmem:[%s0 + $0x280] sm:$0xff]
  %v96 = vld [vmem:[%s0 + $0x288] sm:$0xff]
  %v97 = vld [vmem:[%s0 + $0x290] sm:$0xff]
  %v98 = vld [vmem:[%s0 + $0x298] sm:$0xff]
  %v99 = vld [vmem:[%s0 + $0x2a0] sm:$0xff]
  %v100 = vld [vmem:[%s0 + $0x2a8] sm:$0xff]
  %v101 = vld [vmem:[%s0 + $0x2b0] sm:$0xff]
  %v102 = vld [vmem:[%s0 + $0x2b8] sm:$0xff]
  %v103 = vld [vmem:[%s0 + $0x2c0] sm:$0xff]
  %v104 = vld [vmem:[%s0 + $0x2c8] sm:$0xff]
  %v105 = vld [vmem:[%s0 + $0x2d0] sm:$0xff]
  %v106 = vld [vmem:[%s0 + $0x2d8] sm:$0xff]
  %v107 = vld [vmem:[%s0 + $0x2e0] sm:$0xff]
  %v108 = vld [vmem:[%s0 + $0x2e8] sm:$0xff]
  %v109 = vld [vmem:[%s0 + $0x2f0] sm:$0xff]
  %v110 = vld [vmem:[%s0 + $0x2f8] sm:$0xff]
  %v111 = vld [vmem:[%s0 + $0x300] sm:$0xff]
  %v112 = vld [vmem:[%s0 + $0x308] sm:$0xff]
  %v113 = vld [vmem:[%s0 + $0x310] sm:$0xff]
  %v114 = vld [vmem:[%s0 + $0x318] sm:$0xff]
  %v115 = vld [vmem:[%s0 + $0x320] sm:$0xff]
  %v116 = vld [vmem:[%s0 + $0x328] sm:$0xff]
  %v117 = vld [vmem:[%s0 + $0x330] sm:$0xff]
  %v118 = vld [vmem:[%s0 + $0x338] sm:$0xff]
  %v119 = vld [vmem:[%s0 + $0x340] sm:$0xff]
  %v120 = vld [vmem:[%s0 + $0x348] sm:$0xff]
  %v121 = vld [vmem:[%s0 + $0x350] sm:$0xff]
  %v122 = vld [vmem:[%s0 + $0x358] sm:$0xff]
  %v123 = vld [vmem:[%s0 + $0x360] sm:$0xff]
  %v124 = vld [vmem:[%s0 + $0x368] sm:$0xff]
  %v125 = vld [vmem:[%s0 + $0x370] sm:$0xff]
  %v126 = vld [vmem:[%s0 + $0x378] sm:$0xff]
  %v127 = vld [vmem:[%s0 + $0x380] sm:$0xff]
  %v128 = vld [vmem:[%s0 + $0x388] sm:$0xff]
  %v129 = vld [vmem:[%s0 + $0x390] sm:$0xff]
  %v130 = vld [vmem:[%s0 + $0x398] sm:$0xff]
  %v131 = vld [vmem:[%s0 + $0x3a0] sm:$0xff]
  %v132 = vld [vmem:[%s0 + $0x3a8] sm:$0xff]
  %v133 = vld [vmem:[%s0 + $0x3b0] sm:$0xff]
  %v134 = vld [vmem:[%s0 + $0x3b8] sm:$0xff]
  %v135 = vld [vmem:[%s0 + $0x3c0] sm:$0xff]
  %v136 = vld [vmem:[%s0 + $0x3c8] sm:$0xff]
  %v137 = vld [vmem:[%s0 + $0x3d0] sm:$0xff]
  %v138 = vld [vmem:[%s0 + $0x3d8] sm:$0xff]
  %v139 = vld [vmem:[%s0 + $0x3e0] sm:$0xff]
  %v140 = vld [vmem:[%s0 + $0x3e8] sm:$0xff]
  %v141 = vld [vmem:[%s0 + $0x3f0] sm:$0xff]
  %v142 = vld [vmem:[%s0 + $0x3f8] sm:$0xff]
  %v143 = vld [vmem:[%s0 + $0x400] sm:$0xff]
  %v144 = vld [vmem:[%s0 + $0x408] sm:$0xff]
  %v145 = vld [vmem:[%s0 + $0x410] sm:$0xff]
  %v146 = vld [vmem:[%s0 + $0x418] sm:$0xff]
  %v147 = vld [vmem:[%s0 + $0x420] sm:$0xff]
  %v148 = vld [vmem:[%s0 + $0x428] sm:$0xff]
  %v149 = vld [vmem:[%s0 + $0x430] sm:$0xff]
  %v150 = vld [vmem:[%s0 + $0x438] sm:$0xff]
  %v151 = vld [vmem:[%s0 + $0x440] sm:$0xff]
  %v152 = vld [vmem:[%s0 + $0x448] sm:$0xff]
  %v153 = vld [vmem:[%s0 + $0x450] sm:$0xff]
  %v154 = vld [vmem:[%s0 + $0x458] sm:$0xff]
  %v155 = vld [vmem:[%s0 + $0x460] sm:$0xff]
  %v156 = vld [vmem:[%s0 + $0x468] sm:$0xff]
  %v157 = vld [vmem:[%s0 + $0x470] sm:$0xff]
  %v158 = vld [vmem:[%s0 + $0x478] sm:$0xff]
  %v159 = vld [vmem:[%s0 + $0x480] sm:$0xff]
  %v160 = vld [vmem:[%s0 + $0x488] sm:$0xff]
  %v161 = vld [vmem:[%s0 + $0x490] sm:$0xff]
  %v162 = vld [vmem:[%s0 + $0x498] sm:$0xff]
  %v163 = vld [vmem:[%s0 + $0x4a0] sm:$0xff]
  %v164 = vld [vmem:[%s0 + $0x4a8] sm:$0xff]
  %v165 = vld [vmem:[%s0 + $0x4b0] sm:$0xff]
  %v166 = vld [vmem:[%s0 + $0x4b8] sm:$0xff]
  %v167 = vld [vmem:[%s0 + $0x4c0] sm:$0xff]
  %v168 = vld [vmem:[%s0 + $0x4c8] sm:$0xff]
  %v169 = vld [vmem:[%s0 + $0x4d0] sm:$0xff]
  %v170 = vld [vmem:[%s0 + $0x4d8] sm:$0xff]
  %v171 = vld [vmem:[%s0 + $0x4e0] sm:$0xff]
  %v172 = vld [vmem:[%s0 + $0x4e8] sm:$0xff]
  %v173 = vld [vmem:[%s0 + $0x4f0] sm:$0xff]
  %v174 = vld [vmem:[%s0 + $0x4f8] sm:$0xff]
  %v175 = vld [vmem:[%s0 + $0x500] sm:$0xff]
  %v176 = vld [vmem:[%s0 + $0x508] sm:$0xff]
  %v177 = vld [vmem:[%s0 + $0x510] sm:$0xff]
  %v178 = vld [vmem:[%s0 + $0x518] sm:$0xff]
  %v179 = vld [vmem:[%s0 + $0x520] sm:$0xff]
  %v180 = vld [vmem:[%s0 + $0x528] sm:$0xff]
  %v181 = vld [vmem:[%s0 + $0x530] sm:$0xff]
  %v182 = vld [vmem:[%s0 + $0x538] sm:$0xff]
  %v183 = vld [vmem:[%s0 + $0x540] sm:$0xff]
  %v184 = vld [vmem:[%s0 + $0x548] sm:$0xff]
  %v185 = vld [vmem:[%s0 + $0x550] sm:$0xff]
  %v186 = vld [vmem:[%s0 + $0x558] sm:$0xff]
  %v187 = vld [vmem:[%s0 + $0x560] sm:$0xff]
  %v188 = vld [vmem:[%s0 + $0x568] sm:$0xff]
  %v189 = vld [vmem:[%s0 + $0x570] sm:$0xff]
  %v190 = vld [vmem:[%s0 + $0x578] sm:$0xff]
  %v191 = vld [vmem:[%s0 + $0x580] sm:$0xff]
  %v192 = vld [vmem:[%s0 + $0x588] sm:$0xff]
  %v193 = vld [vmem:[%s0 + $0x590] sm:$0xff]
  %v194 = vld [vmem:[%s0 + $0x598] sm:$0xff]
  %v195 = vld [vmem:[%s0 + $0x5a0] sm:$0xff]
  %v196 = vld [vmem:[%s0 + $0x5a8] sm:$0xff]
  %v197 = vld [vmem:[%s0 + $0x5b0] sm:$0xff]
  %v198 = vld [vmem:[%s0 + $0x5b8] sm:$0xff]
  %v199 = vld [vmem:[%s0 + $0x5c0] sm:$0xff]
  %v200 = vld [vmem:[%s0 + $0x5c8] sm:$0xff]
  %v201 = vld [vmem:[%s0 + $0x5d0] sm:$0xff]
  %v202 = vld [vmem:[%s0 + $0x5d8] sm:$0xff]
  %v203 = vld [vmem:[%s0 + $0x5e0] sm:$0xff]
  %v204 = vld [vmem:[%s0 + $0x5e8] sm:$0xff]
  %v205 = vld [vmem:[%s0 + $0x5f0] sm:$0xff]
  %v206 = vld [vmem:[%s0 + $0x5f8] sm:$0xff]
  %v207 = vld [vmem:[%s0 + $0x600] sm:$0xff]
  %v208 = vld [vmem:[%s0 + $0x608] sm:$0xff]
  %v209 = vld [vmem:[%s0 + $0x610] sm:$0xff]
  %v210 = vld [vmem:[%s0 + $0x618] sm:$0xff]
  %v211 = vld [vmem:[%s0 + $0x620] sm:$0xff]
  %v212 = vld [vmem:[%s0 + $0x628] sm:$0xff]
  %v213 = vld [vmem:[%s0 + $0x630] sm:$0xff]
  %v214 = vld [vmem:[%s0 + $0x638] sm:$0xff]
  %v215 = vld [vmem:[%s0 + $0x640] sm:$0xff]
  %v216 = vld [vmem:[%s0 + $0x648] sm:$0xff]
  %v217 = vld [vmem:[%s0 + $0x650] sm:$0xff]
  %v218 = vld [vmem:[%s0 + $0x658] sm:$0xff]
  %v219 = vld [vmem:[%s0 + $0x660] sm:$0xff]
  %v220 = vld [vmem:[%s0 + $0x668] sm:$0xff]
  %v221 = vld [vmem:[%s0 + $0x670] sm:$0xff]
  %v222 = vld [vmem:[%s0 + $0x678] sm:$0xff]
  %v223 = vld [vmem:[%s0 + $0x680] sm:$0xff]
  %v224 = vld [vmem:[%s0 + $0x688] sm:$0xff]
  %v225 = vld [vmem:[%s0 + $0x690] sm:$0xff]
  %v226 = vld [vmem:[%s0 + $0x698] sm:$0xff]
  %v227 = vld [vmem:[%s0 + $0x6a0] sm:$0xff]
  %v228 = vld [vmem:[%s0 + $0x6a8] sm:$0xff]
  %v229 = vld [vmem:[%s0 + $0x6b0] sm:$0xff]
  %v230 = vld [vmem:[%s0 + $0x6b8] sm:$0xff]
  %v231 = vld [vmem:[%s0 + $0x6c0] sm:$0xff]
  %v232 = vld [vmem:[%s0 + $0x6c8] sm:$0xff]
  %v233 = vld [vmem:[%s0 + $0x6d0] sm:$0xff]
  %v234 = vld [vmem:[%s0 + $0x6d8] sm:$0xff]
  %v235 = vld [vmem:[%s0 + $0x6e0] sm:$0xff]
  %v236 = vld [vmem:[%s0 + $0x6e8] sm:$0xff]
  %v237 = vld [vmem:[%s0 + $0x6f0] sm:$0xff]
  %v238 = vld [vmem:[%s0 + $0x6f8] sm:$0xff]
  %v239 = vld [vmem:[%s0 + $0x700] sm:$0xff]
  %v240 = vld [vmem:[%s0 + $0x708] sm:$0xff]
  %v241 = vld [vmem:[%s0 + $0x710] sm:$0xff]
  %v242 = vld [vmem:[%s0 + $0x718] sm:$0xff]
  %v243 = vld [vmem:[%s0 + $0x720] sm:$0xff]
  %v244 = vld [vmem:[%s0 + $0x728] sm:$0xff]
  %v245 = vld [vmem:[%s0 + $0x730] sm:$0xff]
  %v246 = vld [vmem:[%s0 + $0x738] sm:$0xff]
  %v247 = vld [vmem:[%s0 + $0x740] sm:$0xff]
  %v248 = vld [vmem:[%s0 + $0x748] sm:$0xff]
  %v249 = vld [vmem:[%s0 + $0x750] sm:$0xff]
  %v250 = vld [vmem:[%s0 + $0x758] sm:$0xff]
  %v251 = vld [vmem:[%s0 + $0x760] sm:$0xff]
  %v252 = vld [vmem:[%s0 + $0x768] sm:$0xff]
  %v253 = vld [vmem:[%s0 + $0x770] sm:$0xff]
  %v254 = vld [vmem:[%s0 + $0x778] sm:$0xff]
  %v255 = vld [vmem:[%s0 + $0x780] sm:$0xff]
  %v256 = vld [vmem:[%s0 + $0x788] sm:$0xff]
  %v257 = vld [vmem:[%s0 + $0x790] sm:$0xff]
  %v258 = vld [vmem:[%s0 + $0x798] sm:$0xff]
  %v259 = vld [vmem:[%s0 + $0x7a0] sm:$0xff]
  %v260 = vld [vmem:[%s0 + $0x7a8] sm:$0xff]
  %v261 = vld [vmem:[%s0 + $0x7b0] sm:$0xff]
  %v262 = vld [vmem:[%s0 + $0x7b8] sm:$0xff]
  %v263 = vld [vmem:[%s0 + $0x7c0] sm:$0xff]
  %v264 = vld [vmem:[%s0 + $0x7c8] sm:$0xff]
  %v265 = vld [vmem:[%s0 + $0x7d0] sm:$0xff]
  %v266 = vld [vmem:[%s0 + $0x7d8] sm:$0xff]
  %v267 = vld [vmem:[%s0 + $0x7e0] sm:$0xff]
  %v268 = vld [vmem:[%s0 + $0x7e8] sm:$0xff]
  %v269 = vld [vmem:[%s0 + $0x7f0] sm:$0xff]
  %v270 = vld [vmem:[%s0 + $0x7f8] sm:$0xff]
  %v271 = vld [vmem:[%s0 + $0x800] sm:$0xff]
  %v272 = vld [vmem:[%s0 + $0x808] sm:$0xff]
  %v273 = vld [vmem:[%s0 + $0x810] sm:$0xff]
  %v274 = vld [vmem:[%s0 + $0x818] sm:$0xff]
  %v275 = vld [vmem:[%s0 + $0x820] sm:$0xff]
  %v276 = vld [vmem:[%s0 + $0x828] sm:$0xff]
  %v277 = vld [vmem:[%s0 + $0x830] sm:$0xff]
  %v278 = vld [vmem:[%s0 + $0x838] sm:$0xff]
  %v279 = vld [vmem:[%s0 + $0x840] sm:$0xff]
  %v280 = vld [vmem:[%s0 + $0x848] sm:$0xff]
  %v281 = vld [vmem:[%s0 + $0x850] sm:$0xff]
  %v282 = vld [vmem:[%s0 + $0x858] sm:$0xff]
  %v283 = vld [vmem:[%s0 + $0x860] sm:$0xff]
  %v284 = vld [vmem:[%s0 + $0x868] sm:$0xff]
  %v285 = vld [vmem:[%s0 + $0x870] sm:$0xff]
  %v286 = vld [vmem:[%s0 + $0x878] sm:$0xff]
  %v287 = vld [vmem:[%s0 + $0x880] sm:$0xff]
  %v288 = vld [vmem:[%s0 + $0x888] sm:$0xff]
  %v289 = vld [vmem:[%s0 + $0x890] sm:$0xff]
  %v290 = vld [vmem:[%s0 + $0x898] sm:$0xff]
  %v291 = vld [vmem:[%s0 + $0x8a0] sm:$0xff]
  %v292 = vld [vmem:[%s0 + $0x8a8] sm:$0xff]
  %v293 = vld [vmem:[%s0 + $0x8b0] sm:$0xff]
  %v294 = vld [vmem:[%s0 + $0x8b8] sm:$0xff]
  %v295 = vld [vmem:[%s0 + $0x8c0] sm:$0xff]
  %v296 = vld [vmem:[%s0 + $0x8c8] sm:$0xff]
  %v297 = vld [vmem:[%s0 + $0x8d0] sm:$0xff]
  %v298 = vld [vmem:[%s0 + $0x8d8] sm:$0xff]
  %v299 = vld [vmem:[%s0 + $0x8e0] sm:$0xff]
  %v300 = vld [vmem:[%s0 + $0x8e8] sm:$0xff]
  %v301 = vld [vmem:[%s0 + $0x8f0] sm:$0xff]
  %v302 = vld [vmem:[%s0 + $0x8f8] sm:$0xff]
  %v303 = vld [vmem:[%s0 + $0x900] sm:$0xff]
  %v304 = vld [vmem:[%s0 + $0x908] sm:$0xff]
  %v305 = vld [vmem:[%s0 + $0x910] sm:$0xff]
  %v306 = vld [vmem:[%s0 + $0x918] sm:$0xff]
  %v307 = vld [vmem:[%s0 + $0x920] sm:$0xff]
  %v308 = vld [vmem:[%s0 + $0x928] sm:$0xff]
  %v309 = vld [vmem:[%s0 + $0x930] sm:$0xff]
  %v310 = vld [vmem:[%s0 + $0x938] sm:$0xff]
  %v311 = vld [vmem:[%s0 + $0x940] sm:$0xff]
  %v312 = vld [vmem:[%s0 + $0x948] sm:$0xff]
  %v313 = vld [vmem:[%s0 + $0x950] sm:$0xff]
  %v314 = vld [vmem:[%s0 + $0x958] sm:$0xff]
  %v315 = vld [vmem:[%s0 + $0x960] sm:$0xff]
  %v316 = vld [vmem:[%s0 + $0x968] sm:$0xff]
  %v317 = vld [vmem:[%s0 + $0x970] sm:$0xff]
  %v318 = vld [vmem:[%s0 + $0x978] sm:$0xff]
  %v319 = vld [vmem:[%s0 + $0x980] sm:$0xff]
  %v320 = vld [vmem:[%s0 + $0x988] sm:$0xff]
  %v321 = vld [vmem:[%s0 + $0x990] sm:$0xff]
  %v322 = vld [vmem:[%s0 + $0x998] sm:$0xff]
  %v323 = vld [vmem:[%s0 + $0x9a0] sm:$0xff]
  %v324 = vld [vmem:[%s0 + $0x9a8] sm:$0xff]
  %v325 = vld [vmem:[%s0 + $0x9b0] sm:$0xff]
  %v326 = vld [vmem:[%s0 + $0x9b8] sm:$0xff]
  %v327 = vld [vmem:[%s0 + $0x9c0] sm:$0xff]
  %v328 = vld [vmem:[%s0 + $0x9c8] sm:$0xff]
  %v329 = vld [vmem:[%s0 + $0x9d0] sm:$0xff]
  %v330 = vld [vmem:[%s0 + $0x9d8] sm:$0xff]
  %v331 = vld [vmem:[%s0 + $0x9e0] sm:$0xff]
  %v332 = vld [vmem:[%s0 + $0x9e8] sm:$0xff]
  %v333 = vld [vmem:[%s0 + $0x9f0] sm:$0xff]
  %v334 = vld [vmem:[%s0 + $0x9f8] sm:$0xff]
  %v335 = vld [vmem:[%s0 + $0xa00] sm:$0xff]
  %v336 = vld [vmem:[%s0 + $0xa08] sm:$0xff]
  %v337 = vld [vmem:[%s0 + $0xa10] sm:$0xff]
  %v338 = vld [vmem:[%s0 + $0xa18] sm:$0xff]
  %v339 = vld [vmem:[%s0 + $0xa20] sm:$0xff]
  %v340 = vld [vmem:[%s0 + $0xa28] sm:$0xff]
  %v341 = vld [vmem:[%s0 + $0xa30] sm:$0xff]
  %v342 = vld [vmem:[%s0 + $0xa38] sm:$0xff]
  %v343 = vld [vmem:[%s0 + $0xa40] sm:$0xff]
  %v344 = vld [vmem:[%s0 + $0xa48] sm:$0xff]
  %v345 = vld [vmem:[%s0 + $0xa50] sm:$0xff]
  %v346 = vld [vmem:[%s0 + $0xa58] sm:$0xff]
  %v347 = vld [vmem:[%s0 + $0xa60] sm:$0xff]
  %v348 = vld [vmem:[%s0 + $0xa68] sm:$0xff]
  %v349 = vld [vmem:[%s0 + $0xa70] sm:$0xff]
  %v350 = vld [vmem:[%s0 + $0xa78] sm:$0xff]
  %v351 = vld [vmem:[%s0 + $0xa80] sm:$0xff]
  %v352 = vld [vmem:[%s0 + $0xa88] sm:$0xff]
  %v353 = vld [vmem:[%s0 + $0xa90] sm:$0xff]
  %v354 = vld [vmem:[%s0 + $0xa98] sm:$0xff]
  %v355 = vld [vmem:[%s0 + $0xaa0] sm:$0xff]
  %v356 = vld [vmem:[%s0 + $0xaa8] sm:$0xff]
  %v357 = vld [vmem:[%s0 + $0xab0] sm:$0xff]
  %v358 = vld [vmem:[%s0 + $0xab8] sm:$0xff]
  %v359 = vld [vmem:[%s0 + $0xac0] sm:$0xff]
  %v360 = vld [vmem:[%s0 + $0xac8] sm:$0xff]
  %v361 = vld [vmem:[%s0 + $0xad0] sm:$0xff]
  %v362 = vld [vmem:[%s0 + $0xad8] sm:$0xff]
  %v363 = vld [vmem:[%s0 + $0xae0] sm:$0xff]
  %v364 = vld [vmem:[%s0 + $0xae8] sm:$0xff]
  %v365 = vld [vmem:[%s0 + $0xaf0] sm:$0xff]
  %v366 = vld [vmem:[%s0 + $0xaf8] sm:$0xff]
  %v367 = vld [vmem:[%s0 + $0xb00] sm:$0xff]
  %v368 = vld [vmem:[%s0 + $0xb08] sm:$0xff]
  %v369 = vld [vmem:[%s0 + $0xb10] sm:$0xff]
  %v370 = vld [vmem:[%s0 + $0xb18] sm:$0xff]
  %v371 = vld [vmem:[%s0 + $0xb20] sm:$0xff]
  %v372 = vld [vmem:[%s0 + $0xb28] sm:$0xff]
  %v373 = vld [vmem:[%s0 + $0xb30] sm:$0xff]
  %v374 = vld [vmem:[%s0 + $0xb38] sm:$0xff]
  %v375 = vld [vmem:[%s0 + $0xb40] sm:$0xff]
  %v376 = vld [vmem:[%s0 + $0xb48] sm:$0xff]
  %v377 = vld [vmem:[%s0 + $0xb50] sm:$0xff]
  %v378 = vld [vmem:[%s0 + $0xb58] sm:$0xff]
  %v379 = vld [vmem:[%s0 + $0xb60] sm:$0xff]
  %v380 = vld [vmem:[%s0 + $0xb68] sm:$0xff]
  %v381 = vld [vmem:[%s0 + $0xb70] sm:$0xff]
  %v382 = vld [vmem:[%s0 + $0xb78] sm:$0xff]
  %v383 = vld [vmem:[%s0 + $0xb80] sm:$0xff]
  %v384 = vld [vmem:[%s0 + $0xb88] sm:$0xff]
  %v385 = vld [vmem:[%s0 + $0xb90] sm:$0xff]
  %v386 = vld [vmem:[%s0 + $0xb98] sm:$0xff]
  %v387 = vld [vmem:[%s0 + $0xba0] sm:$0xff]
  %v388 = vld [vmem:[%s0 + $0xba8] sm:$0xff]
  %v389 = vld [vmem:[%s0 + $0xbb0] sm:$0xff]
  %v390 = vld [vmem:[%s0 + $0xbb8] sm:$0xff]
  %v391 = vld [vmem:[%s0 + $0xbc0] sm:$0xff]
  %v392 = vld [vmem:[%s0 + $0xbc8] sm:$0xff]
  %v393 = vld [vmem:[%s1] sm:$0xf]
  %v394 = vld [vmem:[%s1 + $0x4] sm:$0xf]
  %v395 = vld [vmem:[%s1 + $0x8] sm:$0xf]
  %v396 = vld [vmem:[%s1 + $0xc] sm:$0xf]
  %v397 = vld [vmem:[%s1 + $0x10] sm:$0xf]
  %v398 = vld [vmem:[%s1 + $0x14] sm:$0xf]
  %v399 = vld [vmem:[%s1 + $0x18] sm:$0xf]
  %v400 = vld [vmem:[%s1 + $0x1c] sm:$0xf]
  %v401 = vld [vmem:[%s1 + $0x20] sm:$0xf]
  %v402 = vld [vmem:[%s1 + $0x24] sm:$0xf]
  %v403 = vld [vmem:[%s1 + $0x28] sm:$0xf]
  %v404 = vld [vmem:[%s1 + $0x2c] sm:$0xf]
  %v405 = vld [vmem:[%s1 + $0x30] sm:$0xf]
  %v406 = vld [vmem:[%s1 + $0x34] sm:$0xf]
  %v407 = vld [vmem:[%s1 + $0x38] sm:$0xf]
  %v408 = vld [vmem:[%s1 + $0x3c] sm:$0xf]
  %v409 = vld [vmem:[%s1 + $0x40] sm:$0xf]
  %v410 = vld [vmem:[%s1 + $0x44] sm:$0xf]
  %v411 = vld [vmem:[%s1 + $0x48] sm:$0xf]
  %v412 = vld [vmem:[%s1 + $0x4c] sm:$0xf]
  %v413 = vld [vmem:[%s1 + $0x50] sm:$0xf]
  %v414 = vld [vmem:[%s1 + $0x54] sm:$0xf]
  %v415 = vld [vmem:[%s1 + $0x58] sm:$0xf]
  %v416 = vld [vmem:[%s1 + $0x5c] sm:$0xf]
  %v417 = vld [vmem:[%s1 + $0x60] sm:$0xf]
  %v418 = vld [vmem:[%s1 + $0x64] sm:$0xf]
  %v419 = vld [vmem:[%s1 + $0x68] sm:$0xf]
  %v420 = vld [vmem:[%s1 + $0x6c] sm:$0xf]
  %v421 = vld [vmem:[%s1 + $0x70] sm:$0xf]
  %v422 = vld [vmem:[%s1 + $0x74] sm:$0xf]
  %v423 = vld [vmem:[%s1 + $0x78] sm:$0xf]
  %v424 = vld [vmem:[%s1 + $0x7c] sm:$0xf]
  %v425 = vld [vmem:[%s1 + $0x80] sm:$0xf]
  %v426 = vld [vmem:[%s1 + $0x84] sm:$0xf]
  %v427 = vld [vmem:[%s1 + $0x88] sm:$0xf]
  %v428 = vld [vmem:[%s1 + $0x8c] sm:$0xf]
  %v429 = vld [vmem:[%s1 + $0x90] sm:$0xf]
  %v430 = vld [vmem:[%s1 + $0x94] sm:$0xf]
  %v431 = vld [vmem:[%s1 + $0x98] sm:$0xf]
  %v432 = vld [vmem:[%s1 + $0x9c] sm:$0xf]
  %v433 = vld [vmem:[%s1 + $0xa0] sm:$0xf]
  %v434 = vld [vmem:[%s1 + $0xa4] sm:$0xf]
  %v435 = vld [vmem:[%s1 + $0xa8] sm:$0xf]
  %v436 = vld [vmem:[%s1 + $0xac] sm:$0xf]
  %v437 = vld [vmem:[%s1 + $0xb0] sm:$0xf]
  %v438 = vld [vmem:[%s1 + $0xb4] sm:$0xf]
  %v439 = vld [vmem:[%s1 + $0xb8] sm:$0xf]
  %v440 = vld [vmem:[%s1 + $0xbc] sm:$0xf]
  %v441 = vld [vmem:[%s1 + $0xc0] sm:$0xf]
  %v442 = vld [vmem:[%s1 + $0xc4] sm:$0xf]
  %v443 = vld [vmem:[%s1 + $0xc8] sm:$0xf]
  %v444 = vld [vmem:[%s1 + $0xcc] sm:$0xf]
  %v445 = vld [vmem:[%s1 + $0xd0] sm:$0xf]
  %v446 = vld [vmem:[%s1 + $0xd4] sm:$0xf]
  %v447 = vld [vmem:[%s1 + $0xd8] sm:$0xf]
  %v448 = vld [vmem:[%s1 + $0xdc] sm:$0xf]
  %v449 = vld [vmem:[%s1 + $0xe0] sm:$0xf]
  %v450 = vld [vmem:[%s1 + $0xe4] sm:$0xf]
  %v451 = vld [vmem:[%s1 + $0xe8] sm:$0xf]
  %v452 = vld [vmem:[%s1 + $0xec] sm:$0xf]
  %v453 = vld [vmem:[%s1 + $0xf0] sm:$0xf]
  %v454 = vld [vmem:[%s1 + $0xf4] sm:$0xf]
  %v455 = vld [vmem:[%s1 + $0xf8] sm:$0xf]
  %v456 = vld [vmem:[%s1 + $0xfc] sm:$0xf]
  %v457 = vld [vmem:[%s1 + $0x100] sm:$0xf]
  %v458 = vld [vmem:[%s1 + $0x104] sm:$0xf]
  %v459 = vld [vmem:[%s1 + $0x108] sm:$0xf]
  %v460 = vld [vmem:[%s1 + $0x10c] sm:$0xf]
  %v461 = vld [vmem:[%s1 + $0x110] sm:$0xf]
  %v462 = vld [vmem:[%s1 + $0x114] sm:$0xf]
  %v463 = vld [vmem:[%s1 + $0x118] sm:$0xf]
  %v464 = vld [vmem:[%s1 + $0x11c] sm:$0xf]
  %v465 = vld [vmem:[%s1 + $0x120] sm:$0xf]
  %v466 = vld [vmem:[%s1 + $0x124] sm:$0xf]
  %v467 = vld [vmem:[%s1 + $0x128] sm:$0xf]
  %v468 = vld [vmem:[%s1 + $0x12c] sm:$0xf]
  %v469 = vld [vmem:[%s1 + $0x130] sm:$0xf]
  %v470 = vld [vmem:[%s1 + $0x134] sm:$0xf]
  %v471 = vld [vmem:[%s1 + $0x138] sm:$0xf]
  %v472 = vld [vmem:[%s1 + $0x13c] sm:$0xf]
  %v473 = vld [vmem:[%s1 + $0x140] sm:$0xf]
  %v474 = vld [vmem:[%s1 + $0x144] sm:$0xf]
  %v475 = vld [vmem:[%s1 + $0x148] sm:$0xf]
  %v476 = vld [vmem:[%s1 + $0x14c] sm:$0xf]
  %v477 = vld [vmem:[%s1 + $0x150] sm:$0xf]
  %v478 = vld [vmem:[%s1 + $0x154] sm:$0xf]
  %v479 = vld [vmem:[%s1 + $0x158] sm:$0xf]
  %v480 = vld [vmem:[%s1 + $0x15c] sm:$0xf]
  %v481 = vld [vmem:[%s1 + $0x160] sm:$0xf]
  %v482 = vld [vmem:[%s1 + $0x164] sm:$0xf]
  %v483 = vld [vmem:[%s1 + $0x168] sm:$0xf]
  %v484 = vld [vmem:[%s1 + $0x16c] sm:$0xf]
  %v485 = vld [vmem:[%s1 + $0x170] sm:$0xf]
  %v486 = vld [vmem:[%s1 + $0x174] sm:$0xf]
  %v487 = vld [vmem:[%s1 + $0x178] sm:$0xf]
  %v488 = vld [vmem:[%s1 + $0x17c] sm:$0xf]
  %v489 = vld [vmem:[%s1 + $0x180] sm:$0xf]
  %v490 = vld [vmem:[%s1 + $0x184] sm:$0xf]
  %v491 = vld [vmem:[%s1 + $0x188] sm:$0xf]
  %v492 = vld [vmem:[%s1 + $0x18c] sm:$0xf]
  %v493 = vld [vmem:[%s1 + $0x190] sm:$0xf]
  %v494 = vld [vmem:[%s1 + $0x194] sm:$0xf]
  %v495 = vld [vmem:[%s1 + $0x198] sm:$0xf]
  %v496 = vld [vmem:[%s1 + $0x19c] sm:$0xf]
  %v497 = vld [vmem:[%s1 + $0x1a0] sm:$0xf]
  %v498 = vld [vmem:[%s1 + $0x1a4] sm:$0xf]
  %v499 = vld [vmem:[%s1 + $0x1a8] sm:$0xf]
  %v500 = vld [vmem:[%s1 + $0x1ac] sm:$0xf]
  %v501 = vld [vmem:[%s1 + $0x1b0] sm:$0xf]
  %v502 = vld [vmem:[%s1 + $0x1b4] sm:$0xf]
  %v503 = vld [vmem:[%s1 + $0x1b8] sm:$0xf]
  %v504 = vld [vmem:[%s1 + $0x1bc] sm:$0xf]
  %v505 = vld [vmem:[%s1 + $0x1c0] sm:$0xf]
  %v506 = vld [vmem:[%s1 + $0x1c4] sm:$0xf]
  %v507 = vld [vmem:[%s1 + $0x1c8] sm:$0xf]
  %v508 = vld [vmem:[%s1 + $0x1cc] sm:$0xf]
  %v509 = vld [vmem:[%s1 + $0x1d0] sm:$0xf]
  %v510 = vld [vmem:[%s1 + $0x1d4] sm:$0xf]
  %v511 = vld [vmem:[%s1 + $0x1d8] sm:$0xf]
  %v512 = vld [vmem:[%s1 + $0x1dc] sm:$0xf]
  %v513 = vld [vmem:[%s1 + $0x1e0] sm:$0xf]
  %v514 = vld [vmem:[%s1 + $0x1e4] sm:$0xf]
  %v515 = vld [vmem:[%s1 + $0x1e8] sm:$0xf]
  %v516 = vld [vmem:[%s1 + $0x1ec] sm:$0xf]
  %v517 = vld [vmem:[%s1 + $0x1f0] sm:$0xf]
  %v518 = vld [vmem:[%s1 + $0x1f4] sm:$0xf]
  %v519 = vld [vmem:[%s1 + $0x1f8] sm:$0xf]
  %v520 = vld [vmem:[%s1 + $0x1fc] sm:$0xf]
  %v521 = vld [vmem:[%s1 + $0x200] sm:$0xf]
  %v522 = vld [vmem:[%s1 + $0x204] sm:$0xf]
  %v523 = vld [vmem:[%s1 + $0x208] sm:$0xf]
  %v524 = vld [vmem:[%s1 + $0x20c] sm:$0xf]
  %v525 = vld [vmem:[%s1 + $0x210] sm:$0xf]
  %v526 = vld [vmem:[%s1 + $0x214] sm:$0xf]
  %v527 = vld [vmem:[%s1 + $0x218] sm:$0xf]
  %v528 = vld [vmem:[%s1 + $0x21c] sm:$0xf]
  %v529 = vld [vmem:[%s1 + $0x220] sm:$0xf]
  %v530 = vld [vmem:[%s1 + $0x224] sm:$0xf]
  %v531 = vld [vmem:[%s1 + $0x228] sm:$0xf]
  %v532 = vld [vmem:[%s1 + $0x22c] sm:$0xf]
  %v533 = vld [vmem:[%s1 + $0x230] sm:$0xf]
  %v534 = vld [vmem:[%s1 + $0x234] sm:$0xf]
  %v535 = vld [vmem:[%s1 + $0x238] sm:$0xf]
  %v536 = vld [vmem:[%s1 + $0x23c] sm:$0xf]
  %v537 = vld [vmem:[%s1 + $0x240] sm:$0xf]
  %v538 = vld [vmem:[%s1 + $0x244] sm:$0xf]
  %v539 = vld [vmem:[%s1 + $0x248] sm:$0xf]
  %v540 = vld [vmem:[%s1 + $0x24c] sm:$0xf]
  %v541 = vld [vmem:[%s1 + $0x250] sm:$0xf]
  %v542 = vld [vmem:[%s1 + $0x254] sm:$0xf]
  %v543 = vld [vmem:[%s1 + $0x258] sm:$0xf]
  %v544 = vld [vmem:[%s1 + $0x25c] sm:$0xf]
  %v545 = vld [vmem:[%s1 + $0x260] sm:$0xf]
  %v546 = vld [vmem:[%s1 + $0x264] sm:$0xf]
  %v547 = vld [vmem:[%s1 + $0x268] sm:$0xf]
  %v548 = vld [vmem:[%s1 + $0x26c] sm:$0xf]
  %v549 = vld [vmem:[%s1 + $0x270] sm:$0xf]
  %v550 = vld [vmem:[%s1 + $0x274] sm:$0xf]
  %v551 = vld [vmem:[%s1 + $0x278] sm:$0xf]
  %v552 = vld [vmem:[%s1 + $0x27c] sm:$0xf]
  %v553 = vld [vmem:[%s1 + $0x280] sm:$0xf]
  %v554 = vld [vmem:[%s1 + $0x284] sm:$0xf]
  %v555 = vld [vmem:[%s1 + $0x288] sm:$0xf]
  %v556 = vld [vmem:[%s1 + $0x28c] sm:$0xf]
  %v557 = vld [vmem:[%s1 + $0x290] sm:$0xf]
  %v558 = vld [vmem:[%s1 + $0x294] sm:$0xf]
  %v559 = vld [vmem:[%s1 + $0x298] sm:$0xf]
  %v560 = vld [vmem:[%s1 + $0x29c] sm:$0xf]
  %v561 = vld [vmem:[%s1 + $0x2a0] sm:$0xf]
  %v562 = vld [vmem:[%s1 + $0x2a4] sm:$0xf]
  %v563 = vld [vmem:[%s1 + $0x2a8] sm:$0xf]
  %v564 = vld [vmem:[%s1 + $0x2ac] sm:$0xf]
  %v565 = vld [vmem:[%s1 + $0x2b0] sm:$0xf]
  %v566 = vld [vmem:[%s1 + $0x2b4] sm:$0xf]
  %v567 = vld [vmem:[%s1 + $0x2b8] sm:$0xf]
  %v568 = vld [vmem:[%s1 + $0x2bc] sm:$0xf]
  %v569 = vld [vmem:[%s1 + $0x2c0] sm:$0xf]
  %v570 = vld [vmem:[%s1 + $0x2c4] sm:$0xf]
  %v571 = vld [vmem:[%s1 + $0x2c8] sm:$0xf]
  %v572 = vld [vmem:[%s1 + $0x2cc] sm:$0xf]
  %v573 = vld [vmem:[%s1 + $0x2d0] sm:$0xf]
  %v574 = vld [vmem:[%s1 + $0x2d4] sm:$0xf]
  %v575 = vld [vmem:[%s1 + $0x2d8] sm:$0xf]
  %v576 = vld [vmem:[%s1 + $0x2dc] sm:$0xf]
  %v577 = vld [vmem:[%s1 + $0x2e0] sm:$0xf]
  %v578 = vld [vmem:[%s1 + $0x2e4] sm:$0xf]
  %v579 = vld [vmem:[%s1 + $0x2e8] sm:$0xf]
  %v580 = vld [vmem:[%s1 + $0x2ec] sm:$0xf]
  %v581 = vld [vmem:[%s1 + $0x2f0] sm:$0xf]
  %v582 = vld [vmem:[%s1 + $0x2f4] sm:$0xf]
  %v583 = vld [vmem:[%s1 + $0x2f8] sm:$0xf]
  %v584 = vld [vmem:[%s1 + $0x2fc] sm:$0xf]
  %v585 = vld [vmem:[%s1 + $0x300] sm:$0xf]
  %v586 = vld [vmem:[%s1 + $0x304] sm:$0xf]
  %v587 = vld [vmem:[%s1 + $0x308] sm:$0xf]
  %v588 = vld [vmem:[%s1 + $0x30c] sm:$0xf]
  %v589 = vld [vmem:[%s1 + $0x310] sm:$0xf]
  %v590 = vld [vmem:[%s1 + $0x314] sm:$0xf]
  %v591 = vld [vmem:[%s1 + $0x318] sm:$0xf]
  %v592 = vld [vmem:[%s1 + $0x31c] sm:$0xf]
  %v593 = vld [vmem:[%s1 + $0x320] sm:$0xf]
  %v594 = vld [vmem:[%s1 + $0x324] sm:$0xf]
  %v595 = vld [vmem:[%s1 + $0x328] sm:$0xf]
  %v596 = vld [vmem:[%s1 + $0x32c] sm:$0xf]
  %v597 = vld [vmem:[%s1 + $0x330] sm:$0xf]
  %v598 = vld [vmem:[%s1 + $0x334] sm:$0xf]
  %v599 = vld [vmem:[%s1 + $0x338] sm:$0xf]
  %v600 = vld [vmem:[%s1 + $0x33c] sm:$0xf]
  %v601 = vld [vmem:[%s1 + $0x340] sm:$0xf]
  %v602 = vld [vmem:[%s1 + $0x344] sm:$0xf]
  %v603 = vld [vmem:[%s1 + $0x348] sm:$0xf]
  %v604 = vld [vmem:[%s1 + $0x34c] sm:$0xf]
  %v605 = vld [vmem:[%s1 + $0x350] sm:$0xf]
  %v606 = vld [vmem:[%s1 + $0x354] sm:$0xf]
  %v607 = vld [vmem:[%s1 + $0x358] sm:$0xf]
  %v608 = vld [vmem:[%s1 + $0x35c] sm:$0xf]
  %v609 = vld [vmem:[%s2] sm:$0x1]
  %v611 = vperm.slane %v609, 0
  %v991 = vunpack.c.l.b16 %v15
  %v992 = vunpack.c.h.b16 %v15
  %v993 = vunpack.c.l.b16 %v16
  %v994 = vunpack.c.h.b16 %v16
  %v995 = vunpack.c.l.b16 %v17
  %v996 = vunpack.c.h.b16 %v17
  %v997 = vunpack.c.l.b16 %v18
  %v998 = vunpack.c.h.b16 %v18
  %v999 = vunpack.c.l.b16 %v19
  %v1000 = vunpack.c.h.b16 %v19
  %v1001 = vunpack.c.l.b16 %v20
  %v1002 = vunpack.c.h.b16 %v20
  %v1003 = vunpack.c.l.b16 %v21
  %v1004 = vunpack.c.h.b16 %v21
  %v1005 = vunpack.c.l.b16 %v22
  %v1006 = vunpack.c.h.b16 %v22
  %v1007 = vunpack.c.l.b16 %v23
  %v1008 = vunpack.c.h.b16 %v23
  %v1009 = vunpack.c.l.b16 %v24
  %v1010 = vunpack.c.h.b16 %v24
  %v1011 = vunpack.c.l.b16 %v25
  %v1012 = vunpack.c.h.b16 %v25
  %v1013 = vunpack.c.l.b16 %v26
  %v1014 = vunpack.c.h.b16 %v26
  %v1015 = vunpack.c.l.b16 %v27
  %v1016 = vunpack.c.h.b16 %v27
  %v1017 = vunpack.c.l.b16 %v28
  %v1018 = vunpack.c.h.b16 %v28
  %v1019 = vunpack.c.l.b16 %v29
  %v1020 = vunpack.c.h.b16 %v29
  %v1021 = vunpack.c.l.b16 %v30
  %v1022 = vunpack.c.h.b16 %v30
  %v1023 = vunpack.c.l.b16 %v31
  %v1024 = vunpack.c.h.b16 %v31
  %v1025 = vunpack.c.l.b16 %v32
  %v1026 = vunpack.c.h.b16 %v32
  %v1027 = vunpack.c.l.b16 %v33
  %v1028 = vunpack.c.h.b16 %v33
  %v1029 = vunpack.c.l.b16 %v34
  %v1030 = vunpack.c.h.b16 %v34
  %v1031 = vunpack.c.l.b16 %v35
  %v1032 = vunpack.c.h.b16 %v35
  %v1033 = vunpack.c.l.b16 %v36
  %v1034 = vunpack.c.h.b16 %v36
  %v1035 = vunpack.c.l.b16 %v37
  %v1036 = vunpack.c.h.b16 %v37
  %v1037 = vunpack.c.l.b16 %v38
  %v1038 = vunpack.c.h.b16 %v38
  %v1039 = vunpack.c.l.b16 %v39
  %v1040 = vunpack.c.h.b16 %v39
  %v1041 = vunpack.c.l.b16 %v40
  %v1042 = vunpack.c.h.b16 %v40
  %v1043 = vunpack.c.l.b16 %v41
  %v1044 = vunpack.c.h.b16 %v41
  %v1045 = vunpack.c.l.b16 %v42
  %v1046 = vunpack.c.h.b16 %v42
  %v1047 = vunpack.c.l.b16 %v43
  %v1048 = vunpack.c.h.b16 %v43
  %v1049 = vunpack.c.l.b16 %v44
  %v1050 = vunpack.c.h.b16 %v44
  %v1051 = vunpack.c.l.b16 %v45
  %v1052 = vunpack.c.h.b16 %v45
  %v1053 = vunpack.c.l.b16 %v46
  %v1054 = vunpack.c.h.b16 %v46
  %v1055 = vunpack.c.l.b16 %v47
  %v1056 = vunpack.c.h.b16 %v47
  %v1057 = vunpack.c.l.b16 %v48
  %v1058 = vunpack.c.h.b16 %v48
  %v1059 = vunpack.c.l.b16 %v49
  %v1060 = vunpack.c.h.b16 %v49
  %v1061 = vunpack.c.l.b16 %v50
  %v1062 = vunpack.c.h.b16 %v50
  %v1063 = vunpack.c.l.b16 %v51
  %v1064 = vunpack.c.h.b16 %v51
  %v1065 = vunpack.c.l.b16 %v52
  %v1066 = vunpack.c.h.b16 %v52
  %v1067 = vunpack.c.l.b16 %v53
  %v1068 = vunpack.c.h.b16 %v53
  %v1069 = vunpack.c.l.b16 %v54
  %v1070 = vunpack.c.h.b16 %v54
  %v1071 = vunpack.c.l.b16 %v55
  %v1072 = vunpack.c.h.b16 %v55
  %v1073 = vunpack.c.l.b16 %v56
  %v1074 = vunpack.c.h.b16 %v56
  %v1075 = vunpack.c.l.b16 %v57
  %v1076 = vunpack.c.h.b16 %v57
  %v1077 = vunpack.c.l.b16 %v58
  %v1078 = vunpack.c.h.b16 %v58
  %v1079 = vunpack.c.l.b16 %v59
  %v1080 = vunpack.c.h.b16 %v59
  %v1081 = vunpack.c.l.b16 %v60
  %v1082 = vunpack.c.h.b16 %v60
  %v1083 = vunpack.c.l.b16 %v61
  %v1084 = vunpack.c.h.b16 %v61
  %v1085 = vunpack.c.l.b16 %v62
  %v1086 = vunpack.c.h.b16 %v62
  %v1087 = vunpack.c.l.b16 %v63
  %v1088 = vunpack.c.h.b16 %v63
  %v1089 = vunpack.c.l.b16 %v64
  %v1090 = vunpack.c.h.b16 %v64
  %v1091 = vunpack.c.l.b16 %v65
  %v1092 = vunpack.c.h.b16 %v65
  %v1093 = vunpack.c.l.b16 %v66
  %v1094 = vunpack.c.h.b16 %v66
  %v1095 = vunpack.c.l.b16 %v67
  %v1096 = vunpack.c.h.b16 %v67
  %v1097 = vunpack.c.l.b16 %v68
  %v1098 = vunpack.c.h.b16 %v68
  %v1099 = vunpack.c.l.b16 %v69
  %v1100 = vunpack.c.h.b16 %v69
  %v1101 = vunpack.c.l.b16 %v70
  %v1102 = vunpack.c.h.b16 %v70
  %v1103 = vunpack.c.l.b16 %v71
  %v1104 = vunpack.c.h.b16 %v71
  %v1105 = vunpack.c.l.b16 %v72
  %v1106 = vunpack.c.h.b16 %v72
  %v1107 = vunpack.c.l.b16 %v73
  %v1108 = vunpack.c.h.b16 %v73
  %v1109 = vunpack.c.l.b16 %v74
  %v1110 = vunpack.c.h.b16 %v74
  %v1111 = vunpack.c.l.b16 %v75
  %v1112 = vunpack.c.h.b16 %v75
  %v1113 = vunpack.c.l.b16 %v76
  %v1114 = vunpack.c.h.b16 %v76
  %v1115 = vunpack.c.l.b16 %v77
  %v1116 = vunpack.c.h.b16 %v77
  %v1117 = vunpack.c.l.b16 %v78
  %v1118 = vunpack.c.h.b16 %v78
  %v1119 = vunpack.c.l.b16 %v79
  %v1120 = vunpack.c.h.b16 %v79
  %v1121 = vunpack.c.l.b16 %v80
  %v1122 = vunpack.c.h.b16 %v80
  %v1123 = vunpack.c.l.b16 %v81
  %v1124 = vunpack.c.h.b16 %v81
  %v1125 = vunpack.c.l.b16 %v82
  %v1126 = vunpack.c.h.b16 %v82
  %v1127 = vunpack.c.l.b16 %v83
  %v1128 = vunpack.c.h.b16 %v83
  %v1129 = vunpack.c.l.b16 %v84
  %v1130 = vunpack.c.h.b16 %v84
  %v1131 = vunpack.c.l.b16 %v85
  %v1132 = vunpack.c.h.b16 %v85
  %v1133 = vunpack.c.l.b16 %v86
  %v1134 = vunpack.c.h.b16 %v86
  %v1135 = vunpack.c.l.b16 %v87
  %v1136 = vunpack.c.h.b16 %v87
  %v1137 = vunpack.c.l.b16 %v88
  %v1138 = vunpack.c.h.b16 %v88
  %v1139 = vunpack.c.l.b16 %v89
  %v1140 = vunpack.c.h.b16 %v89
  %v1141 = vunpack.c.l.b16 %v90
  %v1142 = vunpack.c.h.b16 %v90
  %v1143 = vunpack.c.l.b16 %v91
  %v1144 = vunpack.c.h.b16 %v91
  %v1145 = vunpack.c.l.b16 %v92
  %v1146 = vunpack.c.h.b16 %v92
  %v1147 = vunpack.c.l.b16 %v93
  %v1148 = vunpack.c.h.b16 %v93
  %v1149 = vunpack.c.l.b16 %v94
  %v1150 = vunpack.c.h.b16 %v94
  %v1151 = vunpack.c.l.b16 %v95
  %v1152 = vunpack.c.h.b16 %v95
  %v1153 = vunpack.c.l.b16 %v96
  %v1154 = vunpack.c.h.b16 %v96
  %v1155 = vunpack.c.l.b16 %v97
  %v1156 = vunpack.c.h.b16 %v97
  %v1157 = vunpack.c.l.b16 %v98
  %v1158 = vunpack.c.h.b16 %v98
  %v1159 = vunpack.c.l.b16 %v99
  %v1160 = vunpack.c.h.b16 %v99
  %v1161 = vunpack.c.l.b16 %v100
  %v1162 = vunpack.c.h.b16 %v100
  %v1163 = vunpack.c.l.b16 %v101
  %v1164 = vunpack.c.h.b16 %v101
  %v1165 = vunpack.c.l.b16 %v102
  %v1166 = vunpack.c.h.b16 %v102
  %v1167 = vunpack.c.l.b16 %v103
  %v1168 = vunpack.c.h.b16 %v103
  %v1169 = vunpack.c.l.b16 %v104
  %v1170 = vunpack.c.h.b16 %v104
  %v1171 = vunpack.c.l.b16 %v105
  %v1172 = vunpack.c.h.b16 %v105
  %v1173 = vunpack.c.l.b16 %v106
  %v1174 = vunpack.c.h.b16 %v106
  %v1175 = vunpack.c.l.b16 %v107
  %v1176 = vunpack.c.h.b16 %v107
  %v1177 = vunpack.c.l.b16 %v108
  %v1178 = vunpack.c.h.b16 %v108
  %v1179 = vunpack.c.l.b16 %v109
  %v1180 = vunpack.c.h.b16 %v109
  %v1181 = vunpack.c.l.b16 %v110
  %v1182 = vunpack.c.h.b16 %v110
  %v1183 = vunpack.c.l.b16 %v111
  %v1184 = vunpack.c.h.b16 %v111
  %v1185 = vunpack.c.l.b16 %v112
  %v1186 = vunpack.c.h.b16 %v112
  %v1187 = vunpack.c.l.b16 %v113
  %v1188 = vunpack.c.h.b16 %v113
  %v1189 = vunpack.c.l.b16 %v114
  %v1190 = vunpack.c.h.b16 %v114
  %v1191 = vunpack.c.l.b16 %v115
  %v1192 = vunpack.c.h.b16 %v115
  %v1193 = vunpack.c.l.b16 %v116
  %v1194 = vunpack.c.h.b16 %v116
  %v1195 = vunpack.c.l.b16 %v117
  %v1196 = vunpack.c.h.b16 %v117
  %v1197 = vunpack.c.l.b16 %v118
  %v1198 = vunpack.c.h.b16 %v118
  %v1199 = vunpack.c.l.b16 %v119
  %v1200 = vunpack.c.h.b16 %v119
  %v1201 = vunpack.c.l.b16 %v120
  %v1202 = vunpack.c.h.b16 %v120
  %v1203 = vunpack.c.l.b16 %v121
  %v1204 = vunpack.c.h.b16 %v121
  %v1205 = vunpack.c.l.b16 %v122
  %v1206 = vunpack.c.h.b16 %v122
  %v1207 = vunpack.c.l.b16 %v123
  %v1208 = vunpack.c.h.b16 %v123
  %v1209 = vunpack.c.l.b16 %v124
  %v1210 = vunpack.c.h.b16 %v124
  %v1211 = vunpack.c.l.b16 %v125
  %v1212 = vunpack.c.h.b16 %v125
  %v1213 = vunpack.c.l.b16 %v126
  %v1214 = vunpack.c.h.b16 %v126
  %v1215 = vunpack.c.l.b16 %v127
  %v1216 = vunpack.c.h.b16 %v127
  %v1217 = vunpack.c.l.b16 %v128
  %v1218 = vunpack.c.h.b16 %v128
  %v1219 = vunpack.c.l.b16 %v129
  %v1220 = vunpack.c.h.b16 %v129
  %v1221 = vunpack.c.l.b16 %v130
  %v1222 = vunpack.c.h.b16 %v130
  %v1223 = vunpack.c.l.b16 %v131
  %v1224 = vunpack.c.h.b16 %v131
  %v1225 = vunpack.c.l.b16 %v132
  %v1226 = vunpack.c.h.b16 %v132
  %v1227 = vunpack.c.l.b16 %v133
  %v1228 = vunpack.c.h.b16 %v133
  %v1229 = vunpack.c.l.b16 %v134
  %v1230 = vunpack.c.h.b16 %v134
  %v1231 = vunpack.c.l.b16 %v135
  %v1232 = vunpack.c.h.b16 %v135
  %v1233 = vunpack.c.l.b16 %v136
  %v1234 = vunpack.c.h.b16 %v136
  %v1235 = vunpack.c.l.b16 %v137
  %v1236 = vunpack.c.h.b16 %v137
  %v1237 = vunpack.c.l.b16 %v138
  %v1238 = vunpack.c.h.b16 %v138
  %v1239 = vunpack.c.l.b16 %v139
  %v1240 = vunpack.c.h.b16 %v139
  %v1241 = vunpack.c.l.b16 %v140
  %v1242 = vunpack.c.h.b16 %v140
  %v1243 = vunpack.c.l.b16 %v141
  %v1244 = vunpack.c.h.b16 %v141
  %v1245 = vunpack.c.l.b16 %v142
  %v1246 = vunpack.c.h.b16 %v142
  %v1247 = vunpack.c.l.b16 %v143
  %v1248 = vunpack.c.h.b16 %v143
  %v1249 = vunpack.c.l.b16 %v144
  %v1250 = vunpack.c.h.b16 %v144
  %v1251 = vunpack.c.l.b16 %v145
  %v1252 = vunpack.c.h.b16 %v145
  %v1253 = vunpack.c.l.b16 %v146
  %v1254 = vunpack.c.h.b16 %v146
  %v1255 = vunpack.c.l.b16 %v147
  %v1256 = vunpack.c.h.b16 %v147
  %v1257 = vunpack.c.l.b16 %v148
  %v1258 = vunpack.c.h.b16 %v148
  %v1259 = vunpack.c.l.b16 %v149
  %v1260 = vunpack.c.h.b16 %v149
  %v1261 = vunpack.c.l.b16 %v150
  %v1262 = vunpack.c.h.b16 %v150
  %v1263 = vunpack.c.l.b16 %v151
  %v1264 = vunpack.c.h.b16 %v151
  %v1265 = vunpack.c.l.b16 %v152
  %v1266 = vunpack.c.h.b16 %v152
  %v1267 = vunpack.c.l.b16 %v153
  %v1268 = vunpack.c.h.b16 %v153
  %v1269 = vunpack.c.l.b16 %v154
  %v1270 = vunpack.c.h.b16 %v154
  %v1271 = vunpack.c.l.b16 %v155
  %v1272 = vunpack.c.h.b16 %v155
  %v1273 = vunpack.c.l.b16 %v156
  %v1274 = vunpack.c.h.b16 %v156
  %v1275 = vunpack.c.l.b16 %v157
  %v1276 = vunpack.c.h.b16 %v157
  %v1277 = vunpack.c.l.b16 %v158
  %v1278 = vunpack.c.h.b16 %v158
  %v1279 = vunpack.c.l.b16 %v159
  %v1280 = vunpack.c.h.b16 %v159
  %v1281 = vunpack.c.l.b16 %v160
  %v1282 = vunpack.c.h.b16 %v160
  %v1283 = vunpack.c.l.b16 %v161
  %v1284 = vunpack.c.h.b16 %v161
  %v1285 = vunpack.c.l.b16 %v162
  %v1286 = vunpack.c.h.b16 %v162
  %v1287 = vunpack.c.l.b16 %v163
  %v1288 = vunpack.c.h.b16 %v163
  %v1289 = vunpack.c.l.b16 %v164
  %v1290 = vunpack.c.h.b16 %v164
  %v1291 = vunpack.c.l.b16 %v165
  %v1292 = vunpack.c.h.b16 %v165
  %v1293 = vunpack.c.l.b16 %v166
  %v1294 = vunpack.c.h.b16 %v166
  %v1295 = vunpack.c.l.b16 %v167
  %v1296 = vunpack.c.h.b16 %v167
  %v1297 = vunpack.c.l.b16 %v168
  %v1298 = vunpack.c.h.b16 %v168
  %v1299 = vunpack.c.l.b16 %v169
  %v1300 = vunpack.c.h.b16 %v169
  %v1301 = vunpack.c.l.b16 %v170
  %v1302 = vunpack.c.h.b16 %v170
  %v1303 = vunpack.c.l.b16 %v171
  %v1304 = vunpack.c.h.b16 %v171
  %v1305 = vunpack.c.l.b16 %v172
  %v1306 = vunpack.c.h.b16 %v172
  %v1307 = vunpack.c.l.b16 %v173
  %v1308 = vunpack.c.h.b16 %v173
  %v1309 = vunpack.c.l.b16 %v174
  %v1310 = vunpack.c.h.b16 %v174
  %v1311 = vunpack.c.l.b16 %v175
  %v1312 = vunpack.c.h.b16 %v175
  %v1313 = vunpack.c.l.b16 %v176
  %v1314 = vunpack.c.h.b16 %v176
  %v1315 = vunpack.c.l.b16 %v177
  %v1316 = vunpack.c.h.b16 %v177
  %v1317 = vunpack.c.l.b16 %v178
  %v1318 = vunpack.c.h.b16 %v178
  %v1319 = vunpack.c.l.b16 %v179
  %v1320 = vunpack.c.h.b16 %v179
  %v1321 = vunpack.c.l.b16 %v180
  %v1322 = vunpack.c.h.b16 %v180
  %v1323 = vunpack.c.l.b16 %v181
  %v1324 = vunpack.c.h.b16 %v181
  %v1325 = vunpack.c.l.b16 %v182
  %v1326 = vunpack.c.h.b16 %v182
  %v1327 = vunpack.c.l.b16 %v183
  %v1328 = vunpack.c.h.b16 %v183
  %v1329 = vunpack.c.l.b16 %v184
  %v1330 = vunpack.c.h.b16 %v184
  %v1331 = vunpack.c.l.b16 %v185
  %v1332 = vunpack.c.h.b16 %v185
  %v1333 = vunpack.c.l.b16 %v186
  %v1334 = vunpack.c.h.b16 %v186
  %v1335 = vunpack.c.l.b16 %v187
  %v1336 = vunpack.c.h.b16 %v187
  %v1337 = vunpack.c.l.b16 %v188
  %v1338 = vunpack.c.h.b16 %v188
  %v1339 = vunpack.c.l.b16 %v189
  %v1340 = vunpack.c.h.b16 %v189
  %v1341 = vunpack.c.l.b16 %v190
  %v1342 = vunpack.c.h.b16 %v190
  %v1343 = vunpack.c.l.b16 %v191
  %v1344 = vunpack.c.h.b16 %v191
  %v1345 = vunpack.c.l.b16 %v192
  %v1346 = vunpack.c.h.b16 %v192
  %v1347 = vunpack.c.l.b16 %v193
  %v1348 = vunpack.c.h.b16 %v193
  %v1349 = vunpack.c.l.b16 %v194
  %v1350 = vunpack.c.h.b16 %v194
  %v1351 = vunpack.c.l.b16 %v195
  %v1352 = vunpack.c.h.b16 %v195
  %v1353 = vunpack.c.l.b16 %v196
  %v1354 = vunpack.c.h.b16 %v196
  %v1355 = vunpack.c.l.b16 %v197
  %v1356 = vunpack.c.h.b16 %v197
  %v1357 = vunpack.c.l.b16 %v198
  %v1358 = vunpack.c.h.b16 %v198
  %v1359 = vunpack.c.l.b16 %v199
  %v1360 = vunpack.c.h.b16 %v199
  %v1361 = vunpack.c.l.b16 %v200
  %v1362 = vunpack.c.h.b16 %v200
  %v1363 = vunpack.c.l.b16 %v201
  %v1364 = vunpack.c.h.b16 %v201
  %v1365 = vunpack.c.l.b16 %v202
  %v1366 = vunpack.c.h.b16 %v202
  %v1367 = vunpack.c.l.b16 %v203
  %v1368 = vunpack.c.h.b16 %v203
  %v1369 = vunpack.c.l.b16 %v204
  %v1370 = vunpack.c.h.b16 %v204
  %v1371 = vunpack.c.l.b16 %v205
  %v1372 = vunpack.c.h.b16 %v205
  %v1373 = vunpack.c.l.b16 %v206
  %v1374 = vunpack.c.h.b16 %v206
  %v1375 = vunpack.c.l.b16 %v207
  %v1376 = vunpack.c.h.b16 %v207
  %v1377 = vunpack.c.l.b16 %v208
  %v1378 = vunpack.c.h.b16 %v208
  %v1379 = vunpack.c.l.b16 %v209
  %v1380 = vunpack.c.h.b16 %v209
  %v1381 = vunpack.c.l.b16 %v210
  %v1382 = vunpack.c.h.b16 %v210
  %v1383 = vunpack.c.l.b16 %v211
  %v1384 = vunpack.c.h.b16 %v211
  %v1385 = vunpack.c.l.b16 %v212
  %v1386 = vunpack.c.h.b16 %v212
  %v1387 = vunpack.c.l.b16 %v213
  %v1388 = vunpack.c.h.b16 %v213
  %v1389 = vunpack.c.l.b16 %v214
  %v1390 = vunpack.c.h.b16 %v214
  %v1391 = vunpack.c.l.b16 %v215
  %v1392 = vunpack.c.h.b16 %v215
  %v1393 = vunpack.c.l.b16 %v216
  %v1394 = vunpack.c.h.b16 %v216
  %v1395 = vunpack.c.l.b16 %v217
  %v1396 = vunpack.c.h.b16 %v217
  %v1397 = vunpack.c.l.b16 %v218
  %v1398 = vunpack.c.h.b16 %v218
  %v1399 = vunpack.c.l.b16 %v219
  %v1400 = vunpack.c.h.b16 %v219
  %v1401 = vunpack.c.l.b16 %v220
  %v1402 = vunpack.c.h.b16 %v220
  %v1403 = vunpack.c.l.b16 %v221
  %v1404 = vunpack.c.h.b16 %v221
  %v1405 = vunpack.c.l.b16 %v222
  %v1406 = vunpack.c.h.b16 %v222
  %v1407 = vunpack.c.l.b16 %v223
  %v1408 = vunpack.c.h.b16 %v223
  %v1409 = vunpack.c.l.b16 %v224
  %v1410 = vunpack.c.h.b16 %v224
  %v1411 = vunpack.c.l.b16 %v225
  %v1412 = vunpack.c.h.b16 %v225
  %v1413 = vunpack.c.l.b16 %v226
  %v1414 = vunpack.c.h.b16 %v226
  %v1415 = vunpack.c.l.b16 %v227
  %v1416 = vunpack.c.h.b16 %v227
  %v1417 = vunpack.c.l.b16 %v228
  %v1418 = vunpack.c.h.b16 %v228
  %v1419 = vunpack.c.l.b16 %v229
  %v1420 = vunpack.c.h.b16 %v229
  %v1421 = vunpack.c.l.b16 %v230
  %v1422 = vunpack.c.h.b16 %v230
  %v1423 = vunpack.c.l.b16 %v231
  %v1424 = vunpack.c.h.b16 %v231
  %v1425 = vunpack.c.l.b16 %v232
  %v1426 = vunpack.c.h.b16 %v232
  %v1427 = vunpack.c.l.b16 %v233
  %v1428 = vunpack.c.h.b16 %v233
  %v1429 = vunpack.c.l.b16 %v234
  %v1430 = vunpack.c.h.b16 %v234
  %v1431 = vunpack.c.l.b16 %v235
  %v1432 = vunpack.c.h.b16 %v235
  %v1433 = vunpack.c.l.b16 %v236
  %v1434 = vunpack.c.h.b16 %v236
  %v1435 = vunpack.c.l.b16 %v237
  %v1436 = vunpack.c.h.b16 %v237
  %v1437 = vunpack.c.l.b16 %v238
  %v1438 = vunpack.c.h.b16 %v238
  %v1439 = vunpack.c.l.b16 %v239
  %v1440 = vunpack.c.h.b16 %v239
  %v1441 = vunpack.c.l.b16 %v240
  %v1442 = vunpack.c.h.b16 %v240
  %v1443 = vunpack.c.l.b16 %v241
  %v1444 = vunpack.c.h.b16 %v241
  %v1445 = vunpack.c.l.b16 %v242
  %v1446 = vunpack.c.h.b16 %v242
  %v1447 = vunpack.c.l.b16 %v243
  %v1448 = vunpack.c.h.b16 %v243
  %v1449 = vunpack.c.l.b16 %v244
  %v1450 = vunpack.c.h.b16 %v244
  %v1451 = vunpack.c.l.b16 %v245
  %v1452 = vunpack.c.h.b16 %v245
  %v1453 = vunpack.c.l.b16 %v246
  %v1454 = vunpack.c.h.b16 %v246
  %v1455 = vunpack.c.l.b16 %v247
  %v1456 = vunpack.c.h.b16 %v247
  %v1457 = vunpack.c.l.b16 %v248
  %v1458 = vunpack.c.h.b16 %v248
  %v1459 = vunpack.c.l.b16 %v249
  %v1460 = vunpack.c.h.b16 %v249
  %v1461 = vunpack.c.l.b16 %v250
  %v1462 = vunpack.c.h.b16 %v250
  %v1463 = vunpack.c.l.b16 %v251
  %v1464 = vunpack.c.h.b16 %v251
  %v1465 = vunpack.c.l.b16 %v252
  %v1466 = vunpack.c.h.b16 %v252
  %v1467 = vunpack.c.l.b16 %v253
  %v1468 = vunpack.c.h.b16 %v253
  %v1469 = vunpack.c.l.b16 %v254
  %v1470 = vunpack.c.h.b16 %v254
  %v1471 = vunpack.c.l.b16 %v255
  %v1472 = vunpack.c.h.b16 %v255
  %v1473 = vunpack.c.l.b16 %v256
  %v1474 = vunpack.c.h.b16 %v256
  %v1475 = vunpack.c.l.b16 %v257
  %v1476 = vunpack.c.h.b16 %v257
  %v1477 = vunpack.c.l.b16 %v258
  %v1478 = vunpack.c.h.b16 %v258
  %v1479 = vunpack.c.l.b16 %v259
  %v1480 = vunpack.c.h.b16 %v259
  %v1481 = vunpack.c.l.b16 %v260
  %v1482 = vunpack.c.h.b16 %v260
  %v1483 = vunpack.c.l.b16 %v261
  %v1484 = vunpack.c.h.b16 %v261
  %v1485 = vunpack.c.l.b16 %v262
  %v1486 = vunpack.c.h.b16 %v262
  %v1487 = vunpack.c.l.b16 %v263
  %v1488 = vunpack.c.h.b16 %v263
  %v1489 = vunpack.c.l.b16 %v264
  %v1490 = vunpack.c.h.b16 %v264
  %v1491 = vunpack.c.l.b16 %v265
  %v1492 = vunpack.c.h.b16 %v265
  %v1493 = vunpack.c.l.b16 %v266
  %v1494 = vunpack.c.h.b16 %v266
  %v1495 = vunpack.c.l.b16 %v267
  %v1496 = vunpack.c.h.b16 %v267
  %v1497 = vunpack.c.l.b16 %v268
  %v1498 = vunpack.c.h.b16 %v268
  %v1499 = vunpack.c.l.b16 %v269
  %v1500 = vunpack.c.h.b16 %v269
  %v1501 = vunpack.c.l.b16 %v270
  %v1502 = vunpack.c.h.b16 %v270
  %v1503 = vunpack.c.l.b16 %v271
  %v1504 = vunpack.c.h.b16 %v271
  %v1505 = vunpack.c.l.b16 %v272
  %v1506 = vunpack.c.h.b16 %v272
  %v1507 = vunpack.c.l.b16 %v273
  %v1508 = vunpack.c.h.b16 %v273
  %v1509 = vunpack.c.l.b16 %v274
  %v1510 = vunpack.c.h.b16 %v274
  %v1511 = vunpack.c.l.b16 %v275
  %v1512 = vunpack.c.h.b16 %v275
  %v1513 = vunpack.c.l.b16 %v276
  %v1514 = vunpack.c.h.b16 %v276
  %v1515 = vunpack.c.l.b16 %v277
  %v1516 = vunpack.c.h.b16 %v277
  %v1517 = vunpack.c.l.b16 %v278
  %v1518 = vunpack.c.h.b16 %v278
  %v1519 = vunpack.c.l.b16 %v279
  %v1520 = vunpack.c.h.b16 %v279
  %v1521 = vunpack.c.l.b16 %v280
  %v1522 = vunpack.c.h.b16 %v280
  %v1523 = vunpack.c.l.b16 %v281
  %v1524 = vunpack.c.h.b16 %v281
  %v1525 = vunpack.c.l.b16 %v282
  %v1526 = vunpack.c.h.b16 %v282
  %v1527 = vunpack.c.l.b16 %v283
  %v1528 = vunpack.c.h.b16 %v283
  %v1529 = vunpack.c.l.b16 %v284
  %v1530 = vunpack.c.h.b16 %v284
  %v1531 = vunpack.c.l.b16 %v285
  %v1532 = vunpack.c.h.b16 %v285
  %v1533 = vunpack.c.l.b16 %v286
  %v1534 = vunpack.c.h.b16 %v286
  %v1535 = vunpack.c.l.b16 %v287
  %v1536 = vunpack.c.h.b16 %v287
  %v1537 = vunpack.c.l.b16 %v288
  %v1538 = vunpack.c.h.b16 %v288
  %v1539 = vunpack.c.l.b16 %v289
  %v1540 = vunpack.c.h.b16 %v289
  %v1541 = vunpack.c.l.b16 %v290
  %v1542 = vunpack.c.h.b16 %v290
  %v1543 = vunpack.c.l.b16 %v291
  %v1544 = vunpack.c.h.b16 %v291
  %v1545 = vunpack.c.l.b16 %v292
  %v1546 = vunpack.c.h.b16 %v292
  %v1547 = vunpack.c.l.b16 %v293
  %v1548 = vunpack.c.h.b16 %v293
  %v1549 = vunpack.c.l.b16 %v294
  %v1550 = vunpack.c.h.b16 %v294
  %v1551 = vunpack.c.l.b16 %v295
  %v1552 = vunpack.c.h.b16 %v295
  %v1553 = vunpack.c.l.b16 %v296
  %v1554 = vunpack.c.h.b16 %v296
  %v1555 = vunpack.c.l.b16 %v297
  %v1556 = vunpack.c.h.b16 %v297
  %v1557 = vunpack.c.l.b16 %v298
  %v1558 = vunpack.c.h.b16 %v298
  %v1559 = vunpack.c.l.b16 %v299
  %v1560 = vunpack.c.h.b16 %v299
  %v1561 = vunpack.c.l.b16 %v300
  %v1562 = vunpack.c.h.b16 %v300
  %v1563 = vunpack.c.l.b16 %v301
  %v1564 = vunpack.c.h.b16 %v301
  %v1565 = vunpack.c.l.b16 %v302
  %v1566 = vunpack.c.h.b16 %v302
  %v1567 = vunpack.c.l.b16 %v303
  %v1568 = vunpack.c.h.b16 %v303
  %v1569 = vunpack.c.l.b16 %v304
  %v1570 = vunpack.c.h.b16 %v304
  %v1571 = vunpack.c.l.b16 %v305
  %v1572 = vunpack.c.h.b16 %v305
  %v1573 = vunpack.c.l.b16 %v306
  %v1574 = vunpack.c.h.b16 %v306
  %v1575 = vunpack.c.l.b16 %v307
  %v1576 = vunpack.c.h.b16 %v307
  %v1577 = vunpack.c.l.b16 %v308
  %v1578 = vunpack.c.h.b16 %v308
  %v1579 = vunpack.c.l.b16 %v309
  %v1580 = vunpack.c.h.b16 %v309
  %v1581 = vunpack.c.l.b16 %v310
  %v1582 = vunpack.c.h.b16 %v310
  %v1583 = vunpack.c.l.b16 %v311
  %v1584 = vunpack.c.h.b16 %v311
  %v1585 = vunpack.c.l.b16 %v312
  %v1586 = vunpack.c.h.b16 %v312
  %v1587 = vunpack.c.l.b16 %v313
  %v1588 = vunpack.c.h.b16 %v313
  %v1589 = vunpack.c.l.b16 %v314
  %v1590 = vunpack.c.h.b16 %v314
  %v1591 = vunpack.c.l.b16 %v315
  %v1592 = vunpack.c.h.b16 %v315
  %v1593 = vunpack.c.l.b16 %v316
  %v1594 = vunpack.c.h.b16 %v316
  %v1595 = vunpack.c.l.b16 %v317
  %v1596 = vunpack.c.h.b16 %v317
  %v1597 = vunpack.c.l.b16 %v318
  %v1598 = vunpack.c.h.b16 %v318
  %v1599 = vunpack.c.l.b16 %v319
  %v1600 = vunpack.c.h.b16 %v319
  %v1601 = vunpack.c.l.b16 %v320
  %v1602 = vunpack.c.h.b16 %v320
  %v1603 = vunpack.c.l.b16 %v321
  %v1604 = vunpack.c.h.b16 %v321
  %v1605 = vunpack.c.l.b16 %v322
  %v1606 = vunpack.c.h.b16 %v322
  %v1607 = vunpack.c.l.b16 %v323
  %v1608 = vunpack.c.h.b16 %v323
  %v1609 = vunpack.c.l.b16 %v324
  %v1610 = vunpack.c.h.b16 %v324
  %v1611 = vunpack.c.l.b16 %v325
  %v1612 = vunpack.c.h.b16 %v325
  %v1613 = vunpack.c.l.b16 %v326
  %v1614 = vunpack.c.h.b16 %v326
  %v1615 = vunpack.c.l.b16 %v327
  %v1616 = vunpack.c.h.b16 %v327
  %v1617 = vunpack.c.l.b16 %v328
  %v1618 = vunpack.c.h.b16 %v328
  %v1619 = vunpack.c.l.b16 %v329
  %v1620 = vunpack.c.h.b16 %v329
  %v1621 = vunpack.c.l.b16 %v330
  %v1622 = vunpack.c.h.b16 %v330
  %v1623 = vunpack.c.l.b16 %v331
  %v1624 = vunpack.c.h.b16 %v331
  %v1625 = vunpack.c.l.b16 %v332
  %v1626 = vunpack.c.h.b16 %v332
  %v1627 = vunpack.c.l.b16 %v333
  %v1628 = vunpack.c.h.b16 %v333
  %v1629 = vunpack.c.l.b16 %v334
  %v1630 = vunpack.c.h.b16 %v334
  %v1631 = vunpack.c.l.b16 %v335
  %v1632 = vunpack.c.h.b16 %v335
  %v1633 = vunpack.c.l.b16 %v336
  %v1634 = vunpack.c.h.b16 %v336
  %v1635 = vunpack.c.l.b16 %v337
  %v1636 = vunpack.c.h.b16 %v337
  %v1637 = vunpack.c.l.b16 %v338
  %v1638 = vunpack.c.h.b16 %v338
  %v1639 = vunpack.c.l.b16 %v339
  %v1640 = vunpack.c.h.b16 %v339
  %v1641 = vunpack.c.l.b16 %v340
  %v1642 = vunpack.c.h.b16 %v340
  %v1643 = vunpack.c.l.b16 %v341
  %v1644 = vunpack.c.h.b16 %v341
  %v1645 = vunpack.c.l.b16 %v342
  %v1646 = vunpack.c.h.b16 %v342
  %v1647 = vunpack.c.l.b16 %v343
  %v1648 = vunpack.c.h.b16 %v343
  %v1649 = vunpack.c.l.b16 %v344
  %v1650 = vunpack.c.h.b16 %v344
  %v1651 = vunpack.c.l.b16 %v345
  %v1652 = vunpack.c.h.b16 %v345
  %v1653 = vunpack.c.l.b16 %v346
  %v1654 = vunpack.c.h.b16 %v346
  %v1655 = vunpack.c.l.b16 %v347
  %v1656 = vunpack.c.h.b16 %v347
  %v1657 = vunpack.c.l.b16 %v348
  %v1658 = vunpack.c.h.b16 %v348
  %v1659 = vunpack.c.l.b16 %v349
  %v1660 = vunpack.c.h.b16 %v349
  %v1661 = vunpack.c.l.b16 %v350
  %v1662 = vunpack.c.h.b16 %v350
  %v1663 = vunpack.c.l.b16 %v351
  %v1664 = vunpack.c.h.b16 %v351
  %v1665 = vunpack.c.l.b16 %v352
  %v1666 = vunpack.c.h.b16 %v352
  %v1667 = vunpack.c.l.b16 %v353
  %v1668 = vunpack.c.h.b16 %v353
  %v1669 = vunpack.c.l.b16 %v354
  %v1670 = vunpack.c.h.b16 %v354
  %v1671 = vunpack.c.l.b16 %v355
  %v1672 = vunpack.c.h.b16 %v355
  %v1673 = vunpack.c.l.b16 %v356
  %v1674 = vunpack.c.h.b16 %v356
  %v1675 = vunpack.c.l.b16 %v357
  %v1676 = vunpack.c.h.b16 %v357
  %v1677 = vunpack.c.l.b16 %v358
  %v1678 = vunpack.c.h.b16 %v358
  %v1679 = vunpack.c.l.b16 %v359
  %v1680 = vunpack.c.h.b16 %v359
  %v1681 = vunpack.c.l.b16 %v360
  %v1682 = vunpack.c.h.b16 %v360
  %v1683 = vunpack.c.l.b16 %v361
  %v1684 = vunpack.c.h.b16 %v361
  %v1685 = vunpack.c.l.b16 %v362
  %v1686 = vunpack.c.h.b16 %v362
  %v1687 = vunpack.c.l.b16 %v363
  %v1688 = vunpack.c.h.b16 %v363
  %v1689 = vunpack.c.l.b16 %v364
  %v1690 = vunpack.c.h.b16 %v364
  %v1691 = vunpack.c.l.b16 %v365
  %v1692 = vunpack.c.h.b16 %v365
  %v1693 = vunpack.c.l.b16 %v366
  %v1694 = vunpack.c.h.b16 %v366
  %v1695 = vunpack.c.l.b16 %v367
  %v1696 = vunpack.c.h.b16 %v367
  %v1697 = vunpack.c.l.b16 %v368
  %v1698 = vunpack.c.h.b16 %v368
  %v1699 = vunpack.c.l.b16 %v369
  %v1700 = vunpack.c.h.b16 %v369
  %v1701 = vunpack.c.l.b16 %v370
  %v1702 = vunpack.c.h.b16 %v370
  %v1703 = vunpack.c.l.b16 %v371
  %v1704 = vunpack.c.h.b16 %v371
  %v1705 = vunpack.c.l.b16 %v372
  %v1706 = vunpack.c.h.b16 %v372
  %v1707 = vunpack.c.l.b16 %v373
  %v1708 = vunpack.c.h.b16 %v373
  %v1709 = vunpack.c.l.b16 %v374
  %v1710 = vunpack.c.h.b16 %v374
  %v1711 = vunpack.c.l.b16 %v375
  %v1712 = vunpack.c.h.b16 %v375
  %v1713 = vunpack.c.l.b16 %v376
  %v1714 = vunpack.c.h.b16 %v376
  %v1715 = vunpack.c.l.b16 %v377
  %v1716 = vunpack.c.h.b16 %v377
  %v1717 = vunpack.c.l.b16 %v378
  %v1718 = vunpack.c.h.b16 %v378
  %v1719 = vunpack.c.l.b16 %v379
  %v1720 = vunpack.c.h.b16 %v379
  %v1721 = vunpack.c.l.b16 %v380
  %v1722 = vunpack.c.h.b16 %v380
  %v1723 = vunpack.c.l.b16 %v381
  %v1724 = vunpack.c.h.b16 %v381
  %v1725 = vunpack.c.l.b16 %v382
  %v1726 = vunpack.c.h.b16 %v382
  %v1727 = vunpack.c.l.b16 %v383
  %v1728 = vunpack.c.h.b16 %v383
  %v1729 = vunpack.c.l.b16 %v384
  %v1730 = vunpack.c.h.b16 %v384
  %v1731 = vunpack.c.l.b16 %v385
  %v1732 = vunpack.c.h.b16 %v385
  %v1733 = vunpack.c.l.b16 %v386
  %v1734 = vunpack.c.h.b16 %v386
  %v1735 = vunpack.c.l.b16 %v387
  %v1736 = vunpack.c.h.b16 %v387
  %v1737 = vunpack.c.l.b16 %v388
  %v1738 = vunpack.c.h.b16 %v388
  %v1739 = vunpack.c.l.b16 %v389
  %v1740 = vunpack.c.h.b16 %v389
  %v1741 = vunpack.c.l.b16 %v390
  %v1742 = vunpack.c.h.b16 %v390
  %v1743 = vunpack.c.l.b16 %v391
  %v1744 = vunpack.c.h.b16 %v391
  %v1745 = vunpack.c.l.b16 %v392
  %v1746 = vunpack.c.h.b16 %v392
  %v1747 = vpack.c.b16 %v1005, %v991
  %v1748 = vpack.c.b16 %v1006, %v992
  %v1749 = vpack.c.b16 %v1007, %v993
  %v1750 = vpack.c.b16 %v1008, %v994
  %v1751 = vpack.c.b16 %v1009, %v995
  %v1752 = vpack.c.b16 %v1010, %v996
  %v1753 = vpack.c.b16 %v1011, %v997
  %v1754 = vpack.c.b16 %v1012, %v998
  %v1755 = vpack.c.b16 %v1013, %v999
  %v1756 = vpack.c.b16 %v1014, %v1000
  %v1757 = vpack.c.b16 %v1015, %v1001
  %v1758 = vpack.c.b16 %v1016, %v1002
  %v1759 = vpack.c.b16 %v1017, %v1003
  %v1760 = vpack.c.b16 %v1018, %v1004
  %v1761 = vpack.c.b16 %v1033, %v1019
  %v1762 = vpack.c.b16 %v1034, %v1020
  %v1763 = vpack.c.b16 %v1035, %v1021
  %v1764 = vpack.c.b16 %v1036, %v1022
  %v1765 = vpack.c.b16 %v1037, %v1023
  %v1766 = vpack.c.b16 %v1038, %v1024
  %v1767 = vpack.c.b16 %v1039, %v1025
  %v1768 = vpack.c.b16 %v1040, %v1026
  %v1769 = vpack.c.b16 %v1041, %v1027
  %v1770 = vpack.c.b16 %v1042, %v1028
  %v1771 = vpack.c.b16 %v1043, %v1029
  %v1772 = vpack.c.b16 %v1044, %v1030
  %v1773 = vpack.c.b16 %v1045, %v1031
  %v1774 = vpack.c.b16 %v1046, %v1032
  %v1775 = vpack.c.b16 %v1061, %v1047
  %v1776 = vpack.c.b16 %v1062, %v1048
  %v1777 = vpack.c.b16 %v1063, %v1049
  %v1778 = vpack.c.b16 %v1064, %v1050
  %v1779 = vpack.c.b16 %v1065, %v1051
  %v1780 = vpack.c.b16 %v1066, %v1052
  %v1781 = vpack.c.b16 %v1067, %v1053
  %v1782 = vpack.c.b16 %v1068, %v1054
  %v1783 = vpack.c.b16 %v1069, %v1055
  %v1784 = vpack.c.b16 %v1070, %v1056
  %v1785 = vpack.c.b16 %v1071, %v1057
  %v1786 = vpack.c.b16 %v1072, %v1058
  %v1787 = vpack.c.b16 %v1073, %v1059
  %v1788 = vpack.c.b16 %v1074, %v1060
  %v1789 = vpack.c.b16 %v1089, %v1075
  %v1790 = vpack.c.b16 %v1090, %v1076
  %v1791 = vpack.c.b16 %v1091, %v1077
  %v1792 = vpack.c.b16 %v1092, %v1078
  %v1793 = vpack.c.b16 %v1093, %v1079
  %v1794 = vpack.c.b16 %v1094, %v1080
  %v1795 = vpack.c.b16 %v1095, %v1081
  %v1796 = vpack.c.b16 %v1096, %v1082
  %v1797 = vpack.c.b16 %v1097, %v1083
  %v1798 = vpack.c.b16 %v1098, %v1084
  %v1799 = vpack.c.b16 %v1099, %v1085
  %v1800 = vpack.c.b16 %v1100, %v1086
  %v1801 = vpack.c.b16 %v1101, %v1087
  %v1802 = vpack.c.b16 %v1102, %v1088
  %v1803 = vpack.c.b16 %v1117, %v1103
  %v1804 = vpack.c.b16 %v1118, %v1104
  %v1805 = vpack.c.b16 %v1119, %v1105
  %v1806 = vpack.c.b16 %v1120, %v1106
  %v1807 = vpack.c.b16 %v1121, %v1107
  %v1808 = vpack.c.b16 %v1122, %v1108
  %v1809 = vpack.c.b16 %v1123, %v1109
  %v1810 = vpack.c.b16 %v1124, %v1110
  %v1811 = vpack.c.b16 %v1125, %v1111
  %v1812 = vpack.c.b16 %v1126, %v1112
  %v1813 = vpack.c.b16 %v1127, %v1113
  %v1814 = vpack.c.b16 %v1128, %v1114
  %v1815 = vpack.c.b16 %v1129, %v1115
  %v1816 = vpack.c.b16 %v1130, %v1116
  %v1817 = vpack.c.b16 %v1145, %v1131
  %v1818 = vpack.c.b16 %v1146, %v1132
  %v1819 = vpack.c.b16 %v1147, %v1133
  %v1820 = vpack.c.b16 %v1148, %v1134
  %v1821 = vpack.c.b16 %v1149, %v1135
  %v1822 = vpack.c.b16 %v1150, %v1136
  %v1823 = vpack.c.b16 %v1151, %v1137
  %v1824 = vpack.c.b16 %v1152, %v1138
  %v1825 = vpack.c.b16 %v1153, %v1139
  %v1826 = vpack.c.b16 %v1154, %v1140
  %v1827 = vpack.c.b16 %v1155, %v1141
  %v1828 = vpack.c.b16 %v1156, %v1142
  %v1829 = vpack.c.b16 %v1157, %v1143
  %v1830 = vpack.c.b16 %v1158, %v1144
  %v1831 = vpack.c.b16 %v1173, %v1159
  %v1832 = vpack.c.b16 %v1174, %v1160
  %v1833 = vpack.c.b16 %v1175, %v1161
  %v1834 = vpack.c.b16 %v1176, %v1162
  %v1835 = vpack.c.b16 %v1177, %v1163
  %v1836 = vpack.c.b16 %v1178, %v1164
  %v1837 = vpack.c.b16 %v1179, %v1165
  %v1838 = vpack.c.b16 %v1180, %v1166
  %v1839 = vpack.c.b16 %v1181, %v1167
  %v1840 = vpack.c.b16 %v1182, %v1168
  %v1841 = vpack.c.b16 %v1183, %v1169
  %v1842 = vpack.c.b16 %v1184, %v1170
  %v1843 = vpack.c.b16 %v1185, %v1171
  %v1844 = vpack.c.b16 %v1186, %v1172
  %v1845 = vpack.c.b16 %v1201, %v1187
  %v1846 = vpack.c.b16 %v1202, %v1188
  %v1847 = vpack.c.b16 %v1203, %v1189
  %v1848 = vpack.c.b16 %v1204, %v1190
  %v1849 = vpack.c.b16 %v1205, %v1191
  %v1850 = vpack.c.b16 %v1206, %v1192
  %v1851 = vpack.c.b16 %v1207, %v1193
  %v1852 = vpack.c.b16 %v1208, %v1194
  %v1853 = vpack.c.b16 %v1209, %v1195
  %v1854 = vpack.c.b16 %v1210, %v1196
  %v1855 = vpack.c.b16 %v1211, %v1197
  %v1856 = vpack.c.b16 %v1212, %v1198
  %v1857 = vpack.c.b16 %v1213, %v1199
  %v1858 = vpack.c.b16 %v1214, %v1200
  %v1859 = vpack.c.b16 %v1229, %v1215
  %v1860 = vpack.c.b16 %v1230, %v1216
  %v1861 = vpack.c.b16 %v1231, %v1217
  %v1862 = vpack.c.b16 %v1232, %v1218
  %v1863 = vpack.c.b16 %v1233, %v1219
  %v1864 = vpack.c.b16 %v1234, %v1220
  %v1865 = vpack.c.b16 %v1235, %v1221
  %v1866 = vpack.c.b16 %v1236, %v1222
  %v1867 = vpack.c.b16 %v1237, %v1223
  %v1868 = vpack.c.b16 %v1238, %v1224
  %v1869 = vpack.c.b16 %v1239, %v1225
  %v1870 = vpack.c.b16 %v1240, %v1226
  %v1871 = vpack.c.b16 %v1241, %v1227
  %v1872 = vpack.c.b16 %v1242, %v1228
  %v1873 = vpack.c.b16 %v1257, %v1243
  %v1874 = vpack.c.b16 %v1258, %v1244
  %v1875 = vpack.c.b16 %v1259, %v1245
  %v1876 = vpack.c.b16 %v1260, %v1246
  %v1877 = vpack.c.b16 %v1261, %v1247
  %v1878 = vpack.c.b16 %v1262, %v1248
  %v1879 = vpack.c.b16 %v1263, %v1249
  %v1880 = vpack.c.b16 %v1264, %v1250
  %v1881 = vpack.c.b16 %v1265, %v1251
  %v1882 = vpack.c.b16 %v1266, %v1252
  %v1883 = vpack.c.b16 %v1267, %v1253
  %v1884 = vpack.c.b16 %v1268, %v1254
  %v1885 = vpack.c.b16 %v1269, %v1255
  %v1886 = vpack.c.b16 %v1270, %v1256
  %v1887 = vpack.c.b16 %v1285, %v1271
  %v1888 = vpack.c.b16 %v1286, %v1272
  %v1889 = vpack.c.b16 %v1287, %v1273
  %v1890 = vpack.c.b16 %v1288, %v1274
  %v1891 = vpack.c.b16 %v1289, %v1275
  %v1892 = vpack.c.b16 %v1290, %v1276
  %v1893 = vpack.c.b16 %v1291, %v1277
  %v1894 = vpack.c.b16 %v1292, %v1278
  %v1895 = vpack.c.b16 %v1293, %v1279
  %v1896 = vpack.c.b16 %v1294, %v1280
  %v1897 = vpack.c.b16 %v1295, %v1281
  %v1898 = vpack.c.b16 %v1296, %v1282
  %v1899 = vpack.c.b16 %v1297, %v1283
  %v1900 = vpack.c.b16 %v1298, %v1284
  %v1901 = vpack.c.b16 %v1313, %v1299
  %v1902 = vpack.c.b16 %v1314, %v1300
  %v1903 = vpack.c.b16 %v1315, %v1301
  %v1904 = vpack.c.b16 %v1316, %v1302
  %v1905 = vpack.c.b16 %v1317, %v1303
  %v1906 = vpack.c.b16 %v1318, %v1304
  %v1907 = vpack.c.b16 %v1319, %v1305
  %v1908 = vpack.c.b16 %v1320, %v1306
  %v1909 = vpack.c.b16 %v1321, %v1307
  %v1910 = vpack.c.b16 %v1322, %v1308
  %v1911 = vpack.c.b16 %v1323, %v1309
  %v1912 = vpack.c.b16 %v1324, %v1310
  %v1913 = vpack.c.b16 %v1325, %v1311
  %v1914 = vpack.c.b16 %v1326, %v1312
  %v1915 = vpack.c.b16 %v1341, %v1327
  %v1916 = vpack.c.b16 %v1342, %v1328
  %v1917 = vpack.c.b16 %v1343, %v1329
  %v1918 = vpack.c.b16 %v1344, %v1330
  %v1919 = vpack.c.b16 %v1345, %v1331
  %v1920 = vpack.c.b16 %v1346, %v1332
  %v1921 = vpack.c.b16 %v1347, %v1333
  %v1922 = vpack.c.b16 %v1348, %v1334
  %v1923 = vpack.c.b16 %v1349, %v1335
  %v1924 = vpack.c.b16 %v1350, %v1336
  %v1925 = vpack.c.b16 %v1351, %v1337
  %v1926 = vpack.c.b16 %v1352, %v1338
  %v1927 = vpack.c.b16 %v1353, %v1339
  %v1928 = vpack.c.b16 %v1354, %v1340
  %v1929 = vpack.c.b16 %v1369, %v1355
  %v1930 = vpack.c.b16 %v1370, %v1356
  %v1931 = vpack.c.b16 %v1371, %v1357
  %v1932 = vpack.c.b16 %v1372, %v1358
  %v1933 = vpack.c.b16 %v1373, %v1359
  %v1934 = vpack.c.b16 %v1374, %v1360
  %v1935 = vpack.c.b16 %v1375, %v1361
  %v1936 = vpack.c.b16 %v1376, %v1362
  %v1937 = vpack.c.b16 %v1377, %v1363
  %v1938 = vpack.c.b16 %v1378, %v1364
  %v1939 = vpack.c.b16 %v1379, %v1365
  %v1940 = vpack.c.b16 %v1380, %v1366
  %v1941 = vpack.c.b16 %v1381, %v1367
  %v1942 = vpack.c.b16 %v1382, %v1368
  %v1943 = vpack.c.b16 %v1397, %v1383
  %v1944 = vpack.c.b16 %v1398, %v1384
  %v1945 = vpack.c.b16 %v1399, %v1385
  %v1946 = vpack.c.b16 %v1400, %v1386
  %v1947 = vpack.c.b16 %v1401, %v1387
  %v1948 = vpack.c.b16 %v1402, %v1388
  %v1949 = vpack.c.b16 %v1403, %v1389
  %v1950 = vpack.c.b16 %v1404, %v1390
  %v1951 = vpack.c.b16 %v1405, %v1391
  %v1952 = vpack.c.b16 %v1406, %v1392
  %v1953 = vpack.c.b16 %v1407, %v1393
  %v1954 = vpack.c.b16 %v1408, %v1394
  %v1955 = vpack.c.b16 %v1409, %v1395
  %v1956 = vpack.c.b16 %v1410, %v1396
  %v1957 = vpack.c.b16 %v1425, %v1411
  %v1958 = vpack.c.b16 %v1426, %v1412
  %v1959 = vpack.c.b16 %v1427, %v1413
  %v1960 = vpack.c.b16 %v1428, %v1414
  %v1961 = vpack.c.b16 %v1429, %v1415
  %v1962 = vpack.c.b16 %v1430, %v1416
  %v1963 = vpack.c.b16 %v1431, %v1417
  %v1964 = vpack.c.b16 %v1432, %v1418
  %v1965 = vpack.c.b16 %v1433, %v1419
  %v1966 = vpack.c.b16 %v1434, %v1420
  %v1967 = vpack.c.b16 %v1435, %v1421
  %v1968 = vpack.c.b16 %v1436, %v1422
  %v1969 = vpack.c.b16 %v1437, %v1423
  %v1970 = vpack.c.b16 %v1438, %v1424
  %v1971 = vpack.c.b16 %v1453, %v1439
  %v1972 = vpack.c.b16 %v1454, %v1440
  %v1973 = vpack.c.b16 %v1455, %v1441
  %v1974 = vpack.c.b16 %v1456, %v1442
  %v1975 = vpack.c.b16 %v1457, %v1443
  %v1976 = vpack.c.b16 %v1458, %v1444
  %v1977 = vpack.c.b16 %v1459, %v1445
  %v1978 = vpack.c.b16 %v1460, %v1446
  %v1979 = vpack.c.b16 %v1461, %v1447
  %v1980 = vpack.c.b16 %v1462, %v1448
  %v1981 = vpack.c.b16 %v1463, %v1449
  %v1982 = vpack.c.b16 %v1464, %v1450
  %v1983 = vpack.c.b16 %v1465, %v1451
  %v1984 = vpack.c.b16 %v1466, %v1452
  %v1985 = vpack.c.b16 %v1481, %v1467
  %v1986 = vpack.c.b16 %v1482, %v1468
  %v1987 = vpack.c.b16 %v1483, %v1469
  %v1988 = vpack.c.b16 %v1484, %v1470
  %v1989 = vpack.c.b16 %v1485, %v1471
  %v1990 = vpack.c.b16 %v1486, %v1472
  %v1991 = vpack.c.b16 %v1487, %v1473
  %v1992 = vpack.c.b16 %v1488, %v1474
  %v1993 = vpack.c.b16 %v1489, %v1475
  %v1994 = vpack.c.b16 %v1490, %v1476
  %v1995 = vpack.c.b16 %v1491, %v1477
  %v1996 = vpack.c.b16 %v1492, %v1478
  %v1997 = vpack.c.b16 %v1493, %v1479
  %v1998 = vpack.c.b16 %v1494, %v1480
  %v1999 = vpack.c.b16 %v1509, %v1495
  %v2000 = vpack.c.b16 %v1510, %v1496
  %v2001 = vpack.c.b16 %v1511, %v1497
  %v2002 = vpack.c.b16 %v1512, %v1498
  %v2003 = vpack.c.b16 %v1513, %v1499
  %v2004 = vpack.c.b16 %v1514, %v1500
  %v2005 = vpack.c.b16 %v1515, %v1501
  %v2006 = vpack.c.b16 %v1516, %v1502
  %v2007 = vpack.c.b16 %v1517, %v1503
  %v2008 = vpack.c.b16 %v1518, %v1504
  %v2009 = vpack.c.b16 %v1519, %v1505
  %v2010 = vpack.c.b16 %v1520, %v1506
  %v2011 = vpack.c.b16 %v1521, %v1507
  %v2012 = vpack.c.b16 %v1522, %v1508
  %v2013 = vpack.c.b16 %v1537, %v1523
  %v2014 = vpack.c.b16 %v1538, %v1524
  %v2015 = vpack.c.b16 %v1539, %v1525
  %v2016 = vpack.c.b16 %v1540, %v1526
  %v2017 = vpack.c.b16 %v1541, %v1527
  %v2018 = vpack.c.b16 %v1542, %v1528
  %v2019 = vpack.c.b16 %v1543, %v1529
  %v2020 = vpack.c.b16 %v1544, %v1530
  %v2021 = vpack.c.b16 %v1545, %v1531
  %v2022 = vpack.c.b16 %v1546, %v1532
  %v2023 = vpack.c.b16 %v1547, %v1533
  %v2024 = vpack.c.b16 %v1548, %v1534
  %v2025 = vpack.c.b16 %v1549, %v1535
  %v2026 = vpack.c.b16 %v1550, %v1536
  %v2027 = vpack.c.b16 %v1565, %v1551
  %v2028 = vpack.c.b16 %v1566, %v1552
  %v2029 = vpack.c.b16 %v1567, %v1553
  %v2030 = vpack.c.b16 %v1568, %v1554
  %v2031 = vpack.c.b16 %v1569, %v1555
  %v2032 = vpack.c.b16 %v1570, %v1556
  %v2033 = vpack.c.b16 %v1571, %v1557
  %v2034 = vpack.c.b16 %v1572, %v1558
  %v2035 = vpack.c.b16 %v1573, %v1559
  %v2036 = vpack.c.b16 %v1574, %v1560
  %v2037 = vpack.c.b16 %v1575, %v1561
  %v2038 = vpack.c.b16 %v1576, %v1562
  %v2039 = vpack.c.b16 %v1577, %v1563
  %v2040 = vpack.c.b16 %v1578, %v1564
  %v2041 = vpack.c.b16 %v1593, %v1579
  %v2042 = vpack.c.b16 %v1594, %v1580
  %v2043 = vpack.c.b16 %v1595, %v1581
  %v2044 = vpack.c.b16 %v1596, %v1582
  %v2045 = vpack.c.b16 %v1597, %v1583
  %v2046 = vpack.c.b16 %v1598, %v1584
  %v2047 = vpack.c.b16 %v1599, %v1585
  %v2048 = vpack.c.b16 %v1600, %v1586
  %v2049 = vpack.c.b16 %v1601, %v1587
  %v2050 = vpack.c.b16 %v1602, %v1588
  %v2051 = vpack.c.b16 %v1603, %v1589
  %v2052 = vpack.c.b16 %v1604, %v1590
  %v2053 = vpack.c.b16 %v1605, %v1591
  %v2054 = vpack.c.b16 %v1606, %v1592
  %v2055 = vpack.c.b16 %v1621, %v1607
  %v2056 = vpack.c.b16 %v1622, %v1608
  %v2057 = vpack.c.b16 %v1623, %v1609
  %v2058 = vpack.c.b16 %v1624, %v1610
  %v2059 = vpack.c.b16 %v1625, %v1611
  %v2060 = vpack.c.b16 %v1626, %v1612
  %v2061 = vpack.c.b16 %v1627, %v1613
  %v2062 = vpack.c.b16 %v1628, %v1614
  %v2063 = vpack.c.b16 %v1629, %v1615
  %v2064 = vpack.c.b16 %v1630, %v1616
  %v2065 = vpack.c.b16 %v1631, %v1617
  %v2066 = vpack.c.b16 %v1632, %v1618
  %v2067 = vpack.c.b16 %v1633, %v1619
  %v2068 = vpack.c.b16 %v1634, %v1620
  %v2069 = vpack.c.b16 %v1649, %v1635
  %v2070 = vpack.c.b16 %v1650, %v1636
  %v2071 = vpack.c.b16 %v1651, %v1637
  %v2072 = vpack.c.b16 %v1652, %v1638
  %v2073 = vpack.c.b16 %v1653, %v1639
  %v2074 = vpack.c.b16 %v1654, %v1640
  %v2075 = vpack.c.b16 %v1655, %v1641
  %v2076 = vpack.c.b16 %v1656, %v1642
  %v2077 = vpack.c.b16 %v1657, %v1643
  %v2078 = vpack.c.b16 %v1658, %v1644
  %v2079 = vpack.c.b16 %v1659, %v1645
  %v2080 = vpack.c.b16 %v1660, %v1646
  %v2081 = vpack.c.b16 %v1661, %v1647
  %v2082 = vpack.c.b16 %v1662, %v1648
  %v2083 = vpack.c.b16 %v1677, %v1663
  %v2084 = vpack.c.b16 %v1678, %v1664
  %v2085 = vpack.c.b16 %v1679, %v1665
  %v2086 = vpack.c.b16 %v1680, %v1666
  %v2087 = vpack.c.b16 %v1681, %v1667
  %v2088 = vpack.c.b16 %v1682, %v1668
  %v2089 = vpack.c.b16 %v1683, %v1669
  %v2090 = vpack.c.b16 %v1684, %v1670
  %v2091 = vpack.c.b16 %v1685, %v1671
  %v2092 = vpack.c.b16 %v1686, %v1672
  %v2093 = vpack.c.b16 %v1687, %v1673
  %v2094 = vpack.c.b16 %v1688, %v1674
  %v2095 = vpack.c.b16 %v1689, %v1675
  %v2096 = vpack.c.b16 %v1690, %v1676
  %v2097 = vpack.c.b16 %v1705, %v1691
  %v2098 = vpack.c.b16 %v1706, %v1692
  %v2099 = vpack.c.b16 %v1707, %v1693
  %v2100 = vpack.c.b16 %v1708, %v1694
  %v2101 = vpack.c.b16 %v1709, %v1695
  %v2102 = vpack.c.b16 %v1710, %v1696
  %v2103 = vpack.c.b16 %v1711, %v1697
  %v2104 = vpack.c.b16 %v1712, %v1698
  %v2105 = vpack.c.b16 %v1713, %v1699
  %v2106 = vpack.c.b16 %v1714, %v1700
  %v2107 = vpack.c.b16 %v1715, %v1701
  %v2108 = vpack.c.b16 %v1716, %v1702
  %v2109 = vpack.c.b16 %v1717, %v1703
  %v2110 = vpack.c.b16 %v1718, %v1704
  %v2111 = vpack.c.b16 %v1733, %v1719
  %v2112 = vpack.c.b16 %v1734, %v1720
  %v2113 = vpack.c.b16 %v1735, %v1721
  %v2114 = vpack.c.b16 %v1736, %v1722
  %v2115 = vpack.c.b16 %v1737, %v1723
  %v2116 = vpack.c.b16 %v1738, %v1724
  %v2117 = vpack.c.b16 %v1739, %v1725
  %v2118 = vpack.c.b16 %v1740, %v1726
  %v2119 = vpack.c.b16 %v1741, %v1727
  %v2120 = vpack.c.b16 %v1742, %v1728
  %v2121 = vpack.c.b16 %v1743, %v1729
  %v2122 = vpack.c.b16 %v1744, %v1730
  %v2123 = vpack.c.b16 %v1745, %v1731
  %v2124 = vpack.c.b16 %v1746, %v1732
  %v2692 = vunpack.c.l.b16 %v393
  %v2693 = vunpack.c.l.b16 %v394
  %v2694 = vunpack.c.l.b16 %v395
  %v2695 = vunpack.c.l.b16 %v396
  %v2696 = vunpack.c.l.b16 %v397
  %v2697 = vunpack.c.l.b16 %v398
  %v2698 = vunpack.c.l.b16 %v399
  %v2699 = vunpack.c.l.b16 %v400
  %v2700 = vunpack.c.l.b16 %v401
  %v2701 = vunpack.c.l.b16 %v402
  %v2702 = vunpack.c.l.b16 %v403
  %v2703 = vunpack.c.l.b16 %v404
  %v2704 = vunpack.c.l.b16 %v405
  %v2705 = vunpack.c.l.b16 %v406
  %v2706 = vunpack.c.l.b16 %v407
  %v2707 = vunpack.c.l.b16 %v408
  %v2708 = vunpack.c.l.b16 %v409
  %v2709 = vunpack.c.l.b16 %v410
  %v2710 = vunpack.c.l.b16 %v411
  %v2711 = vunpack.c.l.b16 %v412
  %v2712 = vunpack.c.l.b16 %v413
  %v2713 = vunpack.c.l.b16 %v414
  %v2714 = vunpack.c.l.b16 %v415
  %v2715 = vunpack.c.l.b16 %v416
  %v2716 = vunpack.c.l.b16 %v417
  %v2717 = vunpack.c.l.b16 %v418
  %v2718 = vunpack.c.l.b16 %v419
  %v2719 = vunpack.c.l.b16 %v420
  %v2720 = vunpack.c.l.b16 %v421
  %v2721 = vunpack.c.l.b16 %v422
  %v2722 = vunpack.c.l.b16 %v423
  %v2723 = vunpack.c.l.b16 %v424
  %v2724 = vunpack.c.l.b16 %v425
  %v2725 = vunpack.c.l.b16 %v426
  %v2726 = vunpack.c.l.b16 %v427
  %v2727 = vunpack.c.l.b16 %v428
  %v2728 = vunpack.c.l.b16 %v429
  %v2729 = vunpack.c.l.b16 %v430
  %v2730 = vunpack.c.l.b16 %v431
  %v2731 = vunpack.c.l.b16 %v432
  %v2732 = vunpack.c.l.b16 %v433
  %v2733 = vunpack.c.l.b16 %v434
  %v2734 = vunpack.c.l.b16 %v435
  %v2735 = vunpack.c.l.b16 %v436
  %v2736 = vunpack.c.l.b16 %v437
  %v2737 = vunpack.c.l.b16 %v438
  %v2738 = vunpack.c.l.b16 %v439
  %v2739 = vunpack.c.l.b16 %v440
  %v2740 = vunpack.c.l.b16 %v441
  %v2741 = vunpack.c.l.b16 %v442
  %v2742 = vunpack.c.l.b16 %v443
  %v2743 = vunpack.c.l.b16 %v444
  %v2744 = vunpack.c.l.b16 %v445
  %v2745 = vunpack.c.l.b16 %v446
  %v2746 = vunpack.c.l.b16 %v447
  %v2747 = vunpack.c.l.b16 %v448
  %v2748 = vunpack.c.l.b16 %v449
  %v2749 = vunpack.c.l.b16 %v450
  %v2750 = vunpack.c.l.b16 %v451
  %v2751 = vunpack.c.l.b16 %v452
  %v2752 = vunpack.c.l.b16 %v453
  %v2753 = vunpack.c.l.b16 %v454
  %v2754 = vunpack.c.l.b16 %v455
  %v2755 = vunpack.c.l.b16 %v456
  %v2756 = vunpack.c.l.b16 %v457
  %v2757 = vunpack.c.l.b16 %v458
  %v2758 = vunpack.c.l.b16 %v459
  %v2759 = vunpack.c.l.b16 %v460
  %v2760 = vunpack.c.l.b16 %v461
  %v2761 = vunpack.c.l.b16 %v462
  %v2762 = vunpack.c.l.b16 %v463
  %v2763 = vunpack.c.l.b16 %v464
  %v2764 = vunpack.c.l.b16 %v465
  %v2765 = vunpack.c.l.b16 %v466
  %v2766 = vunpack.c.l.b16 %v467
  %v2767 = vunpack.c.l.b16 %v468
  %v2768 = vunpack.c.l.b16 %v469
  %v2769 = vunpack.c.l.b16 %v470
  %v2770 = vunpack.c.l.b16 %v471
  %v2771 = vunpack.c.l.b16 %v472
  %v2772 = vunpack.c.l.b16 %v473
  %v2773 = vunpack.c.l.b16 %v474
  %v2774 = vunpack.c.l.b16 %v475
  %v2775 = vunpack.c.l.b16 %v476
  %v2776 = vunpack.c.l.b16 %v477
  %v2777 = vunpack.c.l.b16 %v478
  %v2778 = vunpack.c.l.b16 %v479
  %v2779 = vunpack.c.l.b16 %v480
  %v2780 = vunpack.c.l.b16 %v481
  %v2781 = vunpack.c.l.b16 %v482
  %v2782 = vunpack.c.l.b16 %v483
  %v2783 = vunpack.c.l.b16 %v484
  %v2784 = vunpack.c.l.b16 %v485
  %v2785 = vunpack.c.l.b16 %v486
  %v2786 = vunpack.c.l.b16 %v487
  %v2787 = vunpack.c.l.b16 %v488
  %v2788 = vunpack.c.l.b16 %v489
  %v2789 = vunpack.c.l.b16 %v490
  %v2790 = vunpack.c.l.b16 %v491
  %v2791 = vunpack.c.l.b16 %v492
  %v2792 = vunpack.c.l.b16 %v493
  %v2793 = vunpack.c.l.b16 %v494
  %v2794 = vunpack.c.l.b16 %v495
  %v2795 = vunpack.c.l.b16 %v496
  %v2796 = vunpack.c.l.b16 %v497
  %v2797 = vunpack.c.l.b16 %v498
  %v2798 = vunpack.c.l.b16 %v499
  %v2799 = vunpack.c.l.b16 %v500
  %v2800 = vunpack.c.l.b16 %v501
  %v2801 = vunpack.c.l.b16 %v502
  %v2802 = vunpack.c.l.b16 %v503
  %v2803 = vunpack.c.l.b16 %v504
  %v2804 = vunpack.c.l.b16 %v505
  %v2805 = vunpack.c.l.b16 %v506
  %v2806 = vunpack.c.l.b16 %v507
  %v2807 = vunpack.c.l.b16 %v508
  %v2808 = vunpack.c.l.b16 %v509
  %v2809 = vunpack.c.l.b16 %v510
  %v2810 = vunpack.c.l.b16 %v511
  %v2811 = vunpack.c.l.b16 %v512
  %v2812 = vunpack.c.l.b16 %v513
  %v2813 = vunpack.c.l.b16 %v514
  %v2814 = vunpack.c.l.b16 %v515
  %v2815 = vunpack.c.l.b16 %v516
  %v2816 = vunpack.c.l.b16 %v517
  %v2817 = vunpack.c.l.b16 %v518
  %v2818 = vunpack.c.l.b16 %v519
  %v2819 = vunpack.c.l.b16 %v520
  %v2820 = vunpack.c.l.b16 %v521
  %v2821 = vunpack.c.l.b16 %v522
  %v2822 = vunpack.c.l.b16 %v523
  %v2823 = vunpack.c.l.b16 %v524
  %v2824 = vunpack.c.l.b16 %v525
  %v2825 = vunpack.c.l.b16 %v526
  %v2826 = vunpack.c.l.b16 %v527
  %v2827 = vunpack.c.l.b16 %v528
  %v2828 = vunpack.c.l.b16 %v529
  %v2829 = vunpack.c.l.b16 %v530
  %v2830 = vunpack.c.l.b16 %v531
  %v2831 = vunpack.c.l.b16 %v532
  %v2832 = vunpack.c.l.b16 %v533
  %v2833 = vunpack.c.l.b16 %v534
  %v2834 = vunpack.c.l.b16 %v535
  %v2835 = vunpack.c.l.b16 %v536
  %v2836 = vunpack.c.l.b16 %v537
  %v2837 = vunpack.c.l.b16 %v538
  %v2838 = vunpack.c.l.b16 %v539
  %v2839 = vunpack.c.l.b16 %v540
  %v2840 = vunpack.c.l.b16 %v541
  %v2841 = vunpack.c.l.b16 %v542
  %v2842 = vunpack.c.l.b16 %v543
  %v2843 = vunpack.c.l.b16 %v544
  %v2844 = vunpack.c.l.b16 %v545
  %v2845 = vunpack.c.l.b16 %v546
  %v2846 = vunpack.c.l.b16 %v547
  %v2847 = vunpack.c.l.b16 %v548
  %v2848 = vunpack.c.l.b16 %v549
  %v2849 = vunpack.c.l.b16 %v550
  %v2850 = vunpack.c.l.b16 %v551
  %v2851 = vunpack.c.l.b16 %v552
  %v2852 = vunpack.c.l.b16 %v553
  %v2853 = vunpack.c.l.b16 %v554
  %v2854 = vunpack.c.l.b16 %v555
  %v2855 = vunpack.c.l.b16 %v556
  %v2856 = vunpack.c.l.b16 %v557
  %v2857 = vunpack.c.l.b16 %v558
  %v2858 = vunpack.c.l.b16 %v559
  %v2859 = vunpack.c.l.b16 %v560
  %v2860 = vunpack.c.l.b16 %v561
  %v2861 = vunpack.c.l.b16 %v562
  %v2862 = vunpack.c.l.b16 %v563
  %v2863 = vunpack.c.l.b16 %v564
  %v2864 = vunpack.c.l.b16 %v565
  %v2865 = vunpack.c.l.b16 %v566
  %v2866 = vunpack.c.l.b16 %v567
  %v2867 = vunpack.c.l.b16 %v568
  %v2868 = vunpack.c.l.b16 %v569
  %v2869 = vunpack.c.l.b16 %v570
  %v2870 = vunpack.c.l.b16 %v571
  %v2871 = vunpack.c.l.b16 %v572
  %v2872 = vunpack.c.l.b16 %v573
  %v2873 = vunpack.c.l.b16 %v574
  %v2874 = vunpack.c.l.b16 %v575
  %v2875 = vunpack.c.l.b16 %v576
  %v2876 = vunpack.c.l.b16 %v577
  %v2877 = vunpack.c.l.b16 %v578
  %v2878 = vunpack.c.l.b16 %v579
  %v2879 = vunpack.c.l.b16 %v580
  %v2880 = vunpack.c.l.b16 %v581
  %v2881 = vunpack.c.l.b16 %v582
  %v2882 = vunpack.c.l.b16 %v583
  %v2883 = vunpack.c.l.b16 %v584
  %v2884 = vunpack.c.l.b16 %v585
  %v2885 = vunpack.c.l.b16 %v586
  %v2886 = vunpack.c.l.b16 %v587
  %v2887 = vunpack.c.l.b16 %v588
  %v2888 = vunpack.c.l.b16 %v589
  %v2889 = vunpack.c.l.b16 %v590
  %v2890 = vunpack.c.l.b16 %v591
  %v2891 = vunpack.c.l.b16 %v592
  %v2892 = vunpack.c.l.b16 %v593
  %v2893 = vunpack.c.l.b16 %v594
  %v2894 = vunpack.c.l.b16 %v595
  %v2895 = vunpack.c.l.b16 %v596
  %v2896 = vunpack.c.l.b16 %v597
  %v2897 = vunpack.c.l.b16 %v598
  %v2898 = vunpack.c.l.b16 %v599
  %v2899 = vunpack.c.l.b16 %v600
  %v2900 = vunpack.c.l.b16 %v601
  %v2901 = vunpack.c.l.b16 %v602
  %v2902 = vunpack.c.l.b16 %v603
  %v2903 = vunpack.c.l.b16 %v604
  %v2904 = vunpack.c.l.b16 %v605
  %v2905 = vunpack.c.l.b16 %v606
  %v2906 = vunpack.c.l.b16 %v607
  %v2907 = vunpack.c.l.b16 %v608
  %v2908 = vpack.c.b16 %v2693, %v2692
  %v2909 = vpack.c.b16 %v2695, %v2694
  %v2910 = vpack.c.b16 %v2697, %v2696
  %v2911 = vpack.c.b16 %v2699, %v2698
  %v2912 = vpack.c.b16 %v2701, %v2700
  %v2913 = vpack.c.b16 %v2703, %v2702
  %v2914 = vpack.c.b16 %v2705, %v2704
  %v2915 = vpack.c.b16 %v2707, %v2706
  %v2916 = vpack.c.b16 %v2709, %v2708
  %v2917 = vpack.c.b16 %v2711, %v2710
  %v2918 = vpack.c.b16 %v2713, %v2712
  %v2919 = vpack.c.b16 %v2715, %v2714
  %v2920 = vpack.c.b16 %v2717, %v2716
  %v2921 = vpack.c.b16 %v2719, %v2718
  %v2922 = vpack.c.b16 %v2721, %v2720
  %v2923 = vpack.c.b16 %v2723, %v2722
  %v2924 = vpack.c.b16 %v2725, %v2724
  %v2925 = vpack.c.b16 %v2727, %v2726
  %v2926 = vpack.c.b16 %v2729, %v2728
  %v2927 = vpack.c.b16 %v2731, %v2730
  %v2928 = vpack.c.b16 %v2733, %v2732
  %v2929 = vpack.c.b16 %v2735, %v2734
  %v2930 = vpack.c.b16 %v2737, %v2736
  %v2931 = vpack.c.b16 %v2739, %v2738
  %v2932 = vpack.c.b16 %v2741, %v2740
  %v2933 = vpack.c.b16 %v2743, %v2742
  %v2934 = vpack.c.b16 %v2745, %v2744
  %v2935 = vpack.c.b16 %v2747, %v2746
  %v2936 = vpack.c.b16 %v2749, %v2748
  %v2937 = vpack.c.b16 %v2751, %v2750
  %v2938 = vpack.c.b16 %v2753, %v2752
  %v2939 = vpack.c.b16 %v2755, %v2754
  %v2940 = vpack.c.b16 %v2757, %v2756
  %v2941 = vpack.c.b16 %v2759, %v2758
  %v2942 = vpack.c.b16 %v2761, %v2760
  %v2943 = vpack.c.b16 %v2763, %v2762
  %v2944 = vpack.c.b16 %v2765, %v2764
  %v2945 = vpack.c.b16 %v2767, %v2766
  %v2946 = vpack.c.b16 %v2769, %v2768
  %v2947 = vpack.c.b16 %v2771, %v2770
  %v2948 = vpack.c.b16 %v2773, %v2772
  %v2949 = vpack.c.b16 %v2775, %v2774
  %v2950 = vpack.c.b16 %v2777, %v2776
  %v2951 = vpack.c.b16 %v2779, %v2778
  %v2952 = vpack.c.b16 %v2781, %v2780
  %v2953 = vpack.c.b16 %v2783, %v2782
  %v2954 = vpack.c.b16 %v2785, %v2784
  %v2955 = vpack.c.b16 %v2787, %v2786
  %v2956 = vpack.c.b16 %v2789, %v2788
  %v2957 = vpack.c.b16 %v2791, %v2790
  %v2958 = vpack.c.b16 %v2793, %v2792
  %v2959 = vpack.c.b16 %v2795, %v2794
  %v2960 = vpack.c.b16 %v2797, %v2796
  %v2961 = vpack.c.b16 %v2799, %v2798
  %v2962 = vpack.c.b16 %v2801, %v2800
  %v2963 = vpack.c.b16 %v2803, %v2802
  %v2964 = vpack.c.b16 %v2805, %v2804
  %v2965 = vpack.c.b16 %v2807, %v2806
  %v2966 = vpack.c.b16 %v2809, %v2808
  %v2967 = vpack.c.b16 %v2811, %v2810
  %v2968 = vpack.c.b16 %v2813, %v2812
  %v2969 = vpack.c.b16 %v2815, %v2814
  %v2970 = vpack.c.b16 %v2817, %v2816
  %v2971 = vpack.c.b16 %v2819, %v2818
  %v2972 = vpack.c.b16 %v2821, %v2820
  %v2973 = vpack.c.b16 %v2823, %v2822
  %v2974 = vpack.c.b16 %v2825, %v2824
  %v2975 = vpack.c.b16 %v2827, %v2826
  %v2976 = vpack.c.b16 %v2829, %v2828
  %v2977 = vpack.c.b16 %v2831, %v2830
  %v2978 = vpack.c.b16 %v2833, %v2832
  %v2979 = vpack.c.b16 %v2835, %v2834
  %v2980 = vpack.c.b16 %v2837, %v2836
  %v2981 = vpack.c.b16 %v2839, %v2838
  %v2982 = vpack.c.b16 %v2841, %v2840
  %v2983 = vpack.c.b16 %v2843, %v2842
  %v2984 = vpack.c.b16 %v2845, %v2844
  %v2985 = vpack.c.b16 %v2847, %v2846
  %v2986 = vpack.c.b16 %v2849, %v2848
  %v2987 = vpack.c.b16 %v2851, %v2850
  %v2988 = vpack.c.b16 %v2853, %v2852
  %v2989 = vpack.c.b16 %v2855, %v2854
  %v2990 = vpack.c.b16 %v2857, %v2856
  %v2991 = vpack.c.b16 %v2859, %v2858
  %v2992 = vpack.c.b16 %v2861, %v2860
  %v2993 = vpack.c.b16 %v2863, %v2862
  %v2994 = vpack.c.b16 %v2865, %v2864
  %v2995 = vpack.c.b16 %v2867, %v2866
  %v2996 = vpack.c.b16 %v2869, %v2868
  %v2997 = vpack.c.b16 %v2871, %v2870
  %v2998 = vpack.c.b16 %v2873, %v2872
  %v2999 = vpack.c.b16 %v2875, %v2874
  %v3000 = vpack.c.b16 %v2877, %v2876
  %v3001 = vpack.c.b16 %v2879, %v2878
  %v3002 = vpack.c.b16 %v2881, %v2880
  %v3003 = vpack.c.b16 %v2883, %v2882
  %v3004 = vpack.c.b16 %v2885, %v2884
  %v3005 = vpack.c.b16 %v2887, %v2886
  %v3006 = vpack.c.b16 %v2889, %v2888
  %v3007 = vpack.c.b16 %v2891, %v2890
  %v3008 = vpack.c.b16 %v2893, %v2892
  %v3009 = vpack.c.b16 %v2895, %v2894
  %v3010 = vpack.c.b16 %v2897, %v2896
  %v3011 = vpack.c.b16 %v2899, %v2898
  %v3012 = vpack.c.b16 %v2901, %v2900
  %v3013 = vpack.c.b16 %v2903, %v2902
  %v3014 = vpack.c.b16 %v2905, %v2904
  %v3015 = vpack.c.b16 %v2907, %v2906
  %vm3124 = vcmask 523264
  %v3126 = vsel %vm3124, %v1760, 0
  %v3129 = vsel %vm3124, %v1774, 0
  %v3132 = vsel %vm3124, %v1788, 0
  %v3135 = vsel %vm3124, %v1802, 0
  %v3138 = vsel %vm3124, %v1816, 0
  %v3141 = vsel %vm3124, %v1830, 0
  %v3144 = vsel %vm3124, %v1844, 0
  %v3147 = vsel %vm3124, %v1858, 0
  %v3150 = vsel %vm3124, %v1872, 0
  %v3153 = vsel %vm3124, %v1886, 0
  %v3156 = vsel %vm3124, %v1900, 0
  %v3159 = vsel %vm3124, %v1914, 0
  %v3162 = vsel %vm3124, %v1928, 0
  %v3165 = vsel %vm3124, %v1942, 0
  %v3168 = vsel %vm3124, %v1956, 0
  %v3171 = vsel %vm3124, %v1970, 0
  %v3174 = vsel %vm3124, %v1984, 0
  %v3177 = vsel %vm3124, %v1998, 0
  %v3180 = vsel %vm3124, %v2012, 0
  %v3183 = vsel %vm3124, %v2026, 0
  %v3186 = vsel %vm3124, %v2040, 0
  %v3189 = vsel %vm3124, %v2054, 0
  %v3192 = vsel %vm3124, %v2068, 0
  %v3195 = vsel %vm3124, %v2082, 0
  %v3198 = vsel %vm3124, %v2096, 0
  %v3201 = vsel %vm3124, %v2110, 0
  %v3204 = vsel %vm3124, %v2124, 0
  %3206 = vmatpush.bf16.msra.mxu0 %v2915
  %3207 = vmatpush.bf16.msra.mxu0 %v2914
  %3208 = vmatpush.bf16.msra.mxu0 %v2913
  %3209 = vmatpush.bf16.msra.mxu0 %v2912
  %3210 = vmatpush.bf16.msra.mxu0 %v2911
  %3211 = vmatpush.bf16.msra.mxu0 %v2910
  %3212 = vmatpush.bf16.msra.mxu0 %v2909
  %3213 = vmatpush.bf16.msra.mxu0 %v2908
  %3214 = vmatmul.bf16.gmra.mxu0 %v1747
  %v3215 = vpop.f32.mrf.mxu0
  %v3216 = vadd.f32 %v611, %v3215
  %v3217 = vpop.f32.mrf.mxu0
  %v3218 = vadd.f32 %v611, %v3217
  %3219 = vmatmul.bf16.gmra.mxu0 %v1761
  %v3220 = vpop.f32.mrf.mxu0
  %v3221 = vadd.f32 %v611, %v3220
  %v3222 = vpop.f32.mrf.mxu0
  %v3223 = vadd.f32 %v611, %v3222
  %3224 = vmatmul.bf16.gmra.mxu0 %v1775
  %v3225 = vpop.f32.mrf.mxu0
  %v3226 = vadd.f32 %v611, %v3225
  %v3227 = vpop.f32.mrf.mxu0
  %v3228 = vadd.f32 %v611, %v3227
  %3229 = vmatmul.bf16.gmra.mxu0 %v1789
  %v3230 = vpop.f32.mrf.mxu0
  %v3231 = vadd.f32 %v611, %v3230
  %v3232 = vpop.f32.mrf.mxu0
  %v3233 = vadd.f32 %v611, %v3232
  %3234 = vmatmul.bf16.gmra.mxu0 %v1803
  %v3235 = vpop.f32.mrf.mxu0
  %v3236 = vadd.f32 %v611, %v3235
  %v3237 = vpop.f32.mrf.mxu0
  %v3238 = vadd.f32 %v611, %v3237
  %3239 = vmatmul.bf16.gmra.mxu0 %v1817
  %v3240 = vpop.f32.mrf.mxu0
  %v3241 = vadd.f32 %v611, %v3240
  %v3242 = vpop.f32.mrf.mxu0
  %v3243 = vadd.f32 %v611, %v3242
  %3244 = vmatmul.bf16.gmra.mxu0 %v1831
  %v3245 = vpop.f32.mrf.mxu0
  %v3246 = vadd.f32 %v611, %v3245
  %v3247 = vpop.f32.mrf.mxu0
  %v3248 = vadd.f32 %v611, %v3247
  %3249 = vmatmul.bf16.gmra.mxu0 %v1845
  %v3250 = vpop.f32.mrf.mxu0
  %v3251 = vadd.f32 %v611, %v3250
  %v3252 = vpop.f32.mrf.mxu0
  %v3253 = vadd.f32 %v611, %v3252
  %3254 = vmatmul.bf16.gmra.mxu0 %v1859
  %v3255 = vpop.f32.mrf.mxu0
  %v3256 = vadd.f32 %v611, %v3255
  %v3257 = vpop.f32.mrf.mxu0
  %v3258 = vadd.f32 %v611, %v3257
  %3259 = vmatmul.bf16.gmra.mxu0 %v1873
  %v3260 = vpop.f32.mrf.mxu0
  %v3261 = vadd.f32 %v611, %v3260
  %v3262 = vpop.f32.mrf.mxu0
  %v3263 = vadd.f32 %v611, %v3262
  %3264 = vmatmul.bf16.gmra.mxu0 %v1887
  %v3265 = vpop.f32.mrf.mxu0
  %v3266 = vadd.f32 %v611, %v3265
  %v3267 = vpop.f32.mrf.mxu0
  %v3268 = vadd.f32 %v611, %v3267
  %3269 = vmatmul.bf16.gmra.mxu0 %v1901
  %v3270 = vpop.f32.mrf.mxu0
  %v3271 = vadd.f32 %v611, %v3270
  %v3272 = vpop.f32.mrf.mxu0
  %v3273 = vadd.f32 %v611, %v3272
  %3274 = vmatmul.bf16.gmra.mxu0 %v1915
  %v3275 = vpop.f32.mrf.mxu0
  %v3276 = vadd.f32 %v611, %v3275
  %v3277 = vpop.f32.mrf.mxu0
  %v3278 = vadd.f32 %v611, %v3277
  %3279 = vmatmul.bf16.gmra.mxu0 %v1929
  %v3280 = vpop.f32.mrf.mxu0
  %v3281 = vadd.f32 %v611, %v3280
  %v3282 = vpop.f32.mrf.mxu0
  %v3283 = vadd.f32 %v611, %v3282
  %3284 = vmatmul.bf16.gmra.mxu0 %v1943
  %v3285 = vpop.f32.mrf.mxu0
  %v3286 = vadd.f32 %v611, %v3285
  %v3287 = vpop.f32.mrf.mxu0
  %v3288 = vadd.f32 %v611, %v3287
  %3289 = vmatmul.bf16.gmra.mxu0 %v1957
  %v3290 = vpop.f32.mrf.mxu0
  %v3291 = vadd.f32 %v611, %v3290
  %v3292 = vpop.f32.mrf.mxu0
  %v3293 = vadd.f32 %v611, %v3292
  %3294 = vmatmul.bf16.gmra.mxu0 %v1971
  %v3295 = vpop.f32.mrf.mxu0
  %v3296 = vadd.f32 %v611, %v3295
  %v3297 = vpop.f32.mrf.mxu0
  %v3298 = vadd.f32 %v611, %v3297
  %3299 = vmatmul.bf16.gmra.mxu0 %v1985
  %v3300 = vpop.f32.mrf.mxu0
  %v3301 = vadd.f32 %v611, %v3300
  %v3302 = vpop.f32.mrf.mxu0
  %v3303 = vadd.f32 %v611, %v3302
  %3304 = vmatmul.bf16.gmra.mxu0 %v1999
  %v3305 = vpop.f32.mrf.mxu0
  %v3306 = vadd.f32 %v611, %v3305
  %v3307 = vpop.f32.mrf.mxu0
  %v3308 = vadd.f32 %v611, %v3307
  %3309 = vmatmul.bf16.gmra.mxu0 %v2013
  %v3310 = vpop.f32.mrf.mxu0
  %v3311 = vadd.f32 %v611, %v3310
  %v3312 = vpop.f32.mrf.mxu0
  %v3313 = vadd.f32 %v611, %v3312
  %3314 = vmatmul.bf16.gmra.mxu0 %v2027
  %v3315 = vpop.f32.mrf.mxu0
  %v3316 = vadd.f32 %v611, %v3315
  %v3317 = vpop.f32.mrf.mxu0
  %v3318 = vadd.f32 %v611, %v3317
  %3319 = vmatmul.bf16.gmra.mxu0 %v2041
  %v3320 = vpop.f32.mrf.mxu0
  %v3321 = vadd.f32 %v611, %v3320
  %v3322 = vpop.f32.mrf.mxu0
  %v3323 = vadd.f32 %v611, %v3322
  %3324 = vmatmul.bf16.gmra.mxu0 %v2055
  %v3325 = vpop.f32.mrf.mxu0
  %v3326 = vadd.f32 %v611, %v3325
  %v3327 = vpop.f32.mrf.mxu0
  %v3328 = vadd.f32 %v611, %v3327
  %3329 = vmatmul.bf16.gmra.mxu0 %v2069
  %v3330 = vpop.f32.mrf.mxu0
  %v3331 = vadd.f32 %v611, %v3330
  %v3332 = vpop.f32.mrf.mxu0
  %v3333 = vadd.f32 %v611, %v3332
  %3334 = vmatmul.bf16.gmra.mxu0 %v2083
  %v3335 = vpop.f32.mrf.mxu0
  %v3336 = vadd.f32 %v611, %v3335
  %v3337 = vpop.f32.mrf.mxu0
  %v3338 = vadd.f32 %v611, %v3337
  %3339 = vmatmul.bf16.gmra.mxu0 %v2097
  %v3340 = vpop.f32.mrf.mxu0
  %v3341 = vadd.f32 %v611, %v3340
  %v3342 = vpop.f32.mrf.mxu0
  %v3343 = vadd.f32 %v611, %v3342
  %3344 = vmatmul.bf16.gmra.mxu0 %v2111
  %v3345 = vpop.f32.mrf.mxu0
  %v3346 = vadd.f32 %v611, %v3345
  %v3347 = vpop.f32.mrf.mxu0
  %v3348 = vadd.f32 %v611, %v3347
  %3349 = vdwg.mxu0
  %3350 = vmatpush.bf16.msra.mxu0 %v2923
  %3351 = vmatpush.bf16.msra.mxu0 %v2922
  %3352 = vmatpush.bf16.msra.mxu0 %v2921
  %3353 = vmatpush.bf16.msra.mxu0 %v2920
  %3354 = vmatpush.bf16.msra.mxu0 %v2919
  %3355 = vmatpush.bf16.msra.mxu0 %v2918
  %3356 = vmatpush.bf16.msra.mxu0 %v2917
  %3357 = vmatpush.bf16.msra.mxu0 %v2916
  %3358 = vmatmul.bf16.gmra.mxu0 %v1748
  %v3359 = vpop.f32.mrf.mxu0
  %v3360 = vadd.f32 %v3216, %v3359
  %v3361 = vpop.f32.mrf.mxu0
  %v3362 = vadd.f32 %v3218, %v3361
  %3363 = vmatmul.bf16.gmra.mxu0 %v1762
  %v3364 = vpop.f32.mrf.mxu0
  %v3365 = vadd.f32 %v3221, %v3364
  %v3366 = vpop.f32.mrf.mxu0
  %v3367 = vadd.f32 %v3223, %v3366
  %3368 = vmatmul.bf16.gmra.mxu0 %v1776
  %v3369 = vpop.f32.mrf.mxu0
  %v3370 = vadd.f32 %v3226, %v3369
  %v3371 = vpop.f32.mrf.mxu0
  %v3372 = vadd.f32 %v3228, %v3371
  %3373 = vmatmul.bf16.gmra.mxu0 %v1790
  %v3374 = vpop.f32.mrf.mxu0
  %v3375 = vadd.f32 %v3231, %v3374
  %v3376 = vpop.f32.mrf.mxu0
  %v3377 = vadd.f32 %v3233, %v3376
  %3378 = vmatmul.bf16.gmra.mxu0 %v1804
  %v3379 = vpop.f32.mrf.mxu0
  %v3380 = vadd.f32 %v3236, %v3379
  %v3381 = vpop.f32.mrf.mxu0
  %v3382 = vadd.f32 %v3238, %v3381
  %3383 = vmatmul.bf16.gmra.mxu0 %v1818
  %v3384 = vpop.f32.mrf.mxu0
  %v3385 = vadd.f32 %v3241, %v3384
  %v3386 = vpop.f32.mrf.mxu0
  %v3387 = vadd.f32 %v3243, %v3386
  %3388 = vmatmul.bf16.gmra.mxu0 %v1832
  %v3389 = vpop.f32.mrf.mxu0
  %v3390 = vadd.f32 %v3246, %v3389
  %v3391 = vpop.f32.mrf.mxu0
  %v3392 = vadd.f32 %v3248, %v3391
  %3393 = vmatmul.bf16.gmra.mxu0 %v1846
  %v3394 = vpop.f32.mrf.mxu0
  %v3395 = vadd.f32 %v3251, %v3394
  %v3396 = vpop.f32.mrf.mxu0
  %v3397 = vadd.f32 %v3253, %v3396
  %3398 = vmatmul.bf16.gmra.mxu0 %v1860
  %v3399 = vpop.f32.mrf.mxu0
  %v3400 = vadd.f32 %v3256, %v3399
  %v3401 = vpop.f32.mrf.mxu0
  %v3402 = vadd.f32 %v3258, %v3401
  %3403 = vmatmul.bf16.gmra.mxu0 %v1874
  %v3404 = vpop.f32.mrf.mxu0
  %v3405 = vadd.f32 %v3261, %v3404
  %v3406 = vpop.f32.mrf.mxu0
  %v3407 = vadd.f32 %v3263, %v3406
  %3408 = vmatmul.bf16.gmra.mxu0 %v1888
  %v3409 = vpop.f32.mrf.mxu0
  %v3410 = vadd.f32 %v3266, %v3409
  %v3411 = vpop.f32.mrf.mxu0
  %v3412 = vadd.f32 %v3268, %v3411
  %3413 = vmatmul.bf16.gmra.mxu0 %v1902
  %v3414 = vpop.f32.mrf.mxu0
  %v3415 = vadd.f32 %v3271, %v3414
  %v3416 = vpop.f32.mrf.mxu0
  %v3417 = vadd.f32 %v3273, %v3416
  %3418 = vmatmul.bf16.gmra.mxu0 %v1916
  %v3419 = vpop.f32.mrf.mxu0
  %v3420 = vadd.f32 %v3276, %v3419
  %v3421 = vpop.f32.mrf.mxu0
  %v3422 = vadd.f32 %v3278, %v3421
  %3423 = vmatmul.bf16.gmra.mxu0 %v1930
  %v3424 = vpop.f32.mrf.mxu0
  %v3425 = vadd.f32 %v3281, %v3424
  %v3426 = vpop.f32.mrf.mxu0
  %v3427 = vadd.f32 %v3283, %v3426
  %3428 = vmatmul.bf16.gmra.mxu0 %v1944
  %v3429 = vpop.f32.mrf.mxu0
  %v3430 = vadd.f32 %v3286, %v3429
  %v3431 = vpop.f32.mrf.mxu0
  %v3432 = vadd.f32 %v3288, %v3431
  %3433 = vmatmul.bf16.gmra.mxu0 %v1958
  %v3434 = vpop.f32.mrf.mxu0
  %v3435 = vadd.f32 %v3291, %v3434
  %v3436 = vpop.f32.mrf.mxu0
  %v3437 = vadd.f32 %v3293, %v3436
  %3438 = vmatmul.bf16.gmra.mxu0 %v1972
  %v3439 = vpop.f32.mrf.mxu0
  %v3440 = vadd.f32 %v3296, %v3439
  %v3441 = vpop.f32.mrf.mxu0
  %v3442 = vadd.f32 %v3298, %v3441
  %3443 = vmatmul.bf16.gmra.mxu0 %v1986
  %v3444 = vpop.f32.mrf.mxu0
  %v3445 = vadd.f32 %v3301, %v3444
  %v3446 = vpop.f32.mrf.mxu0
  %v3447 = vadd.f32 %v3303, %v3446
  %3448 = vmatmul.bf16.gmra.mxu0 %v2000
  %v3449 = vpop.f32.mrf.mxu0
  %v3450 = vadd.f32 %v3306, %v3449
  %v3451 = vpop.f32.mrf.mxu0
  %v3452 = vadd.f32 %v3308, %v3451
  %3453 = vmatmul.bf16.gmra.mxu0 %v2014
  %v3454 = vpop.f32.mrf.mxu0
  %v3455 = vadd.f32 %v3311, %v3454
  %v3456 = vpop.f32.mrf.mxu0
  %v3457 = vadd.f32 %v3313, %v3456
  %3458 = vmatmul.bf16.gmra.mxu0 %v2028
  %v3459 = vpop.f32.mrf.mxu0
  %v3460 = vadd.f32 %v3316, %v3459
  %v3461 = vpop.f32.mrf.mxu0
  %v3462 = vadd.f32 %v3318, %v3461
  %3463 = vmatmul.bf16.gmra.mxu0 %v2042
  %v3464 = vpop.f32.mrf.mxu0
  %v3465 = vadd.f32 %v3321, %v3464
  %v3466 = vpop.f32.mrf.mxu0
  %v3467 = vadd.f32 %v3323, %v3466
  %3468 = vmatmul.bf16.gmra.mxu0 %v2056
  %v3469 = vpop.f32.mrf.mxu0
  %v3470 = vadd.f32 %v3326, %v3469
  %v3471 = vpop.f32.mrf.mxu0
  %v3472 = vadd.f32 %v3328, %v3471
  %3473 = vmatmul.bf16.gmra.mxu0 %v2070
  %v3474 = vpop.f32.mrf.mxu0
  %v3475 = vadd.f32 %v3331, %v3474
  %v3476 = vpop.f32.mrf.mxu0
  %v3477 = vadd.f32 %v3333, %v3476
  %3478 = vmatmul.bf16.gmra.mxu0 %v2084
  %v3479 = vpop.f32.mrf.mxu0
  %v3480 = vadd.f32 %v3336, %v3479
  %v3481 = vpop.f32.mrf.mxu0
  %v3482 = vadd.f32 %v3338, %v3481
  %3483 = vmatmul.bf16.gmra.mxu0 %v2098
  %v3484 = vpop.f32.mrf.mxu0
  %v3485 = vadd.f32 %v3341, %v3484
  %v3486 = vpop.f32.mrf.mxu0
  %v3487 = vadd.f32 %v3343, %v3486
  %3488 = vmatmul.bf16.gmra.mxu0 %v2112
  %v3489 = vpop.f32.mrf.mxu0
  %v3490 = vadd.f32 %v3346, %v3489
  %v3491 = vpop.f32.mrf.mxu0
  %v3492 = vadd.f32 %v3348, %v3491
  %3493 = vdwg.mxu0
  %3494 = vmatpush.bf16.msra.mxu0 %v2931
  %3495 = vmatpush.bf16.msra.mxu0 %v2930
  %3496 = vmatpush.bf16.msra.mxu0 %v2929
  %3497 = vmatpush.bf16.msra.mxu0 %v2928
  %3498 = vmatpush.bf16.msra.mxu0 %v2927
  %3499 = vmatpush.bf16.msra.mxu0 %v2926
  %3500 = vmatpush.bf16.msra.mxu0 %v2925
  %3501 = vmatpush.bf16.msra.mxu0 %v2924
  %3502 = vmatmul.bf16.gmra.mxu0 %v1749
  %v3503 = vpop.f32.mrf.mxu0
  %v3504 = vadd.f32 %v3360, %v3503
  %v3505 = vpop.f32.mrf.mxu0
  %v3506 = vadd.f32 %v3362, %v3505
  %3507 = vmatmul.bf16.gmra.mxu0 %v1763
  %v3508 = vpop.f32.mrf.mxu0
  %v3509 = vadd.f32 %v3365, %v3508
  %v3510 = vpop.f32.mrf.mxu0
  %v3511 = vadd.f32 %v3367, %v3510
  %3512 = vmatmul.bf16.gmra.mxu0 %v1777
  %v3513 = vpop.f32.mrf.mxu0
  %v3514 = vadd.f32 %v3370, %v3513
  %v3515 = vpop.f32.mrf.mxu0
  %v3516 = vadd.f32 %v3372, %v3515
  %3517 = vmatmul.bf16.gmra.mxu0 %v1791
  %v3518 = vpop.f32.mrf.mxu0
  %v3519 = vadd.f32 %v3375, %v3518
  %v3520 = vpop.f32.mrf.mxu0
  %v3521 = vadd.f32 %v3377, %v3520
  %3522 = vmatmul.bf16.gmra.mxu0 %v1805
  %v3523 = vpop.f32.mrf.mxu0
  %v3524 = vadd.f32 %v3380, %v3523
  %v3525 = vpop.f32.mrf.mxu0
  %v3526 = vadd.f32 %v3382, %v3525
  %3527 = vmatmul.bf16.gmra.mxu0 %v1819
  %v3528 = vpop.f32.mrf.mxu0
  %v3529 = vadd.f32 %v3385, %v3528
  %v3530 = vpop.f32.mrf.mxu0
  %v3531 = vadd.f32 %v3387, %v3530
  %3532 = vmatmul.bf16.gmra.mxu0 %v1833
  %v3533 = vpop.f32.mrf.mxu0
  %v3534 = vadd.f32 %v3390, %v3533
  %v3535 = vpop.f32.mrf.mxu0
  %v3536 = vadd.f32 %v3392, %v3535
  %3537 = vmatmul.bf16.gmra.mxu0 %v1847
  %v3538 = vpop.f32.mrf.mxu0
  %v3539 = vadd.f32 %v3395, %v3538
  %v3540 = vpop.f32.mrf.mxu0
  %v3541 = vadd.f32 %v3397, %v3540
  %3542 = vmatmul.bf16.gmra.mxu0 %v1861
  %v3543 = vpop.f32.mrf.mxu0
  %v3544 = vadd.f32 %v3400, %v3543
  %v3545 = vpop.f32.mrf.mxu0
  %v3546 = vadd.f32 %v3402, %v3545
  %3547 = vmatmul.bf16.gmra.mxu0 %v1875
  %v3548 = vpop.f32.mrf.mxu0
  %v3549 = vadd.f32 %v3405, %v3548
  %v3550 = vpop.f32.mrf.mxu0
  %v3551 = vadd.f32 %v3407, %v3550
  %3552 = vmatmul.bf16.gmra.mxu0 %v1889
  %v3553 = vpop.f32.mrf.mxu0
  %v3554 = vadd.f32 %v3410, %v3553
  %v3555 = vpop.f32.mrf.mxu0
  %v3556 = vadd.f32 %v3412, %v3555
  %3557 = vmatmul.bf16.gmra.mxu0 %v1903
  %v3558 = vpop.f32.mrf.mxu0
  %v3559 = vadd.f32 %v3415, %v3558
  %v3560 = vpop.f32.mrf.mxu0
  %v3561 = vadd.f32 %v3417, %v3560
  %3562 = vmatmul.bf16.gmra.mxu0 %v1917
  %v3563 = vpop.f32.mrf.mxu0
  %v3564 = vadd.f32 %v3420, %v3563
  %v3565 = vpop.f32.mrf.mxu0
  %v3566 = vadd.f32 %v3422, %v3565
  %3567 = vmatmul.bf16.gmra.mxu0 %v1931
  %v3568 = vpop.f32.mrf.mxu0
  %v3569 = vadd.f32 %v3425, %v3568
  %v3570 = vpop.f32.mrf.mxu0
  %v3571 = vadd.f32 %v3427, %v3570
  %3572 = vmatmul.bf16.gmra.mxu0 %v1945
  %v3573 = vpop.f32.mrf.mxu0
  %v3574 = vadd.f32 %v3430, %v3573
  %v3575 = vpop.f32.mrf.mxu0
  %v3576 = vadd.f32 %v3432, %v3575
  %3577 = vmatmul.bf16.gmra.mxu0 %v1959
  %v3578 = vpop.f32.mrf.mxu0
  %v3579 = vadd.f32 %v3435, %v3578
  %v3580 = vpop.f32.mrf.mxu0
  %v3581 = vadd.f32 %v3437, %v3580
  %3582 = vmatmul.bf16.gmra.mxu0 %v1973
  %v3583 = vpop.f32.mrf.mxu0
  %v3584 = vadd.f32 %v3440, %v3583
  %v3585 = vpop.f32.mrf.mxu0
  %v3586 = vadd.f32 %v3442, %v3585
  %3587 = vmatmul.bf16.gmra.mxu0 %v1987
  %v3588 = vpop.f32.mrf.mxu0
  %v3589 = vadd.f32 %v3445, %v3588
  %v3590 = vpop.f32.mrf.mxu0
  %v3591 = vadd.f32 %v3447, %v3590
  %3592 = vmatmul.bf16.gmra.mxu0 %v2001
  %v3593 = vpop.f32.mrf.mxu0
  %v3594 = vadd.f32 %v3450, %v3593
  %v3595 = vpop.f32.mrf.mxu0
  %v3596 = vadd.f32 %v3452, %v3595
  %3597 = vmatmul.bf16.gmra.mxu0 %v2015
  %v3598 = vpop.f32.mrf.mxu0
  %v3599 = vadd.f32 %v3455, %v3598
  %v3600 = vpop.f32.mrf.mxu0
  %v3601 = vadd.f32 %v3457, %v3600
  %3602 = vmatmul.bf16.gmra.mxu0 %v2029
  %v3603 = vpop.f32.mrf.mxu0
  %v3604 = vadd.f32 %v3460, %v3603
  %v3605 = vpop.f32.mrf.mxu0
  %v3606 = vadd.f32 %v3462, %v3605
  %3607 = vmatmul.bf16.gmra.mxu0 %v2043
  %v3608 = vpop.f32.mrf.mxu0
  %v3609 = vadd.f32 %v3465, %v3608
  %v3610 = vpop.f32.mrf.mxu0
  %v3611 = vadd.f32 %v3467, %v3610
  %3612 = vmatmul.bf16.gmra.mxu0 %v2057
  %v3613 = vpop.f32.mrf.mxu0
  %v3614 = vadd.f32 %v3470, %v3613
  %v3615 = vpop.f32.mrf.mxu0
  %v3616 = vadd.f32 %v3472, %v3615
  %3617 = vmatmul.bf16.gmra.mxu0 %v2071
  %v3618 = vpop.f32.mrf.mxu0
  %v3619 = vadd.f32 %v3475, %v3618
  %v3620 = vpop.f32.mrf.mxu0
  %v3621 = vadd.f32 %v3477, %v3620
  %3622 = vmatmul.bf16.gmra.mxu0 %v2085
  %v3623 = vpop.f32.mrf.mxu0
  %v3624 = vadd.f32 %v3480, %v3623
  %v3625 = vpop.f32.mrf.mxu0
  %v3626 = vadd.f32 %v3482, %v3625
  %3627 = vmatmul.bf16.gmra.mxu0 %v2099
  %v3628 = vpop.f32.mrf.mxu0
  %v3629 = vadd.f32 %v3485, %v3628
  %v3630 = vpop.f32.mrf.mxu0
  %v3631 = vadd.f32 %v3487, %v3630
  %3632 = vmatmul.bf16.gmra.mxu0 %v2113
  %v3633 = vpop.f32.mrf.mxu0
  %v3634 = vadd.f32 %v3490, %v3633
  %v3635 = vpop.f32.mrf.mxu0
  %v3636 = vadd.f32 %v3492, %v3635
  %3637 = vdwg.mxu0
  %3638 = vmatpush.bf16.msra.mxu0 %v2939
  %3639 = vmatpush.bf16.msra.mxu0 %v2938
  %3640 = vmatpush.bf16.msra.mxu0 %v2937
  %3641 = vmatpush.bf16.msra.mxu0 %v2936
  %3642 = vmatpush.bf16.msra.mxu0 %v2935
  %3643 = vmatpush.bf16.msra.mxu0 %v2934
  %3644 = vmatpush.bf16.msra.mxu0 %v2933
  %3645 = vmatpush.bf16.msra.mxu0 %v2932
  %3646 = vmatmul.bf16.gmra.mxu0 %v1750
  %v3647 = vpop.f32.mrf.mxu0
  %v3648 = vadd.f32 %v3504, %v3647
  %v3649 = vpop.f32.mrf.mxu0
  %v3650 = vadd.f32 %v3506, %v3649
  %3651 = vmatmul.bf16.gmra.mxu0 %v1764
  %v3652 = vpop.f32.mrf.mxu0
  %v3653 = vadd.f32 %v3509, %v3652
  %v3654 = vpop.f32.mrf.mxu0
  %v3655 = vadd.f32 %v3511, %v3654
  %3656 = vmatmul.bf16.gmra.mxu0 %v1778
  %v3657 = vpop.f32.mrf.mxu0
  %v3658 = vadd.f32 %v3514, %v3657
  %v3659 = vpop.f32.mrf.mxu0
  %v3660 = vadd.f32 %v3516, %v3659
  %3661 = vmatmul.bf16.gmra.mxu0 %v1792
  %v3662 = vpop.f32.mrf.mxu0
  %v3663 = vadd.f32 %v3519, %v3662
  %v3664 = vpop.f32.mrf.mxu0
  %v3665 = vadd.f32 %v3521, %v3664
  %3666 = vmatmul.bf16.gmra.mxu0 %v1806
  %v3667 = vpop.f32.mrf.mxu0
  %v3668 = vadd.f32 %v3524, %v3667
  %v3669 = vpop.f32.mrf.mxu0
  %v3670 = vadd.f32 %v3526, %v3669
  %3671 = vmatmul.bf16.gmra.mxu0 %v1820
  %v3672 = vpop.f32.mrf.mxu0
  %v3673 = vadd.f32 %v3529, %v3672
  %v3674 = vpop.f32.mrf.mxu0
  %v3675 = vadd.f32 %v3531, %v3674
  %3676 = vmatmul.bf16.gmra.mxu0 %v1834
  %v3677 = vpop.f32.mrf.mxu0
  %v3678 = vadd.f32 %v3534, %v3677
  %v3679 = vpop.f32.mrf.mxu0
  %v3680 = vadd.f32 %v3536, %v3679
  %3681 = vmatmul.bf16.gmra.mxu0 %v1848
  %v3682 = vpop.f32.mrf.mxu0
  %v3683 = vadd.f32 %v3539, %v3682
  %v3684 = vpop.f32.mrf.mxu0
  %v3685 = vadd.f32 %v3541, %v3684
  %3686 = vmatmul.bf16.gmra.mxu0 %v1862
  %v3687 = vpop.f32.mrf.mxu0
  %v3688 = vadd.f32 %v3544, %v3687
  %v3689 = vpop.f32.mrf.mxu0
  %v3690 = vadd.f32 %v3546, %v3689
  %3691 = vmatmul.bf16.gmra.mxu0 %v1876
  %v3692 = vpop.f32.mrf.mxu0
  %v3693 = vadd.f32 %v3549, %v3692
  %v3694 = vpop.f32.mrf.mxu0
  %v3695 = vadd.f32 %v3551, %v3694
  %3696 = vmatmul.bf16.gmra.mxu0 %v1890
  %v3697 = vpop.f32.mrf.mxu0
  %v3698 = vadd.f32 %v3554, %v3697
  %v3699 = vpop.f32.mrf.mxu0
  %v3700 = vadd.f32 %v3556, %v3699
  %3701 = vmatmul.bf16.gmra.mxu0 %v1904
  %v3702 = vpop.f32.mrf.mxu0
  %v3703 = vadd.f32 %v3559, %v3702
  %v3704 = vpop.f32.mrf.mxu0
  %v3705 = vadd.f32 %v3561, %v3704
  %3706 = vmatmul.bf16.gmra.mxu0 %v1918
  %v3707 = vpop.f32.mrf.mxu0
  %v3708 = vadd.f32 %v3564, %v3707
  %v3709 = vpop.f32.mrf.mxu0
  %v3710 = vadd.f32 %v3566, %v3709
  %3711 = vmatmul.bf16.gmra.mxu0 %v1932
  %v3712 = vpop.f32.mrf.mxu0
  %v3713 = vadd.f32 %v3569, %v3712
  %v3714 = vpop.f32.mrf.mxu0
  %v3715 = vadd.f32 %v3571, %v3714
  %3716 = vmatmul.bf16.gmra.mxu0 %v1946
  %v3717 = vpop.f32.mrf.mxu0
  %v3718 = vadd.f32 %v3574, %v3717
  %v3719 = vpop.f32.mrf.mxu0
  %v3720 = vadd.f32 %v3576, %v3719
  %3721 = vmatmul.bf16.gmra.mxu0 %v1960
  %v3722 = vpop.f32.mrf.mxu0
  %v3723 = vadd.f32 %v3579, %v3722
  %v3724 = vpop.f32.mrf.mxu0
  %v3725 = vadd.f32 %v3581, %v3724
  %3726 = vmatmul.bf16.gmra.mxu0 %v1974
  %v3727 = vpop.f32.mrf.mxu0
  %v3728 = vadd.f32 %v3584, %v3727
  %v3729 = vpop.f32.mrf.mxu0
  %v3730 = vadd.f32 %v3586, %v3729
  %3731 = vmatmul.bf16.gmra.mxu0 %v1988
  %v3732 = vpop.f32.mrf.mxu0
  %v3733 = vadd.f32 %v3589, %v3732
  %v3734 = vpop.f32.mrf.mxu0
  %v3735 = vadd.f32 %v3591, %v3734
  %3736 = vmatmul.bf16.gmra.mxu0 %v2002
  %v3737 = vpop.f32.mrf.mxu0
  %v3738 = vadd.f32 %v3594, %v3737
  %v3739 = vpop.f32.mrf.mxu0
  %v3740 = vadd.f32 %v3596, %v3739
  %3741 = vmatmul.bf16.gmra.mxu0 %v2016
  %v3742 = vpop.f32.mrf.mxu0
  %v3743 = vadd.f32 %v3599, %v3742
  %v3744 = vpop.f32.mrf.mxu0
  %v3745 = vadd.f32 %v3601, %v3744
  %3746 = vmatmul.bf16.gmra.mxu0 %v2030
  %v3747 = vpop.f32.mrf.mxu0
  %v3748 = vadd.f32 %v3604, %v3747
  %v3749 = vpop.f32.mrf.mxu0
  %v3750 = vadd.f32 %v3606, %v3749
  %3751 = vmatmul.bf16.gmra.mxu0 %v2044
  %v3752 = vpop.f32.mrf.mxu0
  %v3753 = vadd.f32 %v3609, %v3752
  %v3754 = vpop.f32.mrf.mxu0
  %v3755 = vadd.f32 %v3611, %v3754
  %3756 = vmatmul.bf16.gmra.mxu0 %v2058
  %v3757 = vpop.f32.mrf.mxu0
  %v3758 = vadd.f32 %v3614, %v3757
  %v3759 = vpop.f32.mrf.mxu0
  %v3760 = vadd.f32 %v3616, %v3759
  %3761 = vmatmul.bf16.gmra.mxu0 %v2072
  %v3762 = vpop.f32.mrf.mxu0
  %v3763 = vadd.f32 %v3619, %v3762
  %v3764 = vpop.f32.mrf.mxu0
  %v3765 = vadd.f32 %v3621, %v3764
  %3766 = vmatmul.bf16.gmra.mxu0 %v2086
  %v3767 = vpop.f32.mrf.mxu0
  %v3768 = vadd.f32 %v3624, %v3767
  %v3769 = vpop.f32.mrf.mxu0
  %v3770 = vadd.f32 %v3626, %v3769
  %3771 = vmatmul.bf16.gmra.mxu0 %v2100
  %v3772 = vpop.f32.mrf.mxu0
  %v3773 = vadd.f32 %v3629, %v3772
  %v3774 = vpop.f32.mrf.mxu0
  %v3775 = vadd.f32 %v3631, %v3774
  %3776 = vmatmul.bf16.gmra.mxu0 %v2114
  %v3777 = vpop.f32.mrf.mxu0
  %v3778 = vadd.f32 %v3634, %v3777
  %v3779 = vpop.f32.mrf.mxu0
  %v3780 = vadd.f32 %v3636, %v3779
  %3781 = vdwg.mxu0
  %3782 = vmatpush.bf16.msra.mxu0 %v2947
  %3783 = vmatpush.bf16.msra.mxu0 %v2946
  %3784 = vmatpush.bf16.msra.mxu0 %v2945
  %3785 = vmatpush.bf16.msra.mxu0 %v2944
  %3786 = vmatpush.bf16.msra.mxu0 %v2943
  %3787 = vmatpush.bf16.msra.mxu0 %v2942
  %3788 = vmatpush.bf16.msra.mxu0 %v2941
  %3789 = vmatpush.bf16.msra.mxu0 %v2940
  %3790 = vmatmul.bf16.gmra.mxu0 %v1751
  %v3791 = vpop.f32.mrf.mxu0
  %v3792 = vadd.f32 %v3648, %v3791
  %v3793 = vpop.f32.mrf.mxu0
  %v3794 = vadd.f32 %v3650, %v3793
  %3795 = vmatmul.bf16.gmra.mxu0 %v1765
  %v3796 = vpop.f32.mrf.mxu0
  %v3797 = vadd.f32 %v3653, %v3796
  %v3798 = vpop.f32.mrf.mxu0
  %v3799 = vadd.f32 %v3655, %v3798
  %3800 = vmatmul.bf16.gmra.mxu0 %v1779
  %v3801 = vpop.f32.mrf.mxu0
  %v3802 = vadd.f32 %v3658, %v3801
  %v3803 = vpop.f32.mrf.mxu0
  %v3804 = vadd.f32 %v3660, %v3803
  %3805 = vmatmul.bf16.gmra.mxu0 %v1793
  %v3806 = vpop.f32.mrf.mxu0
  %v3807 = vadd.f32 %v3663, %v3806
  %v3808 = vpop.f32.mrf.mxu0
  %v3809 = vadd.f32 %v3665, %v3808
  %3810 = vmatmul.bf16.gmra.mxu0 %v1807
  %v3811 = vpop.f32.mrf.mxu0
  %v3812 = vadd.f32 %v3668, %v3811
  %v3813 = vpop.f32.mrf.mxu0
  %v3814 = vadd.f32 %v3670, %v3813
  %3815 = vmatmul.bf16.gmra.mxu0 %v1821
  %v3816 = vpop.f32.mrf.mxu0
  %v3817 = vadd.f32 %v3673, %v3816
  %v3818 = vpop.f32.mrf.mxu0
  %v3819 = vadd.f32 %v3675, %v3818
  %3820 = vmatmul.bf16.gmra.mxu0 %v1835
  %v3821 = vpop.f32.mrf.mxu0
  %v3822 = vadd.f32 %v3678, %v3821
  %v3823 = vpop.f32.mrf.mxu0
  %v3824 = vadd.f32 %v3680, %v3823
  %3825 = vmatmul.bf16.gmra.mxu0 %v1849
  %v3826 = vpop.f32.mrf.mxu0
  %v3827 = vadd.f32 %v3683, %v3826
  %v3828 = vpop.f32.mrf.mxu0
  %v3829 = vadd.f32 %v3685, %v3828
  %3830 = vmatmul.bf16.gmra.mxu0 %v1863
  %v3831 = vpop.f32.mrf.mxu0
  %v3832 = vadd.f32 %v3688, %v3831
  %v3833 = vpop.f32.mrf.mxu0
  %v3834 = vadd.f32 %v3690, %v3833
  %3835 = vmatmul.bf16.gmra.mxu0 %v1877
  %v3836 = vpop.f32.mrf.mxu0
  %v3837 = vadd.f32 %v3693, %v3836
  %v3838 = vpop.f32.mrf.mxu0
  %v3839 = vadd.f32 %v3695, %v3838
  %3840 = vmatmul.bf16.gmra.mxu0 %v1891
  %v3841 = vpop.f32.mrf.mxu0
  %v3842 = vadd.f32 %v3698, %v3841
  %v3843 = vpop.f32.mrf.mxu0
  %v3844 = vadd.f32 %v3700, %v3843
  %3845 = vmatmul.bf16.gmra.mxu0 %v1905
  %v3846 = vpop.f32.mrf.mxu0
  %v3847 = vadd.f32 %v3703, %v3846
  %v3848 = vpop.f32.mrf.mxu0
  %v3849 = vadd.f32 %v3705, %v3848
  %3850 = vmatmul.bf16.gmra.mxu0 %v1919
  %v3851 = vpop.f32.mrf.mxu0
  %v3852 = vadd.f32 %v3708, %v3851
  %v3853 = vpop.f32.mrf.mxu0
  %v3854 = vadd.f32 %v3710, %v3853
  %3855 = vmatmul.bf16.gmra.mxu0 %v1933
  %v3856 = vpop.f32.mrf.mxu0
  %v3857 = vadd.f32 %v3713, %v3856
  %v3858 = vpop.f32.mrf.mxu0
  %v3859 = vadd.f32 %v3715, %v3858
  %3860 = vmatmul.bf16.gmra.mxu0 %v1947
  %v3861 = vpop.f32.mrf.mxu0
  %v3862 = vadd.f32 %v3718, %v3861
  %v3863 = vpop.f32.mrf.mxu0
  %v3864 = vadd.f32 %v3720, %v3863
  %3865 = vmatmul.bf16.gmra.mxu0 %v1961
  %v3866 = vpop.f32.mrf.mxu0
  %v3867 = vadd.f32 %v3723, %v3866
  %v3868 = vpop.f32.mrf.mxu0
  %v3869 = vadd.f32 %v3725, %v3868
  %3870 = vmatmul.bf16.gmra.mxu0 %v1975
  %v3871 = vpop.f32.mrf.mxu0
  %v3872 = vadd.f32 %v3728, %v3871
  %v3873 = vpop.f32.mrf.mxu0
  %v3874 = vadd.f32 %v3730, %v3873
  %3875 = vmatmul.bf16.gmra.mxu0 %v1989
  %v3876 = vpop.f32.mrf.mxu0
  %v3877 = vadd.f32 %v3733, %v3876
  %v3878 = vpop.f32.mrf.mxu0
  %v3879 = vadd.f32 %v3735, %v3878
  %3880 = vmatmul.bf16.gmra.mxu0 %v2003
  %v3881 = vpop.f32.mrf.mxu0
  %v3882 = vadd.f32 %v3738, %v3881
  %v3883 = vpop.f32.mrf.mxu0
  %v3884 = vadd.f32 %v3740, %v3883
  %3885 = vmatmul.bf16.gmra.mxu0 %v2017
  %v3886 = vpop.f32.mrf.mxu0
  %v3887 = vadd.f32 %v3743, %v3886
  %v3888 = vpop.f32.mrf.mxu0
  %v3889 = vadd.f32 %v3745, %v3888
  %3890 = vmatmul.bf16.gmra.mxu0 %v2031
  %v3891 = vpop.f32.mrf.mxu0
  %v3892 = vadd.f32 %v3748, %v3891
  %v3893 = vpop.f32.mrf.mxu0
  %v3894 = vadd.f32 %v3750, %v3893
  %3895 = vmatmul.bf16.gmra.mxu0 %v2045
  %v3896 = vpop.f32.mrf.mxu0
  %v3897 = vadd.f32 %v3753, %v3896
  %v3898 = vpop.f32.mrf.mxu0
  %v3899 = vadd.f32 %v3755, %v3898
  %3900 = vmatmul.bf16.gmra.mxu0 %v2059
  %v3901 = vpop.f32.mrf.mxu0
  %v3902 = vadd.f32 %v3758, %v3901
  %v3903 = vpop.f32.mrf.mxu0
  %v3904 = vadd.f32 %v3760, %v3903
  %3905 = vmatmul.bf16.gmra.mxu0 %v2073
  %v3906 = vpop.f32.mrf.mxu0
  %v3907 = vadd.f32 %v3763, %v3906
  %v3908 = vpop.f32.mrf.mxu0
  %v3909 = vadd.f32 %v3765, %v3908
  %3910 = vmatmul.bf16.gmra.mxu0 %v2087
  %v3911 = vpop.f32.mrf.mxu0
  %v3912 = vadd.f32 %v3768, %v3911
  %v3913 = vpop.f32.mrf.mxu0
  %v3914 = vadd.f32 %v3770, %v3913
  %3915 = vmatmul.bf16.gmra.mxu0 %v2101
  %v3916 = vpop.f32.mrf.mxu0
  %v3917 = vadd.f32 %v3773, %v3916
  %v3918 = vpop.f32.mrf.mxu0
  %v3919 = vadd.f32 %v3775, %v3918
  %3920 = vmatmul.bf16.gmra.mxu0 %v2115
  %v3921 = vpop.f32.mrf.mxu0
  %v3922 = vadd.f32 %v3778, %v3921
  %v3923 = vpop.f32.mrf.mxu0
  %v3924 = vadd.f32 %v3780, %v3923
  %3925 = vdwg.mxu0
  %3926 = vmatpush.bf16.msra.mxu0 %v2955
  %3927 = vmatpush.bf16.msra.mxu0 %v2954
  %3928 = vmatpush.bf16.msra.mxu0 %v2953
  %3929 = vmatpush.bf16.msra.mxu0 %v2952
  %3930 = vmatpush.bf16.msra.mxu0 %v2951
  %3931 = vmatpush.bf16.msra.mxu0 %v2950
  %3932 = vmatpush.bf16.msra.mxu0 %v2949
  %3933 = vmatpush.bf16.msra.mxu0 %v2948
  %3934 = vmatmul.bf16.gmra.mxu0 %v1752
  %v3935 = vpop.f32.mrf.mxu0
  %v3936 = vadd.f32 %v3792, %v3935
  %v3937 = vpop.f32.mrf.mxu0
  %v3938 = vadd.f32 %v3794, %v3937
  %3939 = vmatmul.bf16.gmra.mxu0 %v1766
  %v3940 = vpop.f32.mrf.mxu0
  %v3941 = vadd.f32 %v3797, %v3940
  %v3942 = vpop.f32.mrf.mxu0
  %v3943 = vadd.f32 %v3799, %v3942
  %3944 = vmatmul.bf16.gmra.mxu0 %v1780
  %v3945 = vpop.f32.mrf.mxu0
  %v3946 = vadd.f32 %v3802, %v3945
  %v3947 = vpop.f32.mrf.mxu0
  %v3948 = vadd.f32 %v3804, %v3947
  %3949 = vmatmul.bf16.gmra.mxu0 %v1794
  %v3950 = vpop.f32.mrf.mxu0
  %v3951 = vadd.f32 %v3807, %v3950
  %v3952 = vpop.f32.mrf.mxu0
  %v3953 = vadd.f32 %v3809, %v3952
  %3954 = vmatmul.bf16.gmra.mxu0 %v1808
  %v3955 = vpop.f32.mrf.mxu0
  %v3956 = vadd.f32 %v3812, %v3955
  %v3957 = vpop.f32.mrf.mxu0
  %v3958 = vadd.f32 %v3814, %v3957
  %3959 = vmatmul.bf16.gmra.mxu0 %v1822
  %v3960 = vpop.f32.mrf.mxu0
  %v3961 = vadd.f32 %v3817, %v3960
  %v3962 = vpop.f32.mrf.mxu0
  %v3963 = vadd.f32 %v3819, %v3962
  %3964 = vmatmul.bf16.gmra.mxu0 %v1836
  %v3965 = vpop.f32.mrf.mxu0
  %v3966 = vadd.f32 %v3822, %v3965
  %v3967 = vpop.f32.mrf.mxu0
  %v3968 = vadd.f32 %v3824, %v3967
  %3969 = vmatmul.bf16.gmra.mxu0 %v1850
  %v3970 = vpop.f32.mrf.mxu0
  %v3971 = vadd.f32 %v3827, %v3970
  %v3972 = vpop.f32.mrf.mxu0
  %v3973 = vadd.f32 %v3829, %v3972
  %3974 = vmatmul.bf16.gmra.mxu0 %v1864
  %v3975 = vpop.f32.mrf.mxu0
  %v3976 = vadd.f32 %v3832, %v3975
  %v3977 = vpop.f32.mrf.mxu0
  %v3978 = vadd.f32 %v3834, %v3977
  %3979 = vmatmul.bf16.gmra.mxu0 %v1878
  %v3980 = vpop.f32.mrf.mxu0
  %v3981 = vadd.f32 %v3837, %v3980
  %v3982 = vpop.f32.mrf.mxu0
  %v3983 = vadd.f32 %v3839, %v3982
  %3984 = vmatmul.bf16.gmra.mxu0 %v1892
  %v3985 = vpop.f32.mrf.mxu0
  %v3986 = vadd.f32 %v3842, %v3985
  %v3987 = vpop.f32.mrf.mxu0
  %v3988 = vadd.f32 %v3844, %v3987
  %3989 = vmatmul.bf16.gmra.mxu0 %v1906
  %v3990 = vpop.f32.mrf.mxu0
  %v3991 = vadd.f32 %v3847, %v3990
  %v3992 = vpop.f32.mrf.mxu0
  %v3993 = vadd.f32 %v3849, %v3992
  %3994 = vmatmul.bf16.gmra.mxu0 %v1920
  %v3995 = vpop.f32.mrf.mxu0
  %v3996 = vadd.f32 %v3852, %v3995
  %v3997 = vpop.f32.mrf.mxu0
  %v3998 = vadd.f32 %v3854, %v3997
  %3999 = vmatmul.bf16.gmra.mxu0 %v1934
  %v4000 = vpop.f32.mrf.mxu0
  %v4001 = vadd.f32 %v3857, %v4000
  %v4002 = vpop.f32.mrf.mxu0
  %v4003 = vadd.f32 %v3859, %v4002
  %4004 = vmatmul.bf16.gmra.mxu0 %v1948
  %v4005 = vpop.f32.mrf.mxu0
  %v4006 = vadd.f32 %v3862, %v4005
  %v4007 = vpop.f32.mrf.mxu0
  %v4008 = vadd.f32 %v3864, %v4007
  %4009 = vmatmul.bf16.gmra.mxu0 %v1962
  %v4010 = vpop.f32.mrf.mxu0
  %v4011 = vadd.f32 %v3867, %v4010
  %v4012 = vpop.f32.mrf.mxu0
  %v4013 = vadd.f32 %v3869, %v4012
  %4014 = vmatmul.bf16.gmra.mxu0 %v1976
  %v4015 = vpop.f32.mrf.mxu0
  %v4016 = vadd.f32 %v3872, %v4015
  %v4017 = vpop.f32.mrf.mxu0
  %v4018 = vadd.f32 %v3874, %v4017
  %4019 = vmatmul.bf16.gmra.mxu0 %v1990
  %v4020 = vpop.f32.mrf.mxu0
  %v4021 = vadd.f32 %v3877, %v4020
  %v4022 = vpop.f32.mrf.mxu0
  %v4023 = vadd.f32 %v3879, %v4022
  %4024 = vmatmul.bf16.gmra.mxu0 %v2004
  %v4025 = vpop.f32.mrf.mxu0
  %v4026 = vadd.f32 %v3882, %v4025
  %v4027 = vpop.f32.mrf.mxu0
  %v4028 = vadd.f32 %v3884, %v4027
  %4029 = vmatmul.bf16.gmra.mxu0 %v2018
  %v4030 = vpop.f32.mrf.mxu0
  %v4031 = vadd.f32 %v3887, %v4030
  %v4032 = vpop.f32.mrf.mxu0
  %v4033 = vadd.f32 %v3889, %v4032
  %4034 = vmatmul.bf16.gmra.mxu0 %v2032
  %v4035 = vpop.f32.mrf.mxu0
  %v4036 = vadd.f32 %v3892, %v4035
  %v4037 = vpop.f32.mrf.mxu0
  %v4038 = vadd.f32 %v3894, %v4037
  %4039 = vmatmul.bf16.gmra.mxu0 %v2046
  %v4040 = vpop.f32.mrf.mxu0
  %v4041 = vadd.f32 %v3897, %v4040
  %v4042 = vpop.f32.mrf.mxu0
  %v4043 = vadd.f32 %v3899, %v4042
  %4044 = vmatmul.bf16.gmra.mxu0 %v2060
  %v4045 = vpop.f32.mrf.mxu0
  %v4046 = vadd.f32 %v3902, %v4045
  %v4047 = vpop.f32.mrf.mxu0
  %v4048 = vadd.f32 %v3904, %v4047
  %4049 = vmatmul.bf16.gmra.mxu0 %v2074
  %v4050 = vpop.f32.mrf.mxu0
  %v4051 = vadd.f32 %v3907, %v4050
  %v4052 = vpop.f32.mrf.mxu0
  %v4053 = vadd.f32 %v3909, %v4052
  %4054 = vmatmul.bf16.gmra.mxu0 %v2088
  %v4055 = vpop.f32.mrf.mxu0
  %v4056 = vadd.f32 %v3912, %v4055
  %v4057 = vpop.f32.mrf.mxu0
  %v4058 = vadd.f32 %v3914, %v4057
  %4059 = vmatmul.bf16.gmra.mxu0 %v2102
  %v4060 = vpop.f32.mrf.mxu0
  %v4061 = vadd.f32 %v3917, %v4060
  %v4062 = vpop.f32.mrf.mxu0
  %v4063 = vadd.f32 %v3919, %v4062
  %4064 = vmatmul.bf16.gmra.mxu0 %v2116
  %v4065 = vpop.f32.mrf.mxu0
  %v4066 = vadd.f32 %v3922, %v4065
  %v4067 = vpop.f32.mrf.mxu0
  %v4068 = vadd.f32 %v3924, %v4067
  %4069 = vdwg.mxu0
  %4070 = vmatpush.bf16.msra.mxu0 %v2963
  %4071 = vmatpush.bf16.msra.mxu0 %v2962
  %4072 = vmatpush.bf16.msra.mxu0 %v2961
  %4073 = vmatpush.bf16.msra.mxu0 %v2960
  %4074 = vmatpush.bf16.msra.mxu0 %v2959
  %4075 = vmatpush.bf16.msra.mxu0 %v2958
  %4076 = vmatpush.bf16.msra.mxu0 %v2957
  %4077 = vmatpush.bf16.msra.mxu0 %v2956
  %4078 = vmatmul.bf16.gmra.mxu0 %v1753
  %v4079 = vpop.f32.mrf.mxu0
  %v4080 = vadd.f32 %v3936, %v4079
  %v4081 = vpop.f32.mrf.mxu0
  %v4082 = vadd.f32 %v3938, %v4081
  %4083 = vmatmul.bf16.gmra.mxu0 %v1767
  %v4084 = vpop.f32.mrf.mxu0
  %v4085 = vadd.f32 %v3941, %v4084
  %v4086 = vpop.f32.mrf.mxu0
  %v4087 = vadd.f32 %v3943, %v4086
  %4088 = vmatmul.bf16.gmra.mxu0 %v1781
  %v4089 = vpop.f32.mrf.mxu0
  %v4090 = vadd.f32 %v3946, %v4089
  %v4091 = vpop.f32.mrf.mxu0
  %v4092 = vadd.f32 %v3948, %v4091
  %4093 = vmatmul.bf16.gmra.mxu0 %v1795
  %v4094 = vpop.f32.mrf.mxu0
  %v4095 = vadd.f32 %v3951, %v4094
  %v4096 = vpop.f32.mrf.mxu0
  %v4097 = vadd.f32 %v3953, %v4096
  %4098 = vmatmul.bf16.gmra.mxu0 %v1809
  %v4099 = vpop.f32.mrf.mxu0
  %v4100 = vadd.f32 %v3956, %v4099
  %v4101 = vpop.f32.mrf.mxu0
  %v4102 = vadd.f32 %v3958, %v4101
  %4103 = vmatmul.bf16.gmra.mxu0 %v1823
  %v4104 = vpop.f32.mrf.mxu0
  %v4105 = vadd.f32 %v3961, %v4104
  %v4106 = vpop.f32.mrf.mxu0
  %v4107 = vadd.f32 %v3963, %v4106
  %4108 = vmatmul.bf16.gmra.mxu0 %v1837
  %v4109 = vpop.f32.mrf.mxu0
  %v4110 = vadd.f32 %v3966, %v4109
  %v4111 = vpop.f32.mrf.mxu0
  %v4112 = vadd.f32 %v3968, %v4111
  %4113 = vmatmul.bf16.gmra.mxu0 %v1851
  %v4114 = vpop.f32.mrf.mxu0
  %v4115 = vadd.f32 %v3971, %v4114
  %v4116 = vpop.f32.mrf.mxu0
  %v4117 = vadd.f32 %v3973, %v4116
  %4118 = vmatmul.bf16.gmra.mxu0 %v1865
  %v4119 = vpop.f32.mrf.mxu0
  %v4120 = vadd.f32 %v3976, %v4119
  %v4121 = vpop.f32.mrf.mxu0
  %v4122 = vadd.f32 %v3978, %v4121
  %4123 = vmatmul.bf16.gmra.mxu0 %v1879
  %v4124 = vpop.f32.mrf.mxu0
  %v4125 = vadd.f32 %v3981, %v4124
  %v4126 = vpop.f32.mrf.mxu0
  %v4127 = vadd.f32 %v3983, %v4126
  %4128 = vmatmul.bf16.gmra.mxu0 %v1893
  %v4129 = vpop.f32.mrf.mxu0
  %v4130 = vadd.f32 %v3986, %v4129
  %v4131 = vpop.f32.mrf.mxu0
  %v4132 = vadd.f32 %v3988, %v4131
  %4133 = vmatmul.bf16.gmra.mxu0 %v1907
  %v4134 = vpop.f32.mrf.mxu0
  %v4135 = vadd.f32 %v3991, %v4134
  %v4136 = vpop.f32.mrf.mxu0
  %v4137 = vadd.f32 %v3993, %v4136
  %4138 = vmatmul.bf16.gmra.mxu0 %v1921
  %v4139 = vpop.f32.mrf.mxu0
  %v4140 = vadd.f32 %v3996, %v4139
  %v4141 = vpop.f32.mrf.mxu0
  %v4142 = vadd.f32 %v3998, %v4141
  %4143 = vmatmul.bf16.gmra.mxu0 %v1935
  %v4144 = vpop.f32.mrf.mxu0
  %v4145 = vadd.f32 %v4001, %v4144
  %v4146 = vpop.f32.mrf.mxu0
  %v4147 = vadd.f32 %v4003, %v4146
  %4148 = vmatmul.bf16.gmra.mxu0 %v1949
  %v4149 = vpop.f32.mrf.mxu0
  %v4150 = vadd.f32 %v4006, %v4149
  %v4151 = vpop.f32.mrf.mxu0
  %v4152 = vadd.f32 %v4008, %v4151
  %4153 = vmatmul.bf16.gmra.mxu0 %v1963
  %v4154 = vpop.f32.mrf.mxu0
  %v4155 = vadd.f32 %v4011, %v4154
  %v4156 = vpop.f32.mrf.mxu0
  %v4157 = vadd.f32 %v4013, %v4156
  %4158 = vmatmul.bf16.gmra.mxu0 %v1977
  %v4159 = vpop.f32.mrf.mxu0
  %v4160 = vadd.f32 %v4016, %v4159
  %v4161 = vpop.f32.mrf.mxu0
  %v4162 = vadd.f32 %v4018, %v4161
  %4163 = vmatmul.bf16.gmra.mxu0 %v1991
  %v4164 = vpop.f32.mrf.mxu0
  %v4165 = vadd.f32 %v4021, %v4164
  %v4166 = vpop.f32.mrf.mxu0
  %v4167 = vadd.f32 %v4023, %v4166
  %4168 = vmatmul.bf16.gmra.mxu0 %v2005
  %v4169 = vpop.f32.mrf.mxu0
  %v4170 = vadd.f32 %v4026, %v4169
  %v4171 = vpop.f32.mrf.mxu0
  %v4172 = vadd.f32 %v4028, %v4171
  %4173 = vmatmul.bf16.gmra.mxu0 %v2019
  %v4174 = vpop.f32.mrf.mxu0
  %v4175 = vadd.f32 %v4031, %v4174
  %v4176 = vpop.f32.mrf.mxu0
  %v4177 = vadd.f32 %v4033, %v4176
  %4178 = vmatmul.bf16.gmra.mxu0 %v2033
  %v4179 = vpop.f32.mrf.mxu0
  %v4180 = vadd.f32 %v4036, %v4179
  %v4181 = vpop.f32.mrf.mxu0
  %v4182 = vadd.f32 %v4038, %v4181
  %4183 = vmatmul.bf16.gmra.mxu0 %v2047
  %v4184 = vpop.f32.mrf.mxu0
  %v4185 = vadd.f32 %v4041, %v4184
  %v4186 = vpop.f32.mrf.mxu0
  %v4187 = vadd.f32 %v4043, %v4186
  %4188 = vmatmul.bf16.gmra.mxu0 %v2061
  %v4189 = vpop.f32.mrf.mxu0
  %v4190 = vadd.f32 %v4046, %v4189
  %v4191 = vpop.f32.mrf.mxu0
  %v4192 = vadd.f32 %v4048, %v4191
  %4193 = vmatmul.bf16.gmra.mxu0 %v2075
  %v4194 = vpop.f32.mrf.mxu0
  %v4195 = vadd.f32 %v4051, %v4194
  %v4196 = vpop.f32.mrf.mxu0
  %v4197 = vadd.f32 %v4053, %v4196
  %4198 = vmatmul.bf16.gmra.mxu0 %v2089
  %v4199 = vpop.f32.mrf.mxu0
  %v4200 = vadd.f32 %v4056, %v4199
  %v4201 = vpop.f32.mrf.mxu0
  %v4202 = vadd.f32 %v4058, %v4201
  %4203 = vmatmul.bf16.gmra.mxu0 %v2103
  %v4204 = vpop.f32.mrf.mxu0
  %v4205 = vadd.f32 %v4061, %v4204
  %v4206 = vpop.f32.mrf.mxu0
  %v4207 = vadd.f32 %v4063, %v4206
  %4208 = vmatmul.bf16.gmra.mxu0 %v2117
  %v4209 = vpop.f32.mrf.mxu0
  %v4210 = vadd.f32 %v4066, %v4209
  %v4211 = vpop.f32.mrf.mxu0
  %v4212 = vadd.f32 %v4068, %v4211
  %4213 = vdwg.mxu0
  %4214 = vmatpush.bf16.msra.mxu0 %v2971
  %4215 = vmatpush.bf16.msra.mxu0 %v2970
  %4216 = vmatpush.bf16.msra.mxu0 %v2969
  %4217 = vmatpush.bf16.msra.mxu0 %v2968
  %4218 = vmatpush.bf16.msra.mxu0 %v2967
  %4219 = vmatpush.bf16.msra.mxu0 %v2966
  %4220 = vmatpush.bf16.msra.mxu0 %v2965
  %4221 = vmatpush.bf16.msra.mxu0 %v2964
  %4222 = vmatmul.bf16.gmra.mxu0 %v1754
  %v4223 = vpop.f32.mrf.mxu0
  %v4224 = vadd.f32 %v4080, %v4223
  %v4225 = vpop.f32.mrf.mxu0
  %v4226 = vadd.f32 %v4082, %v4225
  %4227 = vmatmul.bf16.gmra.mxu0 %v1768
  %v4228 = vpop.f32.mrf.mxu0
  %v4229 = vadd.f32 %v4085, %v4228
  %v4230 = vpop.f32.mrf.mxu0
  %v4231 = vadd.f32 %v4087, %v4230
  %4232 = vmatmul.bf16.gmra.mxu0 %v1782
  %v4233 = vpop.f32.mrf.mxu0
  %v4234 = vadd.f32 %v4090, %v4233
  %v4235 = vpop.f32.mrf.mxu0
  %v4236 = vadd.f32 %v4092, %v4235
  %4237 = vmatmul.bf16.gmra.mxu0 %v1796
  %v4238 = vpop.f32.mrf.mxu0
  %v4239 = vadd.f32 %v4095, %v4238
  %v4240 = vpop.f32.mrf.mxu0
  %v4241 = vadd.f32 %v4097, %v4240
  %4242 = vmatmul.bf16.gmra.mxu0 %v1810
  %v4243 = vpop.f32.mrf.mxu0
  %v4244 = vadd.f32 %v4100, %v4243
  %v4245 = vpop.f32.mrf.mxu0
  %v4246 = vadd.f32 %v4102, %v4245
  %4247 = vmatmul.bf16.gmra.mxu0 %v1824
  %v4248 = vpop.f32.mrf.mxu0
  %v4249 = vadd.f32 %v4105, %v4248
  %v4250 = vpop.f32.mrf.mxu0
  %v4251 = vadd.f32 %v4107, %v4250
  %4252 = vmatmul.bf16.gmra.mxu0 %v1838
  %v4253 = vpop.f32.mrf.mxu0
  %v4254 = vadd.f32 %v4110, %v4253
  %v4255 = vpop.f32.mrf.mxu0
  %v4256 = vadd.f32 %v4112, %v4255
  %4257 = vmatmul.bf16.gmra.mxu0 %v1852
  %v4258 = vpop.f32.mrf.mxu0
  %v4259 = vadd.f32 %v4115, %v4258
  %v4260 = vpop.f32.mrf.mxu0
  %v4261 = vadd.f32 %v4117, %v4260
  %4262 = vmatmul.bf16.gmra.mxu0 %v1866
  %v4263 = vpop.f32.mrf.mxu0
  %v4264 = vadd.f32 %v4120, %v4263
  %v4265 = vpop.f32.mrf.mxu0
  %v4266 = vadd.f32 %v4122, %v4265
  %4267 = vmatmul.bf16.gmra.mxu0 %v1880
  %v4268 = vpop.f32.mrf.mxu0
  %v4269 = vadd.f32 %v4125, %v4268
  %v4270 = vpop.f32.mrf.mxu0
  %v4271 = vadd.f32 %v4127, %v4270
  %4272 = vmatmul.bf16.gmra.mxu0 %v1894
  %v4273 = vpop.f32.mrf.mxu0
  %v4274 = vadd.f32 %v4130, %v4273
  %v4275 = vpop.f32.mrf.mxu0
  %v4276 = vadd.f32 %v4132, %v4275
  %4277 = vmatmul.bf16.gmra.mxu0 %v1908
  %v4278 = vpop.f32.mrf.mxu0
  %v4279 = vadd.f32 %v4135, %v4278
  %v4280 = vpop.f32.mrf.mxu0
  %v4281 = vadd.f32 %v4137, %v4280
  %4282 = vmatmul.bf16.gmra.mxu0 %v1922
  %v4283 = vpop.f32.mrf.mxu0
  %v4284 = vadd.f32 %v4140, %v4283
  %v4285 = vpop.f32.mrf.mxu0
  %v4286 = vadd.f32 %v4142, %v4285
  %4287 = vmatmul.bf16.gmra.mxu0 %v1936
  %v4288 = vpop.f32.mrf.mxu0
  %v4289 = vadd.f32 %v4145, %v4288
  %v4290 = vpop.f32.mrf.mxu0
  %v4291 = vadd.f32 %v4147, %v4290
  %4292 = vmatmul.bf16.gmra.mxu0 %v1950
  %v4293 = vpop.f32.mrf.mxu0
  %v4294 = vadd.f32 %v4150, %v4293
  %v4295 = vpop.f32.mrf.mxu0
  %v4296 = vadd.f32 %v4152, %v4295
  %4297 = vmatmul.bf16.gmra.mxu0 %v1964
  %v4298 = vpop.f32.mrf.mxu0
  %v4299 = vadd.f32 %v4155, %v4298
  %v4300 = vpop.f32.mrf.mxu0
  %v4301 = vadd.f32 %v4157, %v4300
  %4302 = vmatmul.bf16.gmra.mxu0 %v1978
  %v4303 = vpop.f32.mrf.mxu0
  %v4304 = vadd.f32 %v4160, %v4303
  %v4305 = vpop.f32.mrf.mxu0
  %v4306 = vadd.f32 %v4162, %v4305
  %4307 = vmatmul.bf16.gmra.mxu0 %v1992
  %v4308 = vpop.f32.mrf.mxu0
  %v4309 = vadd.f32 %v4165, %v4308
  %v4310 = vpop.f32.mrf.mxu0
  %v4311 = vadd.f32 %v4167, %v4310
  %4312 = vmatmul.bf16.gmra.mxu0 %v2006
  %v4313 = vpop.f32.mrf.mxu0
  %v4314 = vadd.f32 %v4170, %v4313
  %v4315 = vpop.f32.mrf.mxu0
  %v4316 = vadd.f32 %v4172, %v4315
  %4317 = vmatmul.bf16.gmra.mxu0 %v2020
  %v4318 = vpop.f32.mrf.mxu0
  %v4319 = vadd.f32 %v4175, %v4318
  %v4320 = vpop.f32.mrf.mxu0
  %v4321 = vadd.f32 %v4177, %v4320
  %4322 = vmatmul.bf16.gmra.mxu0 %v2034
  %v4323 = vpop.f32.mrf.mxu0
  %v4324 = vadd.f32 %v4180, %v4323
  %v4325 = vpop.f32.mrf.mxu0
  %v4326 = vadd.f32 %v4182, %v4325
  %4327 = vmatmul.bf16.gmra.mxu0 %v2048
  %v4328 = vpop.f32.mrf.mxu0
  %v4329 = vadd.f32 %v4185, %v4328
  %v4330 = vpop.f32.mrf.mxu0
  %v4331 = vadd.f32 %v4187, %v4330
  %4332 = vmatmul.bf16.gmra.mxu0 %v2062
  %v4333 = vpop.f32.mrf.mxu0
  %v4334 = vadd.f32 %v4190, %v4333
  %v4335 = vpop.f32.mrf.mxu0
  %v4336 = vadd.f32 %v4192, %v4335
  %4337 = vmatmul.bf16.gmra.mxu0 %v2076
  %v4338 = vpop.f32.mrf.mxu0
  %v4339 = vadd.f32 %v4195, %v4338
  %v4340 = vpop.f32.mrf.mxu0
  %v4341 = vadd.f32 %v4197, %v4340
  %4342 = vmatmul.bf16.gmra.mxu0 %v2090
  %v4343 = vpop.f32.mrf.mxu0
  %v4344 = vadd.f32 %v4200, %v4343
  %v4345 = vpop.f32.mrf.mxu0
  %v4346 = vadd.f32 %v4202, %v4345
  %4347 = vmatmul.bf16.gmra.mxu0 %v2104
  %v4348 = vpop.f32.mrf.mxu0
  %v4349 = vadd.f32 %v4205, %v4348
  %v4350 = vpop.f32.mrf.mxu0
  %v4351 = vadd.f32 %v4207, %v4350
  %4352 = vmatmul.bf16.gmra.mxu0 %v2118
  %v4353 = vpop.f32.mrf.mxu0
  %v4354 = vadd.f32 %v4210, %v4353
  %v4355 = vpop.f32.mrf.mxu0
  %v4356 = vadd.f32 %v4212, %v4355
  %4357 = vdwg.mxu0
  %4358 = vmatpush.bf16.msra.mxu0 %v2979
  %4359 = vmatpush.bf16.msra.mxu0 %v2978
  %4360 = vmatpush.bf16.msra.mxu0 %v2977
  %4361 = vmatpush.bf16.msra.mxu0 %v2976
  %4362 = vmatpush.bf16.msra.mxu0 %v2975
  %4363 = vmatpush.bf16.msra.mxu0 %v2974
  %4364 = vmatpush.bf16.msra.mxu0 %v2973
  %4365 = vmatpush.bf16.msra.mxu0 %v2972
  %4366 = vmatmul.bf16.gmra.mxu0 %v1755
  %v4367 = vpop.f32.mrf.mxu0
  %v4368 = vadd.f32 %v4224, %v4367
  %v4369 = vpop.f32.mrf.mxu0
  %v4370 = vadd.f32 %v4226, %v4369
  %4371 = vmatmul.bf16.gmra.mxu0 %v1769
  %v4372 = vpop.f32.mrf.mxu0
  %v4373 = vadd.f32 %v4229, %v4372
  %v4374 = vpop.f32.mrf.mxu0
  %v4375 = vadd.f32 %v4231, %v4374
  %4376 = vmatmul.bf16.gmra.mxu0 %v1783
  %v4377 = vpop.f32.mrf.mxu0
  %v4378 = vadd.f32 %v4234, %v4377
  %v4379 = vpop.f32.mrf.mxu0
  %v4380 = vadd.f32 %v4236, %v4379
  %4381 = vmatmul.bf16.gmra.mxu0 %v1797
  %v4382 = vpop.f32.mrf.mxu0
  %v4383 = vadd.f32 %v4239, %v4382
  %v4384 = vpop.f32.mrf.mxu0
  %v4385 = vadd.f32 %v4241, %v4384
  %4386 = vmatmul.bf16.gmra.mxu0 %v1811
  %v4387 = vpop.f32.mrf.mxu0
  %v4388 = vadd.f32 %v4244, %v4387
  %v4389 = vpop.f32.mrf.mxu0
  %v4390 = vadd.f32 %v4246, %v4389
  %4391 = vmatmul.bf16.gmra.mxu0 %v1825
  %v4392 = vpop.f32.mrf.mxu0
  %v4393 = vadd.f32 %v4249, %v4392
  %v4394 = vpop.f32.mrf.mxu0
  %v4395 = vadd.f32 %v4251, %v4394
  %4396 = vmatmul.bf16.gmra.mxu0 %v1839
  %v4397 = vpop.f32.mrf.mxu0
  %v4398 = vadd.f32 %v4254, %v4397
  %v4399 = vpop.f32.mrf.mxu0
  %v4400 = vadd.f32 %v4256, %v4399
  %4401 = vmatmul.bf16.gmra.mxu0 %v1853
  %v4402 = vpop.f32.mrf.mxu0
  %v4403 = vadd.f32 %v4259, %v4402
  %v4404 = vpop.f32.mrf.mxu0
  %v4405 = vadd.f32 %v4261, %v4404
  %4406 = vmatmul.bf16.gmra.mxu0 %v1867
  %v4407 = vpop.f32.mrf.mxu0
  %v4408 = vadd.f32 %v4264, %v4407
  %v4409 = vpop.f32.mrf.mxu0
  %v4410 = vadd.f32 %v4266, %v4409
  %4411 = vmatmul.bf16.gmra.mxu0 %v1881
  %v4412 = vpop.f32.mrf.mxu0
  %v4413 = vadd.f32 %v4269, %v4412
  %v4414 = vpop.f32.mrf.mxu0
  %v4415 = vadd.f32 %v4271, %v4414
  %4416 = vmatmul.bf16.gmra.mxu0 %v1895
  %v4417 = vpop.f32.mrf.mxu0
  %v4418 = vadd.f32 %v4274, %v4417
  %v4419 = vpop.f32.mrf.mxu0
  %v4420 = vadd.f32 %v4276, %v4419
  %4421 = vmatmul.bf16.gmra.mxu0 %v1909
  %v4422 = vpop.f32.mrf.mxu0
  %v4423 = vadd.f32 %v4279, %v4422
  %v4424 = vpop.f32.mrf.mxu0
  %v4425 = vadd.f32 %v4281, %v4424
  %4426 = vmatmul.bf16.gmra.mxu0 %v1923
  %v4427 = vpop.f32.mrf.mxu0
  %v4428 = vadd.f32 %v4284, %v4427
  %v4429 = vpop.f32.mrf.mxu0
  %v4430 = vadd.f32 %v4286, %v4429
  %4431 = vmatmul.bf16.gmra.mxu0 %v1937
  %v4432 = vpop.f32.mrf.mxu0
  %v4433 = vadd.f32 %v4289, %v4432
  %v4434 = vpop.f32.mrf.mxu0
  %v4435 = vadd.f32 %v4291, %v4434
  %4436 = vmatmul.bf16.gmra.mxu0 %v1951
  %v4437 = vpop.f32.mrf.mxu0
  %v4438 = vadd.f32 %v4294, %v4437
  %v4439 = vpop.f32.mrf.mxu0
  %v4440 = vadd.f32 %v4296, %v4439
  %4441 = vmatmul.bf16.gmra.mxu0 %v1965
  %v4442 = vpop.f32.mrf.mxu0
  %v4443 = vadd.f32 %v4299, %v4442
  %v4444 = vpop.f32.mrf.mxu0
  %v4445 = vadd.f32 %v4301, %v4444
  %4446 = vmatmul.bf16.gmra.mxu0 %v1979
  %v4447 = vpop.f32.mrf.mxu0
  %v4448 = vadd.f32 %v4304, %v4447
  %v4449 = vpop.f32.mrf.mxu0
  %v4450 = vadd.f32 %v4306, %v4449
  %4451 = vmatmul.bf16.gmra.mxu0 %v1993
  %v4452 = vpop.f32.mrf.mxu0
  %v4453 = vadd.f32 %v4309, %v4452
  %v4454 = vpop.f32.mrf.mxu0
  %v4455 = vadd.f32 %v4311, %v4454
  %4456 = vmatmul.bf16.gmra.mxu0 %v2007
  %v4457 = vpop.f32.mrf.mxu0
  %v4458 = vadd.f32 %v4314, %v4457
  %v4459 = vpop.f32.mrf.mxu0
  %v4460 = vadd.f32 %v4316, %v4459
  %4461 = vmatmul.bf16.gmra.mxu0 %v2021
  %v4462 = vpop.f32.mrf.mxu0
  %v4463 = vadd.f32 %v4319, %v4462
  %v4464 = vpop.f32.mrf.mxu0
  %v4465 = vadd.f32 %v4321, %v4464
  %4466 = vmatmul.bf16.gmra.mxu0 %v2035
  %v4467 = vpop.f32.mrf.mxu0
  %v4468 = vadd.f32 %v4324, %v4467
  %v4469 = vpop.f32.mrf.mxu0
  %v4470 = vadd.f32 %v4326, %v4469
  %4471 = vmatmul.bf16.gmra.mxu0 %v2049
  %v4472 = vpop.f32.mrf.mxu0
  %v4473 = vadd.f32 %v4329, %v4472
  %v4474 = vpop.f32.mrf.mxu0
  %v4475 = vadd.f32 %v4331, %v4474
  %4476 = vmatmul.bf16.gmra.mxu0 %v2063
  %v4477 = vpop.f32.mrf.mxu0
  %v4478 = vadd.f32 %v4334, %v4477
  %v4479 = vpop.f32.mrf.mxu0
  %v4480 = vadd.f32 %v4336, %v4479
  %4481 = vmatmul.bf16.gmra.mxu0 %v2077
  %v4482 = vpop.f32.mrf.mxu0
  %v4483 = vadd.f32 %v4339, %v4482
  %v4484 = vpop.f32.mrf.mxu0
  %v4485 = vadd.f32 %v4341, %v4484
  %4486 = vmatmul.bf16.gmra.mxu0 %v2091
  %v4487 = vpop.f32.mrf.mxu0
  %v4488 = vadd.f32 %v4344, %v4487
  %v4489 = vpop.f32.mrf.mxu0
  %v4490 = vadd.f32 %v4346, %v4489
  %4491 = vmatmul.bf16.gmra.mxu0 %v2105
  %v4492 = vpop.f32.mrf.mxu0
  %v4493 = vadd.f32 %v4349, %v4492
  %v4494 = vpop.f32.mrf.mxu0
  %v4495 = vadd.f32 %v4351, %v4494
  %4496 = vmatmul.bf16.gmra.mxu0 %v2119
  %v4497 = vpop.f32.mrf.mxu0
  %v4498 = vadd.f32 %v4354, %v4497
  %v4499 = vpop.f32.mrf.mxu0
  %v4500 = vadd.f32 %v4356, %v4499
  %4501 = vdwg.mxu0
  %4502 = vmatpush.bf16.msra.mxu0 %v2987
  %4503 = vmatpush.bf16.msra.mxu0 %v2986
  %4504 = vmatpush.bf16.msra.mxu0 %v2985
  %4505 = vmatpush.bf16.msra.mxu0 %v2984
  %4506 = vmatpush.bf16.msra.mxu0 %v2983
  %4507 = vmatpush.bf16.msra.mxu0 %v2982
  %4508 = vmatpush.bf16.msra.mxu0 %v2981
  %4509 = vmatpush.bf16.msra.mxu0 %v2980
  %4510 = vmatmul.bf16.gmra.mxu0 %v1756
  %v4511 = vpop.f32.mrf.mxu0
  %v4512 = vadd.f32 %v4368, %v4511
  %v4513 = vpop.f32.mrf.mxu0
  %v4514 = vadd.f32 %v4370, %v4513
  %4515 = vmatmul.bf16.gmra.mxu0 %v1770
  %v4516 = vpop.f32.mrf.mxu0
  %v4517 = vadd.f32 %v4373, %v4516
  %v4518 = vpop.f32.mrf.mxu0
  %v4519 = vadd.f32 %v4375, %v4518
  %4520 = vmatmul.bf16.gmra.mxu0 %v1784
  %v4521 = vpop.f32.mrf.mxu0
  %v4522 = vadd.f32 %v4378, %v4521
  %v4523 = vpop.f32.mrf.mxu0
  %v4524 = vadd.f32 %v4380, %v4523
  %4525 = vmatmul.bf16.gmra.mxu0 %v1798
  %v4526 = vpop.f32.mrf.mxu0
  %v4527 = vadd.f32 %v4383, %v4526
  %v4528 = vpop.f32.mrf.mxu0
  %v4529 = vadd.f32 %v4385, %v4528
  %4530 = vmatmul.bf16.gmra.mxu0 %v1812
  %v4531 = vpop.f32.mrf.mxu0
  %v4532 = vadd.f32 %v4388, %v4531
  %v4533 = vpop.f32.mrf.mxu0
  %v4534 = vadd.f32 %v4390, %v4533
  %4535 = vmatmul.bf16.gmra.mxu0 %v1826
  %v4536 = vpop.f32.mrf.mxu0
  %v4537 = vadd.f32 %v4393, %v4536
  %v4538 = vpop.f32.mrf.mxu0
  %v4539 = vadd.f32 %v4395, %v4538
  %4540 = vmatmul.bf16.gmra.mxu0 %v1840
  %v4541 = vpop.f32.mrf.mxu0
  %v4542 = vadd.f32 %v4398, %v4541
  %v4543 = vpop.f32.mrf.mxu0
  %v4544 = vadd.f32 %v4400, %v4543
  %4545 = vmatmul.bf16.gmra.mxu0 %v1854
  %v4546 = vpop.f32.mrf.mxu0
  %v4547 = vadd.f32 %v4403, %v4546
  %v4548 = vpop.f32.mrf.mxu0
  %v4549 = vadd.f32 %v4405, %v4548
  %4550 = vmatmul.bf16.gmra.mxu0 %v1868
  %v4551 = vpop.f32.mrf.mxu0
  %v4552 = vadd.f32 %v4408, %v4551
  %v4553 = vpop.f32.mrf.mxu0
  %v4554 = vadd.f32 %v4410, %v4553
  %4555 = vmatmul.bf16.gmra.mxu0 %v1882
  %v4556 = vpop.f32.mrf.mxu0
  %v4557 = vadd.f32 %v4413, %v4556
  %v4558 = vpop.f32.mrf.mxu0
  %v4559 = vadd.f32 %v4415, %v4558
  %4560 = vmatmul.bf16.gmra.mxu0 %v1896
  %v4561 = vpop.f32.mrf.mxu0
  %v4562 = vadd.f32 %v4418, %v4561
  %v4563 = vpop.f32.mrf.mxu0
  %v4564 = vadd.f32 %v4420, %v4563
  %4565 = vmatmul.bf16.gmra.mxu0 %v1910
  %v4566 = vpop.f32.mrf.mxu0
  %v4567 = vadd.f32 %v4423, %v4566
  %v4568 = vpop.f32.mrf.mxu0
  %v4569 = vadd.f32 %v4425, %v4568
  %4570 = vmatmul.bf16.gmra.mxu0 %v1924
  %v4571 = vpop.f32.mrf.mxu0
  %v4572 = vadd.f32 %v4428, %v4571
  %v4573 = vpop.f32.mrf.mxu0
  %v4574 = vadd.f32 %v4430, %v4573
  %4575 = vmatmul.bf16.gmra.mxu0 %v1938
  %v4576 = vpop.f32.mrf.mxu0
  %v4577 = vadd.f32 %v4433, %v4576
  %v4578 = vpop.f32.mrf.mxu0
  %v4579 = vadd.f32 %v4435, %v4578
  %4580 = vmatmul.bf16.gmra.mxu0 %v1952
  %v4581 = vpop.f32.mrf.mxu0
  %v4582 = vadd.f32 %v4438, %v4581
  %v4583 = vpop.f32.mrf.mxu0
  %v4584 = vadd.f32 %v4440, %v4583
  %4585 = vmatmul.bf16.gmra.mxu0 %v1966
  %v4586 = vpop.f32.mrf.mxu0
  %v4587 = vadd.f32 %v4443, %v4586
  %v4588 = vpop.f32.mrf.mxu0
  %v4589 = vadd.f32 %v4445, %v4588
  %4590 = vmatmul.bf16.gmra.mxu0 %v1980
  %v4591 = vpop.f32.mrf.mxu0
  %v4592 = vadd.f32 %v4448, %v4591
  %v4593 = vpop.f32.mrf.mxu0
  %v4594 = vadd.f32 %v4450, %v4593
  %4595 = vmatmul.bf16.gmra.mxu0 %v1994
  %v4596 = vpop.f32.mrf.mxu0
  %v4597 = vadd.f32 %v4453, %v4596
  %v4598 = vpop.f32.mrf.mxu0
  %v4599 = vadd.f32 %v4455, %v4598
  %4600 = vmatmul.bf16.gmra.mxu0 %v2008
  %v4601 = vpop.f32.mrf.mxu0
  %v4602 = vadd.f32 %v4458, %v4601
  %v4603 = vpop.f32.mrf.mxu0
  %v4604 = vadd.f32 %v4460, %v4603
  %4605 = vmatmul.bf16.gmra.mxu0 %v2022
  %v4606 = vpop.f32.mrf.mxu0
  %v4607 = vadd.f32 %v4463, %v4606
  %v4608 = vpop.f32.mrf.mxu0
  %v4609 = vadd.f32 %v4465, %v4608
  %4610 = vmatmul.bf16.gmra.mxu0 %v2036
  %v4611 = vpop.f32.mrf.mxu0
  %v4612 = vadd.f32 %v4468, %v4611
  %v4613 = vpop.f32.mrf.mxu0
  %v4614 = vadd.f32 %v4470, %v4613
  %4615 = vmatmul.bf16.gmra.mxu0 %v2050
  %v4616 = vpop.f32.mrf.mxu0
  %v4617 = vadd.f32 %v4473, %v4616
  %v4618 = vpop.f32.mrf.mxu0
  %v4619 = vadd.f32 %v4475, %v4618
  %4620 = vmatmul.bf16.gmra.mxu0 %v2064
  %v4621 = vpop.f32.mrf.mxu0
  %v4622 = vadd.f32 %v4478, %v4621
  %v4623 = vpop.f32.mrf.mxu0
  %v4624 = vadd.f32 %v4480, %v4623
  %4625 = vmatmul.bf16.gmra.mxu0 %v2078
  %v4626 = vpop.f32.mrf.mxu0
  %v4627 = vadd.f32 %v4483, %v4626
  %v4628 = vpop.f32.mrf.mxu0
  %v4629 = vadd.f32 %v4485, %v4628
  %4630 = vmatmul.bf16.gmra.mxu0 %v2092
  %v4631 = vpop.f32.mrf.mxu0
  %v4632 = vadd.f32 %v4488, %v4631
  %v4633 = vpop.f32.mrf.mxu0
  %v4634 = vadd.f32 %v4490, %v4633
  %4635 = vmatmul.bf16.gmra.mxu0 %v2106
  %v4636 = vpop.f32.mrf.mxu0
  %v4637 = vadd.f32 %v4493, %v4636
  %v4638 = vpop.f32.mrf.mxu0
  %v4639 = vadd.f32 %v4495, %v4638
  %4640 = vmatmul.bf16.gmra.mxu0 %v2120
  %v4641 = vpop.f32.mrf.mxu0
  %v4642 = vadd.f32 %v4498, %v4641
  %v4643 = vpop.f32.mrf.mxu0
  %v4644 = vadd.f32 %v4500, %v4643
  %4645 = vdwg.mxu0
  %4646 = vmatpush.bf16.msra.mxu0 %v2995
  %4647 = vmatpush.bf16.msra.mxu0 %v2994
  %4648 = vmatpush.bf16.msra.mxu0 %v2993
  %4649 = vmatpush.bf16.msra.mxu0 %v2992
  %4650 = vmatpush.bf16.msra.mxu0 %v2991
  %4651 = vmatpush.bf16.msra.mxu0 %v2990
  %4652 = vmatpush.bf16.msra.mxu0 %v2989
  %4653 = vmatpush.bf16.msra.mxu0 %v2988
  %4654 = vmatmul.bf16.gmra.mxu0 %v1757
  %v4655 = vpop.f32.mrf.mxu0
  %v4656 = vadd.f32 %v4512, %v4655
  %v4657 = vpop.f32.mrf.mxu0
  %v4658 = vadd.f32 %v4514, %v4657
  %4659 = vmatmul.bf16.gmra.mxu0 %v1771
  %v4660 = vpop.f32.mrf.mxu0
  %v4661 = vadd.f32 %v4517, %v4660
  %v4662 = vpop.f32.mrf.mxu0
  %v4663 = vadd.f32 %v4519, %v4662
  %4664 = vmatmul.bf16.gmra.mxu0 %v1785
  %v4665 = vpop.f32.mrf.mxu0
  %v4666 = vadd.f32 %v4522, %v4665
  %v4667 = vpop.f32.mrf.mxu0
  %v4668 = vadd.f32 %v4524, %v4667
  %4669 = vmatmul.bf16.gmra.mxu0 %v1799
  %v4670 = vpop.f32.mrf.mxu0
  %v4671 = vadd.f32 %v4527, %v4670
  %v4672 = vpop.f32.mrf.mxu0
  %v4673 = vadd.f32 %v4529, %v4672
  %4674 = vmatmul.bf16.gmra.mxu0 %v1813
  %v4675 = vpop.f32.mrf.mxu0
  %v4676 = vadd.f32 %v4532, %v4675
  %v4677 = vpop.f32.mrf.mxu0
  %v4678 = vadd.f32 %v4534, %v4677
  %4679 = vmatmul.bf16.gmra.mxu0 %v1827
  %v4680 = vpop.f32.mrf.mxu0
  %v4681 = vadd.f32 %v4537, %v4680
  %v4682 = vpop.f32.mrf.mxu0
  %v4683 = vadd.f32 %v4539, %v4682
  %4684 = vmatmul.bf16.gmra.mxu0 %v1841
  %v4685 = vpop.f32.mrf.mxu0
  %v4686 = vadd.f32 %v4542, %v4685
  %v4687 = vpop.f32.mrf.mxu0
  %v4688 = vadd.f32 %v4544, %v4687
  %4689 = vmatmul.bf16.gmra.mxu0 %v1855
  %v4690 = vpop.f32.mrf.mxu0
  %v4691 = vadd.f32 %v4547, %v4690
  %v4692 = vpop.f32.mrf.mxu0
  %v4693 = vadd.f32 %v4549, %v4692
  %4694 = vmatmul.bf16.gmra.mxu0 %v1869
  %v4695 = vpop.f32.mrf.mxu0
  %v4696 = vadd.f32 %v4552, %v4695
  %v4697 = vpop.f32.mrf.mxu0
  %v4698 = vadd.f32 %v4554, %v4697
  %4699 = vmatmul.bf16.gmra.mxu0 %v1883
  %v4700 = vpop.f32.mrf.mxu0
  %v4701 = vadd.f32 %v4557, %v4700
  %v4702 = vpop.f32.mrf.mxu0
  %v4703 = vadd.f32 %v4559, %v4702
  %4704 = vmatmul.bf16.gmra.mxu0 %v1897
  %v4705 = vpop.f32.mrf.mxu0
  %v4706 = vadd.f32 %v4562, %v4705
  %v4707 = vpop.f32.mrf.mxu0
  %v4708 = vadd.f32 %v4564, %v4707
  %4709 = vmatmul.bf16.gmra.mxu0 %v1911
  %v4710 = vpop.f32.mrf.mxu0
  %v4711 = vadd.f32 %v4567, %v4710
  %v4712 = vpop.f32.mrf.mxu0
  %v4713 = vadd.f32 %v4569, %v4712
  %4714 = vmatmul.bf16.gmra.mxu0 %v1925
  %v4715 = vpop.f32.mrf.mxu0
  %v4716 = vadd.f32 %v4572, %v4715
  %v4717 = vpop.f32.mrf.mxu0
  %v4718 = vadd.f32 %v4574, %v4717
  %4719 = vmatmul.bf16.gmra.mxu0 %v1939
  %v4720 = vpop.f32.mrf.mxu0
  %v4721 = vadd.f32 %v4577, %v4720
  %v4722 = vpop.f32.mrf.mxu0
  %v4723 = vadd.f32 %v4579, %v4722
  %4724 = vmatmul.bf16.gmra.mxu0 %v1953
  %v4725 = vpop.f32.mrf.mxu0
  %v4726 = vadd.f32 %v4582, %v4725
  %v4727 = vpop.f32.mrf.mxu0
  %v4728 = vadd.f32 %v4584, %v4727
  %4729 = vmatmul.bf16.gmra.mxu0 %v1967
  %v4730 = vpop.f32.mrf.mxu0
  %v4731 = vadd.f32 %v4587, %v4730
  %v4732 = vpop.f32.mrf.mxu0
  %v4733 = vadd.f32 %v4589, %v4732
  %4734 = vmatmul.bf16.gmra.mxu0 %v1981
  %v4735 = vpop.f32.mrf.mxu0
  %v4736 = vadd.f32 %v4592, %v4735
  %v4737 = vpop.f32.mrf.mxu0
  %v4738 = vadd.f32 %v4594, %v4737
  %4739 = vmatmul.bf16.gmra.mxu0 %v1995
  %v4740 = vpop.f32.mrf.mxu0
  %v4741 = vadd.f32 %v4597, %v4740
  %v4742 = vpop.f32.mrf.mxu0
  %v4743 = vadd.f32 %v4599, %v4742
  %4744 = vmatmul.bf16.gmra.mxu0 %v2009
  %v4745 = vpop.f32.mrf.mxu0
  %v4746 = vadd.f32 %v4602, %v4745
  %v4747 = vpop.f32.mrf.mxu0
  %v4748 = vadd.f32 %v4604, %v4747
  %4749 = vmatmul.bf16.gmra.mxu0 %v2023
  %v4750 = vpop.f32.mrf.mxu0
  %v4751 = vadd.f32 %v4607, %v4750
  %v4752 = vpop.f32.mrf.mxu0
  %v4753 = vadd.f32 %v4609, %v4752
  %4754 = vmatmul.bf16.gmra.mxu0 %v2037
  %v4755 = vpop.f32.mrf.mxu0
  %v4756 = vadd.f32 %v4612, %v4755
  %v4757 = vpop.f32.mrf.mxu0
  %v4758 = vadd.f32 %v4614, %v4757
  %4759 = vmatmul.bf16.gmra.mxu0 %v2051
  %v4760 = vpop.f32.mrf.mxu0
  %v4761 = vadd.f32 %v4617, %v4760
  %v4762 = vpop.f32.mrf.mxu0
  %v4763 = vadd.f32 %v4619, %v4762
  %4764 = vmatmul.bf16.gmra.mxu0 %v2065
  %v4765 = vpop.f32.mrf.mxu0
  %v4766 = vadd.f32 %v4622, %v4765
  %v4767 = vpop.f32.mrf.mxu0
  %v4768 = vadd.f32 %v4624, %v4767
  %4769 = vmatmul.bf16.gmra.mxu0 %v2079
  %v4770 = vpop.f32.mrf.mxu0
  %v4771 = vadd.f32 %v4627, %v4770
  %v4772 = vpop.f32.mrf.mxu0
  %v4773 = vadd.f32 %v4629, %v4772
  %4774 = vmatmul.bf16.gmra.mxu0 %v2093
  %v4775 = vpop.f32.mrf.mxu0
  %v4776 = vadd.f32 %v4632, %v4775
  %v4777 = vpop.f32.mrf.mxu0
  %v4778 = vadd.f32 %v4634, %v4777
  %4779 = vmatmul.bf16.gmra.mxu0 %v2107
  %v4780 = vpop.f32.mrf.mxu0
  %v4781 = vadd.f32 %v4637, %v4780
  %v4782 = vpop.f32.mrf.mxu0
  %v4783 = vadd.f32 %v4639, %v4782
  %4784 = vmatmul.bf16.gmra.mxu0 %v2121
  %v4785 = vpop.f32.mrf.mxu0
  %v4786 = vadd.f32 %v4642, %v4785
  %v4787 = vpop.f32.mrf.mxu0
  %v4788 = vadd.f32 %v4644, %v4787
  %4789 = vdwg.mxu0
  %4790 = vmatpush.bf16.msra.mxu0 %v3003
  %4791 = vmatpush.bf16.msra.mxu0 %v3002
  %4792 = vmatpush.bf16.msra.mxu0 %v3001
  %4793 = vmatpush.bf16.msra.mxu0 %v3000
  %4794 = vmatpush.bf16.msra.mxu0 %v2999
  %4795 = vmatpush.bf16.msra.mxu0 %v2998
  %4796 = vmatpush.bf16.msra.mxu0 %v2997
  %4797 = vmatpush.bf16.msra.mxu0 %v2996
  %4798 = vmatmul.bf16.gmra.mxu0 %v1758
  %v4799 = vpop.f32.mrf.mxu0
  %v4800 = vadd.f32 %v4656, %v4799
  %v4801 = vpop.f32.mrf.mxu0
  %v4802 = vadd.f32 %v4658, %v4801
  %4803 = vmatmul.bf16.gmra.mxu0 %v1772
  %v4804 = vpop.f32.mrf.mxu0
  %v4805 = vadd.f32 %v4661, %v4804
  %v4806 = vpop.f32.mrf.mxu0
  %v4807 = vadd.f32 %v4663, %v4806
  %4808 = vmatmul.bf16.gmra.mxu0 %v1786
  %v4809 = vpop.f32.mrf.mxu0
  %v4810 = vadd.f32 %v4666, %v4809
  %v4811 = vpop.f32.mrf.mxu0
  %v4812 = vadd.f32 %v4668, %v4811
  %4813 = vmatmul.bf16.gmra.mxu0 %v1800
  %v4814 = vpop.f32.mrf.mxu0
  %v4815 = vadd.f32 %v4671, %v4814
  %v4816 = vpop.f32.mrf.mxu0
  %v4817 = vadd.f32 %v4673, %v4816
  %4818 = vmatmul.bf16.gmra.mxu0 %v1814
  %v4819 = vpop.f32.mrf.mxu0
  %v4820 = vadd.f32 %v4676, %v4819
  %v4821 = vpop.f32.mrf.mxu0
  %v4822 = vadd.f32 %v4678, %v4821
  %4823 = vmatmul.bf16.gmra.mxu0 %v1828
  %v4824 = vpop.f32.mrf.mxu0
  %v4825 = vadd.f32 %v4681, %v4824
  %v4826 = vpop.f32.mrf.mxu0
  %v4827 = vadd.f32 %v4683, %v4826
  %4828 = vmatmul.bf16.gmra.mxu0 %v1842
  %v4829 = vpop.f32.mrf.mxu0
  %v4830 = vadd.f32 %v4686, %v4829
  %v4831 = vpop.f32.mrf.mxu0
  %v4832 = vadd.f32 %v4688, %v4831
  %4833 = vmatmul.bf16.gmra.mxu0 %v1856
  %v4834 = vpop.f32.mrf.mxu0
  %v4835 = vadd.f32 %v4691, %v4834
  %v4836 = vpop.f32.mrf.mxu0
  %v4837 = vadd.f32 %v4693, %v4836
  %4838 = vmatmul.bf16.gmra.mxu0 %v1870
  %v4839 = vpop.f32.mrf.mxu0
  %v4840 = vadd.f32 %v4696, %v4839
  %v4841 = vpop.f32.mrf.mxu0
  %v4842 = vadd.f32 %v4698, %v4841
  %4843 = vmatmul.bf16.gmra.mxu0 %v1884
  %v4844 = vpop.f32.mrf.mxu0
  %v4845 = vadd.f32 %v4701, %v4844
  %v4846 = vpop.f32.mrf.mxu0
  %v4847 = vadd.f32 %v4703, %v4846
  %4848 = vmatmul.bf16.gmra.mxu0 %v1898
  %v4849 = vpop.f32.mrf.mxu0
  %v4850 = vadd.f32 %v4706, %v4849
  %v4851 = vpop.f32.mrf.mxu0
  %v4852 = vadd.f32 %v4708, %v4851
  %4853 = vmatmul.bf16.gmra.mxu0 %v1912
  %v4854 = vpop.f32.mrf.mxu0
  %v4855 = vadd.f32 %v4711, %v4854
  %v4856 = vpop.f32.mrf.mxu0
  %v4857 = vadd.f32 %v4713, %v4856
  %4858 = vmatmul.bf16.gmra.mxu0 %v1926
  %v4859 = vpop.f32.mrf.mxu0
  %v4860 = vadd.f32 %v4716, %v4859
  %v4861 = vpop.f32.mrf.mxu0
  %v4862 = vadd.f32 %v4718, %v4861
  %4863 = vmatmul.bf16.gmra.mxu0 %v1940
  %v4864 = vpop.f32.mrf.mxu0
  %v4865 = vadd.f32 %v4721, %v4864
  %v4866 = vpop.f32.mrf.mxu0
  %v4867 = vadd.f32 %v4723, %v4866
  %4868 = vmatmul.bf16.gmra.mxu0 %v1954
  %v4869 = vpop.f32.mrf.mxu0
  %v4870 = vadd.f32 %v4726, %v4869
  %v4871 = vpop.f32.mrf.mxu0
  %v4872 = vadd.f32 %v4728, %v4871
  %4873 = vmatmul.bf16.gmra.mxu0 %v1968
  %v4874 = vpop.f32.mrf.mxu0
  %v4875 = vadd.f32 %v4731, %v4874
  %v4876 = vpop.f32.mrf.mxu0
  %v4877 = vadd.f32 %v4733, %v4876
  %4878 = vmatmul.bf16.gmra.mxu0 %v1982
  %v4879 = vpop.f32.mrf.mxu0
  %v4880 = vadd.f32 %v4736, %v4879
  %v4881 = vpop.f32.mrf.mxu0
  %v4882 = vadd.f32 %v4738, %v4881
  %4883 = vmatmul.bf16.gmra.mxu0 %v1996
  %v4884 = vpop.f32.mrf.mxu0
  %v4885 = vadd.f32 %v4741, %v4884
  %v4886 = vpop.f32.mrf.mxu0
  %v4887 = vadd.f32 %v4743, %v4886
  %4888 = vmatmul.bf16.gmra.mxu0 %v2010
  %v4889 = vpop.f32.mrf.mxu0
  %v4890 = vadd.f32 %v4746, %v4889
  %v4891 = vpop.f32.mrf.mxu0
  %v4892 = vadd.f32 %v4748, %v4891
  %4893 = vmatmul.bf16.gmra.mxu0 %v2024
  %v4894 = vpop.f32.mrf.mxu0
  %v4895 = vadd.f32 %v4751, %v4894
  %v4896 = vpop.f32.mrf.mxu0
  %v4897 = vadd.f32 %v4753, %v4896
  %4898 = vmatmul.bf16.gmra.mxu0 %v2038
  %v4899 = vpop.f32.mrf.mxu0
  %v4900 = vadd.f32 %v4756, %v4899
  %v4901 = vpop.f32.mrf.mxu0
  %v4902 = vadd.f32 %v4758, %v4901
  %4903 = vmatmul.bf16.gmra.mxu0 %v2052
  %v4904 = vpop.f32.mrf.mxu0
  %v4905 = vadd.f32 %v4761, %v4904
  %v4906 = vpop.f32.mrf.mxu0
  %v4907 = vadd.f32 %v4763, %v4906
  %4908 = vmatmul.bf16.gmra.mxu0 %v2066
  %v4909 = vpop.f32.mrf.mxu0
  %v4910 = vadd.f32 %v4766, %v4909
  %v4911 = vpop.f32.mrf.mxu0
  %v4912 = vadd.f32 %v4768, %v4911
  %4913 = vmatmul.bf16.gmra.mxu0 %v2080
  %v4914 = vpop.f32.mrf.mxu0
  %v4915 = vadd.f32 %v4771, %v4914
  %v4916 = vpop.f32.mrf.mxu0
  %v4917 = vadd.f32 %v4773, %v4916
  %4918 = vmatmul.bf16.gmra.mxu0 %v2094
  %v4919 = vpop.f32.mrf.mxu0
  %v4920 = vadd.f32 %v4776, %v4919
  %v4921 = vpop.f32.mrf.mxu0
  %v4922 = vadd.f32 %v4778, %v4921
  %4923 = vmatmul.bf16.gmra.mxu0 %v2108
  %v4924 = vpop.f32.mrf.mxu0
  %v4925 = vadd.f32 %v4781, %v4924
  %v4926 = vpop.f32.mrf.mxu0
  %v4927 = vadd.f32 %v4783, %v4926
  %4928 = vmatmul.bf16.gmra.mxu0 %v2122
  %v4929 = vpop.f32.mrf.mxu0
  %v4930 = vadd.f32 %v4786, %v4929
  %v4931 = vpop.f32.mrf.mxu0
  %v4932 = vadd.f32 %v4788, %v4931
  %4933 = vdwg.mxu0
  %4934 = vmatpush.bf16.msra.mxu0 %v3011
  %4935 = vmatpush.bf16.msra.mxu0 %v3010
  %4936 = vmatpush.bf16.msra.mxu0 %v3009
  %4937 = vmatpush.bf16.msra.mxu0 %v3008
  %4938 = vmatpush.bf16.msra.mxu0 %v3007
  %4939 = vmatpush.bf16.msra.mxu0 %v3006
  %4940 = vmatpush.bf16.msra.mxu0 %v3005
  %4941 = vmatpush.bf16.msra.mxu0 %v3004
  %4942 = vmatmul.bf16.gmra.mxu0 %v1759
  %v4943 = vpop.f32.mrf.mxu0
  %v4944 = vadd.f32 %v4800, %v4943
  %v4945 = vpop.f32.mrf.mxu0
  %v4946 = vadd.f32 %v4802, %v4945
  %4947 = vmatmul.bf16.gmra.mxu0 %v1773
  %v4948 = vpop.f32.mrf.mxu0
  %v4949 = vadd.f32 %v4805, %v4948
  %v4950 = vpop.f32.mrf.mxu0
  %v4951 = vadd.f32 %v4807, %v4950
  %4952 = vmatmul.bf16.gmra.mxu0 %v1787
  %v4953 = vpop.f32.mrf.mxu0
  %v4954 = vadd.f32 %v4810, %v4953
  %v4955 = vpop.f32.mrf.mxu0
  %v4956 = vadd.f32 %v4812, %v4955
  %4957 = vmatmul.bf16.gmra.mxu0 %v1801
  %v4958 = vpop.f32.mrf.mxu0
  %v4959 = vadd.f32 %v4815, %v4958
  %v4960 = vpop.f32.mrf.mxu0
  %v4961 = vadd.f32 %v4817, %v4960
  %4962 = vmatmul.bf16.gmra.mxu0 %v1815
  %v4963 = vpop.f32.mrf.mxu0
  %v4964 = vadd.f32 %v4820, %v4963
  %v4965 = vpop.f32.mrf.mxu0
  %v4966 = vadd.f32 %v4822, %v4965
  %4967 = vmatmul.bf16.gmra.mxu0 %v1829
  %v4968 = vpop.f32.mrf.mxu0
  %v4969 = vadd.f32 %v4825, %v4968
  %v4970 = vpop.f32.mrf.mxu0
  %v4971 = vadd.f32 %v4827, %v4970
  %4972 = vmatmul.bf16.gmra.mxu0 %v1843
  %v4973 = vpop.f32.mrf.mxu0
  %v4974 = vadd.f32 %v4830, %v4973
  %v4975 = vpop.f32.mrf.mxu0
  %v4976 = vadd.f32 %v4832, %v4975
  %4977 = vmatmul.bf16.gmra.mxu0 %v1857
  %v4978 = vpop.f32.mrf.mxu0
  %v4979 = vadd.f32 %v4835, %v4978
  %v4980 = vpop.f32.mrf.mxu0
  %v4981 = vadd.f32 %v4837, %v4980
  %4982 = vmatmul.bf16.gmra.mxu0 %v1871
  %v4983 = vpop.f32.mrf.mxu0
  %v4984 = vadd.f32 %v4840, %v4983
  %v4985 = vpop.f32.mrf.mxu0
  %v4986 = vadd.f32 %v4842, %v4985
  %4987 = vmatmul.bf16.gmra.mxu0 %v1885
  %v4988 = vpop.f32.mrf.mxu0
  %v4989 = vadd.f32 %v4845, %v4988
  %v4990 = vpop.f32.mrf.mxu0
  %v4991 = vadd.f32 %v4847, %v4990
  %4992 = vmatmul.bf16.gmra.mxu0 %v1899
  %v4993 = vpop.f32.mrf.mxu0
  %v4994 = vadd.f32 %v4850, %v4993
  %v4995 = vpop.f32.mrf.mxu0
  %v4996 = vadd.f32 %v4852, %v4995
  %4997 = vmatmul.bf16.gmra.mxu0 %v1913
  %v4998 = vpop.f32.mrf.mxu0
  %v4999 = vadd.f32 %v4855, %v4998
  %v5000 = vpop.f32.mrf.mxu0
  %v5001 = vadd.f32 %v4857, %v5000
  %5002 = vmatmul.bf16.gmra.mxu0 %v1927
  %v5003 = vpop.f32.mrf.mxu0
  %v5004 = vadd.f32 %v4860, %v5003
  %v5005 = vpop.f32.mrf.mxu0
  %v5006 = vadd.f32 %v4862, %v5005
  %5007 = vmatmul.bf16.gmra.mxu0 %v1941
  %v5008 = vpop.f32.mrf.mxu0
  %v5009 = vadd.f32 %v4865, %v5008
  %v5010 = vpop.f32.mrf.mxu0
  %v5011 = vadd.f32 %v4867, %v5010
  %5012 = vmatmul.bf16.gmra.mxu0 %v1955
  %v5013 = vpop.f32.mrf.mxu0
  %v5014 = vadd.f32 %v4870, %v5013
  %v5015 = vpop.f32.mrf.mxu0
  %v5016 = vadd.f32 %v4872, %v5015
  %5017 = vmatmul.bf16.gmra.mxu0 %v1969
  %v5018 = vpop.f32.mrf.mxu0
  %v5019 = vadd.f32 %v4875, %v5018
  %v5020 = vpop.f32.mrf.mxu0
  %v5021 = vadd.f32 %v4877, %v5020
  %5022 = vmatmul.bf16.gmra.mxu0 %v1983
  %v5023 = vpop.f32.mrf.mxu0
  %v5024 = vadd.f32 %v4880, %v5023
  %v5025 = vpop.f32.mrf.mxu0
  %v5026 = vadd.f32 %v4882, %v5025
  %5027 = vmatmul.bf16.gmra.mxu0 %v1997
  %v5028 = vpop.f32.mrf.mxu0
  %v5029 = vadd.f32 %v4885, %v5028
  %v5030 = vpop.f32.mrf.mxu0
  %v5031 = vadd.f32 %v4887, %v5030
  %5032 = vmatmul.bf16.gmra.mxu0 %v2011
  %v5033 = vpop.f32.mrf.mxu0
  %v5034 = vadd.f32 %v4890, %v5033
  %v5035 = vpop.f32.mrf.mxu0
  %v5036 = vadd.f32 %v4892, %v5035
  %5037 = vmatmul.bf16.gmra.mxu0 %v2025
  %v5038 = vpop.f32.mrf.mxu0
  %v5039 = vadd.f32 %v4895, %v5038
  %v5040 = vpop.f32.mrf.mxu0
  %v5041 = vadd.f32 %v4897, %v5040
  %5042 = vmatmul.bf16.gmra.mxu0 %v2039
  %v5043 = vpop.f32.mrf.mxu0
  %v5044 = vadd.f32 %v4900, %v5043
  %v5045 = vpop.f32.mrf.mxu0
  %v5046 = vadd.f32 %v4902, %v5045
  %5047 = vmatmul.bf16.gmra.mxu0 %v2053
  %v5048 = vpop.f32.mrf.mxu0
  %v5049 = vadd.f32 %v4905, %v5048
  %v5050 = vpop.f32.mrf.mxu0
  %v5051 = vadd.f32 %v4907, %v5050
  %5052 = vmatmul.bf16.gmra.mxu0 %v2067
  %v5053 = vpop.f32.mrf.mxu0
  %v5054 = vadd.f32 %v4910, %v5053
  %v5055 = vpop.f32.mrf.mxu0
  %v5056 = vadd.f32 %v4912, %v5055
  %5057 = vmatmul.bf16.gmra.mxu0 %v2081
  %v5058 = vpop.f32.mrf.mxu0
  %v5059 = vadd.f32 %v4915, %v5058
  %v5060 = vpop.f32.mrf.mxu0
  %v5061 = vadd.f32 %v4917, %v5060
  %5062 = vmatmul.bf16.gmra.mxu0 %v2095
  %v5063 = vpop.f32.mrf.mxu0
  %v5064 = vadd.f32 %v4920, %v5063
  %v5065 = vpop.f32.mrf.mxu0
  %v5066 = vadd.f32 %v4922, %v5065
  %5067 = vmatmul.bf16.gmra.mxu0 %v2109
  %v5068 = vpop.f32.mrf.mxu0
  %v5069 = vadd.f32 %v4925, %v5068
  %v5070 = vpop.f32.mrf.mxu0
  %v5071 = vadd.f32 %v4927, %v5070
  %5072 = vmatmul.bf16.gmra.mxu0 %v2123
  %v5073 = vpop.f32.mrf.mxu0
  %v5074 = vadd.f32 %v4930, %v5073
  %v5075 = vpop.f32.mrf.mxu0
  %v5076 = vadd.f32 %v4932, %v5075
  %5077 = vdwg.mxu0
  %5078 = vmatpush.bf16.msra.mxu0 0
  %5079 = vmatpush.bf16.msra.mxu0 0
  %5080 = vmatpush.bf16.msra.mxu0 0
  %5081 = vmatpush.bf16.msra.mxu0 0
  %5082 = vmatpush.bf16.msra.mxu0 %v3015
  %5083 = vmatpush.bf16.msra.mxu0 %v3014
  %5084 = vmatpush.bf16.msra.mxu0 %v3013
  %5085 = vmatpush.bf16.msra.mxu0 %v3012
  %5086 = vmatmul.bf16.gmra.mxu0 %v3126
  %v5087 = vpop.f32.mrf.mxu0
  %v5088 = vadd.f32 %v4944, %v5087
  %v5089 = vpop.f32.mrf.mxu0
  %v5090 = vadd.f32 %v4946, %v5089
  %5091 = vmatmul.bf16.gmra.mxu0 %v3129
  %v5092 = vpop.f32.mrf.mxu0
  %v5093 = vadd.f32 %v4949, %v5092
  %v5094 = vpop.f32.mrf.mxu0
  %v5095 = vadd.f32 %v4951, %v5094
  %5096 = vmatmul.bf16.gmra.mxu0 %v3132
  %v5097 = vpop.f32.mrf.mxu0
  %v5098 = vadd.f32 %v4954, %v5097
  %v5099 = vpop.f32.mrf.mxu0
  %v5100 = vadd.f32 %v4956, %v5099
  %5101 = vmatmul.bf16.gmra.mxu0 %v3135
  %v5102 = vpop.f32.mrf.mxu0
  %v5103 = vadd.f32 %v4959, %v5102
  %v5104 = vpop.f32.mrf.mxu0
  %v5105 = vadd.f32 %v4961, %v5104
  %5106 = vmatmul.bf16.gmra.mxu0 %v3138
  %v5107 = vpop.f32.mrf.mxu0
  %v5108 = vadd.f32 %v4964, %v5107
  %v5109 = vpop.f32.mrf.mxu0
  %v5110 = vadd.f32 %v4966, %v5109
  %5111 = vmatmul.bf16.gmra.mxu0 %v3141
  %v5112 = vpop.f32.mrf.mxu0
  %v5113 = vadd.f32 %v4969, %v5112
  %v5114 = vpop.f32.mrf.mxu0
  %v5115 = vadd.f32 %v4971, %v5114
  %5116 = vmatmul.bf16.gmra.mxu0 %v3144
  %v5117 = vpop.f32.mrf.mxu0
  %v5118 = vadd.f32 %v4974, %v5117
  %v5119 = vpop.f32.mrf.mxu0
  %v5120 = vadd.f32 %v4976, %v5119
  %5121 = vmatmul.bf16.gmra.mxu0 %v3147
  %v5122 = vpop.f32.mrf.mxu0
  %v5123 = vadd.f32 %v4979, %v5122
  %v5124 = vpop.f32.mrf.mxu0
  %v5125 = vadd.f32 %v4981, %v5124
  %5126 = vmatmul.bf16.gmra.mxu0 %v3150
  %v5127 = vpop.f32.mrf.mxu0
  %v5128 = vadd.f32 %v4984, %v5127
  %v5129 = vpop.f32.mrf.mxu0
  %v5130 = vadd.f32 %v4986, %v5129
  %5131 = vmatmul.bf16.gmra.mxu0 %v3153
  %v5132 = vpop.f32.mrf.mxu0
  %v5133 = vadd.f32 %v4989, %v5132
  %v5134 = vpop.f32.mrf.mxu0
  %v5135 = vadd.f32 %v4991, %v5134
  %5136 = vmatmul.bf16.gmra.mxu0 %v3156
  %v5137 = vpop.f32.mrf.mxu0
  %v5138 = vadd.f32 %v4994, %v5137
  %v5139 = vpop.f32.mrf.mxu0
  %v5140 = vadd.f32 %v4996, %v5139
  %5141 = vmatmul.bf16.gmra.mxu0 %v3159
  %v5142 = vpop.f32.mrf.mxu0
  %v5143 = vadd.f32 %v4999, %v5142
  %v5144 = vpop.f32.mrf.mxu0
  %v5145 = vadd.f32 %v5001, %v5144
  %5146 = vmatmul.bf16.gmra.mxu0 %v3162
  %v5147 = vpop.f32.mrf.mxu0
  %v5148 = vadd.f32 %v5004, %v5147
  %v5149 = vpop.f32.mrf.mxu0
  %v5150 = vadd.f32 %v5006, %v5149
  %5151 = vmatmul.bf16.gmra.mxu0 %v3165
  %v5152 = vpop.f32.mrf.mxu0
  %v5153 = vadd.f32 %v5009, %v5152
  %v5154 = vpop.f32.mrf.mxu0
  %v5155 = vadd.f32 %v5011, %v5154
  %5156 = vmatmul.bf16.gmra.mxu0 %v3168
  %v5157 = vpop.f32.mrf.mxu0
  %v5158 = vadd.f32 %v5014, %v5157
  %v5159 = vpop.f32.mrf.mxu0
  %v5160 = vadd.f32 %v5016, %v5159
  %5161 = vmatmul.bf16.gmra.mxu0 %v3171
  %v5162 = vpop.f32.mrf.mxu0
  %v5163 = vadd.f32 %v5019, %v5162
  %v5164 = vpop.f32.mrf.mxu0
  %v5165 = vadd.f32 %v5021, %v5164
  %5166 = vmatmul.bf16.gmra.mxu0 %v3174
  %v5167 = vpop.f32.mrf.mxu0
  %v5168 = vadd.f32 %v5024, %v5167
  %v5169 = vpop.f32.mrf.mxu0
  %v5170 = vadd.f32 %v5026, %v5169
  %5171 = vmatmul.bf16.gmra.mxu0 %v3177
  %v5172 = vpop.f32.mrf.mxu0
  %v5173 = vadd.f32 %v5029, %v5172
  %v5174 = vpop.f32.mrf.mxu0
  %v5175 = vadd.f32 %v5031, %v5174
  %5176 = vmatmul.bf16.gmra.mxu0 %v3180
  %v5177 = vpop.f32.mrf.mxu0
  %v5178 = vadd.f32 %v5034, %v5177
  %v5179 = vpop.f32.mrf.mxu0
  %v5180 = vadd.f32 %v5036, %v5179
  %5181 = vmatmul.bf16.gmra.mxu0 %v3183
  %v5182 = vpop.f32.mrf.mxu0
  %v5183 = vadd.f32 %v5039, %v5182
  %v5184 = vpop.f32.mrf.mxu0
  %v5185 = vadd.f32 %v5041, %v5184
  %5186 = vmatmul.bf16.gmra.mxu0 %v3186
  %v5187 = vpop.f32.mrf.mxu0
  %v5188 = vadd.f32 %v5044, %v5187
  %v5189 = vpop.f32.mrf.mxu0
  %v5190 = vadd.f32 %v5046, %v5189
  %5191 = vmatmul.bf16.gmra.mxu0 %v3189
  %v5192 = vpop.f32.mrf.mxu0
  %v5193 = vadd.f32 %v5049, %v5192
  %v5194 = vpop.f32.mrf.mxu0
  %v5195 = vadd.f32 %v5051, %v5194
  %5196 = vmatmul.bf16.gmra.mxu0 %v3192
  %v5197 = vpop.f32.mrf.mxu0
  %v5198 = vadd.f32 %v5054, %v5197
  %v5199 = vpop.f32.mrf.mxu0
  %v5200 = vadd.f32 %v5056, %v5199
  %5201 = vmatmul.bf16.gmra.mxu0 %v3195
  %v5202 = vpop.f32.mrf.mxu0
  %v5203 = vadd.f32 %v5059, %v5202
  %v5204 = vpop.f32.mrf.mxu0
  %v5205 = vadd.f32 %v5061, %v5204
  %5206 = vmatmul.bf16.gmra.mxu0 %v3198
  %v5207 = vpop.f32.mrf.mxu0
  %v5208 = vadd.f32 %v5064, %v5207
  %v5209 = vpop.f32.mrf.mxu0
  %v5210 = vadd.f32 %v5066, %v5209
  %5211 = vmatmul.bf16.gmra.mxu0 %v3201
  %v5212 = vpop.f32.mrf.mxu0
  %v5213 = vadd.f32 %v5069, %v5212
  %v5214 = vpop.f32.mrf.mxu0
  %v5215 = vadd.f32 %v5071, %v5214
  %5216 = vmatmul.bf16.gmra.mxu0 %v3204
  %v5217 = vpop.f32.mrf.mxu0
  %v5218 = vadd.f32 %v5074, %v5217
  %v5219 = vpop.f32.mrf.mxu0
  %v5220 = vadd.f32 %v5076, %v5219
  %5221 = vdwg.mxu0
  %v5222 = vmax.f32 %v5088, 0.0
  %v5223 = vmax.f32 %v5090, 0.0
  %v5224 = vmax.f32 %v5093, 0.0
  %v5225 = vmax.f32 %v5095, 0.0
  %v5226 = vmax.f32 %v5098, 0.0
  %v5227 = vmax.f32 %v5100, 0.0
  %v5228 = vmax.f32 %v5103, 0.0
  %v5229 = vmax.f32 %v5105, 0.0
  %v5230 = vmax.f32 %v5108, 0.0
  %v5231 = vmax.f32 %v5110, 0.0
  %v5232 = vmax.f32 %v5113, 0.0
  %v5233 = vmax.f32 %v5115, 0.0
  %v5234 = vmax.f32 %v5118, 0.0
  %v5235 = vmax.f32 %v5120, 0.0
  %v5236 = vmax.f32 %v5123, 0.0
  %v5237 = vmax.f32 %v5125, 0.0
  %v5238 = vmax.f32 %v5128, 0.0
  %v5239 = vmax.f32 %v5130, 0.0
  %v5240 = vmax.f32 %v5133, 0.0
  %v5241 = vmax.f32 %v5135, 0.0
  %v5242 = vmax.f32 %v5138, 0.0
  %v5243 = vmax.f32 %v5140, 0.0
  %v5244 = vmax.f32 %v5143, 0.0
  %v5245 = vmax.f32 %v5145, 0.0
  %v5246 = vmax.f32 %v5148, 0.0
  %v5247 = vmax.f32 %v5150, 0.0
  %v5248 = vmax.f32 %v5153, 0.0
  %v5249 = vmax.f32 %v5155, 0.0
  %v5250 = vmax.f32 %v5158, 0.0
  %v5251 = vmax.f32 %v5160, 0.0
  %v5252 = vmax.f32 %v5163, 0.0
  %v5253 = vmax.f32 %v5165, 0.0
  %v5254 = vmax.f32 %v5168, 0.0
  %v5255 = vmax.f32 %v5170, 0.0
  %v5256 = vmax.f32 %v5173, 0.0
  %v5257 = vmax.f32 %v5175, 0.0
  %v5258 = vmax.f32 %v5178, 0.0
  %v5259 = vmax.f32 %v5180, 0.0
  %v5260 = vmax.f32 %v5183, 0.0
  %v5261 = vmax.f32 %v5185, 0.0
  %v5262 = vmax.f32 %v5188, 0.0
  %v5263 = vmax.f32 %v5190, 0.0
  %v5264 = vmax.f32 %v5193, 0.0
  %v5265 = vmax.f32 %v5195, 0.0
  %v5266 = vmax.f32 %v5198, 0.0
  %v5267 = vmax.f32 %v5200, 0.0
  %v5268 = vmax.f32 %v5203, 0.0
  %v5269 = vmax.f32 %v5205, 0.0
  %v5270 = vmax.f32 %v5208, 0.0
  %v5271 = vmax.f32 %v5210, 0.0
  %v5272 = vmax.f32 %v5213, 0.0
  %v5273 = vmax.f32 %v5215, 0.0
  %v5274 = vmax.f32 %v5218, 0.0
  %v5275 = vmax.f32 %v5220, 0.0
  %v5276 = vpack.c.bf16 %v5222, %v5222
  %v5277 = vpack.c.bf16 %v5223, %v5223
  %v5278 = vpack.c.bf16 %v5224, %v5224
  %v5279 = vpack.c.bf16 %v5225, %v5225
  %v5280 = vpack.c.bf16 %v5226, %v5226
  %v5281 = vpack.c.bf16 %v5227, %v5227
  %v5282 = vpack.c.bf16 %v5228, %v5228
  %v5283 = vpack.c.bf16 %v5229, %v5229
  %v5284 = vpack.c.bf16 %v5230, %v5230
  %v5285 = vpack.c.bf16 %v5231, %v5231
  %v5286 = vpack.c.bf16 %v5232, %v5232
  %v5287 = vpack.c.bf16 %v5233, %v5233
  %v5288 = vpack.c.bf16 %v5234, %v5234
  %v5289 = vpack.c.bf16 %v5235, %v5235
  %v5290 = vpack.c.bf16 %v5236, %v5236
  %v5291 = vpack.c.bf16 %v5237, %v5237
  %v5292 = vpack.c.bf16 %v5238, %v5238
  %v5293 = vpack.c.bf16 %v5239, %v5239
  %v5294 = vpack.c.bf16 %v5240, %v5240
  %v5295 = vpack.c.bf16 %v5241, %v5241
  %v5296 = vpack.c.bf16 %v5242, %v5242
  %v5297 = vpack.c.bf16 %v5243, %v5243
  %v5298 = vpack.c.bf16 %v5244, %v5244
  %v5299 = vpack.c.bf16 %v5245, %v5245
  %v5300 = vpack.c.bf16 %v5246, %v5246
  %v5301 = vpack.c.bf16 %v5247, %v5247
  %v5302 = vpack.c.bf16 %v5248, %v5248
  %v5303 = vpack.c.bf16 %v5249, %v5249
  %v5304 = vpack.c.bf16 %v5250, %v5250
  %v5305 = vpack.c.bf16 %v5251, %v5251
  %v5306 = vpack.c.bf16 %v5252, %v5252
  %v5307 = vpack.c.bf16 %v5253, %v5253
  %v5308 = vpack.c.bf16 %v5254, %v5254
  %v5309 = vpack.c.bf16 %v5255, %v5255
  %v5310 = vpack.c.bf16 %v5256, %v5256
  %v5311 = vpack.c.bf16 %v5257, %v5257
  %v5312 = vpack.c.bf16 %v5258, %v5258
  %v5313 = vpack.c.bf16 %v5259, %v5259
  %v5314 = vpack.c.bf16 %v5260, %v5260
  %v5315 = vpack.c.bf16 %v5261, %v5261
  %v5316 = vpack.c.bf16 %v5262, %v5262
  %v5317 = vpack.c.bf16 %v5263, %v5263
  %v5318 = vpack.c.bf16 %v5264, %v5264
  %v5319 = vpack.c.bf16 %v5265, %v5265
  %v5320 = vpack.c.bf16 %v5266, %v5266
  %v5321 = vpack.c.bf16 %v5267, %v5267
  %v5322 = vpack.c.bf16 %v5268, %v5268
  %v5323 = vpack.c.bf16 %v5269, %v5269
  %v5324 = vpack.c.bf16 %v5270, %v5270
  %v5325 = vpack.c.bf16 %v5271, %v5271
  %v5326 = vpack.c.bf16 %v5272, %v5272
  %v5327 = vpack.c.bf16 %v5273, %v5273
  %v5328 = vpack.c.bf16 %v5274, %v5274
  %v5329 = vpack.c.bf16 %v5275, %v5275
  %5330 = vst [vmem:[%s3] sm:$0xf] %v5276
  %5331 = vst [vmem:[%s3 + $0x4] sm:$0xf] %v5277
  %5332 = vst [vmem:[%s3 + $0x8] sm:$0xf] %v5278
  %5333 = vst [vmem:[%s3 + $0xc] sm:$0xf] %v5279
  %5334 = vst [vmem:[%s3 + $0x10] sm:$0xf] %v5280
  %5335 = vst [vmem:[%s3 + $0x14] sm:$0xf] %v5281
  %5336 = vst [vmem:[%s3 + $0x18] sm:$0xf] %v5282
  %5337 = vst [vmem:[%s3 + $0x1c] sm:$0xf] %v5283
  %5338 = vst [vmem:[%s3 + $0x20] sm:$0xf] %v5284
  %5339 = vst [vmem:[%s3 + $0x24] sm:$0xf] %v5285
  %5340 = vst [vmem:[%s3 + $0x28] sm:$0xf] %v5286
  %5341 = vst [vmem:[%s3 + $0x2c] sm:$0xf] %v5287
  %5342 = vst [vmem:[%s3 + $0x30] sm:$0xf] %v5288
  %5343 = vst [vmem:[%s3 + $0x34] sm:$0xf] %v5289
  %5344 = vst [vmem:[%s3 + $0x38] sm:$0xf] %v5290
  %5345 = vst [vmem:[%s3 + $0x3c] sm:$0xf] %v5291
  %5346 = vst [vmem:[%s3 + $0x40] sm:$0xf] %v5292
  %5347 = vst [vmem:[%s3 + $0x44] sm:$0xf] %v5293
  %5348 = vst [vmem:[%s3 + $0x48] sm:$0xf] %v5294
  %5349 = vst [vmem:[%s3 + $0x4c] sm:$0xf] %v5295
  %5350 = vst [vmem:[%s3 + $0x50] sm:$0xf] %v5296
  %5351 = vst [vmem:[%s3 + $0x54] sm:$0xf] %v5297
  %5352 = vst [vmem:[%s3 + $0x58] sm:$0xf] %v5298
  %5353 = vst [vmem:[%s3 + $0x5c] sm:$0xf] %v5299
  %5354 = vst [vmem:[%s3 + $0x60] sm:$0xf] %v5300
  %5355 = vst [vmem:[%s3 + $0x64] sm:$0xf] %v5301
  %5356 = vst [vmem:[%s3 + $0x68] sm:$0xf] %v5302
  %5357 = vst [vmem:[%s3 + $0x6c] sm:$0xf] %v5303
  %5358 = vst [vmem:[%s3 + $0x70] sm:$0xf] %v5304
  %5359 = vst [vmem:[%s3 + $0x74] sm:$0xf] %v5305
  %5360 = vst [vmem:[%s3 + $0x78] sm:$0xf] %v5306
  %5361 = vst [vmem:[%s3 + $0x7c] sm:$0xf] %v5307
  %5362 = vst [vmem:[%s3 + $0x80] sm:$0xf] %v5308
  %5363 = vst [vmem:[%s3 + $0x84] sm:$0xf] %v5309
  %5364 = vst [vmem:[%s3 + $0x88] sm:$0xf] %v5310
  %5365 = vst [vmem:[%s3 + $0x8c] sm:$0xf] %v5311
  %5366 = vst [vmem:[%s3 + $0x90] sm:$0xf] %v5312
  %5367 = vst [vmem:[%s3 + $0x94] sm:$0xf] %v5313
  %5368 = vst [vmem:[%s3 + $0x98] sm:$0xf] %v5314
  %5369 = vst [vmem:[%s3 + $0x9c] sm:$0xf] %v5315
  %5370 = vst [vmem:[%s3 + $0xa0] sm:$0xf] %v5316
  %5371 = vst [vmem:[%s3 + $0xa4] sm:$0xf] %v5317
  %5372 = vst [vmem:[%s3 + $0xa8] sm:$0xf] %v5318
  %5373 = vst [vmem:[%s3 + $0xac] sm:$0xf] %v5319
  %5374 = vst [vmem:[%s3 + $0xb0] sm:$0xf] %v5320
  %5375 = vst [vmem:[%s3 + $0xb4] sm:$0xf] %v5321
  %5376 = vst [vmem:[%s3 + $0xb8] sm:$0xf] %v5322
  %5377 = vst [vmem:[%s3 + $0xbc] sm:$0xf] %v5323
  %5378 = vst [vmem:[%s3 + $0xc0] sm:$0xf] %v5324
  %5379 = vst [vmem:[%s3 + $0xc4] sm:$0xf] %v5325
  %5380 = vst [vmem:[%s3 + $0xc8] sm:$0xf] %v5326
  %5381 = vst [vmem:[%s3 + $0xcc] sm:$0xf] %v5327
  %5382 = vst [vmem:[%s3 + $0xd0] sm:$0xf] %v5328
  %5383 = vst [vmem:[%s3 + $0xd4] sm:$0xf] %v5329
  // Predicated region
  $region14: #{shape_encoder_forward.4} parent=0 // pred_check
    _
  $region15: #{shape_encoder_forward.4} parent=0 // pred_check_branch
    %5385 = sbr.rel (0) target = $region17
  $region16: #{shape_encoder_forward.4} parent=0 // pred_region
    _
  $region17: #{shape_encoder_forward.4} parent=0 // pred_fallthru
    _
  // Predicated region
  $region18: #{shape_encoder_forward.4} parent=0 // pred_check
    _
  $region19: #{shape_encoder_forward.4} parent=0 // pred_check_branch
    %5387 = sbr.rel (0) target = $region21
  $region20: #{shape_encoder_forward.4} parent=0 // pred_region
    _
  $region21: #{shape_encoder_forward.4} parent=0 // pred_fallthru
    _

// kernel: shape_encoder_forward.5
$region0: #{shape_encoder_forward.5}
  #allocation0 [shape = 'u32[]', space=smem, size = 0x4, offset = 0x4, fixed_abs, tag = 'smem constant byte address 0x4 - core index']
  #allocation1 [shape = 'u32[72,128]{1,0:T(1,128)}', space=vmem, size = 0x9000, scoped, tag = 'internal scratch']
  %s0 = inlined_call_operand.vmem [shape: bf16[54,3456], index: 0, kind: input, shape index: {}]
  %s1 = inlined_call_operand.vmem [shape: bf16[3456,256], index: 1, kind: input, shape index: {}]
  %s2 = inlined_call_operand.vmem [shape: f32[1,256], index: 2, kind: input, shape index: {}]
  %s3 = inlined_call_operand.vmem [shape: f32[2,54], index: 3, kind: input, shape index: {}]
  %s4 = inlined_call_operand.vmem [shape: bf16[256,128], index: 4, kind: input, shape index: {}]
  %s5 = inlined_call_operand.vmem [shape: f32[1,128], index: 5, kind: input, shape index: {}]
  %s6 = inlined_call_operand.hbm [shape: f32[2,128], index: 6, kind: output, shape index: {}]
  %s7 = sld [smem:[#allocation0]]
  $region34: #{shape_encoder_forward.5} parent=0
    _
  %s9 = ssub.s32 1, %s7
  %s10 = scalar_select 0, %s9, %s7
  $region1: #{shape_encoder_forward.5} parent=0
    #allocation2 [shape = 'u8[1024]{0}', space=vmem, size = 0x400, scoped, tag = 'output window, operand 0, single buffered']
    #allocation3 [shape = 's32[1]{0}', space=sflag, size = 0x4, scoped, tag = 'scoped memory for shape_encoder_forward.5']
    %11 = vsyncpa [#allocation3], 0
    // Predicated region
    $region2: #{shape_encoder_forward.5} parent=1 // pred_check
      _
    $region3: #{shape_encoder_forward.5} parent=1 // pred_check_branch
      %13 = sbr.rel (0) target = $region5
    $region4: #{shape_encoder_forward.5} parent=1 // pred_region
      _
    $region5: #{shape_encoder_forward.5} parent=1 // pred_fallthru
      _
    // Predicated region
    $region6: #{shape_encoder_forward.5} parent=1 // pred_check
      _
    $region7: #{shape_encoder_forward.5} parent=1 // pred_check_branch
      %15 = sbr.rel (0) target = $region9
    $region8: #{shape_encoder_forward.5} parent=1 // pred_region
      _
    $region9: #{shape_encoder_forward.5} parent=1 // pred_fallthru
      _
    // Predicated region
    $region10: #{shape_encoder_forward.5} parent=1 // pred_check
      _
    $region11: #{shape_encoder_forward.5} parent=1 // pred_check_branch
      %17 = sbr.rel (0) target = $region13
    $region12: #{shape_encoder_forward.5} parent=1 // pred_region
      _
    $region13: #{shape_encoder_forward.5} parent=1 // pred_fallthru
      _
    // Predicated region
    $region14: #{shape_encoder_forward.5} parent=1 // pred_check
      _
    $region15: #{shape_encoder_forward.5} parent=1 // pred_check_branch
      %19 = sbr.rel (0) target = $region17
    $region16: #{shape_encoder_forward.5} parent=1 // pred_region
      _
    $region17: #{shape_encoder_forward.5} parent=1 // pred_fallthru
      _
    // Predicated region
    $region18: #{shape_encoder_forward.5} parent=1 // pred_check
      _
    $region19: #{shape_encoder_forward.5} parent=1 // pred_check_branch
      %21 = sbr.rel (0) target = $region21
    $region20: #{shape_encoder_forward.5} parent=1 // pred_region
      _
    $region21: #{shape_encoder_forward.5} parent=1 // pred_fallthru
      _
    // Predicated region
    $region22: #{shape_encoder_forward.5} parent=1 // pred_check
      _
    $region23: #{shape_encoder_forward.5} parent=1 // pred_check_branch
      %23 = sbr.rel (0) target = $region25
    $region24: #{shape_encoder_forward.5} parent=1 // pred_region
      _
    $region25: #{shape_encoder_forward.5} parent=1 // pred_fallthru
      _
    %v24 = vld [vmem:[%s0] sm:$0xff]
    %v25 = vld [vmem:[%s0 + $0x8] sm:$0xff]
    %v26 = vld [vmem:[%s0 + $0x10] sm:$0xff]
    %v27 = vld [vmem:[%s0 + $0x18] sm:$0xff]
    %v28 = vld [vmem:[%s0 + $0x20] sm:$0xff]
    %v29 = vld [vmem:[%s0 + $0x28] sm:$0xff]
    %v30 = vld [vmem:[%s0 + $0x30] sm:$0xff]
    %v31 = vld [vmem:[%s0 + $0x38] sm:$0xff]
    %v32 = vld [vmem:[%s0 + $0x40] sm:$0xff]
    %v33 = vld [vmem:[%s0 + $0x48] sm:$0xff]
    %v34 = vld [vmem:[%s0 + $0x50] sm:$0xff]
    %v35 = vld [vmem:[%s0 + $0x58] sm:$0xff]
    %v36 = vld [vmem:[%s0 + $0x60] sm:$0xff]
    %v37 = vld [vmem:[%s0 + $0x68] sm:$0xf]
    %v38 = vld [vmem:[%s0 + $0x6c] sm:$0xff]
    %v39 = vld [vmem:[%s0 + $0x74] sm:$0xff]
    %v40 = vld [vmem:[%s0 + $0x7c] sm:$0xff]
    %v41 = vld [vmem:[%s0 + $0x84] sm:$0xff]
    %v42 = vld [vmem:[%s0 + $0x8c] sm:$0xff]
    %v43 = vld [vmem:[%s0 + $0x94] sm:$0xff]
    %v44 = vld [vmem:[%s0 + $0x9c] sm:$0xff]
    %v45 = vld [vmem:[%s0 + $0xa4] sm:$0xff]
    %v46 = vld [vmem:[%s0 + $0xac] sm:$0xff]
    %v47 = vld [vmem:[%s0 + $0xb4] sm:$0xff]
    %v48 = vld [vmem:[%s0 + $0xbc] sm:$0xff]
    %v49 = vld [vmem:[%s0 + $0xc4] sm:$0xff]
    %v50 = vld [vmem:[%s0 + $0xcc] sm:$0xff]
    %v51 = vld [vmem:[%s0 + $0xd4] sm:$0xf]
    %v52 = vld [vmem:[%s0 + $0xd8] sm:$0xff]
    %v53 = vld [vmem:[%s0 + $0xe0] sm:$0xff]
    %v54 = vld [vmem:[%s0 + $0xe8] sm:$0xff]
    %v55 = vld [vmem:[%s0 + $0xf0] sm:$0xff]
    %v56 = vld [vmem:[%s0 + $0xf8] sm:$0xff]
    %v57 = vld [vmem:[%s0 + $0x100] sm:$0xff]
    %v58 = vld [vmem:[%s0 + $0x108] sm:$0xff]
    %v59 = vld [vmem:[%s0 + $0x110] sm:$0xff]
    %v60 = vld [vmem:[%s0 + $0x118] sm:$0xff]
    %v61 = vld [vmem:[%s0 + $0x120] sm:$0xff]
    %v62 = vld [vmem:[%s0 + $0x128] sm:$0xff]
    %v63 = vld [vmem:[%s0 + $0x130] sm:$0xff]
    %v64 = vld [vmem:[%s0 + $0x138] sm:$0xff]
    %v65 = vld [vmem:[%s0 + $0x140] sm:$0xf]
    %v66 = vld [vmem:[%s0 + $0x144] sm:$0xff]
    %v67 = vld [vmem:[%s0 + $0x14c] sm:$0xff]
    %v68 = vld [vmem:[%s0 + $0x154] sm:$0xff]
    %v69 = vld [vmem:[%s0 + $0x15c] sm:$0xff]
    %v70 = vld [vmem:[%s0 + $0x164] sm:$0xff]
    %v71 = vld [vmem:[%s0 + $0x16c] sm:$0xff]
    %v72 = vld [vmem:[%s0 + $0x174] sm:$0xff]
    %v73 = vld [vmem:[%s0 + $0x17c] sm:$0xff]
    %v74 = vld [vmem:[%s0 + $0x184] sm:$0xff]
    %v75 = vld [vmem:[%s0 + $0x18c] sm:$0xff]
    %v76 = vld [vmem:[%s0 + $0x194] sm:$0xff]
    %v77 = vld [vmem:[%s0 + $0x19c] sm:$0xff]
    %v78 = vld [vmem:[%s0 + $0x1a4] sm:$0xff]
    %v79 = vld [vmem:[%s0 + $0x1ac] sm:$0xf]
    %v80 = vld [vmem:[%s0 + $0x1b0] sm:$0xff]
    %v81 = vld [vmem:[%s0 + $0x1b8] sm:$0xff]
    %v82 = vld [vmem:[%s0 + $0x1c0] sm:$0xff]
    %v83 = vld [vmem:[%s0 + $0x1c8] sm:$0xff]
    %v84 = vld [vmem:[%s0 + $0x1d0] sm:$0xff]
    %v85 = vld [vmem:[%s0 + $0x1d8] sm:$0xff]
    %v86 = vld [vmem:[%s0 + $0x1e0] sm:$0xff]
    %v87 = vld [vmem:[%s0 + $0x1e8] sm:$0xff]
    %v88 = vld [vmem:[%s0 + $0x1f0] sm:$0xff]
    %v89 = vld [vmem:[%s0 + $0x1f8] sm:$0xff]
    %v90 = vld [vmem:[%s0 + $0x200] sm:$0xff]
    %v91 = vld [vmem:[%s0 + $0x208] sm:$0xff]
    %v92 = vld [vmem:[%s0 + $0x210] sm:$0xff]
    %v93 = vld [vmem:[%s0 + $0x218] sm:$0xf]
    %v94 = vld [vmem:[%s0 + $0x21c] sm:$0xff]
    %v95 = vld [vmem:[%s0 + $0x224] sm:$0xff]
    %v96 = vld [vmem:[%s0 + $0x22c] sm:$0xff]
    %v97 = vld [vmem:[%s0 + $0x234] sm:$0xff]
    %v98 = vld [vmem:[%s0 + $0x23c] sm:$0xff]
    %v99 = vld [vmem:[%s0 + $0x244] sm:$0xff]
    %v100 = vld [vmem:[%s0 + $0x24c] sm:$0xff]
    %v101 = vld [vmem:[%s0 + $0x254] sm:$0xff]
    %v102 = vld [vmem:[%s0 + $0x25c] sm:$0xff]
    %v103 = vld [vmem:[%s0 + $0x264] sm:$0xff]
    %v104 = vld [vmem:[%s0 + $0x26c] sm:$0xff]
    %v105 = vld [vmem:[%s0 + $0x274] sm:$0xff]
    %v106 = vld [vmem:[%s0 + $0x27c] sm:$0xff]
    %v107 = vld [vmem:[%s0 + $0x284] sm:$0xf]
    %v108 = vld [vmem:[%s0 + $0x288] sm:$0x77]
    %v109 = vld [vmem:[%s0 + $0x290] sm:$0x77]
    %v110 = vld [vmem:[%s0 + $0x298] sm:$0x77]
    %v111 = vld [vmem:[%s0 + $0x2a0] sm:$0x77]
    %v112 = vld [vmem:[%s0 + $0x2a8] sm:$0x77]
    %v113 = vld [vmem:[%s0 + $0x2b0] sm:$0x77]
    %v114 = vld [vmem:[%s0 + $0x2b8] sm:$0x77]
    %v115 = vld [vmem:[%s0 + $0x2c0] sm:$0x77]
    %v116 = vld [vmem:[%s0 + $0x2c8] sm:$0x77]
    %v117 = vld [vmem:[%s0 + $0x2d0] sm:$0x77]
    %v118 = vld [vmem:[%s0 + $0x2d8] sm:$0x77]
    %v119 = vld [vmem:[%s0 + $0x2e0] sm:$0x77]
    %v120 = vld [vmem:[%s0 + $0x2e8] sm:$0x77]
    %v121 = vld [vmem:[%s0 + $0x2f0] sm:$0x7]
    %v122 = vld [vmem:[%s1] sm:$0xff]
    %v123 = vld [vmem:[%s1 + $0x8] sm:$0xff]
    %v124 = vld [vmem:[%s1 + $0x10] sm:$0xff]
    %v125 = vld [vmem:[%s1 + $0x18] sm:$0xff]
    %v126 = vld [vmem:[%s1 + $0x20] sm:$0xff]
    %v127 = vld [vmem:[%s1 + $0x28] sm:$0xff]
    %v128 = vld [vmem:[%s1 + $0x30] sm:$0xff]
    %v129 = vld [vmem:[%s1 + $0x38] sm:$0xff]
    %v130 = vld [vmem:[%s1 + $0x40] sm:$0xff]
    %v131 = vld [vmem:[%s1 + $0x48] sm:$0xff]
    %v132 = vld [vmem:[%s1 + $0x50] sm:$0xff]
    %v133 = vld [vmem:[%s1 + $0x58] sm:$0xff]
    %v134 = vld [vmem:[%s1 + $0x60] sm:$0xff]
    %v135 = vld [vmem:[%s1 + $0x68] sm:$0xff]
    %v136 = vld [vmem:[%s1 + $0x70] sm:$0xff]
    %v137 = vld [vmem:[%s1 + $0x78] sm:$0xff]
    %v138 = vld [vmem:[%s1 + $0x80] sm:$0xff]
    %v139 = vld [vmem:[%s1 + $0x88] sm:$0xff]
    %v140 = vld [vmem:[%s1 + $0x90] sm:$0xff]
    %v141 = vld [vmem:[%s1 + $0x98] sm:$0xff]
    %v142 = vld [vmem:[%s1 + $0xa0] sm:$0xff]
    %v143 = vld [vmem:[%s1 + $0xa8] sm:$0xff]
    %v144 = vld [vmem:[%s1 + $0xb0] sm:$0xff]
    %v145 = vld [vmem:[%s1 + $0xb8] sm:$0xff]
    %v146 = vld [vmem:[%s1 + $0xc0] sm:$0xff]
    %v147 = vld [vmem:[%s1 + $0xc8] sm:$0xff]
    %v148 = vld [vmem:[%s1 + $0xd0] sm:$0xff]
    %v149 = vld [vmem:[%s1 + $0xd8] sm:$0xff]
    %v150 = vld [vmem:[%s1 + $0xe0] sm:$0xff]
    %v151 = vld [vmem:[%s1 + $0xe8] sm:$0xff]
    %v152 = vld [vmem:[%s1 + $0xf0] sm:$0xff]
    %v153 = vld [vmem:[%s1 + $0xf8] sm:$0xff]
    %v154 = vld [vmem:[%s1 + $0x100] sm:$0xff]
    %v155 = vld [vmem:[%s1 + $0x108] sm:$0xff]
    %v156 = vld [vmem:[%s1 + $0x110] sm:$0xff]
    %v157 = vld [vmem:[%s1 + $0x118] sm:$0xff]
    %v158 = vld [vmem:[%s1 + $0x120] sm:$0xff]
    %v159 = vld [vmem:[%s1 + $0x128] sm:$0xff]
    %v160 = vld [vmem:[%s1 + $0x130] sm:$0xff]
    %v161 = vld [vmem:[%s1 + $0x138] sm:$0xff]
    %v162 = vld [vmem:[%s1 + $0x140] sm:$0xff]
    %v163 = vld [vmem:[%s1 + $0x148] sm:$0xff]
    %v164 = vld [vmem:[%s1 + $0x150] sm:$0xff]
    %v165 = vld [vmem:[%s1 + $0x158] sm:$0xff]
    %v166 = vld [vmem:[%s1 + $0x160] sm:$0xff]
    %v167 = vld [vmem:[%s1 + $0x168] sm:$0xff]
    %v168 = vld [vmem:[%s1 + $0x170] sm:$0xff]
    %v169 = vld [vmem:[%s1 + $0x178] sm:$0xff]
    %v170 = vld [vmem:[%s1 + $0x180] sm:$0xff]
    %v171 = vld [vmem:[%s1 + $0x188] sm:$0xff]
    %v172 = vld [vmem:[%s1 + $0x190] sm:$0xff]
    %v173 = vld [vmem:[%s1 + $0x198] sm:$0xff]
    %v174 = vld [vmem:[%s1 + $0x1a0] sm:$0xff]
    %v175 = vld [vmem:[%s1 + $0x1a8] sm:$0xff]
    %v176 = vld [vmem:[%s1 + $0x1b0] sm:$0xff]
    %v177 = vld [vmem:[%s1 + $0x1b8] sm:$0xff]
    %v178 = vld [vmem:[%s1 + $0x1c0] sm:$0xff]
    %v179 = vld [vmem:[%s1 + $0x1c8] sm:$0xff]
    %v180 = vld [vmem:[%s1 + $0x1d0] sm:$0xff]
    %v181 = vld [vmem:[%s1 + $0x1d8] sm:$0xff]
    %v182 = vld [vmem:[%s1 + $0x1e0] sm:$0xff]
    %v183 = vld [vmem:[%s1 + $0x1e8] sm:$0xff]
    %v184 = vld [vmem:[%s1 + $0x1f0] sm:$0xff]
    %v185 = vld [vmem:[%s1 + $0x1f8] sm:$0xff]
    %v186 = vld [vmem:[%s1 + $0x200] sm:$0xff]
    %v187 = vld [vmem:[%s1 + $0x208] sm:$0xff]
    %v188 = vld [vmem:[%s1 + $0x210] sm:$0xff]
    %v189 = vld [vmem:[%s1 + $0x218] sm:$0xff]
    %v190 = vld [vmem:[%s1 + $0x220] sm:$0xff]
    %v191 = vld [vmem:[%s1 + $0x228] sm:$0xff]
    %v192 = vld [vmem:[%s1 + $0x230] sm:$0xff]
    %v193 = vld [vmem:[%s1 + $0x238] sm:$0xff]
    %v194 = vld [vmem:[%s1 + $0x240] sm:$0xff]
    %v195 = vld [vmem:[%s1 + $0x248] sm:$0xff]
    %v196 = vld [vmem:[%s1 + $0x250] sm:$0xff]
    %v197 = vld [vmem:[%s1 + $0x258] sm:$0xff]
    %v198 = vld [vmem:[%s1 + $0x260] sm:$0xff]
    %v199 = vld [vmem:[%s1 + $0x268] sm:$0xff]
    %v200 = vld [vmem:[%s1 + $0x270] sm:$0xff]
    %v201 = vld [vmem:[%s1 + $0x278] sm:$0xff]
    %v202 = vld [vmem:[%s1 + $0x280] sm:$0xff]
    %v203 = vld [vmem:[%s1 + $0x288] sm:$0xff]
    %v204 = vld [vmem:[%s1 + $0x290] sm:$0xff]
    %v205 = vld [vmem:[%s1 + $0x298] sm:$0xff]
    %v206 = vld [vmem:[%s1 + $0x2a0] sm:$0xff]
    %v207 = vld [vmem:[%s1 + $0x2a8] sm:$0xff]
    %v208 = vld [vmem:[%s1 + $0x2b0] sm:$0xff]
    %v209 = vld [vmem:[%s1 + $0x2b8] sm:$0xff]
    %v210 = vld [vmem:[%s1 + $0x2c0] sm:$0xff]
    %v211 = vld [vmem:[%s1 + $0x2c8] sm:$0xff]
    %v212 = vld [vmem:[%s1 + $0x2d0] sm:$0xff]
    %v213 = vld [vmem:[%s1 + $0x2d8] sm:$0xff]
    %v214 = vld [vmem:[%s1 + $0x2e0] sm:$0xff]
    %v215 = vld [vmem:[%s1 + $0x2e8] sm:$0xff]
    %v216 = vld [vmem:[%s1 + $0x2f0] sm:$0xff]
    %v217 = vld [vmem:[%s1 + $0x2f8] sm:$0xff]
    %v218 = vld [vmem:[%s1 + $0x300] sm:$0xff]
    %v219 = vld [vmem:[%s1 + $0x308] sm:$0xff]
    %v220 = vld [vmem:[%s1 + $0x310] sm:$0xff]
    %v221 = vld [vmem:[%s1 + $0x318] sm:$0xff]
    %v222 = vld [vmem:[%s1 + $0x320] sm:$0xff]
    %v223 = vld [vmem:[%s1 + $0x328] sm:$0xff]
    %v224 = vld [vmem:[%s1 + $0x330] sm:$0xff]
    %v225 = vld [vmem:[%s1 + $0x338] sm:$0xff]
    %v226 = vld [vmem:[%s1 + $0x340] sm:$0xff]
    %v227 = vld [vmem:[%s1 + $0x348] sm:$0xff]
    %v228 = vld [vmem:[%s1 + $0x350] sm:$0xff]
    %v229 = vld [vmem:[%s1 + $0x358] sm:$0xff]
    %v230 = vld [vmem:[%s1 + $0x360] sm:$0xff]
    %v231 = vld [vmem:[%s1 + $0x368] sm:$0xff]
    %v232 = vld [vmem:[%s1 + $0x370] sm:$0xff]
    %v233 = vld [vmem:[%s1 + $0x378] sm:$0xff]
    %v234 = vld [vmem:[%s1 + $0x380] sm:$0xff]
    %v235 = vld [vmem:[%s1 + $0x388] sm:$0xff]
    %v236 = vld [vmem:[%s1 + $0x390] sm:$0xff]
    %v237 = vld [vmem:[%s1 + $0x398] sm:$0xff]
    %v238 = vld [vmem:[%s1 + $0x3a0] sm:$0xff]
    %v239 = vld [vmem:[%s1 + $0x3a8] sm:$0xff]
    %v240 = vld [vmem:[%s1 + $0x3b0] sm:$0xff]
    %v241 = vld [vmem:[%s1 + $0x3b8] sm:$0xff]
    %v242 = vld [vmem:[%s1 + $0x3c0] sm:$0xff]
    %v243 = vld [vmem:[%s1 + $0x3c8] sm:$0xff]
    %v244 = vld [vmem:[%s1 + $0x3d0] sm:$0xff]
    %v245 = vld [vmem:[%s1 + $0x3d8] sm:$0xff]
    %v246 = vld [vmem:[%s1 + $0x3e0] sm:$0xff]
    %v247 = vld [vmem:[%s1 + $0x3e8] sm:$0xff]
    %v248 = vld [vmem:[%s1 + $0x3f0] sm:$0xff]
    %v249 = vld [vmem:[%s1 + $0x3f8] sm:$0xff]
    %v250 = vld [vmem:[%s1 + $0x400] sm:$0xff]
    %v251 = vld [vmem:[%s1 + $0x408] sm:$0xff]
    %v252 = vld [vmem:[%s1 + $0x410] sm:$0xff]
    %v253 = vld [vmem:[%s1 + $0x418] sm:$0xff]
    %v254 = vld [vmem:[%s1 + $0x420] sm:$0xff]
    %v255 = vld [vmem:[%s1 + $0x428] sm:$0xff]
    %v256 = vld [vmem:[%s1 + $0x430] sm:$0xff]
    %v257 = vld [vmem:[%s1 + $0x438] sm:$0xff]
    %v258 = vld [vmem:[%s1 + $0x440] sm:$0xff]
    %v259 = vld [vmem:[%s1 + $0x448] sm:$0xff]
    %v260 = vld [vmem:[%s1 + $0x450] sm:$0xff]
    %v261 = vld [vmem:[%s1 + $0x458] sm:$0xff]
    %v262 = vld [vmem:[%s1 + $0x460] sm:$0xff]
    %v263 = vld [vmem:[%s1 + $0x468] sm:$0xff]
    %v264 = vld [vmem:[%s1 + $0x470] sm:$0xff]
    %v265 = vld [vmem:[%s1 + $0x478] sm:$0xff]
    %v266 = vld [vmem:[%s1 + $0x480] sm:$0xff]
    %v267 = vld [vmem:[%s1 + $0x488] sm:$0xff]
    %v268 = vld [vmem:[%s1 + $0x490] sm:$0xff]
    %v269 = vld [vmem:[%s1 + $0x498] sm:$0xff]
    %v270 = vld [vmem:[%s1 + $0x4a0] sm:$0xff]
    %v271 = vld [vmem:[%s1 + $0x4a8] sm:$0xff]
    %v272 = vld [vmem:[%s1 + $0x4b0] sm:$0xff]
    %v273 = vld [vmem:[%s1 + $0x4b8] sm:$0xff]
    %v274 = vld [vmem:[%s1 + $0x4c0] sm:$0xff]
    %v275 = vld [vmem:[%s1 + $0x4c8] sm:$0xff]
    %v276 = vld [vmem:[%s1 + $0x4d0] sm:$0xff]
    %v277 = vld [vmem:[%s1 + $0x4d8] sm:$0xff]
    %v278 = vld [vmem:[%s1 + $0x4e0] sm:$0xff]
    %v279 = vld [vmem:[%s1 + $0x4e8] sm:$0xff]
    %v280 = vld [vmem:[%s1 + $0x4f0] sm:$0xff]
    %v281 = vld [vmem:[%s1 + $0x4f8] sm:$0xff]
    %v282 = vld [vmem:[%s1 + $0x500] sm:$0xff]
    %v283 = vld [vmem:[%s1 + $0x508] sm:$0xff]
    %v284 = vld [vmem:[%s1 + $0x510] sm:$0xff]
    %v285 = vld [vmem:[%s1 + $0x518] sm:$0xff]
    %v286 = vld [vmem:[%s1 + $0x520] sm:$0xff]
    %v287 = vld [vmem:[%s1 + $0x528] sm:$0xff]
    %v288 = vld [vmem:[%s1 + $0x530] sm:$0xff]
    %v289 = vld [vmem:[%s1 + $0x538] sm:$0xff]
    %v290 = vld [vmem:[%s1 + $0x540] sm:$0xff]
    %v291 = vld [vmem:[%s1 + $0x548] sm:$0xff]
    %v292 = vld [vmem:[%s1 + $0x550] sm:$0xff]
    %v293 = vld [vmem:[%s1 + $0x558] sm:$0xff]
    %v294 = vld [vmem:[%s1 + $0x560] sm:$0xff]
    %v295 = vld [vmem:[%s1 + $0x568] sm:$0xff]
    %v296 = vld [vmem:[%s1 + $0x570] sm:$0xff]
    %v297 = vld [vmem:[%s1 + $0x578] sm:$0xff]
    %v298 = vld [vmem:[%s1 + $0x580] sm:$0xff]
    %v299 = vld [vmem:[%s1 + $0x588] sm:$0xff]
    %v300 = vld [vmem:[%s1 + $0x590] sm:$0xff]
    %v301 = vld [vmem:[%s1 + $0x598] sm:$0xff]
    %v302 = vld [vmem:[%s1 + $0x5a0] sm:$0xff]
    %v303 = vld [vmem:[%s1 + $0x5a8] sm:$0xff]
    %v304 = vld [vmem:[%s1 + $0x5b0] sm:$0xff]
    %v305 = vld [vmem:[%s1 + $0x5b8] sm:$0xff]
    %v306 = vld [vmem:[%s1 + $0x5c0] sm:$0xff]
    %v307 = vld [vmem:[%s1 + $0x5c8] sm:$0xff]
    %v308 = vld [vmem:[%s1 + $0x5d0] sm:$0xff]
    %v309 = vld [vmem:[%s1 + $0x5d8] sm:$0xff]
    %v310 = vld [vmem:[%s1 + $0x5e0] sm:$0xff]
    %v311 = vld [vmem:[%s1 + $0x5e8] sm:$0xff]
    %v312 = vld [vmem:[%s1 + $0x5f0] sm:$0xff]
    %v313 = vld [vmem:[%s1 + $0x5f8] sm:$0xff]
    %v314 = vld [vmem:[%s1 + $0x600] sm:$0xff]
    %v315 = vld [vmem:[%s1 + $0x608] sm:$0xff]
    %v316 = vld [vmem:[%s1 + $0x610] sm:$0xff]
    %v317 = vld [vmem:[%s1 + $0x618] sm:$0xff]
    %v318 = vld [vmem:[%s1 + $0x620] sm:$0xff]
    %v319 = vld [vmem:[%s1 + $0x628] sm:$0xff]
    %v320 = vld [vmem:[%s1 + $0x630] sm:$0xff]
    %v321 = vld [vmem:[%s1 + $0x638] sm:$0xff]
    %v322 = vld [vmem:[%s1 + $0x640] sm:$0xff]
    %v323 = vld [vmem:[%s1 + $0x648] sm:$0xff]
    %v324 = vld [vmem:[%s1 + $0x650] sm:$0xff]
    %v325 = vld [vmem:[%s1 + $0x658] sm:$0xff]
    %v326 = vld [vmem:[%s1 + $0x660] sm:$0xff]
    %v327 = vld [vmem:[%s1 + $0x668] sm:$0xff]
    %v328 = vld [vmem:[%s1 + $0x670] sm:$0xff]
    %v329 = vld [vmem:[%s1 + $0x678] sm:$0xff]
    %v330 = vld [vmem:[%s1 + $0x680] sm:$0xff]
    %v331 = vld [vmem:[%s1 + $0x688] sm:$0xff]
    %v332 = vld [vmem:[%s1 + $0x690] sm:$0xff]
    %v333 = vld [vmem:[%s1 + $0x698] sm:$0xff]
    %v334 = vld [vmem:[%s1 + $0x6a0] sm:$0xff]
    %v335 = vld [vmem:[%s1 + $0x6a8] sm:$0xff]
    %v336 = vld [vmem:[%s1 + $0x6b0] sm:$0xff]
    %v337 = vld [vmem:[%s1 + $0x6b8] sm:$0xff]
    %v338 = vld [vmem:[%s1 + $0x6c0] sm:$0xff]
    %v339 = vld [vmem:[%s1 + $0x6c8] sm:$0xff]
    %v340 = vld [vmem:[%s1 + $0x6d0] sm:$0xff]
    %v341 = vld [vmem:[%s1 + $0x6d8] sm:$0xff]
    %v342 = vld [vmem:[%s1 + $0x6e0] sm:$0xff]
    %v343 = vld [vmem:[%s1 + $0x6e8] sm:$0xff]
    %v344 = vld [vmem:[%s1 + $0x6f0] sm:$0xff]
    %v345 = vld [vmem:[%s1 + $0x6f8] sm:$0xff]
    %v346 = vld [vmem:[%s1 + $0x700] sm:$0xff]
    %v347 = vld [vmem:[%s1 + $0x708] sm:$0xff]
    %v348 = vld [vmem:[%s1 + $0x710] sm:$0xff]
    %v349 = vld [vmem:[%s1 + $0x718] sm:$0xff]
    %v350 = vld [vmem:[%s1 + $0x720] sm:$0xff]
    %v351 = vld [vmem:[%s1 + $0x728] sm:$0xff]
    %v352 = vld [vmem:[%s1 + $0x730] sm:$0xff]
    %v353 = vld [vmem:[%s1 + $0x738] sm:$0xff]
    %v354 = vld [vmem:[%s1 + $0x740] sm:$0xff]
    %v355 = vld [vmem:[%s1 + $0x748] sm:$0xff]
    %v356 = vld [vmem:[%s1 + $0x750] sm:$0xff]
    %v357 = vld [vmem:[%s1 + $0x758] sm:$0xff]
    %v358 = vld [vmem:[%s1 + $0x760] sm:$0xff]
    %v359 = vld [vmem:[%s1 + $0x768] sm:$0xff]
    %v360 = vld [vmem:[%s1 + $0x770] sm:$0xff]
    %v361 = vld [vmem:[%s1 + $0x778] sm:$0xff]
    %v362 = vld [vmem:[%s1 + $0x780] sm:$0xff]
    %v363 = vld [vmem:[%s1 + $0x788] sm:$0xff]
    %v364 = vld [vmem:[%s1 + $0x790] sm:$0xff]
    %v365 = vld [vmem:[%s1 + $0x798] sm:$0xff]
    %v366 = vld [vmem:[%s1 + $0x7a0] sm:$0xff]
    %v367 = vld [vmem:[%s1 + $0x7a8] sm:$0xff]
    %v368 = vld [vmem:[%s1 + $0x7b0] sm:$0xff]
    %v369 = vld [vmem:[%s1 + $0x7b8] sm:$0xff]
    %v370 = vld [vmem:[%s1 + $0x7c0] sm:$0xff]
    %v371 = vld [vmem:[%s1 + $0x7c8] sm:$0xff]
    %v372 = vld [vmem:[%s1 + $0x7d0] sm:$0xff]
    %v373 = vld [vmem:[%s1 + $0x7d8] sm:$0xff]
    %v374 = vld [vmem:[%s1 + $0x7e0] sm:$0xff]
    %v375 = vld [vmem:[%s1 + $0x7e8] sm:$0xff]
    %v376 = vld [vmem:[%s1 + $0x7f0] sm:$0xff]
    %v377 = vld [vmem:[%s1 + $0x7f8] sm:$0xff]
    %v378 = vld [vmem:[%s1 + $0x800] sm:$0xff]
    %v379 = vld [vmem:[%s1 + $0x808] sm:$0xff]
    %v380 = vld [vmem:[%s1 + $0x810] sm:$0xff]
    %v381 = vld [vmem:[%s1 + $0x818] sm:$0xff]
    %v382 = vld [vmem:[%s1 + $0x820] sm:$0xff]
    %v383 = vld [vmem:[%s1 + $0x828] sm:$0xff]
    %v384 = vld [vmem:[%s1 + $0x830] sm:$0xff]
    %v385 = vld [vmem:[%s1 + $0x838] sm:$0xff]
    %v386 = vld [vmem:[%s1 + $0x840] sm:$0xff]
    %v387 = vld [vmem:[%s1 + $0x848] sm:$0xff]
    %v388 = vld [vmem:[%s1 + $0x850] sm:$0xff]
    %v389 = vld [vmem:[%s1 + $0x858] sm:$0xff]
    %v390 = vld [vmem:[%s1 + $0x860] sm:$0xff]
    %v391 = vld [vmem:[%s1 + $0x868] sm:$0xff]
    %v392 = vld [vmem:[%s1 + $0x870] sm:$0xff]
    %v393 = vld [vmem:[%s1 + $0x878] sm:$0xff]
    %v394 = vld [vmem:[%s1 + $0x880] sm:$0xff]
    %v395 = vld [vmem:[%s1 + $0x888] sm:$0xff]
    %v396 = vld [vmem:[%s1 + $0x890] sm:$0xff]
    %v397 = vld [vmem:[%s1 + $0x898] sm:$0xff]
    %v398 = vld [vmem:[%s1 + $0x8a0] sm:$0xff]
    %v399 = vld [vmem:[%s1 + $0x8a8] sm:$0xff]
    %v400 = vld [vmem:[%s1 + $0x8b0] sm:$0xff]
    %v401 = vld [vmem:[%s1 + $0x8b8] sm:$0xff]
    %v402 = vld [vmem:[%s1 + $0x8c0] sm:$0xff]
    %v403 = vld [vmem:[%s1 + $0x8c8] sm:$0xff]
    %v404 = vld [vmem:[%s1 + $0x8d0] sm:$0xff]
    %v405 = vld [vmem:[%s1 + $0x8d8] sm:$0xff]
    %v406 = vld [vmem:[%s1 + $0x8e0] sm:$0xff]
    %v407 = vld [vmem:[%s1 + $0x8e8] sm:$0xff]
    %v408 = vld [vmem:[%s1 + $0x8f0] sm:$0xff]
    %v409 = vld [vmem:[%s1 + $0x8f8] sm:$0xff]
    %v410 = vld [vmem:[%s1 + $0x900] sm:$0xff]
    %v411 = vld [vmem:[%s1 + $0x908] sm:$0xff]
    %v412 = vld [vmem:[%s1 + $0x910] sm:$0xff]
    %v413 = vld [vmem:[%s1 + $0x918] sm:$0xff]
    %v414 = vld [vmem:[%s1 + $0x920] sm:$0xff]
    %v415 = vld [vmem:[%s1 + $0x928] sm:$0xff]
    %v416 = vld [vmem:[%s1 + $0x930] sm:$0xff]
    %v417 = vld [vmem:[%s1 + $0x938] sm:$0xff]
    %v418 = vld [vmem:[%s1 + $0x940] sm:$0xff]
    %v419 = vld [vmem:[%s1 + $0x948] sm:$0xff]
    %v420 = vld [vmem:[%s1 + $0x950] sm:$0xff]
    %v421 = vld [vmem:[%s1 + $0x958] sm:$0xff]
    %v422 = vld [vmem:[%s1 + $0x960] sm:$0xff]
    %v423 = vld [vmem:[%s1 + $0x968] sm:$0xff]
    %v424 = vld [vmem:[%s1 + $0x970] sm:$0xff]
    %v425 = vld [vmem:[%s1 + $0x978] sm:$0xff]
    %v426 = vld [vmem:[%s1 + $0x980] sm:$0xff]
    %v427 = vld [vmem:[%s1 + $0x988] sm:$0xff]
    %v428 = vld [vmem:[%s1 + $0x990] sm:$0xff]
    %v429 = vld [vmem:[%s1 + $0x998] sm:$0xff]
    %v430 = vld [vmem:[%s1 + $0x9a0] sm:$0xff]
    %v431 = vld [vmem:[%s1 + $0x9a8] sm:$0xff]
    %v432 = vld [vmem:[%s1 + $0x9b0] sm:$0xff]
    %v433 = vld [vmem:[%s1 + $0x9b8] sm:$0xff]
    %v434 = vld [vmem:[%s1 + $0x9c0] sm:$0xff]
    %v435 = vld [vmem:[%s1 + $0x9c8] sm:$0xff]
    %v436 = vld [vmem:[%s1 + $0x9d0] sm:$0xff]
    %v437 = vld [vmem:[%s1 + $0x9d8] sm:$0xff]
    %v438 = vld [vmem:[%s1 + $0x9e0] sm:$0xff]
    %v439 = vld [vmem:[%s1 + $0x9e8] sm:$0xff]
    %v440 = vld [vmem:[%s1 + $0x9f0] sm:$0xff]
    %v441 = vld [vmem:[%s1 + $0x9f8] sm:$0xff]
    %v442 = vld [vmem:[%s1 + $0xa00] sm:$0xff]
    %v443 = vld [vmem:[%s1 + $0xa08] sm:$0xff]
    %v444 = vld [vmem:[%s1 + $0xa10] sm:$0xff]
    %v445 = vld [vmem:[%s1 + $0xa18] sm:$0xff]
    %v446 = vld [vmem:[%s1 + $0xa20] sm:$0xff]
    %v447 = vld [vmem:[%s1 + $0xa28] sm:$0xff]
    %v448 = vld [vmem:[%s1 + $0xa30] sm:$0xff]
    %v449 = vld [vmem:[%s1 + $0xa38] sm:$0xff]
    %v450 = vld [vmem:[%s1 + $0xa40] sm:$0xff]
    %v451 = vld [vmem:[%s1 + $0xa48] sm:$0xff]
    %v452 = vld [vmem:[%s1 + $0xa50] sm:$0xff]
    %v453 = vld [vmem:[%s1 + $0xa58] sm:$0xff]
    %v454 = vld [vmem:[%s1 + $0xa60] sm:$0xff]
    %v455 = vld [vmem:[%s1 + $0xa68] sm:$0xff]
    %v456 = vld [vmem:[%s1 + $0xa70] sm:$0xff]
    %v457 = vld [vmem:[%s1 + $0xa78] sm:$0xff]
    %v458 = vld [vmem:[%s1 + $0xa80] sm:$0xff]
    %v459 = vld [vmem:[%s1 + $0xa88] sm:$0xff]
    %v460 = vld [vmem:[%s1 + $0xa90] sm:$0xff]
    %v461 = vld [vmem:[%s1 + $0xa98] sm:$0xff]
    %v462 = vld [vmem:[%s1 + $0xaa0] sm:$0xff]
    %v463 = vld [vmem:[%s1 + $0xaa8] sm:$0xff]
    %v464 = vld [vmem:[%s1 + $0xab0] sm:$0xff]
    %v465 = vld [vmem:[%s1 + $0xab8] sm:$0xff]
    %v466 = vld [vmem:[%s1 + $0xac0] sm:$0xff]
    %v467 = vld [vmem:[%s1 + $0xac8] sm:$0xff]
    %v468 = vld [vmem:[%s1 + $0xad0] sm:$0xff]
    %v469 = vld [vmem:[%s1 + $0xad8] sm:$0xff]
    %v470 = vld [vmem:[%s1 + $0xae0] sm:$0xff]
    %v471 = vld [vmem:[%s1 + $0xae8] sm:$0xff]
    %v472 = vld [vmem:[%s1 + $0xaf0] sm:$0xff]
    %v473 = vld [vmem:[%s1 + $0xaf8] sm:$0xff]
    %v474 = vld [vmem:[%s1 + $0xb00] sm:$0xff]
    %v475 = vld [vmem:[%s1 + $0xb08] sm:$0xff]
    %v476 = vld [vmem:[%s1 + $0xb10] sm:$0xff]
    %v477 = vld [vmem:[%s1 + $0xb18] sm:$0xff]
    %v478 = vld [vmem:[%s1 + $0xb20] sm:$0xff]
    %v479 = vld [vmem:[%s1 + $0xb28] sm:$0xff]
    %v480 = vld [vmem:[%s1 + $0xb30] sm:$0xff]
    %v481 = vld [vmem:[%s1 + $0xb38] sm:$0xff]
    %v482 = vld [vmem:[%s1 + $0xb40] sm:$0xff]
    %v483 = vld [vmem:[%s1 + $0xb48] sm:$0xff]
    %v484 = vld [vmem:[%s1 + $0xb50] sm:$0xff]
    %v485 = vld [vmem:[%s1 + $0xb58] sm:$0xff]
    %v486 = vld [vmem:[%s1 + $0xb60] sm:$0xff]
    %v487 = vld [vmem:[%s1 + $0xb68] sm:$0xff]
    %v488 = vld [vmem:[%s1 + $0xb70] sm:$0xff]
    %v489 = vld [vmem:[%s1 + $0xb78] sm:$0xff]
    %v490 = vld [vmem:[%s1 + $0xb80] sm:$0xff]
    %v491 = vld [vmem:[%s1 + $0xb88] sm:$0xff]
    %v492 = vld [vmem:[%s1 + $0xb90] sm:$0xff]
    %v493 = vld [vmem:[%s1 + $0xb98] sm:$0xff]
    %v494 = vld [vmem:[%s1 + $0xba0] sm:$0xff]
    %v495 = vld [vmem:[%s1 + $0xba8] sm:$0xff]
    %v496 = vld [vmem:[%s1 + $0xbb0] sm:$0xff]
    %v497 = vld [vmem:[%s1 + $0xbb8] sm:$0xff]
    %v498 = vld [vmem:[%s1 + $0xbc0] sm:$0xff]
    %v499 = vld [vmem:[%s1 + $0xbc8] sm:$0xff]
    %v500 = vld [vmem:[%s1 + $0xbd0] sm:$0xff]
    %v501 = vld [vmem:[%s1 + $0xbd8] sm:$0xff]
    %v502 = vld [vmem:[%s1 + $0xbe0] sm:$0xff]
    %v503 = vld [vmem:[%s1 + $0xbe8] sm:$0xff]
    %v504 = vld [vmem:[%s1 + $0xbf0] sm:$0xff]
    %v505 = vld [vmem:[%s1 + $0xbf8] sm:$0xff]
    %v506 = vld [vmem:[%s1 + $0xc00] sm:$0xff]
    %v507 = vld [vmem:[%s1 + $0xc08] sm:$0xff]
    %v508 = vld [vmem:[%s1 + $0xc10] sm:$0xff]
    %v509 = vld [vmem:[%s1 + $0xc18] sm:$0xff]
    %v510 = vld [vmem:[%s1 + $0xc20] sm:$0xff]
    %v511 = vld [vmem:[%s1 + $0xc28] sm:$0xff]
    %v512 = vld [vmem:[%s1 + $0xc30] sm:$0xff]
    %v513 = vld [vmem:[%s1 + $0xc38] sm:$0xff]
    %v514 = vld [vmem:[%s1 + $0xc40] sm:$0xff]
    %v515 = vld [vmem:[%s1 + $0xc48] sm:$0xff]
    %v516 = vld [vmem:[%s1 + $0xc50] sm:$0xff]
    %v517 = vld [vmem:[%s1 + $0xc58] sm:$0xff]
    %v518 = vld [vmem:[%s1 + $0xc60] sm:$0xff]
    %v519 = vld [vmem:[%s1 + $0xc68] sm:$0xff]
    %v520 = vld [vmem:[%s1 + $0xc70] sm:$0xff]
    %v521 = vld [vmem:[%s1 + $0xc78] sm:$0xff]
    %v522 = vld [vmem:[%s1 + $0xc80] sm:$0xff]
    %v523 = vld [vmem:[%s1 + $0xc88] sm:$0xff]
    %v524 = vld [vmem:[%s1 + $0xc90] sm:$0xff]
    %v525 = vld [vmem:[%s1 + $0xc98] sm:$0xff]
    %v526 = vld [vmem:[%s1 + $0xca0] sm:$0xff]
    %v527 = vld [vmem:[%s1 + $0xca8] sm:$0xff]
    %v528 = vld [vmem:[%s1 + $0xcb0] sm:$0xff]
    %v529 = vld [vmem:[%s1 + $0xcb8] sm:$0xff]
    %v530 = vld [vmem:[%s1 + $0xcc0] sm:$0xff]
    %v531 = vld [vmem:[%s1 + $0xcc8] sm:$0xff]
    %v532 = vld [vmem:[%s1 + $0xcd0] sm:$0xff]
    %v533 = vld [vmem:[%s1 + $0xcd8] sm:$0xff]
    %v534 = vld [vmem:[%s1 + $0xce0] sm:$0xff]
    %v535 = vld [vmem:[%s1 + $0xce8] sm:$0xff]
    %v536 = vld [vmem:[%s1 + $0xcf0] sm:$0xff]
    %v537 = vld [vmem:[%s1 + $0xcf8] sm:$0xff]
    %v538 = vld [vmem:[%s1 + $0xd00] sm:$0xff]
    %v539 = vld [vmem:[%s1 + $0xd08] sm:$0xff]
    %v540 = vld [vmem:[%s1 + $0xd10] sm:$0xff]
    %v541 = vld [vmem:[%s1 + $0xd18] sm:$0xff]
    %v542 = vld [vmem:[%s1 + $0xd20] sm:$0xff]
    %v543 = vld [vmem:[%s1 + $0xd28] sm:$0xff]
    %v544 = vld [vmem:[%s1 + $0xd30] sm:$0xff]
    %v545 = vld [vmem:[%s1 + $0xd38] sm:$0xff]
    %v546 = vld [vmem:[%s1 + $0xd40] sm:$0xff]
    %v547 = vld [vmem:[%s1 + $0xd48] sm:$0xff]
    %v548 = vld [vmem:[%s1 + $0xd50] sm:$0xff]
    %v549 = vld [vmem:[%s1 + $0xd58] sm:$0xff]
    %v550 = vld [vmem:[%s1 + $0xd60] sm:$0xff]
    %v551 = vld [vmem:[%s1 + $0xd68] sm:$0xff]
    %v552 = vld [vmem:[%s1 + $0xd70] sm:$0xff]
    %v553 = vld [vmem:[%s1 + $0xd78] sm:$0xff]
    %v554 = vld [vmem:[%s2] sm:$0x3]
    %v556 = vperm.slane %v554, 0
    %v557 = vperm.slane %v554, 1
    %v658 = vunpack.c.l.b16 %v24
    %v659 = vunpack.c.h.b16 %v24
    %v660 = vunpack.c.l.b16 %v25
    %v661 = vunpack.c.h.b16 %v25
    %v662 = vunpack.c.l.b16 %v26
    %v663 = vunpack.c.h.b16 %v26
    %v664 = vunpack.c.l.b16 %v27
    %v665 = vunpack.c.h.b16 %v27
    %v666 = vunpack.c.l.b16 %v28
    %v667 = vunpack.c.h.b16 %v28
    %v668 = vunpack.c.l.b16 %v29
    %v669 = vunpack.c.h.b16 %v29
    %v670 = vunpack.c.l.b16 %v30
    %v671 = vunpack.c.h.b16 %v30
    %v672 = vunpack.c.l.b16 %v31
    %v673 = vunpack.c.h.b16 %v31
    %v674 = vunpack.c.l.b16 %v32
    %v675 = vunpack.c.h.b16 %v32
    %v676 = vunpack.c.l.b16 %v33
    %v677 = vunpack.c.h.b16 %v33
    %v678 = vunpack.c.l.b16 %v34
    %v679 = vunpack.c.h.b16 %v34
    %v680 = vunpack.c.l.b16 %v35
    %v681 = vunpack.c.h.b16 %v35
    %v682 = vunpack.c.l.b16 %v36
    %v683 = vunpack.c.h.b16 %v36
    %v684 = vunpack.c.l.b16 %v37
    %v685 = vunpack.c.l.b16 %v38
    %v686 = vunpack.c.h.b16 %v38
    %v687 = vunpack.c.l.b16 %v39
    %v688 = vunpack.c.h.b16 %v39
    %v689 = vunpack.c.l.b16 %v40
    %v690 = vunpack.c.h.b16 %v40
    %v691 = vunpack.c.l.b16 %v41
    %v692 = vunpack.c.h.b16 %v41
    %v693 = vunpack.c.l.b16 %v42
    %v694 = vunpack.c.h.b16 %v42
    %v695 = vunpack.c.l.b16 %v43
    %v696 = vunpack.c.h.b16 %v43
    %v697 = vunpack.c.l.b16 %v44
    %v698 = vunpack.c.h.b16 %v44
    %v699 = vunpack.c.l.b16 %v45
    %v700 = vunpack.c.h.b16 %v45
    %v701 = vunpack.c.l.b16 %v46
    %v702 = vunpack.c.h.b16 %v46
    %v703 = vunpack.c.l.b16 %v47
    %v704 = vunpack.c.h.b16 %v47
    %v705 = vunpack.c.l.b16 %v48
    %v706 = vunpack.c.h.b16 %v48
    %v707 = vunpack.c.l.b16 %v49
    %v708 = vunpack.c.h.b16 %v49
    %v709 = vunpack.c.l.b16 %v50
    %v710 = vunpack.c.h.b16 %v50
    %v711 = vunpack.c.l.b16 %v51
    %v712 = vunpack.c.l.b16 %v52
    %v713 = vunpack.c.h.b16 %v52
    %v714 = vunpack.c.l.b16 %v53
    %v715 = vunpack.c.h.b16 %v53
    %v716 = vunpack.c.l.b16 %v54
    %v717 = vunpack.c.h.b16 %v54
    %v718 = vunpack.c.l.b16 %v55
    %v719 = vunpack.c.h.b16 %v55
    %v720 = vunpack.c.l.b16 %v56
    %v721 = vunpack.c.h.b16 %v56
    %v722 = vunpack.c.l.b16 %v57
    %v723 = vunpack.c.h.b16 %v57
    %v724 = vunpack.c.l.b16 %v58
    %v725 = vunpack.c.h.b16 %v58
    %v726 = vunpack.c.l.b16 %v59
    %v727 = vunpack.c.h.b16 %v59
    %v728 = vunpack.c.l.b16 %v60
    %v729 = vunpack.c.h.b16 %v60
    %v730 = vunpack.c.l.b16 %v61
    %v731 = vunpack.c.h.b16 %v61
    %v732 = vunpack.c.l.b16 %v62
    %v733 = vunpack.c.h.b16 %v62
    %v734 = vunpack.c.l.b16 %v63
    %v735 = vunpack.c.h.b16 %v63
    %v736 = vunpack.c.l.b16 %v64
    %v737 = vunpack.c.h.b16 %v64
    %v738 = vunpack.c.l.b16 %v65
    %v739 = vunpack.c.l.b16 %v66
    %v740 = vunpack.c.h.b16 %v66
    %v741 = vunpack.c.l.b16 %v67
    %v742 = vunpack.c.h.b16 %v67
    %v743 = vunpack.c.l.b16 %v68
    %v744 = vunpack.c.h.b16 %v68
    %v745 = vunpack.c.l.b16 %v69
    %v746 = vunpack.c.h.b16 %v69
    %v747 = vunpack.c.l.b16 %v70
    %v748 = vunpack.c.h.b16 %v70
    %v749 = vunpack.c.l.b16 %v71
    %v750 = vunpack.c.h.b16 %v71
    %v751 = vunpack.c.l.b16 %v72
    %v752 = vunpack.c.h.b16 %v72
    %v753 = vunpack.c.l.b16 %v73
    %v754 = vunpack.c.h.b16 %v73
    %v755 = vunpack.c.l.b16 %v74
    %v756 = vunpack.c.h.b16 %v74
    %v757 = vunpack.c.l.b16 %v75
    %v758 = vunpack.c.h.b16 %v75
    %v759 = vunpack.c.l.b16 %v76
    %v760 = vunpack.c.h.b16 %v76
    %v761 = vunpack.c.l.b16 %v77
    %v762 = vunpack.c.h.b16 %v77
    %v763 = vunpack.c.l.b16 %v78
    %v764 = vunpack.c.h.b16 %v78
    %v765 = vunpack.c.l.b16 %v79
    %v766 = vunpack.c.l.b16 %v80
    %v767 = vunpack.c.h.b16 %v80
    %v768 = vunpack.c.l.b16 %v81
    %v769 = vunpack.c.h.b16 %v81
    %v770 = vunpack.c.l.b16 %v82
    %v771 = vunpack.c.h.b16 %v82
    %v772 = vunpack.c.l.b16 %v83
    %v773 = vunpack.c.h.b16 %v83
    %v774 = vunpack.c.l.b16 %v84
    %v775 = vunpack.c.h.b16 %v84
    %v776 = vunpack.c.l.b16 %v85
    %v777 = vunpack.c.h.b16 %v85
    %v778 = vunpack.c.l.b16 %v86
    %v779 = vunpack.c.h.b16 %v86
    %v780 = vunpack.c.l.b16 %v87
    %v781 = vunpack.c.h.b16 %v87
    %v782 = vunpack.c.l.b16 %v88
    %v783 = vunpack.c.h.b16 %v88
    %v784 = vunpack.c.l.b16 %v89
    %v785 = vunpack.c.h.b16 %v89
    %v786 = vunpack.c.l.b16 %v90
    %v787 = vunpack.c.h.b16 %v90
    %v788 = vunpack.c.l.b16 %v91
    %v789 = vunpack.c.h.b16 %v91
    %v790 = vunpack.c.l.b16 %v92
    %v791 = vunpack.c.h.b16 %v92
    %v792 = vunpack.c.l.b16 %v93
    %v793 = vunpack.c.l.b16 %v94
    %v794 = vunpack.c.h.b16 %v94
    %v795 = vunpack.c.l.b16 %v95
    %v796 = vunpack.c.h.b16 %v95
    %v797 = vunpack.c.l.b16 %v96
    %v798 = vunpack.c.h.b16 %v96
    %v799 = vunpack.c.l.b16 %v97
    %v800 = vunpack.c.h.b16 %v97
    %v801 = vunpack.c.l.b16 %v98
    %v802 = vunpack.c.h.b16 %v98
    %v803 = vunpack.c.l.b16 %v99
    %v804 = vunpack.c.h.b16 %v99
    %v805 = vunpack.c.l.b16 %v100
    %v806 = vunpack.c.h.b16 %v100
    %v807 = vunpack.c.l.b16 %v101
    %v808 = vunpack.c.h.b16 %v101
    %v809 = vunpack.c.l.b16 %v102
    %v810 = vunpack.c.h.b16 %v102
    %v811 = vunpack.c.l.b16 %v103
    %v812 = vunpack.c.h.b16 %v103
    %v813 = vunpack.c.l.b16 %v104
    %v814 = vunpack.c.h.b16 %v104
    %v815 = vunpack.c.l.b16 %v105
    %v816 = vunpack.c.h.b16 %v105
    %v817 = vunpack.c.l.b16 %v106
    %v818 = vunpack.c.h.b16 %v106
    %v819 = vunpack.c.l.b16 %v107
    %v820 = vunpack.c.l.b16 %v108
    %v821 = vunpack.c.h.b16 %v108
    %v822 = vunpack.c.l.b16 %v109
    %v823 = vunpack.c.h.b16 %v109
    %v824 = vunpack.c.l.b16 %v110
    %v825 = vunpack.c.h.b16 %v110
    %v826 = vunpack.c.l.b16 %v111
    %v827 = vunpack.c.h.b16 %v111
    %v828 = vunpack.c.l.b16 %v112
    %v829 = vunpack.c.h.b16 %v112
    %v830 = vunpack.c.l.b16 %v113
    %v831 = vunpack.c.h.b16 %v113
    %v832 = vunpack.c.l.b16 %v114
    %v833 = vunpack.c.h.b16 %v114
    %v834 = vunpack.c.l.b16 %v115
    %v835 = vunpack.c.h.b16 %v115
    %v836 = vunpack.c.l.b16 %v116
    %v837 = vunpack.c.h.b16 %v116
    %v838 = vunpack.c.l.b16 %v117
    %v839 = vunpack.c.h.b16 %v117
    %v840 = vunpack.c.l.b16 %v118
    %v841 = vunpack.c.h.b16 %v118
    %v842 = vunpack.c.l.b16 %v119
    %v843 = vunpack.c.h.b16 %v119
    %v844 = vunpack.c.l.b16 %v120
    %v845 = vunpack.c.h.b16 %v120
    %v846 = vunpack.c.l.b16 %v121
    %v847 = vpack.c.b16 %v685, %v658
    %v848 = vpack.c.b16 %v686, %v659
    %v849 = vpack.c.b16 %v687, %v660
    %v850 = vpack.c.b16 %v688, %v661
    %v851 = vpack.c.b16 %v689, %v662
    %v852 = vpack.c.b16 %v690, %v663
    %v853 = vpack.c.b16 %v691, %v664
    %v854 = vpack.c.b16 %v692, %v665
    %v855 = vpack.c.b16 %v693, %v666
    %v856 = vpack.c.b16 %v694, %v667
    %v857 = vpack.c.b16 %v695, %v668
    %v858 = vpack.c.b16 %v696, %v669
    %v859 = vpack.c.b16 %v697, %v670
    %v860 = vpack.c.b16 %v698, %v671
    %v861 = vpack.c.b16 %v699, %v672
    %v862 = vpack.c.b16 %v700, %v673
    %v863 = vpack.c.b16 %v701, %v674
    %v864 = vpack.c.b16 %v702, %v675
    %v865 = vpack.c.b16 %v703, %v676
    %v866 = vpack.c.b16 %v704, %v677
    %v867 = vpack.c.b16 %v705, %v678
    %v868 = vpack.c.b16 %v706, %v679
    %v869 = vpack.c.b16 %v707, %v680
    %v870 = vpack.c.b16 %v708, %v681
    %v871 = vpack.c.b16 %v709, %v682
    %v872 = vpack.c.b16 %v710, %v683
    %v873 = vpack.c.b16 %v711, %v684
    %v874 = vpack.c.b16 %v739, %v712
    %v875 = vpack.c.b16 %v740, %v713
    %v876 = vpack.c.b16 %v741, %v714
    %v877 = vpack.c.b16 %v742, %v715
    %v878 = vpack.c.b16 %v743, %v716
    %v879 = vpack.c.b16 %v744, %v717
    %v880 = vpack.c.b16 %v745, %v718
    %v881 = vpack.c.b16 %v746, %v719
    %v882 = vpack.c.b16 %v747, %v720
    %v883 = vpack.c.b16 %v748, %v721
    %v884 = vpack.c.b16 %v749, %v722
    %v885 = vpack.c.b16 %v750, %v723
    %v886 = vpack.c.b16 %v751, %v724
    %v887 = vpack.c.b16 %v752, %v725
    %v888 = vpack.c.b16 %v753, %v726
    %v889 = vpack.c.b16 %v754, %v727
    %v890 = vpack.c.b16 %v755, %v728
    %v891 = vpack.c.b16 %v756, %v729
    %v892 = vpack.c.b16 %v757, %v730
    %v893 = vpack.c.b16 %v758, %v731
    %v894 = vpack.c.b16 %v759, %v732
    %v895 = vpack.c.b16 %v760, %v733
    %v896 = vpack.c.b16 %v761, %v734
    %v897 = vpack.c.b16 %v762, %v735
    %v898 = vpack.c.b16 %v763, %v736
    %v899 = vpack.c.b16 %v764, %v737
    %v900 = vpack.c.b16 %v765, %v738
    %v901 = vpack.c.b16 %v793, %v766
    %v902 = vpack.c.b16 %v794, %v767
    %v903 = vpack.c.b16 %v795, %v768
    %v904 = vpack.c.b16 %v796, %v769
    %v905 = vpack.c.b16 %v797, %v770
    %v906 = vpack.c.b16 %v798, %v771
    %v907 = vpack.c.b16 %v799, %v772
    %v908 = vpack.c.b16 %v800, %v773
    %v909 = vpack.c.b16 %v801, %v774
    %v910 = vpack.c.b16 %v802, %v775
    %v911 = vpack.c.b16 %v803, %v776
    %v912 = vpack.c.b16 %v804, %v777
    %v913 = vpack.c.b16 %v805, %v778
    %v914 = vpack.c.b16 %v806, %v779
    %v915 = vpack.c.b16 %v807, %v780
    %v916 = vpack.c.b16 %v808, %v781
    %v917 = vpack.c.b16 %v809, %v782
    %v918 = vpack.c.b16 %v810, %v783
    %v919 = vpack.c.b16 %v811, %v784
    %v920 = vpack.c.b16 %v812, %v785
    %v921 = vpack.c.b16 %v813, %v786
    %v922 = vpack.c.b16 %v814, %v787
    %v923 = vpack.c.b16 %v815, %v788
    %v924 = vpack.c.b16 %v816, %v789
    %v925 = vpack.c.b16 %v817, %v790
    %v926 = vpack.c.b16 %v818, %v791
    %v927 = vpack.c.b16 %v819, %v792
    %v928 = vpack.c.b16 %v820, %v820
    %v929 = vpack.c.b16 %v821, %v821
    %v930 = vpack.c.b16 %v822, %v822
    %v931 = vpack.c.b16 %v823, %v823
    %v932 = vpack.c.b16 %v824, %v824
    %v933 = vpack.c.b16 %v825, %v825
    %v934 = vpack.c.b16 %v826, %v826
    %v935 = vpack.c.b16 %v827, %v827
    %v936 = vpack.c.b16 %v828, %v828
    %v937 = vpack.c.b16 %v829, %v829
    %v938 = vpack.c.b16 %v830, %v830
    %v939 = vpack.c.b16 %v831, %v831
    %v940 = vpack.c.b16 %v832, %v832
    %v941 = vpack.c.b16 %v833, %v833
    %v942 = vpack.c.b16 %v834, %v834
    %v943 = vpack.c.b16 %v835, %v835
    %v944 = vpack.c.b16 %v836, %v836
    %v945 = vpack.c.b16 %v837, %v837
    %v946 = vpack.c.b16 %v838, %v838
    %v947 = vpack.c.b16 %v839, %v839
    %v948 = vpack.c.b16 %v840, %v840
    %v949 = vpack.c.b16 %v841, %v841
    %v950 = vpack.c.b16 %v842, %v842
    %v951 = vpack.c.b16 %v843, %v843
    %v952 = vpack.c.b16 %v844, %v844
    %v953 = vpack.c.b16 %v845, %v845
    %v954 = vpack.c.b16 %v846, %v846
    %v1495 = vunpack.c.l.b16 %v122
    %v1496 = vunpack.c.h.b16 %v122
    %v1497 = vunpack.c.l.b16 %v123
    %v1498 = vunpack.c.h.b16 %v123
    %v1499 = vunpack.c.l.b16 %v124
    %v1500 = vunpack.c.h.b16 %v124
    %v1501 = vunpack.c.l.b16 %v125
    %v1502 = vunpack.c.h.b16 %v125
    %v1503 = vunpack.c.l.b16 %v126
    %v1504 = vunpack.c.h.b16 %v126
    %v1505 = vunpack.c.l.b16 %v127
    %v1506 = vunpack.c.h.b16 %v127
    %v1507 = vunpack.c.l.b16 %v128
    %v1508 = vunpack.c.h.b16 %v128
    %v1509 = vunpack.c.l.b16 %v129
    %v1510 = vunpack.c.h.b16 %v129
    %v1511 = vunpack.c.l.b16 %v130
    %v1512 = vunpack.c.h.b16 %v130
    %v1513 = vunpack.c.l.b16 %v131
    %v1514 = vunpack.c.h.b16 %v131
    %v1515 = vunpack.c.l.b16 %v132
    %v1516 = vunpack.c.h.b16 %v132
    %v1517 = vunpack.c.l.b16 %v133
    %v1518 = vunpack.c.h.b16 %v133
    %v1519 = vunpack.c.l.b16 %v134
    %v1520 = vunpack.c.h.b16 %v134
    %v1521 = vunpack.c.l.b16 %v135
    %v1522 = vunpack.c.h.b16 %v135
    %v1523 = vunpack.c.l.b16 %v136
    %v1524 = vunpack.c.h.b16 %v136
    %v1525 = vunpack.c.l.b16 %v137
    %v1526 = vunpack.c.h.b16 %v137
    %v1527 = vunpack.c.l.b16 %v138
    %v1528 = vunpack.c.h.b16 %v138
    %v1529 = vunpack.c.l.b16 %v139
    %v1530 = vunpack.c.h.b16 %v139
    %v1531 = vunpack.c.l.b16 %v140
    %v1532 = vunpack.c.h.b16 %v140
    %v1533 = vunpack.c.l.b16 %v141
    %v1534 = vunpack.c.h.b16 %v141
    %v1535 = vunpack.c.l.b16 %v142
    %v1536 = vunpack.c.h.b16 %v142
    %v1537 = vunpack.c.l.b16 %v143
    %v1538 = vunpack.c.h.b16 %v143
    %v1539 = vunpack.c.l.b16 %v144
    %v1540 = vunpack.c.h.b16 %v144
    %v1541 = vunpack.c.l.b16 %v145
    %v1542 = vunpack.c.h.b16 %v145
    %v1543 = vunpack.c.l.b16 %v146
    %v1544 = vunpack.c.h.b16 %v146
    %v1545 = vunpack.c.l.b16 %v147
    %v1546 = vunpack.c.h.b16 %v147
    %v1547 = vunpack.c.l.b16 %v148
    %v1548 = vunpack.c.h.b16 %v148
    %v1549 = vunpack.c.l.b16 %v149
    %v1550 = vunpack.c.h.b16 %v149
    %v1551 = vunpack.c.l.b16 %v150
    %v1552 = vunpack.c.h.b16 %v150
    %v1553 = vunpack.c.l.b16 %v151
    %v1554 = vunpack.c.h.b16 %v151
    %v1555 = vunpack.c.l.b16 %v152
    %v1556 = vunpack.c.h.b16 %v152
    %v1557 = vunpack.c.l.b16 %v153
    %v1558 = vunpack.c.h.b16 %v153
    %v1559 = vunpack.c.l.b16 %v154
    %v1560 = vunpack.c.h.b16 %v154
    %v1561 = vunpack.c.l.b16 %v155
    %v1562 = vunpack.c.h.b16 %v155
    %v1563 = vunpack.c.l.b16 %v156
    %v1564 = vunpack.c.h.b16 %v156
    %v1565 = vunpack.c.l.b16 %v157
    %v1566 = vunpack.c.h.b16 %v157
    %v1567 = vunpack.c.l.b16 %v158
    %v1568 = vunpack.c.h.b16 %v158
    %v1569 = vunpack.c.l.b16 %v159
    %v1570 = vunpack.c.h.b16 %v159
    %v1571 = vunpack.c.l.b16 %v160
    %v1572 = vunpack.c.h.b16 %v160
    %v1573 = vunpack.c.l.b16 %v161
    %v1574 = vunpack.c.h.b16 %v161
    %v1575 = vunpack.c.l.b16 %v162
    %v1576 = vunpack.c.h.b16 %v162
    %v1577 = vunpack.c.l.b16 %v163
    %v1578 = vunpack.c.h.b16 %v163
    %v1579 = vunpack.c.l.b16 %v164
    %v1580 = vunpack.c.h.b16 %v164
    %v1581 = vunpack.c.l.b16 %v165
    %v1582 = vunpack.c.h.b16 %v165
    %v1583 = vunpack.c.l.b16 %v166
    %v1584 = vunpack.c.h.b16 %v166
    %v1585 = vunpack.c.l.b16 %v167
    %v1586 = vunpack.c.h.b16 %v167
    %v1587 = vunpack.c.l.b16 %v168
    %v1588 = vunpack.c.h.b16 %v168
    %v1589 = vunpack.c.l.b16 %v169
    %v1590 = vunpack.c.h.b16 %v169
    %v1591 = vunpack.c.l.b16 %v170
    %v1592 = vunpack.c.h.b16 %v170
    %v1593 = vunpack.c.l.b16 %v171
    %v1594 = vunpack.c.h.b16 %v171
    %v1595 = vunpack.c.l.b16 %v172
    %v1596 = vunpack.c.h.b16 %v172
    %v1597 = vunpack.c.l.b16 %v173
    %v1598 = vunpack.c.h.b16 %v173
    %v1599 = vunpack.c.l.b16 %v174
    %v1600 = vunpack.c.h.b16 %v174
    %v1601 = vunpack.c.l.b16 %v175
    %v1602 = vunpack.c.h.b16 %v175
    %v1603 = vunpack.c.l.b16 %v176
    %v1604 = vunpack.c.h.b16 %v176
    %v1605 = vunpack.c.l.b16 %v177
    %v1606 = vunpack.c.h.b16 %v177
    %v1607 = vunpack.c.l.b16 %v178
    %v1608 = vunpack.c.h.b16 %v178
    %v1609 = vunpack.c.l.b16 %v179
    %v1610 = vunpack.c.h.b16 %v179
    %v1611 = vunpack.c.l.b16 %v180
    %v1612 = vunpack.c.h.b16 %v180
    %v1613 = vunpack.c.l.b16 %v181
    %v1614 = vunpack.c.h.b16 %v181
    %v1615 = vunpack.c.l.b16 %v182
    %v1616 = vunpack.c.h.b16 %v182
    %v1617 = vunpack.c.l.b16 %v183
    %v1618 = vunpack.c.h.b16 %v183
    %v1619 = vunpack.c.l.b16 %v184
    %v1620 = vunpack.c.h.b16 %v184
    %v1621 = vunpack.c.l.b16 %v185
    %v1622 = vunpack.c.h.b16 %v185
    %v1623 = vunpack.c.l.b16 %v186
    %v1624 = vunpack.c.h.b16 %v186
    %v1625 = vunpack.c.l.b16 %v187
    %v1626 = vunpack.c.h.b16 %v187
    %v1627 = vunpack.c.l.b16 %v188
    %v1628 = vunpack.c.h.b16 %v188
    %v1629 = vunpack.c.l.b16 %v189
    %v1630 = vunpack.c.h.b16 %v189
    %v1631 = vunpack.c.l.b16 %v190
    %v1632 = vunpack.c.h.b16 %v190
    %v1633 = vunpack.c.l.b16 %v191
    %v1634 = vunpack.c.h.b16 %v191
    %v1635 = vunpack.c.l.b16 %v192
    %v1636 = vunpack.c.h.b16 %v192
    %v1637 = vunpack.c.l.b16 %v193
    %v1638 = vunpack.c.h.b16 %v193
    %v1639 = vunpack.c.l.b16 %v194
    %v1640 = vunpack.c.h.b16 %v194
    %v1641 = vunpack.c.l.b16 %v195
    %v1642 = vunpack.c.h.b16 %v195
    %v1643 = vunpack.c.l.b16 %v196
    %v1644 = vunpack.c.h.b16 %v196
    %v1645 = vunpack.c.l.b16 %v197
    %v1646 = vunpack.c.h.b16 %v197
    %v1647 = vunpack.c.l.b16 %v198
    %v1648 = vunpack.c.h.b16 %v198
    %v1649 = vunpack.c.l.b16 %v199
    %v1650 = vunpack.c.h.b16 %v199
    %v1651 = vunpack.c.l.b16 %v200
    %v1652 = vunpack.c.h.b16 %v200
    %v1653 = vunpack.c.l.b16 %v201
    %v1654 = vunpack.c.h.b16 %v201
    %v1655 = vunpack.c.l.b16 %v202
    %v1656 = vunpack.c.h.b16 %v202
    %v1657 = vunpack.c.l.b16 %v203
    %v1658 = vunpack.c.h.b16 %v203
    %v1659 = vunpack.c.l.b16 %v204
    %v1660 = vunpack.c.h.b16 %v204
    %v1661 = vunpack.c.l.b16 %v205
    %v1662 = vunpack.c.h.b16 %v205
    %v1663 = vunpack.c.l.b16 %v206
    %v1664 = vunpack.c.h.b16 %v206
    %v1665 = vunpack.c.l.b16 %v207
    %v1666 = vunpack.c.h.b16 %v207
    %v1667 = vunpack.c.l.b16 %v208
    %v1668 = vunpack.c.h.b16 %v208
    %v1669 = vunpack.c.l.b16 %v209
    %v1670 = vunpack.c.h.b16 %v209
    %v1671 = vunpack.c.l.b16 %v210
    %v1672 = vunpack.c.h.b16 %v210
    %v1673 = vunpack.c.l.b16 %v211
    %v1674 = vunpack.c.h.b16 %v211
    %v1675 = vunpack.c.l.b16 %v212
    %v1676 = vunpack.c.h.b16 %v212
    %v1677 = vunpack.c.l.b16 %v213
    %v1678 = vunpack.c.h.b16 %v213
    %v1679 = vunpack.c.l.b16 %v214
    %v1680 = vunpack.c.h.b16 %v214
    %v1681 = vunpack.c.l.b16 %v215
    %v1682 = vunpack.c.h.b16 %v215
    %v1683 = vunpack.c.l.b16 %v216
    %v1684 = vunpack.c.h.b16 %v216
    %v1685 = vunpack.c.l.b16 %v217
    %v1686 = vunpack.c.h.b16 %v217
    %v1687 = vunpack.c.l.b16 %v218
    %v1688 = vunpack.c.h.b16 %v218
    %v1689 = vunpack.c.l.b16 %v219
    %v1690 = vunpack.c.h.b16 %v219
    %v1691 = vunpack.c.l.b16 %v220
    %v1692 = vunpack.c.h.b16 %v220
    %v1693 = vunpack.c.l.b16 %v221
    %v1694 = vunpack.c.h.b16 %v221
    %v1695 = vunpack.c.l.b16 %v222
    %v1696 = vunpack.c.h.b16 %v222
    %v1697 = vunpack.c.l.b16 %v223
    %v1698 = vunpack.c.h.b16 %v223
    %v1699 = vunpack.c.l.b16 %v224
    %v1700 = vunpack.c.h.b16 %v224
    %v1701 = vunpack.c.l.b16 %v225
    %v1702 = vunpack.c.h.b16 %v225
    %v1703 = vunpack.c.l.b16 %v226
    %v1704 = vunpack.c.h.b16 %v226
    %v1705 = vunpack.c.l.b16 %v227
    %v1706 = vunpack.c.h.b16 %v227
    %v1707 = vunpack.c.l.b16 %v228
    %v1708 = vunpack.c.h.b16 %v228
    %v1709 = vunpack.c.l.b16 %v229
    %v1710 = vunpack.c.h.b16 %v229
    %v1711 = vunpack.c.l.b16 %v230
    %v1712 = vunpack.c.h.b16 %v230
    %v1713 = vunpack.c.l.b16 %v231
    %v1714 = vunpack.c.h.b16 %v231
    %v1715 = vunpack.c.l.b16 %v232
    %v1716 = vunpack.c.h.b16 %v232
    %v1717 = vunpack.c.l.b16 %v233
    %v1718 = vunpack.c.h.b16 %v233
    %v1719 = vunpack.c.l.b16 %v234
    %v1720 = vunpack.c.h.b16 %v234
    %v1721 = vunpack.c.l.b16 %v235
    %v1722 = vunpack.c.h.b16 %v235
    %v1723 = vunpack.c.l.b16 %v236
    %v1724 = vunpack.c.h.b16 %v236
    %v1725 = vunpack.c.l.b16 %v237
    %v1726 = vunpack.c.h.b16 %v237
    %v1727 = vunpack.c.l.b16 %v238
    %v1728 = vunpack.c.h.b16 %v238
    %v1729 = vunpack.c.l.b16 %v239
    %v1730 = vunpack.c.h.b16 %v239
    %v1731 = vunpack.c.l.b16 %v240
    %v1732 = vunpack.c.h.b16 %v240
    %v1733 = vunpack.c.l.b16 %v241
    %v1734 = vunpack.c.h.b16 %v241
    %v1735 = vunpack.c.l.b16 %v242
    %v1736 = vunpack.c.h.b16 %v242
    %v1737 = vunpack.c.l.b16 %v243
    %v1738 = vunpack.c.h.b16 %v243
    %v1739 = vunpack.c.l.b16 %v244
    %v1740 = vunpack.c.h.b16 %v244
    %v1741 = vunpack.c.l.b16 %v245
    %v1742 = vunpack.c.h.b16 %v245
    %v1743 = vunpack.c.l.b16 %v246
    %v1744 = vunpack.c.h.b16 %v246
    %v1745 = vunpack.c.l.b16 %v247
    %v1746 = vunpack.c.h.b16 %v247
    %v1747 = vunpack.c.l.b16 %v248
    %v1748 = vunpack.c.h.b16 %v248
    %v1749 = vunpack.c.l.b16 %v249
    %v1750 = vunpack.c.h.b16 %v249
    %v1751 = vunpack.c.l.b16 %v250
    %v1752 = vunpack.c.h.b16 %v250
    %v1753 = vunpack.c.l.b16 %v251
    %v1754 = vunpack.c.h.b16 %v251
    %v1755 = vunpack.c.l.b16 %v252
    %v1756 = vunpack.c.h.b16 %v252
    %v1757 = vunpack.c.l.b16 %v253
    %v1758 = vunpack.c.h.b16 %v253
    %v1759 = vunpack.c.l.b16 %v254
    %v1760 = vunpack.c.h.b16 %v254
    %v1761 = vunpack.c.l.b16 %v255
    %v1762 = vunpack.c.h.b16 %v255
    %v1763 = vunpack.c.l.b16 %v256
    %v1764 = vunpack.c.h.b16 %v256
    %v1765 = vunpack.c.l.b16 %v257
    %v1766 = vunpack.c.h.b16 %v257
    %v1767 = vunpack.c.l.b16 %v258
    %v1768 = vunpack.c.h.b16 %v258
    %v1769 = vunpack.c.l.b16 %v259
    %v1770 = vunpack.c.h.b16 %v259
    %v1771 = vunpack.c.l.b16 %v260
    %v1772 = vunpack.c.h.b16 %v260
    %v1773 = vunpack.c.l.b16 %v261
    %v1774 = vunpack.c.h.b16 %v261
    %v1775 = vunpack.c.l.b16 %v262
    %v1776 = vunpack.c.h.b16 %v262
    %v1777 = vunpack.c.l.b16 %v263
    %v1778 = vunpack.c.h.b16 %v263
    %v1779 = vunpack.c.l.b16 %v264
    %v1780 = vunpack.c.h.b16 %v264
    %v1781 = vunpack.c.l.b16 %v265
    %v1782 = vunpack.c.h.b16 %v265
    %v1783 = vunpack.c.l.b16 %v266
    %v1784 = vunpack.c.h.b16 %v266
    %v1785 = vunpack.c.l.b16 %v267
    %v1786 = vunpack.c.h.b16 %v267
    %v1787 = vunpack.c.l.b16 %v268
    %v1788 = vunpack.c.h.b16 %v268
    %v1789 = vunpack.c.l.b16 %v269
    %v1790 = vunpack.c.h.b16 %v269
    %v1791 = vunpack.c.l.b16 %v270
    %v1792 = vunpack.c.h.b16 %v270
    %v1793 = vunpack.c.l.b16 %v271
    %v1794 = vunpack.c.h.b16 %v271
    %v1795 = vunpack.c.l.b16 %v272
    %v1796 = vunpack.c.h.b16 %v272
    %v1797 = vunpack.c.l.b16 %v273
    %v1798 = vunpack.c.h.b16 %v273
    %v1799 = vunpack.c.l.b16 %v274
    %v1800 = vunpack.c.h.b16 %v274
    %v1801 = vunpack.c.l.b16 %v275
    %v1802 = vunpack.c.h.b16 %v275
    %v1803 = vunpack.c.l.b16 %v276
    %v1804 = vunpack.c.h.b16 %v276
    %v1805 = vunpack.c.l.b16 %v277
    %v1806 = vunpack.c.h.b16 %v277
    %v1807 = vunpack.c.l.b16 %v278
    %v1808 = vunpack.c.h.b16 %v278
    %v1809 = vunpack.c.l.b16 %v279
    %v1810 = vunpack.c.h.b16 %v279
    %v1811 = vunpack.c.l.b16 %v280
    %v1812 = vunpack.c.h.b16 %v280
    %v1813 = vunpack.c.l.b16 %v281
    %v1814 = vunpack.c.h.b16 %v281
    %v1815 = vunpack.c.l.b16 %v282
    %v1816 = vunpack.c.h.b16 %v282
    %v1817 = vunpack.c.l.b16 %v283
    %v1818 = vunpack.c.h.b16 %v283
    %v1819 = vunpack.c.l.b16 %v284
    %v1820 = vunpack.c.h.b16 %v284
    %v1821 = vunpack.c.l.b16 %v285
    %v1822 = vunpack.c.h.b16 %v285
    %v1823 = vunpack.c.l.b16 %v286
    %v1824 = vunpack.c.h.b16 %v286
    %v1825 = vunpack.c.l.b16 %v287
    %v1826 = vunpack.c.h.b16 %v287
    %v1827 = vunpack.c.l.b16 %v288
    %v1828 = vunpack.c.h.b16 %v288
    %v1829 = vunpack.c.l.b16 %v289
    %v1830 = vunpack.c.h.b16 %v289
    %v1831 = vunpack.c.l.b16 %v290
    %v1832 = vunpack.c.h.b16 %v290
    %v1833 = vunpack.c.l.b16 %v291
    %v1834 = vunpack.c.h.b16 %v291
    %v1835 = vunpack.c.l.b16 %v292
    %v1836 = vunpack.c.h.b16 %v292
    %v1837 = vunpack.c.l.b16 %v293
    %v1838 = vunpack.c.h.b16 %v293
    %v1839 = vunpack.c.l.b16 %v294
    %v1840 = vunpack.c.h.b16 %v294
    %v1841 = vunpack.c.l.b16 %v295
    %v1842 = vunpack.c.h.b16 %v295
    %v1843 = vunpack.c.l.b16 %v296
    %v1844 = vunpack.c.h.b16 %v296
    %v1845 = vunpack.c.l.b16 %v297
    %v1846 = vunpack.c.h.b16 %v297
    %v1847 = vunpack.c.l.b16 %v298
    %v1848 = vunpack.c.h.b16 %v298
    %v1849 = vunpack.c.l.b16 %v299
    %v1850 = vunpack.c.h.b16 %v299
    %v1851 = vunpack.c.l.b16 %v300
    %v1852 = vunpack.c.h.b16 %v300
    %v1853 = vunpack.c.l.b16 %v301
    %v1854 = vunpack.c.h.b16 %v301
    %v1855 = vunpack.c.l.b16 %v302
    %v1856 = vunpack.c.h.b16 %v302
    %v1857 = vunpack.c.l.b16 %v303
    %v1858 = vunpack.c.h.b16 %v303
    %v1859 = vunpack.c.l.b16 %v304
    %v1860 = vunpack.c.h.b16 %v304
    %v1861 = vunpack.c.l.b16 %v305
    %v1862 = vunpack.c.h.b16 %v305
    %v1863 = vunpack.c.l.b16 %v306
    %v1864 = vunpack.c.h.b16 %v306
    %v1865 = vunpack.c.l.b16 %v307
    %v1866 = vunpack.c.h.b16 %v307
    %v1867 = vunpack.c.l.b16 %v308
    %v1868 = vunpack.c.h.b16 %v308
    %v1869 = vunpack.c.l.b16 %v309
    %v1870 = vunpack.c.h.b16 %v309
    %v1871 = vunpack.c.l.b16 %v310
    %v1872 = vunpack.c.h.b16 %v310
    %v1873 = vunpack.c.l.b16 %v311
    %v1874 = vunpack.c.h.b16 %v311
    %v1875 = vunpack.c.l.b16 %v312
    %v1876 = vunpack.c.h.b16 %v312
    %v1877 = vunpack.c.l.b16 %v313
    %v1878 = vunpack.c.h.b16 %v313
    %v1879 = vunpack.c.l.b16 %v314
    %v1880 = vunpack.c.h.b16 %v314
    %v1881 = vunpack.c.l.b16 %v315
    %v1882 = vunpack.c.h.b16 %v315
    %v1883 = vunpack.c.l.b16 %v316
    %v1884 = vunpack.c.h.b16 %v316
    %v1885 = vunpack.c.l.b16 %v317
    %v1886 = vunpack.c.h.b16 %v317
    %v1887 = vunpack.c.l.b16 %v318
    %v1888 = vunpack.c.h.b16 %v318
    %v1889 = vunpack.c.l.b16 %v319
    %v1890 = vunpack.c.h.b16 %v319
    %v1891 = vunpack.c.l.b16 %v320
    %v1892 = vunpack.c.h.b16 %v320
    %v1893 = vunpack.c.l.b16 %v321
    %v1894 = vunpack.c.h.b16 %v321
    %v1895 = vunpack.c.l.b16 %v322
    %v1896 = vunpack.c.h.b16 %v322
    %v1897 = vunpack.c.l.b16 %v323
    %v1898 = vunpack.c.h.b16 %v323
    %v1899 = vunpack.c.l.b16 %v324
    %v1900 = vunpack.c.h.b16 %v324
    %v1901 = vunpack.c.l.b16 %v325
    %v1902 = vunpack.c.h.b16 %v325
    %v1903 = vunpack.c.l.b16 %v326
    %v1904 = vunpack.c.h.b16 %v326
    %v1905 = vunpack.c.l.b16 %v327
    %v1906 = vunpack.c.h.b16 %v327
    %v1907 = vunpack.c.l.b16 %v328
    %v1908 = vunpack.c.h.b16 %v328
    %v1909 = vunpack.c.l.b16 %v329
    %v1910 = vunpack.c.h.b16 %v329
    %v1911 = vunpack.c.l.b16 %v330
    %v1912 = vunpack.c.h.b16 %v330
    %v1913 = vunpack.c.l.b16 %v331
    %v1914 = vunpack.c.h.b16 %v331
    %v1915 = vunpack.c.l.b16 %v332
    %v1916 = vunpack.c.h.b16 %v332
    %v1917 = vunpack.c.l.b16 %v333
    %v1918 = vunpack.c.h.b16 %v333
    %v1919 = vunpack.c.l.b16 %v334
    %v1920 = vunpack.c.h.b16 %v334
    %v1921 = vunpack.c.l.b16 %v335
    %v1922 = vunpack.c.h.b16 %v335
    %v1923 = vunpack.c.l.b16 %v336
    %v1924 = vunpack.c.h.b16 %v336
    %v1925 = vunpack.c.l.b16 %v337
    %v1926 = vunpack.c.h.b16 %v337
    %v1927 = vunpack.c.l.b16 %v338
    %v1928 = vunpack.c.h.b16 %v338
    %v1929 = vunpack.c.l.b16 %v339
    %v1930 = vunpack.c.h.b16 %v339
    %v1931 = vunpack.c.l.b16 %v340
    %v1932 = vunpack.c.h.b16 %v340
    %v1933 = vunpack.c.l.b16 %v341
    %v1934 = vunpack.c.h.b16 %v341
    %v1935 = vunpack.c.l.b16 %v342
    %v1936 = vunpack.c.h.b16 %v342
    %v1937 = vunpack.c.l.b16 %v343
    %v1938 = vunpack.c.h.b16 %v343
    %v1939 = vunpack.c.l.b16 %v344
    %v1940 = vunpack.c.h.b16 %v344
    %v1941 = vunpack.c.l.b16 %v345
    %v1942 = vunpack.c.h.b16 %v345
    %v1943 = vunpack.c.l.b16 %v346
    %v1944 = vunpack.c.h.b16 %v346
    %v1945 = vunpack.c.l.b16 %v347
    %v1946 = vunpack.c.h.b16 %v347
    %v1947 = vunpack.c.l.b16 %v348
    %v1948 = vunpack.c.h.b16 %v348
    %v1949 = vunpack.c.l.b16 %v349
    %v1950 = vunpack.c.h.b16 %v349
    %v1951 = vunpack.c.l.b16 %v350
    %v1952 = vunpack.c.h.b16 %v350
    %v1953 = vunpack.c.l.b16 %v351
    %v1954 = vunpack.c.h.b16 %v351
    %v1955 = vunpack.c.l.b16 %v352
    %v1956 = vunpack.c.h.b16 %v352
    %v1957 = vunpack.c.l.b16 %v353
    %v1958 = vunpack.c.h.b16 %v353
    %v1959 = vunpack.c.l.b16 %v354
    %v1960 = vunpack.c.h.b16 %v354
    %v1961 = vunpack.c.l.b16 %v355
    %v1962 = vunpack.c.h.b16 %v355
    %v1963 = vunpack.c.l.b16 %v356
    %v1964 = vunpack.c.h.b16 %v356
    %v1965 = vunpack.c.l.b16 %v357
    %v1966 = vunpack.c.h.b16 %v357
    %v1967 = vunpack.c.l.b16 %v358
    %v1968 = vunpack.c.h.b16 %v358
    %v1969 = vunpack.c.l.b16 %v359
    %v1970 = vunpack.c.h.b16 %v359
    %v1971 = vunpack.c.l.b16 %v360
    %v1972 = vunpack.c.h.b16 %v360
    %v1973 = vunpack.c.l.b16 %v361
    %v1974 = vunpack.c.h.b16 %v361
    %v1975 = vunpack.c.l.b16 %v362
    %v1976 = vunpack.c.h.b16 %v362
    %v1977 = vunpack.c.l.b16 %v363
    %v1978 = vunpack.c.h.b16 %v363
    %v1979 = vunpack.c.l.b16 %v364
    %v1980 = vunpack.c.h.b16 %v364
    %v1981 = vunpack.c.l.b16 %v365
    %v1982 = vunpack.c.h.b16 %v365
    %v1983 = vunpack.c.l.b16 %v366
    %v1984 = vunpack.c.h.b16 %v366
    %v1985 = vunpack.c.l.b16 %v367
    %v1986 = vunpack.c.h.b16 %v367
    %v1987 = vunpack.c.l.b16 %v368
    %v1988 = vunpack.c.h.b16 %v368
    %v1989 = vunpack.c.l.b16 %v369
    %v1990 = vunpack.c.h.b16 %v369
    %v1991 = vunpack.c.l.b16 %v370
    %v1992 = vunpack.c.h.b16 %v370
    %v1993 = vunpack.c.l.b16 %v371
    %v1994 = vunpack.c.h.b16 %v371
    %v1995 = vunpack.c.l.b16 %v372
    %v1996 = vunpack.c.h.b16 %v372
    %v1997 = vunpack.c.l.b16 %v373
    %v1998 = vunpack.c.h.b16 %v373
    %v1999 = vunpack.c.l.b16 %v374
    %v2000 = vunpack.c.h.b16 %v374
    %v2001 = vunpack.c.l.b16 %v375
    %v2002 = vunpack.c.h.b16 %v375
    %v2003 = vunpack.c.l.b16 %v376
    %v2004 = vunpack.c.h.b16 %v376
    %v2005 = vunpack.c.l.b16 %v377
    %v2006 = vunpack.c.h.b16 %v377
    %v2007 = vunpack.c.l.b16 %v378
    %v2008 = vunpack.c.h.b16 %v378
    %v2009 = vunpack.c.l.b16 %v379
    %v2010 = vunpack.c.h.b16 %v379
    %v2011 = vunpack.c.l.b16 %v380
    %v2012 = vunpack.c.h.b16 %v380
    %v2013 = vunpack.c.l.b16 %v381
    %v2014 = vunpack.c.h.b16 %v381
    %v2015 = vunpack.c.l.b16 %v382
    %v2016 = vunpack.c.h.b16 %v382
    %v2017 = vunpack.c.l.b16 %v383
    %v2018 = vunpack.c.h.b16 %v383
    %v2019 = vunpack.c.l.b16 %v384
    %v2020 = vunpack.c.h.b16 %v384
    %v2021 = vunpack.c.l.b16 %v385
    %v2022 = vunpack.c.h.b16 %v385
    %v2023 = vunpack.c.l.b16 %v386
    %v2024 = vunpack.c.h.b16 %v386
    %v2025 = vunpack.c.l.b16 %v387
    %v2026 = vunpack.c.h.b16 %v387
    %v2027 = vunpack.c.l.b16 %v388
    %v2028 = vunpack.c.h.b16 %v388
    %v2029 = vunpack.c.l.b16 %v389
    %v2030 = vunpack.c.h.b16 %v389
    %v2031 = vunpack.c.l.b16 %v390
    %v2032 = vunpack.c.h.b16 %v390
    %v2033 = vunpack.c.l.b16 %v391
    %v2034 = vunpack.c.h.b16 %v391
    %v2035 = vunpack.c.l.b16 %v392
    %v2036 = vunpack.c.h.b16 %v392
    %v2037 = vunpack.c.l.b16 %v393
    %v2038 = vunpack.c.h.b16 %v393
    %v2039 = vunpack.c.l.b16 %v394
    %v2040 = vunpack.c.h.b16 %v394
    %v2041 = vunpack.c.l.b16 %v395
    %v2042 = vunpack.c.h.b16 %v395
    %v2043 = vunpack.c.l.b16 %v396
    %v2044 = vunpack.c.h.b16 %v396
    %v2045 = vunpack.c.l.b16 %v397
    %v2046 = vunpack.c.h.b16 %v397
    %v2047 = vunpack.c.l.b16 %v398
    %v2048 = vunpack.c.h.b16 %v398
    %v2049 = vunpack.c.l.b16 %v399
    %v2050 = vunpack.c.h.b16 %v399
    %v2051 = vunpack.c.l.b16 %v400
    %v2052 = vunpack.c.h.b16 %v400
    %v2053 = vunpack.c.l.b16 %v401
    %v2054 = vunpack.c.h.b16 %v401
    %v2055 = vunpack.c.l.b16 %v402
    %v2056 = vunpack.c.h.b16 %v402
    %v2057 = vunpack.c.l.b16 %v403
    %v2058 = vunpack.c.h.b16 %v403
    %v2059 = vunpack.c.l.b16 %v404
    %v2060 = vunpack.c.h.b16 %v404
    %v2061 = vunpack.c.l.b16 %v405
    %v2062 = vunpack.c.h.b16 %v405
    %v2063 = vunpack.c.l.b16 %v406
    %v2064 = vunpack.c.h.b16 %v406
    %v2065 = vunpack.c.l.b16 %v407
    %v2066 = vunpack.c.h.b16 %v407
    %v2067 = vunpack.c.l.b16 %v408
    %v2068 = vunpack.c.h.b16 %v408
    %v2069 = vunpack.c.l.b16 %v409
    %v2070 = vunpack.c.h.b16 %v409
    %v2071 = vunpack.c.l.b16 %v410
    %v2072 = vunpack.c.h.b16 %v410
    %v2073 = vunpack.c.l.b16 %v411
    %v2074 = vunpack.c.h.b16 %v411
    %v2075 = vunpack.c.l.b16 %v412
    %v2076 = vunpack.c.h.b16 %v412
    %v2077 = vunpack.c.l.b16 %v413
    %v2078 = vunpack.c.h.b16 %v413
    %v2079 = vunpack.c.l.b16 %v414
    %v2080 = vunpack.c.h.b16 %v414
    %v2081 = vunpack.c.l.b16 %v415
    %v2082 = vunpack.c.h.b16 %v415
    %v2083 = vunpack.c.l.b16 %v416
    %v2084 = vunpack.c.h.b16 %v416
    %v2085 = vunpack.c.l.b16 %v417
    %v2086 = vunpack.c.h.b16 %v417
    %v2087 = vunpack.c.l.b16 %v418
    %v2088 = vunpack.c.h.b16 %v418
    %v2089 = vunpack.c.l.b16 %v419
    %v2090 = vunpack.c.h.b16 %v419
    %v2091 = vunpack.c.l.b16 %v420
    %v2092 = vunpack.c.h.b16 %v420
    %v2093 = vunpack.c.l.b16 %v421
    %v2094 = vunpack.c.h.b16 %v421
    %v2095 = vunpack.c.l.b16 %v422
    %v2096 = vunpack.c.h.b16 %v422
    %v2097 = vunpack.c.l.b16 %v423
    %v2098 = vunpack.c.h.b16 %v423
    %v2099 = vunpack.c.l.b16 %v424
    %v2100 = vunpack.c.h.b16 %v424
    %v2101 = vunpack.c.l.b16 %v425
    %v2102 = vunpack.c.h.b16 %v425
    %v2103 = vunpack.c.l.b16 %v426
    %v2104 = vunpack.c.h.b16 %v426
    %v2105 = vunpack.c.l.b16 %v427
    %v2106 = vunpack.c.h.b16 %v427
    %v2107 = vunpack.c.l.b16 %v428
    %v2108 = vunpack.c.h.b16 %v428
    %v2109 = vunpack.c.l.b16 %v429
    %v2110 = vunpack.c.h.b16 %v429
    %v2111 = vunpack.c.l.b16 %v430
    %v2112 = vunpack.c.h.b16 %v430
    %v2113 = vunpack.c.l.b16 %v431
    %v2114 = vunpack.c.h.b16 %v431
    %v2115 = vunpack.c.l.b16 %v432
    %v2116 = vunpack.c.h.b16 %v432
    %v2117 = vunpack.c.l.b16 %v433
    %v2118 = vunpack.c.h.b16 %v433
    %v2119 = vunpack.c.l.b16 %v434
    %v2120 = vunpack.c.h.b16 %v434
    %v2121 = vunpack.c.l.b16 %v435
    %v2122 = vunpack.c.h.b16 %v435
    %v2123 = vunpack.c.l.b16 %v436
    %v2124 = vunpack.c.h.b16 %v436
    %v2125 = vunpack.c.l.b16 %v437
    %v2126 = vunpack.c.h.b16 %v437
    %v2127 = vunpack.c.l.b16 %v438
    %v2128 = vunpack.c.h.b16 %v438
    %v2129 = vunpack.c.l.b16 %v439
    %v2130 = vunpack.c.h.b16 %v439
    %v2131 = vunpack.c.l.b16 %v440
    %v2132 = vunpack.c.h.b16 %v440
    %v2133 = vunpack.c.l.b16 %v441
    %v2134 = vunpack.c.h.b16 %v441
    %v2135 = vunpack.c.l.b16 %v442
    %v2136 = vunpack.c.h.b16 %v442
    %v2137 = vunpack.c.l.b16 %v443
    %v2138 = vunpack.c.h.b16 %v443
    %v2139 = vunpack.c.l.b16 %v444
    %v2140 = vunpack.c.h.b16 %v444
    %v2141 = vunpack.c.l.b16 %v445
    %v2142 = vunpack.c.h.b16 %v445
    %v2143 = vunpack.c.l.b16 %v446
    %v2144 = vunpack.c.h.b16 %v446
    %v2145 = vunpack.c.l.b16 %v447
    %v2146 = vunpack.c.h.b16 %v447
    %v2147 = vunpack.c.l.b16 %v448
    %v2148 = vunpack.c.h.b16 %v448
    %v2149 = vunpack.c.l.b16 %v449
    %v2150 = vunpack.c.h.b16 %v449
    %v2151 = vunpack.c.l.b16 %v450
    %v2152 = vunpack.c.h.b16 %v450
    %v2153 = vunpack.c.l.b16 %v451
    %v2154 = vunpack.c.h.b16 %v451
    %v2155 = vunpack.c.l.b16 %v452
    %v2156 = vunpack.c.h.b16 %v452
    %v2157 = vunpack.c.l.b16 %v453
    %v2158 = vunpack.c.h.b16 %v453
    %v2159 = vunpack.c.l.b16 %v454
    %v2160 = vunpack.c.h.b16 %v454
    %v2161 = vunpack.c.l.b16 %v455
    %v2162 = vunpack.c.h.b16 %v455
    %v2163 = vunpack.c.l.b16 %v456
    %v2164 = vunpack.c.h.b16 %v456
    %v2165 = vunpack.c.l.b16 %v457
    %v2166 = vunpack.c.h.b16 %v457
    %v2167 = vunpack.c.l.b16 %v458
    %v2168 = vunpack.c.h.b16 %v458
    %v2169 = vunpack.c.l.b16 %v459
    %v2170 = vunpack.c.h.b16 %v459
    %v2171 = vunpack.c.l.b16 %v460
    %v2172 = vunpack.c.h.b16 %v460
    %v2173 = vunpack.c.l.b16 %v461
    %v2174 = vunpack.c.h.b16 %v461
    %v2175 = vunpack.c.l.b16 %v462
    %v2176 = vunpack.c.h.b16 %v462
    %v2177 = vunpack.c.l.b16 %v463
    %v2178 = vunpack.c.h.b16 %v463
    %v2179 = vunpack.c.l.b16 %v464
    %v2180 = vunpack.c.h.b16 %v464
    %v2181 = vunpack.c.l.b16 %v465
    %v2182 = vunpack.c.h.b16 %v465
    %v2183 = vunpack.c.l.b16 %v466
    %v2184 = vunpack.c.h.b16 %v466
    %v2185 = vunpack.c.l.b16 %v467
    %v2186 = vunpack.c.h.b16 %v467
    %v2187 = vunpack.c.l.b16 %v468
    %v2188 = vunpack.c.h.b16 %v468
    %v2189 = vunpack.c.l.b16 %v469
    %v2190 = vunpack.c.h.b16 %v469
    %v2191 = vunpack.c.l.b16 %v470
    %v2192 = vunpack.c.h.b16 %v470
    %v2193 = vunpack.c.l.b16 %v471
    %v2194 = vunpack.c.h.b16 %v471
    %v2195 = vunpack.c.l.b16 %v472
    %v2196 = vunpack.c.h.b16 %v472
    %v2197 = vunpack.c.l.b16 %v473
    %v2198 = vunpack.c.h.b16 %v473
    %v2199 = vunpack.c.l.b16 %v474
    %v2200 = vunpack.c.h.b16 %v474
    %v2201 = vunpack.c.l.b16 %v475
    %v2202 = vunpack.c.h.b16 %v475
    %v2203 = vunpack.c.l.b16 %v476
    %v2204 = vunpack.c.h.b16 %v476
    %v2205 = vunpack.c.l.b16 %v477
    %v2206 = vunpack.c.h.b16 %v477
    %v2207 = vunpack.c.l.b16 %v478
    %v2208 = vunpack.c.h.b16 %v478
    %v2209 = vunpack.c.l.b16 %v479
    %v2210 = vunpack.c.h.b16 %v479
    %v2211 = vunpack.c.l.b16 %v480
    %v2212 = vunpack.c.h.b16 %v480
    %v2213 = vunpack.c.l.b16 %v481
    %v2214 = vunpack.c.h.b16 %v481
    %v2215 = vunpack.c.l.b16 %v482
    %v2216 = vunpack.c.h.b16 %v482
    %v2217 = vunpack.c.l.b16 %v483
    %v2218 = vunpack.c.h.b16 %v483
    %v2219 = vunpack.c.l.b16 %v484
    %v2220 = vunpack.c.h.b16 %v484
    %v2221 = vunpack.c.l.b16 %v485
    %v2222 = vunpack.c.h.b16 %v485
    %v2223 = vunpack.c.l.b16 %v486
    %v2224 = vunpack.c.h.b16 %v486
    %v2225 = vunpack.c.l.b16 %v487
    %v2226 = vunpack.c.h.b16 %v487
    %v2227 = vunpack.c.l.b16 %v488
    %v2228 = vunpack.c.h.b16 %v488
    %v2229 = vunpack.c.l.b16 %v489
    %v2230 = vunpack.c.h.b16 %v489
    %v2231 = vunpack.c.l.b16 %v490
    %v2232 = vunpack.c.h.b16 %v490
    %v2233 = vunpack.c.l.b16 %v491
    %v2234 = vunpack.c.h.b16 %v491
    %v2235 = vunpack.c.l.b16 %v492
    %v2236 = vunpack.c.h.b16 %v492
    %v2237 = vunpack.c.l.b16 %v493
    %v2238 = vunpack.c.h.b16 %v493
    %v2239 = vunpack.c.l.b16 %v494
    %v2240 = vunpack.c.h.b16 %v494
    %v2241 = vunpack.c.l.b16 %v495
    %v2242 = vunpack.c.h.b16 %v495
    %v2243 = vunpack.c.l.b16 %v496
    %v2244 = vunpack.c.h.b16 %v496
    %v2245 = vunpack.c.l.b16 %v497
    %v2246 = vunpack.c.h.b16 %v497
    %v2247 = vunpack.c.l.b16 %v498
    %v2248 = vunpack.c.h.b16 %v498
    %v2249 = vunpack.c.l.b16 %v499
    %v2250 = vunpack.c.h.b16 %v499
    %v2251 = vunpack.c.l.b16 %v500
    %v2252 = vunpack.c.h.b16 %v500
    %v2253 = vunpack.c.l.b16 %v501
    %v2254 = vunpack.c.h.b16 %v501
    %v2255 = vunpack.c.l.b16 %v502
    %v2256 = vunpack.c.h.b16 %v502
    %v2257 = vunpack.c.l.b16 %v503
    %v2258 = vunpack.c.h.b16 %v503
    %v2259 = vunpack.c.l.b16 %v504
    %v2260 = vunpack.c.h.b16 %v504
    %v2261 = vunpack.c.l.b16 %v505
    %v2262 = vunpack.c.h.b16 %v505
    %v2263 = vunpack.c.l.b16 %v506
    %v2264 = vunpack.c.h.b16 %v506
    %v2265 = vunpack.c.l.b16 %v507
    %v2266 = vunpack.c.h.b16 %v507
    %v2267 = vunpack.c.l.b16 %v508
    %v2268 = vunpack.c.h.b16 %v508
    %v2269 = vunpack.c.l.b16 %v509
    %v2270 = vunpack.c.h.b16 %v509
    %v2271 = vunpack.c.l.b16 %v510
    %v2272 = vunpack.c.h.b16 %v510
    %v2273 = vunpack.c.l.b16 %v511
    %v2274 = vunpack.c.h.b16 %v511
    %v2275 = vunpack.c.l.b16 %v512
    %v2276 = vunpack.c.h.b16 %v512
    %v2277 = vunpack.c.l.b16 %v513
    %v2278 = vunpack.c.h.b16 %v513
    %v2279 = vunpack.c.l.b16 %v514
    %v2280 = vunpack.c.h.b16 %v514
    %v2281 = vunpack.c.l.b16 %v515
    %v2282 = vunpack.c.h.b16 %v515
    %v2283 = vunpack.c.l.b16 %v516
    %v2284 = vunpack.c.h.b16 %v516
    %v2285 = vunpack.c.l.b16 %v517
    %v2286 = vunpack.c.h.b16 %v517
    %v2287 = vunpack.c.l.b16 %v518
    %v2288 = vunpack.c.h.b16 %v518
    %v2289 = vunpack.c.l.b16 %v519
    %v2290 = vunpack.c.h.b16 %v519
    %v2291 = vunpack.c.l.b16 %v520
    %v2292 = vunpack.c.h.b16 %v520
    %v2293 = vunpack.c.l.b16 %v521
    %v2294 = vunpack.c.h.b16 %v521
    %v2295 = vunpack.c.l.b16 %v522
    %v2296 = vunpack.c.h.b16 %v522
    %v2297 = vunpack.c.l.b16 %v523
    %v2298 = vunpack.c.h.b16 %v523
    %v2299 = vunpack.c.l.b16 %v524
    %v2300 = vunpack.c.h.b16 %v524
    %v2301 = vunpack.c.l.b16 %v525
    %v2302 = vunpack.c.h.b16 %v525
    %v2303 = vunpack.c.l.b16 %v526
    %v2304 = vunpack.c.h.b16 %v526
    %v2305 = vunpack.c.l.b16 %v527
    %v2306 = vunpack.c.h.b16 %v527
    %v2307 = vunpack.c.l.b16 %v528
    %v2308 = vunpack.c.h.b16 %v528
    %v2309 = vunpack.c.l.b16 %v529
    %v2310 = vunpack.c.h.b16 %v529
    %v2311 = vunpack.c.l.b16 %v530
    %v2312 = vunpack.c.h.b16 %v530
    %v2313 = vunpack.c.l.b16 %v531
    %v2314 = vunpack.c.h.b16 %v531
    %v2315 = vunpack.c.l.b16 %v532
    %v2316 = vunpack.c.h.b16 %v532
    %v2317 = vunpack.c.l.b16 %v533
    %v2318 = vunpack.c.h.b16 %v533
    %v2319 = vunpack.c.l.b16 %v534
    %v2320 = vunpack.c.h.b16 %v534
    %v2321 = vunpack.c.l.b16 %v535
    %v2322 = vunpack.c.h.b16 %v535
    %v2323 = vunpack.c.l.b16 %v536
    %v2324 = vunpack.c.h.b16 %v536
    %v2325 = vunpack.c.l.b16 %v537
    %v2326 = vunpack.c.h.b16 %v537
    %v2327 = vunpack.c.l.b16 %v538
    %v2328 = vunpack.c.h.b16 %v538
    %v2329 = vunpack.c.l.b16 %v539
    %v2330 = vunpack.c.h.b16 %v539
    %v2331 = vunpack.c.l.b16 %v540
    %v2332 = vunpack.c.h.b16 %v540
    %v2333 = vunpack.c.l.b16 %v541
    %v2334 = vunpack.c.h.b16 %v541
    %v2335 = vunpack.c.l.b16 %v542
    %v2336 = vunpack.c.h.b16 %v542
    %v2337 = vunpack.c.l.b16 %v543
    %v2338 = vunpack.c.h.b16 %v543
    %v2339 = vunpack.c.l.b16 %v544
    %v2340 = vunpack.c.h.b16 %v544
    %v2341 = vunpack.c.l.b16 %v545
    %v2342 = vunpack.c.h.b16 %v545
    %v2343 = vunpack.c.l.b16 %v546
    %v2344 = vunpack.c.h.b16 %v546
    %v2345 = vunpack.c.l.b16 %v547
    %v2346 = vunpack.c.h.b16 %v547
    %v2347 = vunpack.c.l.b16 %v548
    %v2348 = vunpack.c.h.b16 %v548
    %v2349 = vunpack.c.l.b16 %v549
    %v2350 = vunpack.c.h.b16 %v549
    %v2351 = vunpack.c.l.b16 %v550
    %v2352 = vunpack.c.h.b16 %v550
    %v2353 = vunpack.c.l.b16 %v551
    %v2354 = vunpack.c.h.b16 %v551
    %v2355 = vunpack.c.l.b16 %v552
    %v2356 = vunpack.c.h.b16 %v552
    %v2357 = vunpack.c.l.b16 %v553
    %v2358 = vunpack.c.h.b16 %v553
    %v2359 = vpack.c.b16 %v1497, %v1495
    %v2360 = vpack.c.b16 %v1498, %v1496
    %v2361 = vpack.c.b16 %v1501, %v1499
    %v2362 = vpack.c.b16 %v1502, %v1500
    %v2363 = vpack.c.b16 %v1505, %v1503
    %v2364 = vpack.c.b16 %v1506, %v1504
    %v2365 = vpack.c.b16 %v1509, %v1507
    %v2366 = vpack.c.b16 %v1510, %v1508
    %v2367 = vpack.c.b16 %v1513, %v1511
    %v2368 = vpack.c.b16 %v1514, %v1512
    %v2369 = vpack.c.b16 %v1517, %v1515
    %v2370 = vpack.c.b16 %v1518, %v1516
    %v2371 = vpack.c.b16 %v1521, %v1519
    %v2372 = vpack.c.b16 %v1522, %v1520
    %v2373 = vpack.c.b16 %v1525, %v1523
    %v2374 = vpack.c.b16 %v1526, %v1524
    %v2375 = vpack.c.b16 %v1529, %v1527
    %v2376 = vpack.c.b16 %v1530, %v1528
    %v2377 = vpack.c.b16 %v1533, %v1531
    %v2378 = vpack.c.b16 %v1534, %v1532
    %v2379 = vpack.c.b16 %v1537, %v1535
    %v2380 = vpack.c.b16 %v1538, %v1536
    %v2381 = vpack.c.b16 %v1541, %v1539
    %v2382 = vpack.c.b16 %v1542, %v1540
    %v2383 = vpack.c.b16 %v1545, %v1543
    %v2384 = vpack.c.b16 %v1546, %v1544
    %v2385 = vpack.c.b16 %v1549, %v1547
    %v2386 = vpack.c.b16 %v1550, %v1548
    %v2387 = vpack.c.b16 %v1553, %v1551
    %v2388 = vpack.c.b16 %v1554, %v1552
    %v2389 = vpack.c.b16 %v1557, %v1555
    %v2390 = vpack.c.b16 %v1558, %v1556
    %v2391 = vpack.c.b16 %v1561, %v1559
    %v2392 = vpack.c.b16 %v1562, %v1560
    %v2393 = vpack.c.b16 %v1565, %v1563
    %v2394 = vpack.c.b16 %v1566, %v1564
    %v2395 = vpack.c.b16 %v1569, %v1567
    %v2396 = vpack.c.b16 %v1570, %v1568
    %v2397 = vpack.c.b16 %v1573, %v1571
    %v2398 = vpack.c.b16 %v1574, %v1572
    %v2399 = vpack.c.b16 %v1577, %v1575
    %v2400 = vpack.c.b16 %v1578, %v1576
    %v2401 = vpack.c.b16 %v1581, %v1579
    %v2402 = vpack.c.b16 %v1582, %v1580
    %v2403 = vpack.c.b16 %v1585, %v1583
    %v2404 = vpack.c.b16 %v1586, %v1584
    %v2405 = vpack.c.b16 %v1589, %v1587
    %v2406 = vpack.c.b16 %v1590, %v1588
    %v2407 = vpack.c.b16 %v1593, %v1591
    %v2408 = vpack.c.b16 %v1594, %v1592
    %v2409 = vpack.c.b16 %v1597, %v1595
    %v2410 = vpack.c.b16 %v1598, %v1596
    %v2411 = vpack.c.b16 %v1601, %v1599
    %v2412 = vpack.c.b16 %v1602, %v1600
    %v2413 = vpack.c.b16 %v1605, %v1603
    %v2414 = vpack.c.b16 %v1606, %v1604
    %v2415 = vpack.c.b16 %v1609, %v1607
    %v2416 = vpack.c.b16 %v1610, %v1608
    %v2417 = vpack.c.b16 %v1613, %v1611
    %v2418 = vpack.c.b16 %v1614, %v1612
    %v2419 = vpack.c.b16 %v1617, %v1615
    %v2420 = vpack.c.b16 %v1618, %v1616
    %v2421 = vpack.c.b16 %v1621, %v1619
    %v2422 = vpack.c.b16 %v1622, %v1620
    %v2423 = vpack.c.b16 %v1625, %v1623
    %v2424 = vpack.c.b16 %v1626, %v1624
    %v2425 = vpack.c.b16 %v1629, %v1627
    %v2426 = vpack.c.b16 %v1630, %v1628
    %v2427 = vpack.c.b16 %v1633, %v1631
    %v2428 = vpack.c.b16 %v1634, %v1632
    %v2429 = vpack.c.b16 %v1637, %v1635
    %v2430 = vpack.c.b16 %v1638, %v1636
    %v2431 = vpack.c.b16 %v1641, %v1639
    %v2432 = vpack.c.b16 %v1642, %v1640
    %v2433 = vpack.c.b16 %v1645, %v1643
    %v2434 = vpack.c.b16 %v1646, %v1644
    %v2435 = vpack.c.b16 %v1649, %v1647
    %v2436 = vpack.c.b16 %v1650, %v1648
    %v2437 = vpack.c.b16 %v1653, %v1651
    %v2438 = vpack.c.b16 %v1654, %v1652
    %v2439 = vpack.c.b16 %v1657, %v1655
    %v2440 = vpack.c.b16 %v1658, %v1656
    %v2441 = vpack.c.b16 %v1661, %v1659
    %v2442 = vpack.c.b16 %v1662, %v1660
    %v2443 = vpack.c.b16 %v1665, %v1663
    %v2444 = vpack.c.b16 %v1666, %v1664
    %v2445 = vpack.c.b16 %v1669, %v1667
    %v2446 = vpack.c.b16 %v1670, %v1668
    %v2447 = vpack.c.b16 %v1673, %v1671
    %v2448 = vpack.c.b16 %v1674, %v1672
    %v2449 = vpack.c.b16 %v1677, %v1675
    %v2450 = vpack.c.b16 %v1678, %v1676
    %v2451 = vpack.c.b16 %v1681, %v1679
    %v2452 = vpack.c.b16 %v1682, %v1680
    %v2453 = vpack.c.b16 %v1685, %v1683
    %v2454 = vpack.c.b16 %v1686, %v1684
    %v2455 = vpack.c.b16 %v1689, %v1687
    %v2456 = vpack.c.b16 %v1690, %v1688
    %v2457 = vpack.c.b16 %v1693, %v1691
    %v2458 = vpack.c.b16 %v1694, %v1692
    %v2459 = vpack.c.b16 %v1697, %v1695
    %v2460 = vpack.c.b16 %v1698, %v1696
    %v2461 = vpack.c.b16 %v1701, %v1699
    %v2462 = vpack.c.b16 %v1702, %v1700
    %v2463 = vpack.c.b16 %v1705, %v1703
    %v2464 = vpack.c.b16 %v1706, %v1704
    %v2465 = vpack.c.b16 %v1709, %v1707
    %v2466 = vpack.c.b16 %v1710, %v1708
    %v2467 = vpack.c.b16 %v1713, %v1711
    %v2468 = vpack.c.b16 %v1714, %v1712
    %v2469 = vpack.c.b16 %v1717, %v1715
    %v2470 = vpack.c.b16 %v1718, %v1716
    %v2471 = vpack.c.b16 %v1721, %v1719
    %v2472 = vpack.c.b16 %v1722, %v1720
    %v2473 = vpack.c.b16 %v1725, %v1723
    %v2474 = vpack.c.b16 %v1726, %v1724
    %v2475 = vpack.c.b16 %v1729, %v1727
    %v2476 = vpack.c.b16 %v1730, %v1728
    %v2477 = vpack.c.b16 %v1733, %v1731
    %v2478 = vpack.c.b16 %v1734, %v1732
    %v2479 = vpack.c.b16 %v1737, %v1735
    %v2480 = vpack.c.b16 %v1738, %v1736
    %v2481 = vpack.c.b16 %v1741, %v1739
    %v2482 = vpack.c.b16 %v1742, %v1740
    %v2483 = vpack.c.b16 %v1745, %v1743
    %v2484 = vpack.c.b16 %v1746, %v1744
    %v2485 = vpack.c.b16 %v1749, %v1747
    %v2486 = vpack.c.b16 %v1750, %v1748
    %v2487 = vpack.c.b16 %v1753, %v1751
    %v2488 = vpack.c.b16 %v1754, %v1752
    %v2489 = vpack.c.b16 %v1757, %v1755
    %v2490 = vpack.c.b16 %v1758, %v1756
    %v2491 = vpack.c.b16 %v1761, %v1759
    %v2492 = vpack.c.b16 %v1762, %v1760
    %v2493 = vpack.c.b16 %v1765, %v1763
    %v2494 = vpack.c.b16 %v1766, %v1764
    %v2495 = vpack.c.b16 %v1769, %v1767
    %v2496 = vpack.c.b16 %v1770, %v1768
    %v2497 = vpack.c.b16 %v1773, %v1771
    %v2498 = vpack.c.b16 %v1774, %v1772
    %v2499 = vpack.c.b16 %v1777, %v1775
    %v2500 = vpack.c.b16 %v1778, %v1776
    %v2501 = vpack.c.b16 %v1781, %v1779
    %v2502 = vpack.c.b16 %v1782, %v1780
    %v2503 = vpack.c.b16 %v1785, %v1783
    %v2504 = vpack.c.b16 %v1786, %v1784
    %v2505 = vpack.c.b16 %v1789, %v1787
    %v2506 = vpack.c.b16 %v1790, %v1788
    %v2507 = vpack.c.b16 %v1793, %v1791
    %v2508 = vpack.c.b16 %v1794, %v1792
    %v2509 = vpack.c.b16 %v1797, %v1795
    %v2510 = vpack.c.b16 %v1798, %v1796
    %v2511 = vpack.c.b16 %v1801, %v1799
    %v2512 = vpack.c.b16 %v1802, %v1800
    %v2513 = vpack.c.b16 %v1805, %v1803
    %v2514 = vpack.c.b16 %v1806, %v1804
    %v2515 = vpack.c.b16 %v1809, %v1807
    %v2516 = vpack.c.b16 %v1810, %v1808
    %v2517 = vpack.c.b16 %v1813, %v1811
    %v2518 = vpack.c.b16 %v1814, %v1812
    %v2519 = vpack.c.b16 %v1817, %v1815
    %v2520 = vpack.c.b16 %v1818, %v1816
    %v2521 = vpack.c.b16 %v1821, %v1819
    %v2522 = vpack.c.b16 %v1822, %v1820
    %v2523 = vpack.c.b16 %v1825, %v1823
    %v2524 = vpack.c.b16 %v1826, %v1824
    %v2525 = vpack.c.b16 %v1829, %v1827
    %v2526 = vpack.c.b16 %v1830, %v1828
    %v2527 = vpack.c.b16 %v1833, %v1831
    %v2528 = vpack.c.b16 %v1834, %v1832
    %v2529 = vpack.c.b16 %v1837, %v1835
    %v2530 = vpack.c.b16 %v1838, %v1836
    %v2531 = vpack.c.b16 %v1841, %v1839
    %v2532 = vpack.c.b16 %v1842, %v1840
    %v2533 = vpack.c.b16 %v1845, %v1843
    %v2534 = vpack.c.b16 %v1846, %v1844
    %v2535 = vpack.c.b16 %v1849, %v1847
    %v2536 = vpack.c.b16 %v1850, %v1848
    %v2537 = vpack.c.b16 %v1853, %v1851
    %v2538 = vpack.c.b16 %v1854, %v1852
    %v2539 = vpack.c.b16 %v1857, %v1855
    %v2540 = vpack.c.b16 %v1858, %v1856
    %v2541 = vpack.c.b16 %v1861, %v1859
    %v2542 = vpack.c.b16 %v1862, %v1860
    %v2543 = vpack.c.b16 %v1865, %v1863
    %v2544 = vpack.c.b16 %v1866, %v1864
    %v2545 = vpack.c.b16 %v1869, %v1867
    %v2546 = vpack.c.b16 %v1870, %v1868
    %v2547 = vpack.c.b16 %v1873, %v1871
    %v2548 = vpack.c.b16 %v1874, %v1872
    %v2549 = vpack.c.b16 %v1877, %v1875
    %v2550 = vpack.c.b16 %v1878, %v1876
    %v2551 = vpack.c.b16 %v1881, %v1879
    %v2552 = vpack.c.b16 %v1882, %v1880
    %v2553 = vpack.c.b16 %v1885, %v1883
    %v2554 = vpack.c.b16 %v1886, %v1884
    %v2555 = vpack.c.b16 %v1889, %v1887
    %v2556 = vpack.c.b16 %v1890, %v1888
    %v2557 = vpack.c.b16 %v1893, %v1891
    %v2558 = vpack.c.b16 %v1894, %v1892
    %v2559 = vpack.c.b16 %v1897, %v1895
    %v2560 = vpack.c.b16 %v1898, %v1896
    %v2561 = vpack.c.b16 %v1901, %v1899
    %v2562 = vpack.c.b16 %v1902, %v1900
    %v2563 = vpack.c.b16 %v1905, %v1903
    %v2564 = vpack.c.b16 %v1906, %v1904
    %v2565 = vpack.c.b16 %v1909, %v1907
    %v2566 = vpack.c.b16 %v1910, %v1908
    %v2567 = vpack.c.b16 %v1913, %v1911
    %v2568 = vpack.c.b16 %v1914, %v1912
    %v2569 = vpack.c.b16 %v1917, %v1915
    %v2570 = vpack.c.b16 %v1918, %v1916
    %v2571 = vpack.c.b16 %v1921, %v1919
    %v2572 = vpack.c.b16 %v1922, %v1920
    %v2573 = vpack.c.b16 %v1925, %v1923
    %v2574 = vpack.c.b16 %v1926, %v1924
    %v2575 = vpack.c.b16 %v1929, %v1927
    %v2576 = vpack.c.b16 %v1930, %v1928
    %v2577 = vpack.c.b16 %v1933, %v1931
    %v2578 = vpack.c.b16 %v1934, %v1932
    %v2579 = vpack.c.b16 %v1937, %v1935
    %v2580 = vpack.c.b16 %v1938, %v1936
    %v2581 = vpack.c.b16 %v1941, %v1939
    %v2582 = vpack.c.b16 %v1942, %v1940
    %v2583 = vpack.c.b16 %v1945, %v1943
    %v2584 = vpack.c.b16 %v1946, %v1944
    %v2585 = vpack.c.b16 %v1949, %v1947
    %v2586 = vpack.c.b16 %v1950, %v1948
    %v2587 = vpack.c.b16 %v1953, %v1951
    %v2588 = vpack.c.b16 %v1954, %v1952
    %v2589 = vpack.c.b16 %v1957, %v1955
    %v2590 = vpack.c.b16 %v1958, %v1956
    %v2591 = vpack.c.b16 %v1961, %v1959
    %v2592 = vpack.c.b16 %v1962, %v1960
    %v2593 = vpack.c.b16 %v1965, %v1963
    %v2594 = vpack.c.b16 %v1966, %v1964
    %v2595 = vpack.c.b16 %v1969, %v1967
    %v2596 = vpack.c.b16 %v1970, %v1968
    %v2597 = vpack.c.b16 %v1973, %v1971
    %v2598 = vpack.c.b16 %v1974, %v1972
    %v2599 = vpack.c.b16 %v1977, %v1975
    %v2600 = vpack.c.b16 %v1978, %v1976
    %v2601 = vpack.c.b16 %v1981, %v1979
    %v2602 = vpack.c.b16 %v1982, %v1980
    %v2603 = vpack.c.b16 %v1985, %v1983
    %v2604 = vpack.c.b16 %v1986, %v1984
    %v2605 = vpack.c.b16 %v1989, %v1987
    %v2606 = vpack.c.b16 %v1990, %v1988
    %v2607 = vpack.c.b16 %v1993, %v1991
    %v2608 = vpack.c.b16 %v1994, %v1992
    %v2609 = vpack.c.b16 %v1997, %v1995
    %v2610 = vpack.c.b16 %v1998, %v1996
    %v2611 = vpack.c.b16 %v2001, %v1999
    %v2612 = vpack.c.b16 %v2002, %v2000
    %v2613 = vpack.c.b16 %v2005, %v2003
    %v2614 = vpack.c.b16 %v2006, %v2004
    %v2615 = vpack.c.b16 %v2009, %v2007
    %v2616 = vpack.c.b16 %v2010, %v2008
    %v2617 = vpack.c.b16 %v2013, %v2011
    %v2618 = vpack.c.b16 %v2014, %v2012
    %v2619 = vpack.c.b16 %v2017, %v2015
    %v2620 = vpack.c.b16 %v2018, %v2016
    %v2621 = vpack.c.b16 %v2021, %v2019
    %v2622 = vpack.c.b16 %v2022, %v2020
    %v2623 = vpack.c.b16 %v2025, %v2023
    %v2624 = vpack.c.b16 %v2026, %v2024
    %v2625 = vpack.c.b16 %v2029, %v2027
    %v2626 = vpack.c.b16 %v2030, %v2028
    %v2627 = vpack.c.b16 %v2033, %v2031
    %v2628 = vpack.c.b16 %v2034, %v2032
    %v2629 = vpack.c.b16 %v2037, %v2035
    %v2630 = vpack.c.b16 %v2038, %v2036
    %v2631 = vpack.c.b16 %v2041, %v2039
    %v2632 = vpack.c.b16 %v2042, %v2040
    %v2633 = vpack.c.b16 %v2045, %v2043
    %v2634 = vpack.c.b16 %v2046, %v2044
    %v2635 = vpack.c.b16 %v2049, %v2047
    %v2636 = vpack.c.b16 %v2050, %v2048
    %v2637 = vpack.c.b16 %v2053, %v2051
    %v2638 = vpack.c.b16 %v2054, %v2052
    %v2639 = vpack.c.b16 %v2057, %v2055
    %v2640 = vpack.c.b16 %v2058, %v2056
    %v2641 = vpack.c.b16 %v2061, %v2059
    %v2642 = vpack.c.b16 %v2062, %v2060
    %v2643 = vpack.c.b16 %v2065, %v2063
    %v2644 = vpack.c.b16 %v2066, %v2064
    %v2645 = vpack.c.b16 %v2069, %v2067
    %v2646 = vpack.c.b16 %v2070, %v2068
    %v2647 = vpack.c.b16 %v2073, %v2071
    %v2648 = vpack.c.b16 %v2074, %v2072
    %v2649 = vpack.c.b16 %v2077, %v2075
    %v2650 = vpack.c.b16 %v2078, %v2076
    %v2651 = vpack.c.b16 %v2081, %v2079
    %v2652 = vpack.c.b16 %v2082, %v2080
    %v2653 = vpack.c.b16 %v2085, %v2083
    %v2654 = vpack.c.b16 %v2086, %v2084
    %v2655 = vpack.c.b16 %v2089, %v2087
    %v2656 = vpack.c.b16 %v2090, %v2088
    %v2657 = vpack.c.b16 %v2093, %v2091
    %v2658 = vpack.c.b16 %v2094, %v2092
    %v2659 = vpack.c.b16 %v2097, %v2095
    %v2660 = vpack.c.b16 %v2098, %v2096
    %v2661 = vpack.c.b16 %v2101, %v2099
    %v2662 = vpack.c.b16 %v2102, %v2100
    %v2663 = vpack.c.b16 %v2105, %v2103
    %v2664 = vpack.c.b16 %v2106, %v2104
    %v2665 = vpack.c.b16 %v2109, %v2107
    %v2666 = vpack.c.b16 %v2110, %v2108
    %v2667 = vpack.c.b16 %v2113, %v2111
    %v2668 = vpack.c.b16 %v2114, %v2112
    %v2669 = vpack.c.b16 %v2117, %v2115
    %v2670 = vpack.c.b16 %v2118, %v2116
    %v2671 = vpack.c.b16 %v2121, %v2119
    %v2672 = vpack.c.b16 %v2122, %v2120
    %v2673 = vpack.c.b16 %v2125, %v2123
    %v2674 = vpack.c.b16 %v2126, %v2124
    %v2675 = vpack.c.b16 %v2129, %v2127
    %v2676 = vpack.c.b16 %v2130, %v2128
    %v2677 = vpack.c.b16 %v2133, %v2131
    %v2678 = vpack.c.b16 %v2134, %v2132
    %v2679 = vpack.c.b16 %v2137, %v2135
    %v2680 = vpack.c.b16 %v2138, %v2136
    %v2681 = vpack.c.b16 %v2141, %v2139
    %v2682 = vpack.c.b16 %v2142, %v2140
    %v2683 = vpack.c.b16 %v2145, %v2143
    %v2684 = vpack.c.b16 %v2146, %v2144
    %v2685 = vpack.c.b16 %v2149, %v2147
    %v2686 = vpack.c.b16 %v2150, %v2148
    %v2687 = vpack.c.b16 %v2153, %v2151
    %v2688 = vpack.c.b16 %v2154, %v2152
    %v2689 = vpack.c.b16 %v2157, %v2155
    %v2690 = vpack.c.b16 %v2158, %v2156
    %v2691 = vpack.c.b16 %v2161, %v2159
    %v2692 = vpack.c.b16 %v2162, %v2160
    %v2693 = vpack.c.b16 %v2165, %v2163
    %v2694 = vpack.c.b16 %v2166, %v2164
    %v2695 = vpack.c.b16 %v2169, %v2167
    %v2696 = vpack.c.b16 %v2170, %v2168
    %v2697 = vpack.c.b16 %v2173, %v2171
    %v2698 = vpack.c.b16 %v2174, %v2172
    %v2699 = vpack.c.b16 %v2177, %v2175
    %v2700 = vpack.c.b16 %v2178, %v2176
    %v2701 = vpack.c.b16 %v2181, %v2179
    %v2702 = vpack.c.b16 %v2182, %v2180
    %v2703 = vpack.c.b16 %v2185, %v2183
    %v2704 = vpack.c.b16 %v2186, %v2184
    %v2705 = vpack.c.b16 %v2189, %v2187
    %v2706 = vpack.c.b16 %v2190, %v2188
    %v2707 = vpack.c.b16 %v2193, %v2191
    %v2708 = vpack.c.b16 %v2194, %v2192
    %v2709 = vpack.c.b16 %v2197, %v2195
    %v2710 = vpack.c.b16 %v2198, %v2196
    %v2711 = vpack.c.b16 %v2201, %v2199
    %v2712 = vpack.c.b16 %v2202, %v2200
    %v2713 = vpack.c.b16 %v2205, %v2203
    %v2714 = vpack.c.b16 %v2206, %v2204
    %v2715 = vpack.c.b16 %v2209, %v2207
    %v2716 = vpack.c.b16 %v2210, %v2208
    %v2717 = vpack.c.b16 %v2213, %v2211
    %v2718 = vpack.c.b16 %v2214, %v2212
    %v2719 = vpack.c.b16 %v2217, %v2215
    %v2720 = vpack.c.b16 %v2218, %v2216
    %v2721 = vpack.c.b16 %v2221, %v2219
    %v2722 = vpack.c.b16 %v2222, %v2220
    %v2723 = vpack.c.b16 %v2225, %v2223
    %v2724 = vpack.c.b16 %v2226, %v2224
    %v2725 = vpack.c.b16 %v2229, %v2227
    %v2726 = vpack.c.b16 %v2230, %v2228
    %v2727 = vpack.c.b16 %v2233, %v2231
    %v2728 = vpack.c.b16 %v2234, %v2232
    %v2729 = vpack.c.b16 %v2237, %v2235
    %v2730 = vpack.c.b16 %v2238, %v2236
    %v2731 = vpack.c.b16 %v2241, %v2239
    %v2732 = vpack.c.b16 %v2242, %v2240
    %v2733 = vpack.c.b16 %v2245, %v2243
    %v2734 = vpack.c.b16 %v2246, %v2244
    %v2735 = vpack.c.b16 %v2249, %v2247
    %v2736 = vpack.c.b16 %v2250, %v2248
    %v2737 = vpack.c.b16 %v2253, %v2251
    %v2738 = vpack.c.b16 %v2254, %v2252
    %v2739 = vpack.c.b16 %v2257, %v2255
    %v2740 = vpack.c.b16 %v2258, %v2256
    %v2741 = vpack.c.b16 %v2261, %v2259
    %v2742 = vpack.c.b16 %v2262, %v2260
    %v2743 = vpack.c.b16 %v2265, %v2263
    %v2744 = vpack.c.b16 %v2266, %v2264
    %v2745 = vpack.c.b16 %v2269, %v2267
    %v2746 = vpack.c.b16 %v2270, %v2268
    %v2747 = vpack.c.b16 %v2273, %v2271
    %v2748 = vpack.c.b16 %v2274, %v2272
    %v2749 = vpack.c.b16 %v2277, %v2275
    %v2750 = vpack.c.b16 %v2278, %v2276
    %v2751 = vpack.c.b16 %v2281, %v2279
    %v2752 = vpack.c.b16 %v2282, %v2280
    %v2753 = vpack.c.b16 %v2285, %v2283
    %v2754 = vpack.c.b16 %v2286, %v2284
    %v2755 = vpack.c.b16 %v2289, %v2287
    %v2756 = vpack.c.b16 %v2290, %v2288
    %v2757 = vpack.c.b16 %v2293, %v2291
    %v2758 = vpack.c.b16 %v2294, %v2292
    %v2759 = vpack.c.b16 %v2297, %v2295
    %v2760 = vpack.c.b16 %v2298, %v2296
    %v2761 = vpack.c.b16 %v2301, %v2299
    %v2762 = vpack.c.b16 %v2302, %v2300
    %v2763 = vpack.c.b16 %v2305, %v2303
    %v2764 = vpack.c.b16 %v2306, %v2304
    %v2765 = vpack.c.b16 %v2309, %v2307
    %v2766 = vpack.c.b16 %v2310, %v2308
    %v2767 = vpack.c.b16 %v2313, %v2311
    %v2768 = vpack.c.b16 %v2314, %v2312
    %v2769 = vpack.c.b16 %v2317, %v2315
    %v2770 = vpack.c.b16 %v2318, %v2316
    %v2771 = vpack.c.b16 %v2321, %v2319
    %v2772 = vpack.c.b16 %v2322, %v2320
    %v2773 = vpack.c.b16 %v2325, %v2323
    %v2774 = vpack.c.b16 %v2326, %v2324
    %v2775 = vpack.c.b16 %v2329, %v2327
    %v2776 = vpack.c.b16 %v2330, %v2328
    %v2777 = vpack.c.b16 %v2333, %v2331
    %v2778 = vpack.c.b16 %v2334, %v2332
    %v2779 = vpack.c.b16 %v2337, %v2335
    %v2780 = vpack.c.b16 %v2338, %v2336
    %v2781 = vpack.c.b16 %v2341, %v2339
    %v2782 = vpack.c.b16 %v2342, %v2340
    %v2783 = vpack.c.b16 %v2345, %v2343
    %v2784 = vpack.c.b16 %v2346, %v2344
    %v2785 = vpack.c.b16 %v2349, %v2347
    %v2786 = vpack.c.b16 %v2350, %v2348
    %v2787 = vpack.c.b16 %v2353, %v2351
    %v2788 = vpack.c.b16 %v2354, %v2352
    %v2789 = vpack.c.b16 %v2357, %v2355
    %v2790 = vpack.c.b16 %v2358, %v2356
    %3223 = vmatpush.bf16.msra.mxu0 %v2373
    %3224 = vmatpush.bf16.msra.mxu0 %v2371
    %3225 = vmatpush.bf16.msra.mxu0 %v2369
    %3226 = vmatpush.bf16.msra.mxu0 %v2367
    %3227 = vmatpush.bf16.msra.mxu0 %v2365
    %3228 = vmatpush.bf16.msra.mxu0 %v2363
    %3229 = vmatpush.bf16.msra.mxu0 %v2361
    %3230 = vmatpush.bf16.msra.mxu0 %v2359
    %3231 = vmatmul.bf16.gmra.mxu0 %v847
    %v3232 = vpop.f32.mrf.mxu0
    %v3233 = vadd.f32 %v556, %v3232
    %v3234 = vpop.f32.mrf.mxu0
    %v3235 = vadd.f32 %v556, %v3234
    %3236 = vmatmul.bf16.gmra.mxu0 %v874
    %v3237 = vpop.f32.mrf.mxu0
    %v3238 = vadd.f32 %v556, %v3237
    %v3239 = vpop.f32.mrf.mxu0
    %v3240 = vadd.f32 %v556, %v3239
    %3241 = vmatmul.bf16.gmra.mxu0 %v901
    %v3242 = vpop.f32.mrf.mxu0
    %v3243 = vadd.f32 %v556, %v3242
    %v3244 = vpop.f32.mrf.mxu0
    %v3245 = vadd.f32 %v556, %v3244
    %3246 = vmatmul.bf16.gmra.mxu0 %v928
    %v3247 = vpop.f32.mrf.mxu0
    %v3248 = vadd.f32 %v556, %v3247
    %v3249 = vpop.f32.mrf.mxu0
    %3250 = vdwg.mxu0
    %3251 = vmatpush.bf16.msra.mxu0 %v2389
    %3252 = vmatpush.bf16.msra.mxu0 %v2387
    %3253 = vmatpush.bf16.msra.mxu0 %v2385
    %3254 = vmatpush.bf16.msra.mxu0 %v2383
    %3255 = vmatpush.bf16.msra.mxu0 %v2381
    %3256 = vmatpush.bf16.msra.mxu0 %v2379
    %3257 = vmatpush.bf16.msra.mxu0 %v2377
    %3258 = vmatpush.bf16.msra.mxu0 %v2375
    %3259 = vmatmul.bf16.gmra.mxu0 %v848
    %v3260 = vpop.f32.mrf.mxu0
    %v3261 = vadd.f32 %v3233, %v3260
    %v3262 = vpop.f32.mrf.mxu0
    %v3263 = vadd.f32 %v3235, %v3262
    %3264 = vmatmul.bf16.gmra.mxu0 %v875
    %v3265 = vpop.f32.mrf.mxu0
    %v3266 = vadd.f32 %v3238, %v3265
    %v3267 = vpop.f32.mrf.mxu0
    %v3268 = vadd.f32 %v3240, %v3267
    %3269 = vmatmul.bf16.gmra.mxu0 %v902
    %v3270 = vpop.f32.mrf.mxu0
    %v3271 = vadd.f32 %v3243, %v3270
    %v3272 = vpop.f32.mrf.mxu0
    %v3273 = vadd.f32 %v3245, %v3272
    %3274 = vmatmul.bf16.gmra.mxu0 %v929
    %v3275 = vpop.f32.mrf.mxu0
    %v3276 = vadd.f32 %v3248, %v3275
    %v3277 = vpop.f32.mrf.mxu0
    %3278 = vdwg.mxu0
    %3279 = vmatpush.bf16.msra.mxu0 %v2405
    %3280 = vmatpush.bf16.msra.mxu0 %v2403
    %3281 = vmatpush.bf16.msra.mxu0 %v2401
    %3282 = vmatpush.bf16.msra.mxu0 %v2399
    %3283 = vmatpush.bf16.msra.mxu0 %v2397
    %3284 = vmatpush.bf16.msra.mxu0 %v2395
    %3285 = vmatpush.bf16.msra.mxu0 %v2393
    %3286 = vmatpush.bf16.msra.mxu0 %v2391
    %3287 = vmatmul.bf16.gmra.mxu0 %v849
    %v3288 = vpop.f32.mrf.mxu0
    %v3289 = vadd.f32 %v3261, %v3288
    %v3290 = vpop.f32.mrf.mxu0
    %v3291 = vadd.f32 %v3263, %v3290
    %3292 = vmatmul.bf16.gmra.mxu0 %v876
    %v3293 = vpop.f32.mrf.mxu0
    %v3294 = vadd.f32 %v3266, %v3293
    %v3295 = vpop.f32.mrf.mxu0
    %v3296 = vadd.f32 %v3268, %v3295
    %3297 = vmatmul.bf16.gmra.mxu0 %v903
    %v3298 = vpop.f32.mrf.mxu0
    %v3299 = vadd.f32 %v3271, %v3298
    %v3300 = vpop.f32.mrf.mxu0
    %v3301 = vadd.f32 %v3273, %v3300
    %3302 = vmatmul.bf16.gmra.mxu0 %v930
    %v3303 = vpop.f32.mrf.mxu0
    %v3304 = vadd.f32 %v3276, %v3303
    %v3305 = vpop.f32.mrf.mxu0
    %3306 = vdwg.mxu0
    %3307 = vmatpush.bf16.msra.mxu0 %v2421
    %3308 = vmatpush.bf16.msra.mxu0 %v2419
    %3309 = vmatpush.bf16.msra.mxu0 %v2417
    %3310 = vmatpush.bf16.msra.mxu0 %v2415
    %3311 = vmatpush.bf16.msra.mxu0 %v2413
    %3312 = vmatpush.bf16.msra.mxu0 %v2411
    %3313 = vmatpush.bf16.msra.mxu0 %v2409
    %3314 = vmatpush.bf16.msra.mxu0 %v2407
    %3315 = vmatmul.bf16.gmra.mxu0 %v850
    %v3316 = vpop.f32.mrf.mxu0
    %v3317 = vadd.f32 %v3289, %v3316
    %v3318 = vpop.f32.mrf.mxu0
    %v3319 = vadd.f32 %v3291, %v3318
    %3320 = vmatmul.bf16.gmra.mxu0 %v877
    %v3321 = vpop.f32.mrf.mxu0
    %v3322 = vadd.f32 %v3294, %v3321
    %v3323 = vpop.f32.mrf.mxu0
    %v3324 = vadd.f32 %v3296, %v3323
    %3325 = vmatmul.bf16.gmra.mxu0 %v904
    %v3326 = vpop.f32.mrf.mxu0
    %v3327 = vadd.f32 %v3299, %v3326
    %v3328 = vpop.f32.mrf.mxu0
    %v3329 = vadd.f32 %v3301, %v3328
    %3330 = vmatmul.bf16.gmra.mxu0 %v931
    %v3331 = vpop.f32.mrf.mxu0
    %v3332 = vadd.f32 %v3304, %v3331
    %v3333 = vpop.f32.mrf.mxu0
    %3334 = vdwg.mxu0
    %3335 = vmatpush.bf16.msra.mxu0 %v2437
    %3336 = vmatpush.bf16.msra.mxu0 %v2435
    %3337 = vmatpush.bf16.msra.mxu0 %v2433
    %3338 = vmatpush.bf16.msra.mxu0 %v2431
    %3339 = vmatpush.bf16.msra.mxu0 %v2429
    %3340 = vmatpush.bf16.msra.mxu0 %v2427
    %3341 = vmatpush.bf16.msra.mxu0 %v2425
    %3342 = vmatpush.bf16.msra.mxu0 %v2423
    %3343 = vmatmul.bf16.gmra.mxu0 %v851
    %v3344 = vpop.f32.mrf.mxu0
    %v3345 = vadd.f32 %v3317, %v3344
    %v3346 = vpop.f32.mrf.mxu0
    %v3347 = vadd.f32 %v3319, %v3346
    %3348 = vmatmul.bf16.gmra.mxu0 %v878
    %v3349 = vpop.f32.mrf.mxu0
    %v3350 = vadd.f32 %v3322, %v3349
    %v3351 = vpop.f32.mrf.mxu0
    %v3352 = vadd.f32 %v3324, %v3351
    %3353 = vmatmul.bf16.gmra.mxu0 %v905
    %v3354 = vpop.f32.mrf.mxu0
    %v3355 = vadd.f32 %v3327, %v3354
    %v3356 = vpop.f32.mrf.mxu0
    %v3357 = vadd.f32 %v3329, %v3356
    %3358 = vmatmul.bf16.gmra.mxu0 %v932
    %v3359 = vpop.f32.mrf.mxu0
    %v3360 = vadd.f32 %v3332, %v3359
    %v3361 = vpop.f32.mrf.mxu0
    %3362 = vdwg.mxu0
    %3363 = vmatpush.bf16.msra.mxu0 %v2453
    %3364 = vmatpush.bf16.msra.mxu0 %v2451
    %3365 = vmatpush.bf16.msra.mxu0 %v2449
    %3366 = vmatpush.bf16.msra.mxu0 %v2447
    %3367 = vmatpush.bf16.msra.mxu0 %v2445
    %3368 = vmatpush.bf16.msra.mxu0 %v2443
    %3369 = vmatpush.bf16.msra.mxu0 %v2441
    %3370 = vmatpush.bf16.msra.mxu0 %v2439
    %3371 = vmatmul.bf16.gmra.mxu0 %v852
    %v3372 = vpop.f32.mrf.mxu0
    %v3373 = vadd.f32 %v3345, %v3372
    %v3374 = vpop.f32.mrf.mxu0
    %v3375 = vadd.f32 %v3347, %v3374
    %3376 = vmatmul.bf16.gmra.mxu0 %v879
    %v3377 = vpop.f32.mrf.mxu0
    %v3378 = vadd.f32 %v3350, %v3377
    %v3379 = vpop.f32.mrf.mxu0
    %v3380 = vadd.f32 %v3352, %v3379
    %3381 = vmatmul.bf16.gmra.mxu0 %v906
    %v3382 = vpop.f32.mrf.mxu0
    %v3383 = vadd.f32 %v3355, %v3382
    %v3384 = vpop.f32.mrf.mxu0
    %v3385 = vadd.f32 %v3357, %v3384
    %3386 = vmatmul.bf16.gmra.mxu0 %v933
    %v3387 = vpop.f32.mrf.mxu0
    %v3388 = vadd.f32 %v3360, %v3387
    %v3389 = vpop.f32.mrf.mxu0
    %3390 = vdwg.mxu0
    %3391 = vmatpush.bf16.msra.mxu0 %v2469
    %3392 = vmatpush.bf16.msra.mxu0 %v2467
    %3393 = vmatpush.bf16.msra.mxu0 %v2465
    %3394 = vmatpush.bf16.msra.mxu0 %v2463
    %3395 = vmatpush.bf16.msra.mxu0 %v2461
    %3396 = vmatpush.bf16.msra.mxu0 %v2459
    %3397 = vmatpush.bf16.msra.mxu0 %v2457
    %3398 = vmatpush.bf16.msra.mxu0 %v2455
    %3399 = vmatmul.bf16.gmra.mxu0 %v853
    %v3400 = vpop.f32.mrf.mxu0
    %v3401 = vadd.f32 %v3373, %v3400
    %v3402 = vpop.f32.mrf.mxu0
    %v3403 = vadd.f32 %v3375, %v3402
    %3404 = vmatmul.bf16.gmra.mxu0 %v880
    %v3405 = vpop.f32.mrf.mxu0
    %v3406 = vadd.f32 %v3378, %v3405
    %v3407 = vpop.f32.mrf.mxu0
    %v3408 = vadd.f32 %v3380, %v3407
    %3409 = vmatmul.bf16.gmra.mxu0 %v907
    %v3410 = vpop.f32.mrf.mxu0
    %v3411 = vadd.f32 %v3383, %v3410
    %v3412 = vpop.f32.mrf.mxu0
    %v3413 = vadd.f32 %v3385, %v3412
    %3414 = vmatmul.bf16.gmra.mxu0 %v934
    %v3415 = vpop.f32.mrf.mxu0
    %v3416 = vadd.f32 %v3388, %v3415
    %v3417 = vpop.f32.mrf.mxu0
    %3418 = vdwg.mxu0
    %3419 = vmatpush.bf16.msra.mxu0 %v2485
    %3420 = vmatpush.bf16.msra.mxu0 %v2483
    %3421 = vmatpush.bf16.msra.mxu0 %v2481
    %3422 = vmatpush.bf16.msra.mxu0 %v2479
    %3423 = vmatpush.bf16.msra.mxu0 %v2477
    %3424 = vmatpush.bf16.msra.mxu0 %v2475
    %3425 = vmatpush.bf16.msra.mxu0 %v2473
    %3426 = vmatpush.bf16.msra.mxu0 %v2471
    %3427 = vmatmul.bf16.gmra.mxu0 %v854
    %v3428 = vpop.f32.mrf.mxu0
    %v3429 = vadd.f32 %v3401, %v3428
    %v3430 = vpop.f32.mrf.mxu0
    %v3431 = vadd.f32 %v3403, %v3430
    %3432 = vmatmul.bf16.gmra.mxu0 %v881
    %v3433 = vpop.f32.mrf.mxu0
    %v3434 = vadd.f32 %v3406, %v3433
    %v3435 = vpop.f32.mrf.mxu0
    %v3436 = vadd.f32 %v3408, %v3435
    %3437 = vmatmul.bf16.gmra.mxu0 %v908
    %v3438 = vpop.f32.mrf.mxu0
    %v3439 = vadd.f32 %v3411, %v3438
    %v3440 = vpop.f32.mrf.mxu0
    %v3441 = vadd.f32 %v3413, %v3440
    %3442 = vmatmul.bf16.gmra.mxu0 %v935
    %v3443 = vpop.f32.mrf.mxu0
    %v3444 = vadd.f32 %v3416, %v3443
    %v3445 = vpop.f32.mrf.mxu0
    %3446 = vdwg.mxu0
    %3447 = vmatpush.bf16.msra.mxu0 %v2501
    %3448 = vmatpush.bf16.msra.mxu0 %v2499
    %3449 = vmatpush.bf16.msra.mxu0 %v2497
    %3450 = vmatpush.bf16.msra.mxu0 %v2495
    %3451 = vmatpush.bf16.msra.mxu0 %v2493
    %3452 = vmatpush.bf16.msra.mxu0 %v2491
    %3453 = vmatpush.bf16.msra.mxu0 %v2489
    %3454 = vmatpush.bf16.msra.mxu0 %v2487
    %3455 = vmatmul.bf16.gmra.mxu0 %v855
    %v3456 = vpop.f32.mrf.mxu0
    %v3457 = vadd.f32 %v3429, %v3456
    %v3458 = vpop.f32.mrf.mxu0
    %v3459 = vadd.f32 %v3431, %v3458
    %3460 = vmatmul.bf16.gmra.mxu0 %v882
    %v3461 = vpop.f32.mrf.mxu0
    %v3462 = vadd.f32 %v3434, %v3461
    %v3463 = vpop.f32.mrf.mxu0
    %v3464 = vadd.f32 %v3436, %v3463
    %3465 = vmatmul.bf16.gmra.mxu0 %v909
    %v3466 = vpop.f32.mrf.mxu0
    %v3467 = vadd.f32 %v3439, %v3466
    %v3468 = vpop.f32.mrf.mxu0
    %v3469 = vadd.f32 %v3441, %v3468
    %3470 = vmatmul.bf16.gmra.mxu0 %v936
    %v3471 = vpop.f32.mrf.mxu0
    %v3472 = vadd.f32 %v3444, %v3471
    %v3473 = vpop.f32.mrf.mxu0
    %3474 = vdwg.mxu0
    %3475 = vmatpush.bf16.msra.mxu0 %v2517
    %3476 = vmatpush.bf16.msra.mxu0 %v2515
    %3477 = vmatpush.bf16.msra.mxu0 %v2513
    %3478 = vmatpush.bf16.msra.mxu0 %v2511
    %3479 = vmatpush.bf16.msra.mxu0 %v2509
    %3480 = vmatpush.bf16.msra.mxu0 %v2507
    %3481 = vmatpush.bf16.msra.mxu0 %v2505
    %3482 = vmatpush.bf16.msra.mxu0 %v2503
    %3483 = vmatmul.bf16.gmra.mxu0 %v856
    %v3484 = vpop.f32.mrf.mxu0
    %v3485 = vadd.f32 %v3457, %v3484
    %v3486 = vpop.f32.mrf.mxu0
    %v3487 = vadd.f32 %v3459, %v3486
    %3488 = vmatmul.bf16.gmra.mxu0 %v883
    %v3489 = vpop.f32.mrf.mxu0
    %v3490 = vadd.f32 %v3462, %v3489
    %v3491 = vpop.f32.mrf.mxu0
    %v3492 = vadd.f32 %v3464, %v3491
    %3493 = vmatmul.bf16.gmra.mxu0 %v910
    %v3494 = vpop.f32.mrf.mxu0
    %v3495 = vadd.f32 %v3467, %v3494
    %v3496 = vpop.f32.mrf.mxu0
    %v3497 = vadd.f32 %v3469, %v3496
    %3498 = vmatmul.bf16.gmra.mxu0 %v937
    %v3499 = vpop.f32.mrf.mxu0
    %v3500 = vadd.f32 %v3472, %v3499
    %v3501 = vpop.f32.mrf.mxu0
    %3502 = vdwg.mxu0
    %3503 = vmatpush.bf16.msra.mxu0 %v2533
    %3504 = vmatpush.bf16.msra.mxu0 %v2531
    %3505 = vmatpush.bf16.msra.mxu0 %v2529
    %3506 = vmatpush.bf16.msra.mxu0 %v2527
    %3507 = vmatpush.bf16.msra.mxu0 %v2525
    %3508 = vmatpush.bf16.msra.mxu0 %v2523
    %3509 = vmatpush.bf16.msra.mxu0 %v2521
    %3510 = vmatpush.bf16.msra.mxu0 %v2519
    %3511 = vmatmul.bf16.gmra.mxu0 %v857
    %v3512 = vpop.f32.mrf.mxu0
    %v3513 = vadd.f32 %v3485, %v3512
    %v3514 = vpop.f32.mrf.mxu0
    %v3515 = vadd.f32 %v3487, %v3514
    %3516 = vmatmul.bf16.gmra.mxu0 %v884
    %v3517 = vpop.f32.mrf.mxu0
    %v3518 = vadd.f32 %v3490, %v3517
    %v3519 = vpop.f32.mrf.mxu0
    %v3520 = vadd.f32 %v3492, %v3519
    %3521 = vmatmul.bf16.gmra.mxu0 %v911
    %v3522 = vpop.f32.mrf.mxu0
    %v3523 = vadd.f32 %v3495, %v3522
    %v3524 = vpop.f32.mrf.mxu0
    %v3525 = vadd.f32 %v3497, %v3524
    %3526 = vmatmul.bf16.gmra.mxu0 %v938
    %v3527 = vpop.f32.mrf.mxu0
    %v3528 = vadd.f32 %v3500, %v3527
    %v3529 = vpop.f32.mrf.mxu0
    %3530 = vdwg.mxu0
    %3531 = vmatpush.bf16.msra.mxu0 %v2549
    %3532 = vmatpush.bf16.msra.mxu0 %v2547
    %3533 = vmatpush.bf16.msra.mxu0 %v2545
    %3534 = vmatpush.bf16.msra.mxu0 %v2543
    %3535 = vmatpush.bf16.msra.mxu0 %v2541
    %3536 = vmatpush.bf16.msra.mxu0 %v2539
    %3537 = vmatpush.bf16.msra.mxu0 %v2537
    %3538 = vmatpush.bf16.msra.mxu0 %v2535
    %3539 = vmatmul.bf16.gmra.mxu0 %v858
    %v3540 = vpop.f32.mrf.mxu0
    %v3541 = vadd.f32 %v3513, %v3540
    %v3542 = vpop.f32.mrf.mxu0
    %v3543 = vadd.f32 %v3515, %v3542
    %3544 = vmatmul.bf16.gmra.mxu0 %v885
    %v3545 = vpop.f32.mrf.mxu0
    %v3546 = vadd.f32 %v3518, %v3545
    %v3547 = vpop.f32.mrf.mxu0
    %v3548 = vadd.f32 %v3520, %v3547
    %3549 = vmatmul.bf16.gmra.mxu0 %v912
    %v3550 = vpop.f32.mrf.mxu0
    %v3551 = vadd.f32 %v3523, %v3550
    %v3552 = vpop.f32.mrf.mxu0
    %v3553 = vadd.f32 %v3525, %v3552
    %3554 = vmatmul.bf16.gmra.mxu0 %v939
    %v3555 = vpop.f32.mrf.mxu0
    %v3556 = vadd.f32 %v3528, %v3555
    %v3557 = vpop.f32.mrf.mxu0
    %3558 = vdwg.mxu0
    %3559 = vmatpush.bf16.msra.mxu0 %v2565
    %3560 = vmatpush.bf16.msra.mxu0 %v2563
    %3561 = vmatpush.bf16.msra.mxu0 %v2561
    %3562 = vmatpush.bf16.msra.mxu0 %v2559
    %3563 = vmatpush.bf16.msra.mxu0 %v2557
    %3564 = vmatpush.bf16.msra.mxu0 %v2555
    %3565 = vmatpush.bf16.msra.mxu0 %v2553
    %3566 = vmatpush.bf16.msra.mxu0 %v2551
    %3567 = vmatmul.bf16.gmra.mxu0 %v859
    %v3568 = vpop.f32.mrf.mxu0
    %v3569 = vadd.f32 %v3541, %v3568
    %v3570 = vpop.f32.mrf.mxu0
    %v3571 = vadd.f32 %v3543, %v3570
    %3572 = vmatmul.bf16.gmra.mxu0 %v886
    %v3573 = vpop.f32.mrf.mxu0
    %v3574 = vadd.f32 %v3546, %v3573
    %v3575 = vpop.f32.mrf.mxu0
    %v3576 = vadd.f32 %v3548, %v3575
    %3577 = vmatmul.bf16.gmra.mxu0 %v913
    %v3578 = vpop.f32.mrf.mxu0
    %v3579 = vadd.f32 %v3551, %v3578
    %v3580 = vpop.f32.mrf.mxu0
    %v3581 = vadd.f32 %v3553, %v3580
    %3582 = vmatmul.bf16.gmra.mxu0 %v940
    %v3583 = vpop.f32.mrf.mxu0
    %v3584 = vadd.f32 %v3556, %v3583
    %v3585 = vpop.f32.mrf.mxu0
    %3586 = vdwg.mxu0
    %3587 = vmatpush.bf16.msra.mxu0 %v2581
    %3588 = vmatpush.bf16.msra.mxu0 %v2579
    %3589 = vmatpush.bf16.msra.mxu0 %v2577
    %3590 = vmatpush.bf16.msra.mxu0 %v2575
    %3591 = vmatpush.bf16.msra.mxu0 %v2573
    %3592 = vmatpush.bf16.msra.mxu0 %v2571
    %3593 = vmatpush.bf16.msra.mxu0 %v2569
    %3594 = vmatpush.bf16.msra.mxu0 %v2567
    %3595 = vmatmul.bf16.gmra.mxu0 %v860
    %v3596 = vpop.f32.mrf.mxu0
    %v3597 = vadd.f32 %v3569, %v3596
    %v3598 = vpop.f32.mrf.mxu0
    %v3599 = vadd.f32 %v3571, %v3598
    %3600 = vmatmul.bf16.gmra.mxu0 %v887
    %v3601 = vpop.f32.mrf.mxu0
    %v3602 = vadd.f32 %v3574, %v3601
    %v3603 = vpop.f32.mrf.mxu0
    %v3604 = vadd.f32 %v3576, %v3603
    %3605 = vmatmul.bf16.gmra.mxu0 %v914
    %v3606 = vpop.f32.mrf.mxu0
    %v3607 = vadd.f32 %v3579, %v3606
    %v3608 = vpop.f32.mrf.mxu0
    %v3609 = vadd.f32 %v3581, %v3608
    %3610 = vmatmul.bf16.gmra.mxu0 %v941
    %v3611 = vpop.f32.mrf.mxu0
    %v3612 = vadd.f32 %v3584, %v3611
    %v3613 = vpop.f32.mrf.mxu0
    %3614 = vdwg.mxu0
    %3615 = vmatpush.bf16.msra.mxu0 %v2597
    %3616 = vmatpush.bf16.msra.mxu0 %v2595
    %3617 = vmatpush.bf16.msra.mxu0 %v2593
    %3618 = vmatpush.bf16.msra.mxu0 %v2591
    %3619 = vmatpush.bf16.msra.mxu0 %v2589
    %3620 = vmatpush.bf16.msra.mxu0 %v2587
    %3621 = vmatpush.bf16.msra.mxu0 %v2585
    %3622 = vmatpush.bf16.msra.mxu0 %v2583
    %3623 = vmatmul.bf16.gmra.mxu0 %v861
    %v3624 = vpop.f32.mrf.mxu0
    %v3625 = vadd.f32 %v3597, %v3624
    %v3626 = vpop.f32.mrf.mxu0
    %v3627 = vadd.f32 %v3599, %v3626
    %3628 = vmatmul.bf16.gmra.mxu0 %v888
    %v3629 = vpop.f32.mrf.mxu0
    %v3630 = vadd.f32 %v3602, %v3629
    %v3631 = vpop.f32.mrf.mxu0
    %v3632 = vadd.f32 %v3604, %v3631
    %3633 = vmatmul.bf16.gmra.mxu0 %v915
    %v3634 = vpop.f32.mrf.mxu0
    %v3635 = vadd.f32 %v3607, %v3634
    %v3636 = vpop.f32.mrf.mxu0
    %v3637 = vadd.f32 %v3609, %v3636
    %3638 = vmatmul.bf16.gmra.mxu0 %v942
    %v3639 = vpop.f32.mrf.mxu0
    %v3640 = vadd.f32 %v3612, %v3639
    %v3641 = vpop.f32.mrf.mxu0
    %3642 = vdwg.mxu0
    %3643 = vmatpush.bf16.msra.mxu0 %v2613
    %3644 = vmatpush.bf16.msra.mxu0 %v2611
    %3645 = vmatpush.bf16.msra.mxu0 %v2609
    %3646 = vmatpush.bf16.msra.mxu0 %v2607
    %3647 = vmatpush.bf16.msra.mxu0 %v2605
    %3648 = vmatpush.bf16.msra.mxu0 %v2603
    %3649 = vmatpush.bf16.msra.mxu0 %v2601
    %3650 = vmatpush.bf16.msra.mxu0 %v2599
    %3651 = vmatmul.bf16.gmra.mxu0 %v862
    %v3652 = vpop.f32.mrf.mxu0
    %v3653 = vadd.f32 %v3625, %v3652
    %v3654 = vpop.f32.mrf.mxu0
    %v3655 = vadd.f32 %v3627, %v3654
    %3656 = vmatmul.bf16.gmra.mxu0 %v889
    %v3657 = vpop.f32.mrf.mxu0
    %v3658 = vadd.f32 %v3630, %v3657
    %v3659 = vpop.f32.mrf.mxu0
    %v3660 = vadd.f32 %v3632, %v3659
    %3661 = vmatmul.bf16.gmra.mxu0 %v916
    %v3662 = vpop.f32.mrf.mxu0
    %v3663 = vadd.f32 %v3635, %v3662
    %v3664 = vpop.f32.mrf.mxu0
    %v3665 = vadd.f32 %v3637, %v3664
    %3666 = vmatmul.bf16.gmra.mxu0 %v943
    %v3667 = vpop.f32.mrf.mxu0
    %v3668 = vadd.f32 %v3640, %v3667
    %v3669 = vpop.f32.mrf.mxu0
    %3670 = vdwg.mxu0
    %3671 = vmatpush.bf16.msra.mxu0 %v2629
    %3672 = vmatpush.bf16.msra.mxu0 %v2627
    %3673 = vmatpush.bf16.msra.mxu0 %v2625
    %3674 = vmatpush.bf16.msra.mxu0 %v2623
    %3675 = vmatpush.bf16.msra.mxu0 %v2621
    %3676 = vmatpush.bf16.msra.mxu0 %v2619
    %3677 = vmatpush.bf16.msra.mxu0 %v2617
    %3678 = vmatpush.bf16.msra.mxu0 %v2615
    %3679 = vmatmul.bf16.gmra.mxu0 %v863
    %v3680 = vpop.f32.mrf.mxu0
    %v3681 = vadd.f32 %v3653, %v3680
    %v3682 = vpop.f32.mrf.mxu0
    %v3683 = vadd.f32 %v3655, %v3682
    %3684 = vmatmul.bf16.gmra.mxu0 %v890
    %v3685 = vpop.f32.mrf.mxu0
    %v3686 = vadd.f32 %v3658, %v3685
    %v3687 = vpop.f32.mrf.mxu0
    %v3688 = vadd.f32 %v3660, %v3687
    %3689 = vmatmul.bf16.gmra.mxu0 %v917
    %v3690 = vpop.f32.mrf.mxu0
    %v3691 = vadd.f32 %v3663, %v3690
    %v3692 = vpop.f32.mrf.mxu0
    %v3693 = vadd.f32 %v3665, %v3692
    %3694 = vmatmul.bf16.gmra.mxu0 %v944
    %v3695 = vpop.f32.mrf.mxu0
    %v3696 = vadd.f32 %v3668, %v3695
    %v3697 = vpop.f32.mrf.mxu0
    %3698 = vdwg.mxu0
    %3699 = vmatpush.bf16.msra.mxu0 %v2645
    %3700 = vmatpush.bf16.msra.mxu0 %v2643
    %3701 = vmatpush.bf16.msra.mxu0 %v2641
    %3702 = vmatpush.bf16.msra.mxu0 %v2639
    %3703 = vmatpush.bf16.msra.mxu0 %v2637
    %3704 = vmatpush.bf16.msra.mxu0 %v2635
    %3705 = vmatpush.bf16.msra.mxu0 %v2633
    %3706 = vmatpush.bf16.msra.mxu0 %v2631
    %3707 = vmatmul.bf16.gmra.mxu0 %v864
    %v3708 = vpop.f32.mrf.mxu0
    %v3709 = vadd.f32 %v3681, %v3708
    %v3710 = vpop.f32.mrf.mxu0
    %v3711 = vadd.f32 %v3683, %v3710
    %3712 = vmatmul.bf16.gmra.mxu0 %v891
    %v3713 = vpop.f32.mrf.mxu0
    %v3714 = vadd.f32 %v3686, %v3713
    %v3715 = vpop.f32.mrf.mxu0
    %v3716 = vadd.f32 %v3688, %v3715
    %3717 = vmatmul.bf16.gmra.mxu0 %v918
    %v3718 = vpop.f32.mrf.mxu0
    %v3719 = vadd.f32 %v3691, %v3718
    %v3720 = vpop.f32.mrf.mxu0
    %v3721 = vadd.f32 %v3693, %v3720
    %3722 = vmatmul.bf16.gmra.mxu0 %v945
    %v3723 = vpop.f32.mrf.mxu0
    %v3724 = vadd.f32 %v3696, %v3723
    %v3725 = vpop.f32.mrf.mxu0
    %3726 = vdwg.mxu0
    %3727 = vmatpush.bf16.msra.mxu0 %v2661
    %3728 = vmatpush.bf16.msra.mxu0 %v2659
    %3729 = vmatpush.bf16.msra.mxu0 %v2657
    %3730 = vmatpush.bf16.msra.mxu0 %v2655
    %3731 = vmatpush.bf16.msra.mxu0 %v2653
    %3732 = vmatpush.bf16.msra.mxu0 %v2651
    %3733 = vmatpush.bf16.msra.mxu0 %v2649
    %3734 = vmatpush.bf16.msra.mxu0 %v2647
    %3735 = vmatmul.bf16.gmra.mxu0 %v865
    %v3736 = vpop.f32.mrf.mxu0
    %v3737 = vadd.f32 %v3709, %v3736
    %v3738 = vpop.f32.mrf.mxu0
    %v3739 = vadd.f32 %v3711, %v3738
    %3740 = vmatmul.bf16.gmra.mxu0 %v892
    %v3741 = vpop.f32.mrf.mxu0
    %v3742 = vadd.f32 %v3714, %v3741
    %v3743 = vpop.f32.mrf.mxu0
    %v3744 = vadd.f32 %v3716, %v3743
    %3745 = vmatmul.bf16.gmra.mxu0 %v919
    %v3746 = vpop.f32.mrf.mxu0
    %v3747 = vadd.f32 %v3719, %v3746
    %v3748 = vpop.f32.mrf.mxu0
    %v3749 = vadd.f32 %v3721, %v3748
    %3750 = vmatmul.bf16.gmra.mxu0 %v946
    %v3751 = vpop.f32.mrf.mxu0
    %v3752 = vadd.f32 %v3724, %v3751
    %v3753 = vpop.f32.mrf.mxu0
    %3754 = vdwg.mxu0
    %3755 = vmatpush.bf16.msra.mxu0 %v2677
    %3756 = vmatpush.bf16.msra.mxu0 %v2675
    %3757 = vmatpush.bf16.msra.mxu0 %v2673
    %3758 = vmatpush.bf16.msra.mxu0 %v2671
    %3759 = vmatpush.bf16.msra.mxu0 %v2669
    %3760 = vmatpush.bf16.msra.mxu0 %v2667
    %3761 = vmatpush.bf16.msra.mxu0 %v2665
    %3762 = vmatpush.bf16.msra.mxu0 %v2663
    %3763 = vmatmul.bf16.gmra.mxu0 %v866
    %v3764 = vpop.f32.mrf.mxu0
    %v3765 = vadd.f32 %v3737, %v3764
    %v3766 = vpop.f32.mrf.mxu0
    %v3767 = vadd.f32 %v3739, %v3766
    %3768 = vmatmul.bf16.gmra.mxu0 %v893
    %v3769 = vpop.f32.mrf.mxu0
    %v3770 = vadd.f32 %v3742, %v3769
    %v3771 = vpop.f32.mrf.mxu0
    %v3772 = vadd.f32 %v3744, %v3771
    %3773 = vmatmul.bf16.gmra.mxu0 %v920
    %v3774 = vpop.f32.mrf.mxu0
    %v3775 = vadd.f32 %v3747, %v3774
    %v3776 = vpop.f32.mrf.mxu0
    %v3777 = vadd.f32 %v3749, %v3776
    %3778 = vmatmul.bf16.gmra.mxu0 %v947
    %v3779 = vpop.f32.mrf.mxu0
    %v3780 = vadd.f32 %v3752, %v3779
    %v3781 = vpop.f32.mrf.mxu0
    %3782 = vdwg.mxu0
    %3783 = vmatpush.bf16.msra.mxu0 %v2693
    %3784 = vmatpush.bf16.msra.mxu0 %v2691
    %3785 = vmatpush.bf16.msra.mxu0 %v2689
    %3786 = vmatpush.bf16.msra.mxu0 %v2687
    %3787 = vmatpush.bf16.msra.mxu0 %v2685
    %3788 = vmatpush.bf16.msra.mxu0 %v2683
    %3789 = vmatpush.bf16.msra.mxu0 %v2681
    %3790 = vmatpush.bf16.msra.mxu0 %v2679
    %3791 = vmatmul.bf16.gmra.mxu0 %v867
    %v3792 = vpop.f32.mrf.mxu0
    %v3793 = vadd.f32 %v3765, %v3792
    %v3794 = vpop.f32.mrf.mxu0
    %v3795 = vadd.f32 %v3767, %v3794
    %3796 = vmatmul.bf16.gmra.mxu0 %v894
    %v3797 = vpop.f32.mrf.mxu0
    %v3798 = vadd.f32 %v3770, %v3797
    %v3799 = vpop.f32.mrf.mxu0
    %v3800 = vadd.f32 %v3772, %v3799
    %3801 = vmatmul.bf16.gmra.mxu0 %v921
    %v3802 = vpop.f32.mrf.mxu0
    %v3803 = vadd.f32 %v3775, %v3802
    %v3804 = vpop.f32.mrf.mxu0
    %v3805 = vadd.f32 %v3777, %v3804
    %3806 = vmatmul.bf16.gmra.mxu0 %v948
    %v3807 = vpop.f32.mrf.mxu0
    %v3808 = vadd.f32 %v3780, %v3807
    %v3809 = vpop.f32.mrf.mxu0
    %3810 = vdwg.mxu0
    %3811 = vmatpush.bf16.msra.mxu0 %v2709
    %3812 = vmatpush.bf16.msra.mxu0 %v2707
    %3813 = vmatpush.bf16.msra.mxu0 %v2705
    %3814 = vmatpush.bf16.msra.mxu0 %v2703
    %3815 = vmatpush.bf16.msra.mxu0 %v2701
    %3816 = vmatpush.bf16.msra.mxu0 %v2699
    %3817 = vmatpush.bf16.msra.mxu0 %v2697
    %3818 = vmatpush.bf16.msra.mxu0 %v2695
    %3819 = vmatmul.bf16.gmra.mxu0 %v868
    %v3820 = vpop.f32.mrf.mxu0
    %v3821 = vadd.f32 %v3793, %v3820
    %v3822 = vpop.f32.mrf.mxu0
    %v3823 = vadd.f32 %v3795, %v3822
    %3824 = vmatmul.bf16.gmra.mxu0 %v895
    %v3825 = vpop.f32.mrf.mxu0
    %v3826 = vadd.f32 %v3798, %v3825
    %v3827 = vpop.f32.mrf.mxu0
    %v3828 = vadd.f32 %v3800, %v3827
    %3829 = vmatmul.bf16.gmra.mxu0 %v922
    %v3830 = vpop.f32.mrf.mxu0
    %v3831 = vadd.f32 %v3803, %v3830
    %v3832 = vpop.f32.mrf.mxu0
    %v3833 = vadd.f32 %v3805, %v3832
    %3834 = vmatmul.bf16.gmra.mxu0 %v949
    %v3835 = vpop.f32.mrf.mxu0
    %v3836 = vadd.f32 %v3808, %v3835
    %v3837 = vpop.f32.mrf.mxu0
    %3838 = vdwg.mxu0
    %3839 = vmatpush.bf16.msra.mxu0 %v2725
    %3840 = vmatpush.bf16.msra.mxu0 %v2723
    %3841 = vmatpush.bf16.msra.mxu0 %v2721
    %3842 = vmatpush.bf16.msra.mxu0 %v2719
    %3843 = vmatpush.bf16.msra.mxu0 %v2717
    %3844 = vmatpush.bf16.msra.mxu0 %v2715
    %3845 = vmatpush.bf16.msra.mxu0 %v2713
    %3846 = vmatpush.bf16.msra.mxu0 %v2711
    %3847 = vmatmul.bf16.gmra.mxu0 %v869
    %v3848 = vpop.f32.mrf.mxu0
    %v3849 = vadd.f32 %v3821, %v3848
    %v3850 = vpop.f32.mrf.mxu0
    %v3851 = vadd.f32 %v3823, %v3850
    %3852 = vmatmul.bf16.gmra.mxu0 %v896
    %v3853 = vpop.f32.mrf.mxu0
    %v3854 = vadd.f32 %v3826, %v3853
    %v3855 = vpop.f32.mrf.mxu0
    %v3856 = vadd.f32 %v3828, %v3855
    %3857 = vmatmul.bf16.gmra.mxu0 %v923
    %v3858 = vpop.f32.mrf.mxu0
    %v3859 = vadd.f32 %v3831, %v3858
    %v3860 = vpop.f32.mrf.mxu0
    %v3861 = vadd.f32 %v3833, %v3860
    %3862 = vmatmul.bf16.gmra.mxu0 %v950
    %v3863 = vpop.f32.mrf.mxu0
    %v3864 = vadd.f32 %v3836, %v3863
    %v3865 = vpop.f32.mrf.mxu0
    %3866 = vdwg.mxu0
    %3867 = vmatpush.bf16.msra.mxu0 %v2741
    %3868 = vmatpush.bf16.msra.mxu0 %v2739
    %3869 = vmatpush.bf16.msra.mxu0 %v2737
    %3870 = vmatpush.bf16.msra.mxu0 %v2735
    %3871 = vmatpush.bf16.msra.mxu0 %v2733
    %3872 = vmatpush.bf16.msra.mxu0 %v2731
    %3873 = vmatpush.bf16.msra.mxu0 %v2729
    %3874 = vmatpush.bf16.msra.mxu0 %v2727
    %3875 = vmatmul.bf16.gmra.mxu0 %v870
    %v3876 = vpop.f32.mrf.mxu0
    %v3877 = vadd.f32 %v3849, %v3876
    %v3878 = vpop.f32.mrf.mxu0
    %v3879 = vadd.f32 %v3851, %v3878
    %3880 = vmatmul.bf16.gmra.mxu0 %v897
    %v3881 = vpop.f32.mrf.mxu0
    %v3882 = vadd.f32 %v3854, %v3881
    %v3883 = vpop.f32.mrf.mxu0
    %v3884 = vadd.f32 %v3856, %v3883
    %3885 = vmatmul.bf16.gmra.mxu0 %v924
    %v3886 = vpop.f32.mrf.mxu0
    %v3887 = vadd.f32 %v3859, %v3886
    %v3888 = vpop.f32.mrf.mxu0
    %v3889 = vadd.f32 %v3861, %v3888
    %3890 = vmatmul.bf16.gmra.mxu0 %v951
    %v3891 = vpop.f32.mrf.mxu0
    %v3892 = vadd.f32 %v3864, %v3891
    %v3893 = vpop.f32.mrf.mxu0
    %3894 = vdwg.mxu0
    %3895 = vmatpush.bf16.msra.mxu0 %v2757
    %3896 = vmatpush.bf16.msra.mxu0 %v2755
    %3897 = vmatpush.bf16.msra.mxu0 %v2753
    %3898 = vmatpush.bf16.msra.mxu0 %v2751
    %3899 = vmatpush.bf16.msra.mxu0 %v2749
    %3900 = vmatpush.bf16.msra.mxu0 %v2747
    %3901 = vmatpush.bf16.msra.mxu0 %v2745
    %3902 = vmatpush.bf16.msra.mxu0 %v2743
    %3903 = vmatmul.bf16.gmra.mxu0 %v871
    %v3904 = vpop.f32.mrf.mxu0
    %v3905 = vadd.f32 %v3877, %v3904
    %v3906 = vpop.f32.mrf.mxu0
    %v3907 = vadd.f32 %v3879, %v3906
    %3908 = vmatmul.bf16.gmra.mxu0 %v898
    %v3909 = vpop.f32.mrf.mxu0
    %v3910 = vadd.f32 %v3882, %v3909
    %v3911 = vpop.f32.mrf.mxu0
    %v3912 = vadd.f32 %v3884, %v3911
    %3913 = vmatmul.bf16.gmra.mxu0 %v925
    %v3914 = vpop.f32.mrf.mxu0
    %v3915 = vadd.f32 %v3887, %v3914
    %v3916 = vpop.f32.mrf.mxu0
    %v3917 = vadd.f32 %v3889, %v3916
    %3918 = vmatmul.bf16.gmra.mxu0 %v952
    %v3919 = vpop.f32.mrf.mxu0
    %v3920 = vadd.f32 %v3892, %v3919
    %v3921 = vpop.f32.mrf.mxu0
    %3922 = vdwg.mxu0
    %3923 = vmatpush.bf16.msra.mxu0 %v2773
    %3924 = vmatpush.bf16.msra.mxu0 %v2771
    %3925 = vmatpush.bf16.msra.mxu0 %v2769
    %3926 = vmatpush.bf16.msra.mxu0 %v2767
    %3927 = vmatpush.bf16.msra.mxu0 %v2765
    %3928 = vmatpush.bf16.msra.mxu0 %v2763
    %3929 = vmatpush.bf16.msra.mxu0 %v2761
    %3930 = vmatpush.bf16.msra.mxu0 %v2759
    %3931 = vmatmul.bf16.gmra.mxu0 %v872
    %v3932 = vpop.f32.mrf.mxu0
    %v3933 = vadd.f32 %v3905, %v3932
    %v3934 = vpop.f32.mrf.mxu0
    %v3935 = vadd.f32 %v3907, %v3934
    %3936 = vmatmul.bf16.gmra.mxu0 %v899
    %v3937 = vpop.f32.mrf.mxu0
    %v3938 = vadd.f32 %v3910, %v3937
    %v3939 = vpop.f32.mrf.mxu0
    %v3940 = vadd.f32 %v3912, %v3939
    %3941 = vmatmul.bf16.gmra.mxu0 %v926
    %v3942 = vpop.f32.mrf.mxu0
    %v3943 = vadd.f32 %v3915, %v3942
    %v3944 = vpop.f32.mrf.mxu0
    %v3945 = vadd.f32 %v3917, %v3944
    %3946 = vmatmul.bf16.gmra.mxu0 %v953
    %v3947 = vpop.f32.mrf.mxu0
    %v3948 = vadd.f32 %v3920, %v3947
    %v3949 = vpop.f32.mrf.mxu0
    %3950 = vdwg.mxu0
    %3951 = vmatpush.bf16.msra.mxu0 %v2789
    %3952 = vmatpush.bf16.msra.mxu0 %v2787
    %3953 = vmatpush.bf16.msra.mxu0 %v2785
    %3954 = vmatpush.bf16.msra.mxu0 %v2783
    %3955 = vmatpush.bf16.msra.mxu0 %v2781
    %3956 = vmatpush.bf16.msra.mxu0 %v2779
    %3957 = vmatpush.bf16.msra.mxu0 %v2777
    %3958 = vmatpush.bf16.msra.mxu0 %v2775
    %3959 = vmatmul.bf16.gmra.mxu0 %v873
    %v3960 = vpop.f32.mrf.mxu0
    %v3961 = vadd.f32 %v3933, %v3960
    %v3962 = vpop.f32.mrf.mxu0
    %v3963 = vadd.f32 %v3935, %v3962
    %3964 = vmatmul.bf16.gmra.mxu0 %v900
    %v3965 = vpop.f32.mrf.mxu0
    %v3966 = vadd.f32 %v3938, %v3965
    %v3967 = vpop.f32.mrf.mxu0
    %v3968 = vadd.f32 %v3940, %v3967
    %3969 = vmatmul.bf16.gmra.mxu0 %v927
    %v3970 = vpop.f32.mrf.mxu0
    %v3971 = vadd.f32 %v3943, %v3970
    %v3972 = vpop.f32.mrf.mxu0
    %v3973 = vadd.f32 %v3945, %v3972
    %3974 = vmatmul.bf16.gmra.mxu0 %v954
    %v3975 = vpop.f32.mrf.mxu0
    %v3976 = vadd.f32 %v3948, %v3975
    %v3977 = vpop.f32.mrf.mxu0
    %3978 = vdwg.mxu0
    %3979 = vmatpush.bf16.msra.mxu0 %v2374
    %3980 = vmatpush.bf16.msra.mxu0 %v2372
    %3981 = vmatpush.bf16.msra.mxu0 %v2370
    %3982 = vmatpush.bf16.msra.mxu0 %v2368
    %3983 = vmatpush.bf16.msra.mxu0 %v2366
    %3984 = vmatpush.bf16.msra.mxu0 %v2364
    %3985 = vmatpush.bf16.msra.mxu0 %v2362
    %3986 = vmatpush.bf16.msra.mxu0 %v2360
    %3987 = vmatmul.bf16.gmra.mxu0 %v847
    %v3988 = vpop.f32.mrf.mxu0
    %v3989 = vadd.f32 %v557, %v3988
    %v3990 = vpop.f32.mrf.mxu0
    %v3991 = vadd.f32 %v557, %v3990
    %3992 = vmatmul.bf16.gmra.mxu0 %v874
    %v3993 = vpop.f32.mrf.mxu0
    %v3994 = vadd.f32 %v557, %v3993
    %v3995 = vpop.f32.mrf.mxu0
    %v3996 = vadd.f32 %v557, %v3995
    %3997 = vmatmul.bf16.gmra.mxu0 %v901
    %v3998 = vpop.f32.mrf.mxu0
    %v3999 = vadd.f32 %v557, %v3998
    %v4000 = vpop.f32.mrf.mxu0
    %v4001 = vadd.f32 %v557, %v4000
    %4002 = vmatmul.bf16.gmra.mxu0 %v928
    %v4003 = vpop.f32.mrf.mxu0
    %v4004 = vadd.f32 %v557, %v4003
    %v4005 = vpop.f32.mrf.mxu0
    %4006 = vdwg.mxu0
    %4007 = vmatpush.bf16.msra.mxu0 %v2390
    %4008 = vmatpush.bf16.msra.mxu0 %v2388
    %4009 = vmatpush.bf16.msra.mxu0 %v2386
    %4010 = vmatpush.bf16.msra.mxu0 %v2384
    %4011 = vmatpush.bf16.msra.mxu0 %v2382
    %4012 = vmatpush.bf16.msra.mxu0 %v2380
    %4013 = vmatpush.bf16.msra.mxu0 %v2378
    %4014 = vmatpush.bf16.msra.mxu0 %v2376
    %4015 = vmatmul.bf16.gmra.mxu0 %v848
    %v4016 = vpop.f32.mrf.mxu0
    %v4017 = vadd.f32 %v3989, %v4016
    %v4018 = vpop.f32.mrf.mxu0
    %v4019 = vadd.f32 %v3991, %v4018
    %4020 = vmatmul.bf16.gmra.mxu0 %v875
    %v4021 = vpop.f32.mrf.mxu0
    %v4022 = vadd.f32 %v3994, %v4021
    %v4023 = vpop.f32.mrf.mxu0
    %v4024 = vadd.f32 %v3996, %v4023
    %4025 = vmatmul.bf16.gmra.mxu0 %v902
    %v4026 = vpop.f32.mrf.mxu0
    %v4027 = vadd.f32 %v3999, %v4026
    %v4028 = vpop.f32.mrf.mxu0
    %v4029 = vadd.f32 %v4001, %v4028
    %4030 = vmatmul.bf16.gmra.mxu0 %v929
    %v4031 = vpop.f32.mrf.mxu0
    %v4032 = vadd.f32 %v4004, %v4031
    %v4033 = vpop.f32.mrf.mxu0
    %4034 = vdwg.mxu0
    %4035 = vmatpush.bf16.msra.mxu0 %v2406
    %4036 = vmatpush.bf16.msra.mxu0 %v2404
    %4037 = vmatpush.bf16.msra.mxu0 %v2402
    %4038 = vmatpush.bf16.msra.mxu0 %v2400
    %4039 = vmatpush.bf16.msra.mxu0 %v2398
    %4040 = vmatpush.bf16.msra.mxu0 %v2396
    %4041 = vmatpush.bf16.msra.mxu0 %v2394
    %4042 = vmatpush.bf16.msra.mxu0 %v2392
    %4043 = vmatmul.bf16.gmra.mxu0 %v849
    %v4044 = vpop.f32.mrf.mxu0
    %v4045 = vadd.f32 %v4017, %v4044
    %v4046 = vpop.f32.mrf.mxu0
    %v4047 = vadd.f32 %v4019, %v4046
    %4048 = vmatmul.bf16.gmra.mxu0 %v876
    %v4049 = vpop.f32.mrf.mxu0
    %v4050 = vadd.f32 %v4022, %v4049
    %v4051 = vpop.f32.mrf.mxu0
    %v4052 = vadd.f32 %v4024, %v4051
    %4053 = vmatmul.bf16.gmra.mxu0 %v903
    %v4054 = vpop.f32.mrf.mxu0
    %v4055 = vadd.f32 %v4027, %v4054
    %v4056 = vpop.f32.mrf.mxu0
    %v4057 = vadd.f32 %v4029, %v4056
    %4058 = vmatmul.bf16.gmra.mxu0 %v930
    %v4059 = vpop.f32.mrf.mxu0
    %v4060 = vadd.f32 %v4032, %v4059
    %v4061 = vpop.f32.mrf.mxu0
    %4062 = vdwg.mxu0
    %4063 = vmatpush.bf16.msra.mxu0 %v2422
    %4064 = vmatpush.bf16.msra.mxu0 %v2420
    %4065 = vmatpush.bf16.msra.mxu0 %v2418
    %4066 = vmatpush.bf16.msra.mxu0 %v2416
    %4067 = vmatpush.bf16.msra.mxu0 %v2414
    %4068 = vmatpush.bf16.msra.mxu0 %v2412
    %4069 = vmatpush.bf16.msra.mxu0 %v2410
    %4070 = vmatpush.bf16.msra.mxu0 %v2408
    %4071 = vmatmul.bf16.gmra.mxu0 %v850
    %v4072 = vpop.f32.mrf.mxu0
    %v4073 = vadd.f32 %v4045, %v4072
    %v4074 = vpop.f32.mrf.mxu0
    %v4075 = vadd.f32 %v4047, %v4074
    %4076 = vmatmul.bf16.gmra.mxu0 %v877
    %v4077 = vpop.f32.mrf.mxu0
    %v4078 = vadd.f32 %v4050, %v4077
    %v4079 = vpop.f32.mrf.mxu0
    %v4080 = vadd.f32 %v4052, %v4079
    %4081 = vmatmul.bf16.gmra.mxu0 %v904
    %v4082 = vpop.f32.mrf.mxu0
    %v4083 = vadd.f32 %v4055, %v4082
    %v4084 = vpop.f32.mrf.mxu0
    %v4085 = vadd.f32 %v4057, %v4084
    %4086 = vmatmul.bf16.gmra.mxu0 %v931
    %v4087 = vpop.f32.mrf.mxu0
    %v4088 = vadd.f32 %v4060, %v4087
    %v4089 = vpop.f32.mrf.mxu0
    %4090 = vdwg.mxu0
    %4091 = vmatpush.bf16.msra.mxu0 %v2438
    %4092 = vmatpush.bf16.msra.mxu0 %v2436
    %4093 = vmatpush.bf16.msra.mxu0 %v2434
    %4094 = vmatpush.bf16.msra.mxu0 %v2432
    %4095 = vmatpush.bf16.msra.mxu0 %v2430
    %4096 = vmatpush.bf16.msra.mxu0 %v2428
    %4097 = vmatpush.bf16.msra.mxu0 %v2426
    %4098 = vmatpush.bf16.msra.mxu0 %v2424
    %4099 = vmatmul.bf16.gmra.mxu0 %v851
    %v4100 = vpop.f32.mrf.mxu0
    %v4101 = vadd.f32 %v4073, %v4100
    %v4102 = vpop.f32.mrf.mxu0
    %v4103 = vadd.f32 %v4075, %v4102
    %4104 = vmatmul.bf16.gmra.mxu0 %v878
    %v4105 = vpop.f32.mrf.mxu0
    %v4106 = vadd.f32 %v4078, %v4105
    %v4107 = vpop.f32.mrf.mxu0
    %v4108 = vadd.f32 %v4080, %v4107
    %4109 = vmatmul.bf16.gmra.mxu0 %v905
    %v4110 = vpop.f32.mrf.mxu0
    %v4111 = vadd.f32 %v4083, %v4110
    %v4112 = vpop.f32.mrf.mxu0
    %v4113 = vadd.f32 %v4085, %v4112
    %4114 = vmatmul.bf16.gmra.mxu0 %v932
    %v4115 = vpop.f32.mrf.mxu0
    %v4116 = vadd.f32 %v4088, %v4115
    %v4117 = vpop.f32.mrf.mxu0
    %4118 = vdwg.mxu0
    %4119 = vmatpush.bf16.msra.mxu0 %v2454
    %4120 = vmatpush.bf16.msra.mxu0 %v2452
    %4121 = vmatpush.bf16.msra.mxu0 %v2450
    %4122 = vmatpush.bf16.msra.mxu0 %v2448
    %4123 = vmatpush.bf16.msra.mxu0 %v2446
    %4124 = vmatpush.bf16.msra.mxu0 %v2444
    %4125 = vmatpush.bf16.msra.mxu0 %v2442
    %4126 = vmatpush.bf16.msra.mxu0 %v2440
    %4127 = vmatmul.bf16.gmra.mxu0 %v852
    %v4128 = vpop.f32.mrf.mxu0
    %v4129 = vadd.f32 %v4101, %v4128
    %v4130 = vpop.f32.mrf.mxu0
    %v4131 = vadd.f32 %v4103, %v4130
    %4132 = vmatmul.bf16.gmra.mxu0 %v879
    %v4133 = vpop.f32.mrf.mxu0
    %v4134 = vadd.f32 %v4106, %v4133
    %v4135 = vpop.f32.mrf.mxu0
    %v4136 = vadd.f32 %v4108, %v4135
    %4137 = vmatmul.bf16.gmra.mxu0 %v906
    %v4138 = vpop.f32.mrf.mxu0
    %v4139 = vadd.f32 %v4111, %v4138
    %v4140 = vpop.f32.mrf.mxu0
    %v4141 = vadd.f32 %v4113, %v4140
    %4142 = vmatmul.bf16.gmra.mxu0 %v933
    %v4143 = vpop.f32.mrf.mxu0
    %v4144 = vadd.f32 %v4116, %v4143
    %v4145 = vpop.f32.mrf.mxu0
    %4146 = vdwg.mxu0
    %4147 = vmatpush.bf16.msra.mxu0 %v2470
    %4148 = vmatpush.bf16.msra.mxu0 %v2468
    %4149 = vmatpush.bf16.msra.mxu0 %v2466
    %4150 = vmatpush.bf16.msra.mxu0 %v2464
    %4151 = vmatpush.bf16.msra.mxu0 %v2462
    %4152 = vmatpush.bf16.msra.mxu0 %v2460
    %4153 = vmatpush.bf16.msra.mxu0 %v2458
    %4154 = vmatpush.bf16.msra.mxu0 %v2456
    %4155 = vmatmul.bf16.gmra.mxu0 %v853
    %v4156 = vpop.f32.mrf.mxu0
    %v4157 = vadd.f32 %v4129, %v4156
    %v4158 = vpop.f32.mrf.mxu0
    %v4159 = vadd.f32 %v4131, %v4158
    %4160 = vmatmul.bf16.gmra.mxu0 %v880
    %v4161 = vpop.f32.mrf.mxu0
    %v4162 = vadd.f32 %v4134, %v4161
    %v4163 = vpop.f32.mrf.mxu0
    %v4164 = vadd.f32 %v4136, %v4163
    %4165 = vmatmul.bf16.gmra.mxu0 %v907
    %v4166 = vpop.f32.mrf.mxu0
    %v4167 = vadd.f32 %v4139, %v4166
    %v4168 = vpop.f32.mrf.mxu0
    %v4169 = vadd.f32 %v4141, %v4168
    %4170 = vmatmul.bf16.gmra.mxu0 %v934
    %v4171 = vpop.f32.mrf.mxu0
    %v4172 = vadd.f32 %v4144, %v4171
    %v4173 = vpop.f32.mrf.mxu0
    %4174 = vdwg.mxu0
    %4175 = vmatpush.bf16.msra.mxu0 %v2486
    %4176 = vmatpush.bf16.msra.mxu0 %v2484
    %4177 = vmatpush.bf16.msra.mxu0 %v2482
    %4178 = vmatpush.bf16.msra.mxu0 %v2480
    %4179 = vmatpush.bf16.msra.mxu0 %v2478
    %4180 = vmatpush.bf16.msra.mxu0 %v2476
    %4181 = vmatpush.bf16.msra.mxu0 %v2474
    %4182 = vmatpush.bf16.msra.mxu0 %v2472
    %4183 = vmatmul.bf16.gmra.mxu0 %v854
    %v4184 = vpop.f32.mrf.mxu0
    %v4185 = vadd.f32 %v4157, %v4184
    %v4186 = vpop.f32.mrf.mxu0
    %v4187 = vadd.f32 %v4159, %v4186
    %4188 = vmatmul.bf16.gmra.mxu0 %v881
    %v4189 = vpop.f32.mrf.mxu0
    %v4190 = vadd.f32 %v4162, %v4189
    %v4191 = vpop.f32.mrf.mxu0
    %v4192 = vadd.f32 %v4164, %v4191
    %4193 = vmatmul.bf16.gmra.mxu0 %v908
    %v4194 = vpop.f32.mrf.mxu0
    %v4195 = vadd.f32 %v4167, %v4194
    %v4196 = vpop.f32.mrf.mxu0
    %v4197 = vadd.f32 %v4169, %v4196
    %4198 = vmatmul.bf16.gmra.mxu0 %v935
    %v4199 = vpop.f32.mrf.mxu0
    %v4200 = vadd.f32 %v4172, %v4199
    %v4201 = vpop.f32.mrf.mxu0
    %4202 = vdwg.mxu0
    %4203 = vmatpush.bf16.msra.mxu0 %v2502
    %4204 = vmatpush.bf16.msra.mxu0 %v2500
    %4205 = vmatpush.bf16.msra.mxu0 %v2498
    %4206 = vmatpush.bf16.msra.mxu0 %v2496
    %4207 = vmatpush.bf16.msra.mxu0 %v2494
    %4208 = vmatpush.bf16.msra.mxu0 %v2492
    %4209 = vmatpush.bf16.msra.mxu0 %v2490
    %4210 = vmatpush.bf16.msra.mxu0 %v2488
    %4211 = vmatmul.bf16.gmra.mxu0 %v855
    %v4212 = vpop.f32.mrf.mxu0
    %v4213 = vadd.f32 %v4185, %v4212
    %v4214 = vpop.f32.mrf.mxu0
    %v4215 = vadd.f32 %v4187, %v4214
    %4216 = vmatmul.bf16.gmra.mxu0 %v882
    %v4217 = vpop.f32.mrf.mxu0
    %v4218 = vadd.f32 %v4190, %v4217
    %v4219 = vpop.f32.mrf.mxu0
    %v4220 = vadd.f32 %v4192, %v4219
    %4221 = vmatmul.bf16.gmra.mxu0 %v909
    %v4222 = vpop.f32.mrf.mxu0
    %v4223 = vadd.f32 %v4195, %v4222
    %v4224 = vpop.f32.mrf.mxu0
    %v4225 = vadd.f32 %v4197, %v4224
    %4226 = vmatmul.bf16.gmra.mxu0 %v936
    %v4227 = vpop.f32.mrf.mxu0
    %v4228 = vadd.f32 %v4200, %v4227
    %v4229 = vpop.f32.mrf.mxu0
    %4230 = vdwg.mxu0
    %4231 = vmatpush.bf16.msra.mxu0 %v2518
    %4232 = vmatpush.bf16.msra.mxu0 %v2516
    %4233 = vmatpush.bf16.msra.mxu0 %v2514
    %4234 = vmatpush.bf16.msra.mxu0 %v2512
    %4235 = vmatpush.bf16.msra.mxu0 %v2510
    %4236 = vmatpush.bf16.msra.mxu0 %v2508
    %4237 = vmatpush.bf16.msra.mxu0 %v2506
    %4238 = vmatpush.bf16.msra.mxu0 %v2504
    %4239 = vmatmul.bf16.gmra.mxu0 %v856
    %v4240 = vpop.f32.mrf.mxu0
    %v4241 = vadd.f32 %v4213, %v4240
    %v4242 = vpop.f32.mrf.mxu0
    %v4243 = vadd.f32 %v4215, %v4242
    %4244 = vmatmul.bf16.gmra.mxu0 %v883
    %v4245 = vpop.f32.mrf.mxu0
    %v4246 = vadd.f32 %v4218, %v4245
    %v4247 = vpop.f32.mrf.mxu0
    %v4248 = vadd.f32 %v4220, %v4247
    %4249 = vmatmul.bf16.gmra.mxu0 %v910
    %v4250 = vpop.f32.mrf.mxu0
    %v4251 = vadd.f32 %v4223, %v4250
    %v4252 = vpop.f32.mrf.mxu0
    %v4253 = vadd.f32 %v4225, %v4252
    %4254 = vmatmul.bf16.gmra.mxu0 %v937
    %v4255 = vpop.f32.mrf.mxu0
    %v4256 = vadd.f32 %v4228, %v4255
    %v4257 = vpop.f32.mrf.mxu0
    %4258 = vdwg.mxu0
    %4259 = vmatpush.bf16.msra.mxu0 %v2534
    %4260 = vmatpush.bf16.msra.mxu0 %v2532
    %4261 = vmatpush.bf16.msra.mxu0 %v2530
    %4262 = vmatpush.bf16.msra.mxu0 %v2528
    %4263 = vmatpush.bf16.msra.mxu0 %v2526
    %4264 = vmatpush.bf16.msra.mxu0 %v2524
    %4265 = vmatpush.bf16.msra.mxu0 %v2522
    %4266 = vmatpush.bf16.msra.mxu0 %v2520
    %4267 = vmatmul.bf16.gmra.mxu0 %v857
    %v4268 = vpop.f32.mrf.mxu0
    %v4269 = vadd.f32 %v4241, %v4268
    %v4270 = vpop.f32.mrf.mxu0
    %v4271 = vadd.f32 %v4243, %v4270
    %4272 = vmatmul.bf16.gmra.mxu0 %v884
    %v4273 = vpop.f32.mrf.mxu0
    %v4274 = vadd.f32 %v4246, %v4273
    %v4275 = vpop.f32.mrf.mxu0
    %v4276 = vadd.f32 %v4248, %v4275
    %4277 = vmatmul.bf16.gmra.mxu0 %v911
    %v4278 = vpop.f32.mrf.mxu0
    %v4279 = vadd.f32 %v4251, %v4278
    %v4280 = vpop.f32.mrf.mxu0
    %v4281 = vadd.f32 %v4253, %v4280
    %4282 = vmatmul.bf16.gmra.mxu0 %v938
    %v4283 = vpop.f32.mrf.mxu0
    %v4284 = vadd.f32 %v4256, %v4283
    %v4285 = vpop.f32.mrf.mxu0
    %4286 = vdwg.mxu0
    %4287 = vmatpush.bf16.msra.mxu0 %v2550
    %4288 = vmatpush.bf16.msra.mxu0 %v2548
    %4289 = vmatpush.bf16.msra.mxu0 %v2546
    %4290 = vmatpush.bf16.msra.mxu0 %v2544
    %4291 = vmatpush.bf16.msra.mxu0 %v2542
    %4292 = vmatpush.bf16.msra.mxu0 %v2540
    %4293 = vmatpush.bf16.msra.mxu0 %v2538
    %4294 = vmatpush.bf16.msra.mxu0 %v2536
    %4295 = vmatmul.bf16.gmra.mxu0 %v858
    %v4296 = vpop.f32.mrf.mxu0
    %v4297 = vadd.f32 %v4269, %v4296
    %v4298 = vpop.f32.mrf.mxu0
    %v4299 = vadd.f32 %v4271, %v4298
    %4300 = vmatmul.bf16.gmra.mxu0 %v885
    %v4301 = vpop.f32.mrf.mxu0
    %v4302 = vadd.f32 %v4274, %v4301
    %v4303 = vpop.f32.mrf.mxu0
    %v4304 = vadd.f32 %v4276, %v4303
    %4305 = vmatmul.bf16.gmra.mxu0 %v912
    %v4306 = vpop.f32.mrf.mxu0
    %v4307 = vadd.f32 %v4279, %v4306
    %v4308 = vpop.f32.mrf.mxu0
    %v4309 = vadd.f32 %v4281, %v4308
    %4310 = vmatmul.bf16.gmra.mxu0 %v939
    %v4311 = vpop.f32.mrf.mxu0
    %v4312 = vadd.f32 %v4284, %v4311
    %v4313 = vpop.f32.mrf.mxu0
    %4314 = vdwg.mxu0
    %4315 = vmatpush.bf16.msra.mxu0 %v2566
    %4316 = vmatpush.bf16.msra.mxu0 %v2564
    %4317 = vmatpush.bf16.msra.mxu0 %v2562
    %4318 = vmatpush.bf16.msra.mxu0 %v2560
    %4319 = vmatpush.bf16.msra.mxu0 %v2558
    %4320 = vmatpush.bf16.msra.mxu0 %v2556
    %4321 = vmatpush.bf16.msra.mxu0 %v2554
    %4322 = vmatpush.bf16.msra.mxu0 %v2552
    %4323 = vmatmul.bf16.gmra.mxu0 %v859
    %v4324 = vpop.f32.mrf.mxu0
    %v4325 = vadd.f32 %v4297, %v4324
    %v4326 = vpop.f32.mrf.mxu0
    %v4327 = vadd.f32 %v4299, %v4326
    %4328 = vmatmul.bf16.gmra.mxu0 %v886
    %v4329 = vpop.f32.mrf.mxu0
    %v4330 = vadd.f32 %v4302, %v4329
    %v4331 = vpop.f32.mrf.mxu0
    %v4332 = vadd.f32 %v4304, %v4331
    %4333 = vmatmul.bf16.gmra.mxu0 %v913
    %v4334 = vpop.f32.mrf.mxu0
    %v4335 = vadd.f32 %v4307, %v4334
    %v4336 = vpop.f32.mrf.mxu0
    %v4337 = vadd.f32 %v4309, %v4336
    %4338 = vmatmul.bf16.gmra.mxu0 %v940
    %v4339 = vpop.f32.mrf.mxu0
    %v4340 = vadd.f32 %v4312, %v4339
    %v4341 = vpop.f32.mrf.mxu0
    %4342 = vdwg.mxu0
    %4343 = vmatpush.bf16.msra.mxu0 %v2582
    %4344 = vmatpush.bf16.msra.mxu0 %v2580
    %4345 = vmatpush.bf16.msra.mxu0 %v2578
    %4346 = vmatpush.bf16.msra.mxu0 %v2576
    %4347 = vmatpush.bf16.msra.mxu0 %v2574
    %4348 = vmatpush.bf16.msra.mxu0 %v2572
    %4349 = vmatpush.bf16.msra.mxu0 %v2570
    %4350 = vmatpush.bf16.msra.mxu0 %v2568
    %4351 = vmatmul.bf16.gmra.mxu0 %v860
    %v4352 = vpop.f32.mrf.mxu0
    %v4353 = vadd.f32 %v4325, %v4352
    %v4354 = vpop.f32.mrf.mxu0
    %v4355 = vadd.f32 %v4327, %v4354
    %4356 = vmatmul.bf16.gmra.mxu0 %v887
    %v4357 = vpop.f32.mrf.mxu0
    %v4358 = vadd.f32 %v4330, %v4357
    %v4359 = vpop.f32.mrf.mxu0
    %v4360 = vadd.f32 %v4332, %v4359
    %4361 = vmatmul.bf16.gmra.mxu0 %v914
    %v4362 = vpop.f32.mrf.mxu0
    %v4363 = vadd.f32 %v4335, %v4362
    %v4364 = vpop.f32.mrf.mxu0
    %v4365 = vadd.f32 %v4337, %v4364
    %4366 = vmatmul.bf16.gmra.mxu0 %v941
    %v4367 = vpop.f32.mrf.mxu0
    %v4368 = vadd.f32 %v4340, %v4367
    %v4369 = vpop.f32.mrf.mxu0
    %4370 = vdwg.mxu0
    %4371 = vmatpush.bf16.msra.mxu0 %v2598
    %4372 = vmatpush.bf16.msra.mxu0 %v2596
    %4373 = vmatpush.bf16.msra.mxu0 %v2594
    %4374 = vmatpush.bf16.msra.mxu0 %v2592
    %4375 = vmatpush.bf16.msra.mxu0 %v2590
    %4376 = vmatpush.bf16.msra.mxu0 %v2588
    %4377 = vmatpush.bf16.msra.mxu0 %v2586
    %4378 = vmatpush.bf16.msra.mxu0 %v2584
    %4379 = vmatmul.bf16.gmra.mxu0 %v861
    %v4380 = vpop.f32.mrf.mxu0
    %v4381 = vadd.f32 %v4353, %v4380
    %v4382 = vpop.f32.mrf.mxu0
    %v4383 = vadd.f32 %v4355, %v4382
    %4384 = vmatmul.bf16.gmra.mxu0 %v888
    %v4385 = vpop.f32.mrf.mxu0
    %v4386 = vadd.f32 %v4358, %v4385
    %v4387 = vpop.f32.mrf.mxu0
    %v4388 = vadd.f32 %v4360, %v4387
    %4389 = vmatmul.bf16.gmra.mxu0 %v915
    %v4390 = vpop.f32.mrf.mxu0
    %v4391 = vadd.f32 %v4363, %v4390
    %v4392 = vpop.f32.mrf.mxu0
    %v4393 = vadd.f32 %v4365, %v4392
    %4394 = vmatmul.bf16.gmra.mxu0 %v942
    %v4395 = vpop.f32.mrf.mxu0
    %v4396 = vadd.f32 %v4368, %v4395
    %v4397 = vpop.f32.mrf.mxu0
    %4398 = vdwg.mxu0
    %4399 = vmatpush.bf16.msra.mxu0 %v2614
    %4400 = vmatpush.bf16.msra.mxu0 %v2612
    %4401 = vmatpush.bf16.msra.mxu0 %v2610
    %4402 = vmatpush.bf16.msra.mxu0 %v2608
    %4403 = vmatpush.bf16.msra.mxu0 %v2606
    %4404 = vmatpush.bf16.msra.mxu0 %v2604
    %4405 = vmatpush.bf16.msra.mxu0 %v2602
    %4406 = vmatpush.bf16.msra.mxu0 %v2600
    %4407 = vmatmul.bf16.gmra.mxu0 %v862
    %v4408 = vpop.f32.mrf.mxu0
    %v4409 = vadd.f32 %v4381, %v4408
    %v4410 = vpop.f32.mrf.mxu0
    %v4411 = vadd.f32 %v4383, %v4410
    %4412 = vmatmul.bf16.gmra.mxu0 %v889
    %v4413 = vpop.f32.mrf.mxu0
    %v4414 = vadd.f32 %v4386, %v4413
    %v4415 = vpop.f32.mrf.mxu0
    %v4416 = vadd.f32 %v4388, %v4415
    %4417 = vmatmul.bf16.gmra.mxu0 %v916
    %v4418 = vpop.f32.mrf.mxu0
    %v4419 = vadd.f32 %v4391, %v4418
    %v4420 = vpop.f32.mrf.mxu0
    %v4421 = vadd.f32 %v4393, %v4420
    %4422 = vmatmul.bf16.gmra.mxu0 %v943
    %v4423 = vpop.f32.mrf.mxu0
    %v4424 = vadd.f32 %v4396, %v4423
    %v4425 = vpop.f32.mrf.mxu0
    %4426 = vdwg.mxu0
    %4427 = vmatpush.bf16.msra.mxu0 %v2630
    %4428 = vmatpush.bf16.msra.mxu0 %v2628
    %4429 = vmatpush.bf16.msra.mxu0 %v2626
    %4430 = vmatpush.bf16.msra.mxu0 %v2624
    %4431 = vmatpush.bf16.msra.mxu0 %v2622
    %4432 = vmatpush.bf16.msra.mxu0 %v2620
    %4433 = vmatpush.bf16.msra.mxu0 %v2618
    %4434 = vmatpush.bf16.msra.mxu0 %v2616
    %4435 = vmatmul.bf16.gmra.mxu0 %v863
    %v4436 = vpop.f32.mrf.mxu0
    %v4437 = vadd.f32 %v4409, %v4436
    %v4438 = vpop.f32.mrf.mxu0
    %v4439 = vadd.f32 %v4411, %v4438
    %4440 = vmatmul.bf16.gmra.mxu0 %v890
    %v4441 = vpop.f32.mrf.mxu0
    %v4442 = vadd.f32 %v4414, %v4441
    %v4443 = vpop.f32.mrf.mxu0
    %v4444 = vadd.f32 %v4416, %v4443
    %4445 = vmatmul.bf16.gmra.mxu0 %v917
    %v4446 = vpop.f32.mrf.mxu0
    %v4447 = vadd.f32 %v4419, %v4446
    %v4448 = vpop.f32.mrf.mxu0
    %v4449 = vadd.f32 %v4421, %v4448
    %4450 = vmatmul.bf16.gmra.mxu0 %v944
    %v4451 = vpop.f32.mrf.mxu0
    %v4452 = vadd.f32 %v4424, %v4451
    %v4453 = vpop.f32.mrf.mxu0
    %4454 = vdwg.mxu0
    %4455 = vmatpush.bf16.msra.mxu0 %v2646
    %4456 = vmatpush.bf16.msra.mxu0 %v2644
    %4457 = vmatpush.bf16.msra.mxu0 %v2642
    %4458 = vmatpush.bf16.msra.mxu0 %v2640
    %4459 = vmatpush.bf16.msra.mxu0 %v2638
    %4460 = vmatpush.bf16.msra.mxu0 %v2636
    %4461 = vmatpush.bf16.msra.mxu0 %v2634
    %4462 = vmatpush.bf16.msra.mxu0 %v2632
    %4463 = vmatmul.bf16.gmra.mxu0 %v864
    %v4464 = vpop.f32.mrf.mxu0
    %v4465 = vadd.f32 %v4437, %v4464
    %v4466 = vpop.f32.mrf.mxu0
    %v4467 = vadd.f32 %v4439, %v4466
    %4468 = vmatmul.bf16.gmra.mxu0 %v891
    %v4469 = vpop.f32.mrf.mxu0
    %v4470 = vadd.f32 %v4442, %v4469
    %v4471 = vpop.f32.mrf.mxu0
    %v4472 = vadd.f32 %v4444, %v4471
    %4473 = vmatmul.bf16.gmra.mxu0 %v918
    %v4474 = vpop.f32.mrf.mxu0
    %v4475 = vadd.f32 %v4447, %v4474
    %v4476 = vpop.f32.mrf.mxu0
    %v4477 = vadd.f32 %v4449, %v4476
    %4478 = vmatmul.bf16.gmra.mxu0 %v945
    %v4479 = vpop.f32.mrf.mxu0
    %v4480 = vadd.f32 %v4452, %v4479
    %v4481 = vpop.f32.mrf.mxu0
    %4482 = vdwg.mxu0
    %4483 = vmatpush.bf16.msra.mxu0 %v2662
    %4484 = vmatpush.bf16.msra.mxu0 %v2660
    %4485 = vmatpush.bf16.msra.mxu0 %v2658
    %4486 = vmatpush.bf16.msra.mxu0 %v2656
    %4487 = vmatpush.bf16.msra.mxu0 %v2654
    %4488 = vmatpush.bf16.msra.mxu0 %v2652
    %4489 = vmatpush.bf16.msra.mxu0 %v2650
    %4490 = vmatpush.bf16.msra.mxu0 %v2648
    %4491 = vmatmul.bf16.gmra.mxu0 %v865
    %v4492 = vpop.f32.mrf.mxu0
    %v4493 = vadd.f32 %v4465, %v4492
    %v4494 = vpop.f32.mrf.mxu0
    %v4495 = vadd.f32 %v4467, %v4494
    %4496 = vmatmul.bf16.gmra.mxu0 %v892
    %v4497 = vpop.f32.mrf.mxu0
    %v4498 = vadd.f32 %v4470, %v4497
    %v4499 = vpop.f32.mrf.mxu0
    %v4500 = vadd.f32 %v4472, %v4499
    %4501 = vmatmul.bf16.gmra.mxu0 %v919
    %v4502 = vpop.f32.mrf.mxu0
    %v4503 = vadd.f32 %v4475, %v4502
    %v4504 = vpop.f32.mrf.mxu0
    %v4505 = vadd.f32 %v4477, %v4504
    %4506 = vmatmul.bf16.gmra.mxu0 %v946
    %v4507 = vpop.f32.mrf.mxu0
    %v4508 = vadd.f32 %v4480, %v4507
    %v4509 = vpop.f32.mrf.mxu0
    %4510 = vdwg.mxu0
    %4511 = vmatpush.bf16.msra.mxu0 %v2678
    %4512 = vmatpush.bf16.msra.mxu0 %v2676
    %4513 = vmatpush.bf16.msra.mxu0 %v2674
    %4514 = vmatpush.bf16.msra.mxu0 %v2672
    %4515 = vmatpush.bf16.msra.mxu0 %v2670
    %4516 = vmatpush.bf16.msra.mxu0 %v2668
    %4517 = vmatpush.bf16.msra.mxu0 %v2666
    %4518 = vmatpush.bf16.msra.mxu0 %v2664
    %4519 = vmatmul.bf16.gmra.mxu0 %v866
    %v4520 = vpop.f32.mrf.mxu0
    %v4521 = vadd.f32 %v4493, %v4520
    %v4522 = vpop.f32.mrf.mxu0
    %v4523 = vadd.f32 %v4495, %v4522
    %4524 = vmatmul.bf16.gmra.mxu0 %v893
    %v4525 = vpop.f32.mrf.mxu0
    %v4526 = vadd.f32 %v4498, %v4525
    %v4527 = vpop.f32.mrf.mxu0
    %v4528 = vadd.f32 %v4500, %v4527
    %4529 = vmatmul.bf16.gmra.mxu0 %v920
    %v4530 = vpop.f32.mrf.mxu0
    %v4531 = vadd.f32 %v4503, %v4530
    %v4532 = vpop.f32.mrf.mxu0
    %v4533 = vadd.f32 %v4505, %v4532
    %4534 = vmatmul.bf16.gmra.mxu0 %v947
    %v4535 = vpop.f32.mrf.mxu0
    %v4536 = vadd.f32 %v4508, %v4535
    %v4537 = vpop.f32.mrf.mxu0
    %4538 = vdwg.mxu0
    %4539 = vmatpush.bf16.msra.mxu0 %v2694
    %4540 = vmatpush.bf16.msra.mxu0 %v2692
    %4541 = vmatpush.bf16.msra.mxu0 %v2690
    %4542 = vmatpush.bf16.msra.mxu0 %v2688
    %4543 = vmatpush.bf16.msra.mxu0 %v2686
    %4544 = vmatpush.bf16.msra.mxu0 %v2684
    %4545 = vmatpush.bf16.msra.mxu0 %v2682
    %4546 = vmatpush.bf16.msra.mxu0 %v2680
    %4547 = vmatmul.bf16.gmra.mxu0 %v867
    %v4548 = vpop.f32.mrf.mxu0
    %v4549 = vadd.f32 %v4521, %v4548
    %v4550 = vpop.f32.mrf.mxu0
    %v4551 = vadd.f32 %v4523, %v4550
    %4552 = vmatmul.bf16.gmra.mxu0 %v894
    %v4553 = vpop.f32.mrf.mxu0
    %v4554 = vadd.f32 %v4526, %v4553
    %v4555 = vpop.f32.mrf.mxu0
    %v4556 = vadd.f32 %v4528, %v4555
    %4557 = vmatmul.bf16.gmra.mxu0 %v921
    %v4558 = vpop.f32.mrf.mxu0
    %v4559 = vadd.f32 %v4531, %v4558
    %v4560 = vpop.f32.mrf.mxu0
    %v4561 = vadd.f32 %v4533, %v4560
    %4562 = vmatmul.bf16.gmra.mxu0 %v948
    %v4563 = vpop.f32.mrf.mxu0
    %v4564 = vadd.f32 %v4536, %v4563
    %v4565 = vpop.f32.mrf.mxu0
    %4566 = vdwg.mxu0
    %4567 = vmatpush.bf16.msra.mxu0 %v2710
    %4568 = vmatpush.bf16.msra.mxu0 %v2708
    %4569 = vmatpush.bf16.msra.mxu0 %v2706
    %4570 = vmatpush.bf16.msra.mxu0 %v2704
    %4571 = vmatpush.bf16.msra.mxu0 %v2702
    %4572 = vmatpush.bf16.msra.mxu0 %v2700
    %4573 = vmatpush.bf16.msra.mxu0 %v2698
    %4574 = vmatpush.bf16.msra.mxu0 %v2696
    %4575 = vmatmul.bf16.gmra.mxu0 %v868
    %v4576 = vpop.f32.mrf.mxu0
    %v4577 = vadd.f32 %v4549, %v4576
    %v4578 = vpop.f32.mrf.mxu0
    %v4579 = vadd.f32 %v4551, %v4578
    %4580 = vmatmul.bf16.gmra.mxu0 %v895
    %v4581 = vpop.f32.mrf.mxu0
    %v4582 = vadd.f32 %v4554, %v4581
    %v4583 = vpop.f32.mrf.mxu0
    %v4584 = vadd.f32 %v4556, %v4583
    %4585 = vmatmul.bf16.gmra.mxu0 %v922
    %v4586 = vpop.f32.mrf.mxu0
    %v4587 = vadd.f32 %v4559, %v4586
    %v4588 = vpop.f32.mrf.mxu0
    %v4589 = vadd.f32 %v4561, %v4588
    %4590 = vmatmul.bf16.gmra.mxu0 %v949
    %v4591 = vpop.f32.mrf.mxu0
    %v4592 = vadd.f32 %v4564, %v4591
    %v4593 = vpop.f32.mrf.mxu0
    %4594 = vdwg.mxu0
    %4595 = vmatpush.bf16.msra.mxu0 %v2726
    %4596 = vmatpush.bf16.msra.mxu0 %v2724
    %4597 = vmatpush.bf16.msra.mxu0 %v2722
    %4598 = vmatpush.bf16.msra.mxu0 %v2720
    %4599 = vmatpush.bf16.msra.mxu0 %v2718
    %4600 = vmatpush.bf16.msra.mxu0 %v2716
    %4601 = vmatpush.bf16.msra.mxu0 %v2714
    %4602 = vmatpush.bf16.msra.mxu0 %v2712
    %4603 = vmatmul.bf16.gmra.mxu0 %v869
    %v4604 = vpop.f32.mrf.mxu0
    %v4605 = vadd.f32 %v4577, %v4604
    %v4606 = vpop.f32.mrf.mxu0
    %v4607 = vadd.f32 %v4579, %v4606
    %4608 = vmatmul.bf16.gmra.mxu0 %v896
    %v4609 = vpop.f32.mrf.mxu0
    %v4610 = vadd.f32 %v4582, %v4609
    %v4611 = vpop.f32.mrf.mxu0
    %v4612 = vadd.f32 %v4584, %v4611
    %4613 = vmatmul.bf16.gmra.mxu0 %v923
    %v4614 = vpop.f32.mrf.mxu0
    %v4615 = vadd.f32 %v4587, %v4614
    %v4616 = vpop.f32.mrf.mxu0
    %v4617 = vadd.f32 %v4589, %v4616
    %4618 = vmatmul.bf16.gmra.mxu0 %v950
    %v4619 = vpop.f32.mrf.mxu0
    %v4620 = vadd.f32 %v4592, %v4619
    %v4621 = vpop.f32.mrf.mxu0
    %4622 = vdwg.mxu0
    %4623 = vmatpush.bf16.msra.mxu0 %v2742
    %4624 = vmatpush.bf16.msra.mxu0 %v2740
    %4625 = vmatpush.bf16.msra.mxu0 %v2738
    %4626 = vmatpush.bf16.msra.mxu0 %v2736
    %4627 = vmatpush.bf16.msra.mxu0 %v2734
    %4628 = vmatpush.bf16.msra.mxu0 %v2732
    %4629 = vmatpush.bf16.msra.mxu0 %v2730
    %4630 = vmatpush.bf16.msra.mxu0 %v2728
    %4631 = vmatmul.bf16.gmra.mxu0 %v870
    %v4632 = vpop.f32.mrf.mxu0
    %v4633 = vadd.f32 %v4605, %v4632
    %v4634 = vpop.f32.mrf.mxu0
    %v4635 = vadd.f32 %v4607, %v4634
    %4636 = vmatmul.bf16.gmra.mxu0 %v897
    %v4637 = vpop.f32.mrf.mxu0
    %v4638 = vadd.f32 %v4610, %v4637
    %v4639 = vpop.f32.mrf.mxu0
    %v4640 = vadd.f32 %v4612, %v4639
    %4641 = vmatmul.bf16.gmra.mxu0 %v924
    %v4642 = vpop.f32.mrf.mxu0
    %v4643 = vadd.f32 %v4615, %v4642
    %v4644 = vpop.f32.mrf.mxu0
    %v4645 = vadd.f32 %v4617, %v4644
    %4646 = vmatmul.bf16.gmra.mxu0 %v951
    %v4647 = vpop.f32.mrf.mxu0
    %v4648 = vadd.f32 %v4620, %v4647
    %v4649 = vpop.f32.mrf.mxu0
    %4650 = vdwg.mxu0
    %4651 = vmatpush.bf16.msra.mxu0 %v2758
    %4652 = vmatpush.bf16.msra.mxu0 %v2756
    %4653 = vmatpush.bf16.msra.mxu0 %v2754
    %4654 = vmatpush.bf16.msra.mxu0 %v2752
    %4655 = vmatpush.bf16.msra.mxu0 %v2750
    %4656 = vmatpush.bf16.msra.mxu0 %v2748
    %4657 = vmatpush.bf16.msra.mxu0 %v2746
    %4658 = vmatpush.bf16.msra.mxu0 %v2744
    %4659 = vmatmul.bf16.gmra.mxu0 %v871
    %v4660 = vpop.f32.mrf.mxu0
    %v4661 = vadd.f32 %v4633, %v4660
    %v4662 = vpop.f32.mrf.mxu0
    %v4663 = vadd.f32 %v4635, %v4662
    %4664 = vmatmul.bf16.gmra.mxu0 %v898
    %v4665 = vpop.f32.mrf.mxu0
    %v4666 = vadd.f32 %v4638, %v4665
    %v4667 = vpop.f32.mrf.mxu0
    %v4668 = vadd.f32 %v4640, %v4667
    %4669 = vmatmul.bf16.gmra.mxu0 %v925
    %v4670 = vpop.f32.mrf.mxu0
    %v4671 = vadd.f32 %v4643, %v4670
    %v4672 = vpop.f32.mrf.mxu0
    %v4673 = vadd.f32 %v4645, %v4672
    %4674 = vmatmul.bf16.gmra.mxu0 %v952
    %v4675 = vpop.f32.mrf.mxu0
    %v4676 = vadd.f32 %v4648, %v4675
    %v4677 = vpop.f32.mrf.mxu0
    %4678 = vdwg.mxu0
    %4679 = vmatpush.bf16.msra.mxu0 %v2774
    %4680 = vmatpush.bf16.msra.mxu0 %v2772
    %4681 = vmatpush.bf16.msra.mxu0 %v2770
    %4682 = vmatpush.bf16.msra.mxu0 %v2768
    %4683 = vmatpush.bf16.msra.mxu0 %v2766
    %4684 = vmatpush.bf16.msra.mxu0 %v2764
    %4685 = vmatpush.bf16.msra.mxu0 %v2762
    %4686 = vmatpush.bf16.msra.mxu0 %v2760
    %4687 = vmatmul.bf16.gmra.mxu0 %v872
    %v4688 = vpop.f32.mrf.mxu0
    %v4689 = vadd.f32 %v4661, %v4688
    %v4690 = vpop.f32.mrf.mxu0
    %v4691 = vadd.f32 %v4663, %v4690
    %4692 = vmatmul.bf16.gmra.mxu0 %v899
    %v4693 = vpop.f32.mrf.mxu0
    %v4694 = vadd.f32 %v4666, %v4693
    %v4695 = vpop.f32.mrf.mxu0
    %v4696 = vadd.f32 %v4668, %v4695
    %4697 = vmatmul.bf16.gmra.mxu0 %v926
    %v4698 = vpop.f32.mrf.mxu0
    %v4699 = vadd.f32 %v4671, %v4698
    %v4700 = vpop.f32.mrf.mxu0
    %v4701 = vadd.f32 %v4673, %v4700
    %4702 = vmatmul.bf16.gmra.mxu0 %v953
    %v4703 = vpop.f32.mrf.mxu0
    %v4704 = vadd.f32 %v4676, %v4703
    %v4705 = vpop.f32.mrf.mxu0
    %4706 = vdwg.mxu0
    %4707 = vmatpush.bf16.msra.mxu0 %v2790
    %4708 = vmatpush.bf16.msra.mxu0 %v2788
    %4709 = vmatpush.bf16.msra.mxu0 %v2786
    %4710 = vmatpush.bf16.msra.mxu0 %v2784
    %4711 = vmatpush.bf16.msra.mxu0 %v2782
    %4712 = vmatpush.bf16.msra.mxu0 %v2780
    %4713 = vmatpush.bf16.msra.mxu0 %v2778
    %4714 = vmatpush.bf16.msra.mxu0 %v2776
    %4715 = vmatmul.bf16.gmra.mxu0 %v873
    %v4716 = vpop.f32.mrf.mxu0
    %v4717 = vadd.f32 %v4689, %v4716
    %v4718 = vpop.f32.mrf.mxu0
    %v4719 = vadd.f32 %v4691, %v4718
    %4720 = vmatmul.bf16.gmra.mxu0 %v900
    %v4721 = vpop.f32.mrf.mxu0
    %v4722 = vadd.f32 %v4694, %v4721
    %v4723 = vpop.f32.mrf.mxu0
    %v4724 = vadd.f32 %v4696, %v4723
    %4725 = vmatmul.bf16.gmra.mxu0 %v927
    %v4726 = vpop.f32.mrf.mxu0
    %v4727 = vadd.f32 %v4699, %v4726
    %v4728 = vpop.f32.mrf.mxu0
    %v4729 = vadd.f32 %v4701, %v4728
    %4730 = vmatmul.bf16.gmra.mxu0 %v954
    %v4731 = vpop.f32.mrf.mxu0
    %v4732 = vadd.f32 %v4704, %v4731
    %v4733 = vpop.f32.mrf.mxu0
    %4734 = vdwg.mxu0
    %v4735 = vmax.f32 %v3961, 0.0
    %v4736 = vmax.f32 %v4717, 0.0
    %v4737 = vmax.f32 %v3963, 0.0
    %v4738 = vmax.f32 %v4719, 0.0
    %v4739 = vmax.f32 %v3966, 0.0
    %v4740 = vmax.f32 %v4722, 0.0
    %v4741 = vmax.f32 %v3968, 0.0
    %v4742 = vmax.f32 %v4724, 0.0
    %v4743 = vmax.f32 %v3971, 0.0
    %v4744 = vmax.f32 %v4727, 0.0
    %v4745 = vmax.f32 %v3973, 0.0
    %v4746 = vmax.f32 %v4729, 0.0
    %v4747 = vmax.f32 %v3976, 0.0
    %v4748 = vmax.f32 %v4732, 0.0
    %v4749 = vld [vmem:[%s3] sm:$0x3]
    %vm4750 = vcmask 441344
    %v4752 = vsel %vm4750, %v4749, 0
    %vm4754 = vcmask 1045504
    %v4756 = vsel %vm4754, %v4747, 0
    %v4759 = vsel %vm4754, %v4748, 0
    %4761 = vmatpush.msra.mxu0 0.0
    %4762 = vmatpush.msra.mxu0 0.0
    %4763 = vmatpush.msra.mxu0 0.0
    %4764 = vmatpush.msra.mxu0 0.0
    %4765 = vmatpush.msra.mxu0 0.0
    %4766 = vmatpush.msra.mxu0 0.0
    %4767 = vmatpush.msra.mxu0 0.0
    %4768 = vmatpush.msra.mxu0 0.0
    %4769 = vmatpush.msra.mxu0 0.0
    %4770 = vmatpush.msra.mxu0 %v4756
    %4771 = vmatpush.msra.mxu0 %v4745
    %4772 = vmatpush.msra.mxu0 %v4743
    %4773 = vmatpush.msra.mxu0 %v4741
    %4774 = vmatpush.msra.mxu0 %v4739
    %4775 = vmatpush.msra.mxu0 %v4737
    %4776 = vmatpush.msra.mxu0 %v4735
    %4777 = vmatmul.f32.gmra.mxu0 %v4752
    %v4778 = vpop.f32.mrf.mxu0
    %v4779 = vadd.f32 0.0, %v4778
    %4780 = vdwg.mxu0
    %4781 = vmatpush.msra.mxu0 0.0
    %4782 = vmatpush.msra.mxu0 0.0
    %4783 = vmatpush.msra.mxu0 0.0
    %4784 = vmatpush.msra.mxu0 0.0
    %4785 = vmatpush.msra.mxu0 0.0
    %4786 = vmatpush.msra.mxu0 0.0
    %4787 = vmatpush.msra.mxu0 0.0
    %4788 = vmatpush.msra.mxu0 0.0
    %4789 = vmatpush.msra.mxu0 0.0
    %4790 = vmatpush.msra.mxu0 %v4759
    %4791 = vmatpush.msra.mxu0 %v4746
    %4792 = vmatpush.msra.mxu0 %v4744
    %4793 = vmatpush.msra.mxu0 %v4742
    %4794 = vmatpush.msra.mxu0 %v4740
    %4795 = vmatpush.msra.mxu0 %v4738
    %4796 = vmatpush.msra.mxu0 %v4736
    %4797 = vmatmul.f32.gmra.mxu0 %v4752
    %v4798 = vpop.f32.mrf.mxu0
    %v4799 = vadd.f32 0.0, %v4798
    %4800 = vdwg.mxu0
    %v4801 = vpack.c.bf16 %v4779, %v4779
    %v4802 = vpack.c.bf16 %v4799, %v4799
    %v4803 = vld [vmem:[%s4] sm:$0xf]
    %v4804 = vld [vmem:[%s4 + $0x4] sm:$0xf]
    %v4805 = vld [vmem:[%s4 + $0x8] sm:$0xf]
    %v4806 = vld [vmem:[%s4 + $0xc] sm:$0xf]
    %v4807 = vld [vmem:[%s4 + $0x10] sm:$0xf]
    %v4808 = vld [vmem:[%s4 + $0x14] sm:$0xf]
    %v4809 = vld [vmem:[%s4 + $0x18] sm:$0xf]
    %v4810 = vld [vmem:[%s4 + $0x1c] sm:$0xf]
    %v4811 = vld [vmem:[%s4 + $0x20] sm:$0xf]
    %v4812 = vld [vmem:[%s4 + $0x24] sm:$0xf]
    %v4813 = vld [vmem:[%s4 + $0x28] sm:$0xf]
    %v4814 = vld [vmem:[%s4 + $0x2c] sm:$0xf]
    %v4815 = vld [vmem:[%s4 + $0x30] sm:$0xf]
    %v4816 = vld [vmem:[%s4 + $0x34] sm:$0xf]
    %v4817 = vld [vmem:[%s4 + $0x38] sm:$0xf]
    %v4818 = vld [vmem:[%s4 + $0x3c] sm:$0xf]
    %v4819 = vld [vmem:[%s4 + $0x40] sm:$0xf]
    %v4820 = vld [vmem:[%s4 + $0x44] sm:$0xf]
    %v4821 = vld [vmem:[%s4 + $0x48] sm:$0xf]
    %v4822 = vld [vmem:[%s4 + $0x4c] sm:$0xf]
    %v4823 = vld [vmem:[%s4 + $0x50] sm:$0xf]
    %v4824 = vld [vmem:[%s4 + $0x54] sm:$0xf]
    %v4825 = vld [vmem:[%s4 + $0x58] sm:$0xf]
    %v4826 = vld [vmem:[%s4 + $0x5c] sm:$0xf]
    %v4827 = vld [vmem:[%s4 + $0x60] sm:$0xf]
    %v4828 = vld [vmem:[%s4 + $0x64] sm:$0xf]
    %v4829 = vld [vmem:[%s4 + $0x68] sm:$0xf]
    %v4830 = vld [vmem:[%s4 + $0x6c] sm:$0xf]
    %v4831 = vld [vmem:[%s4 + $0x70] sm:$0xf]
    %v4832 = vld [vmem:[%s4 + $0x74] sm:$0xf]
    %v4833 = vld [vmem:[%s4 + $0x78] sm:$0xf]
    %v4834 = vld [vmem:[%s4 + $0x7c] sm:$0xf]
    %v4835 = vld [vmem:[%s5] sm:$0x1]
    %v4837 = vperm.slane %v4835, 0
    %v4871 = vunpack.c.l.b16 %v4803
    %v4872 = vunpack.c.l.b16 %v4804
    %v4873 = vunpack.c.l.b16 %v4805
    %v4874 = vunpack.c.l.b16 %v4806
    %v4875 = vunpack.c.l.b16 %v4807
    %v4876 = vunpack.c.l.b16 %v4808
    %v4877 = vunpack.c.l.b16 %v4809
    %v4878 = vunpack.c.l.b16 %v4810
    %v4879 = vunpack.c.l.b16 %v4811
    %v4880 = vunpack.c.l.b16 %v4812
    %v4881 = vunpack.c.l.b16 %v4813
    %v4882 = vunpack.c.l.b16 %v4814
    %v4883 = vunpack.c.l.b16 %v4815
    %v4884 = vunpack.c.l.b16 %v4816
    %v4885 = vunpack.c.l.b16 %v4817
    %v4886 = vunpack.c.l.b16 %v4818
    %v4887 = vunpack.c.l.b16 %v4819
    %v4888 = vunpack.c.l.b16 %v4820
    %v4889 = vunpack.c.l.b16 %v4821
    %v4890 = vunpack.c.l.b16 %v4822
    %v4891 = vunpack.c.l.b16 %v4823
    %v4892 = vunpack.c.l.b16 %v4824
    %v4893 = vunpack.c.l.b16 %v4825
    %v4894 = vunpack.c.l.b16 %v4826
    %v4895 = vunpack.c.l.b16 %v4827
    %v4896 = vunpack.c.l.b16 %v4828
    %v4897 = vunpack.c.l.b16 %v4829
    %v4898 = vunpack.c.l.b16 %v4830
    %v4899 = vunpack.c.l.b16 %v4831
    %v4900 = vunpack.c.l.b16 %v4832
    %v4901 = vunpack.c.l.b16 %v4833
    %v4902 = vunpack.c.l.b16 %v4834
    %v4903 = vpack.c.b16 %v4872, %v4871
    %v4904 = vpack.c.b16 %v4874, %v4873
    %v4905 = vpack.c.b16 %v4876, %v4875
    %v4906 = vpack.c.b16 %v4878, %v4877
    %v4907 = vpack.c.b16 %v4880, %v4879
    %v4908 = vpack.c.b16 %v4882, %v4881
    %v4909 = vpack.c.b16 %v4884, %v4883
    %v4910 = vpack.c.b16 %v4886, %v4885
    %v4911 = vpack.c.b16 %v4888, %v4887
    %v4912 = vpack.c.b16 %v4890, %v4889
    %v4913 = vpack.c.b16 %v4892, %v4891
    %v4914 = vpack.c.b16 %v4894, %v4893
    %v4915 = vpack.c.b16 %v4896, %v4895
    %v4916 = vpack.c.b16 %v4898, %v4897
    %v4917 = vpack.c.b16 %v4900, %v4899
    %v4918 = vpack.c.b16 %v4902, %v4901
    %4935 = vmatpush.bf16.msra.mxu0 %v4910
    %4936 = vmatpush.bf16.msra.mxu0 %v4909
    %4937 = vmatpush.bf16.msra.mxu0 %v4908
    %4938 = vmatpush.bf16.msra.mxu0 %v4907
    %4939 = vmatpush.bf16.msra.mxu0 %v4906
    %4940 = vmatpush.bf16.msra.mxu0 %v4905
    %4941 = vmatpush.bf16.msra.mxu0 %v4904
    %4942 = vmatpush.bf16.msra.mxu0 %v4903
    %4943 = vmatmul.bf16.gmra.mxu0 %v4801
    %v4944 = vpop.f32.mrf.mxu0
    %v4945 = vadd.f32 %v4837, %v4944
    %v4946 = vpop.f32.mrf.mxu0
    %4947 = vdwg.mxu0
    %4948 = vmatpush.bf16.msra.mxu0 %v4918
    %4949 = vmatpush.bf16.msra.mxu0 %v4917
    %4950 = vmatpush.bf16.msra.mxu0 %v4916
    %4951 = vmatpush.bf16.msra.mxu0 %v4915
    %4952 = vmatpush.bf16.msra.mxu0 %v4914
    %4953 = vmatpush.bf16.msra.mxu0 %v4913
    %4954 = vmatpush.bf16.msra.mxu0 %v4912
    %4955 = vmatpush.bf16.msra.mxu0 %v4911
    %4956 = vmatmul.bf16.gmra.mxu0 %v4802
    %v4957 = vpop.f32.mrf.mxu0
    %v4958 = vadd.f32 %v4945, %v4957
    %v4959 = vpop.f32.mrf.mxu0
    %4960 = vdwg.mxu0
    %4961 = vst [vmem:[#allocation2] sm:$0x3] %v4958
    // Predicated region
    $region26: #{shape_encoder_forward.5} parent=1 // pred_check
      _
    $region27: #{shape_encoder_forward.5} parent=1 // pred_check_branch
      %4963 = sbr.rel (0) target = $region29
    $region28: #{shape_encoder_forward.5} parent=1 // pred_region
      %4965 = vsyncadd [#allocation3], 0
      %s4967 = sshll.u32 [#allocation2], 4
      %s4968 = int_to_ptr.vmem [resolvable:$true] %s4967
      %s4969 = sshll.u32 %s6, 4
      %s4970 = int_to_ptr.hbm [resolvable:$true] %s4969
      %4972 = dma.vmem_to_hbm [thread:$0]  %s4968, 32, %s4970, [#allocation3]
    $region29: #{shape_encoder_forward.5} parent=1 // pred_fallthru
      _
    // Predicated region
    $region30: #{shape_encoder_forward.5} parent=1 // pred_check
      _
    $region31: #{shape_encoder_forward.5} parent=1 // pred_check_branch
      %4974 = sbr.rel (0) target = $region33
    $region32: #{shape_encoder_forward.5} parent=1 // pred_region
      %4976 = dma.done [#allocation3], 32
    $region33: #{shape_encoder_forward.5} parent=1 // pred_fallthru
      _
    %4977 = vsyncpa [#allocation3], 1

</llo_original>
